<compile_context>
chip_gen: v7x
topology: tpu7x:2x2x1
jax: 0.10.0
libtpu: 0.0.40
codegen_flags: <defaults>
</compile_context>

<pallas_src>
import numpy as np
import jax
import jax.numpy as jnp
from jax.experimental import pallas as pl
from jax.experimental.pallas import tpu as pltpu


# ---------------------------------------------------------------------------
# Clenshaw-Curtis quadrature weights / abscissae (exactly as in UMNN's
# compute_cc_weights) -- pure numpy glue, computed once at trace time.
# ---------------------------------------------------------------------------
def _cc_weights_and_steps(nb_steps):
    lam = np.arange(0, nb_steps + 1, 1, dtype=np.float64).reshape(-1, 1)
    lam = np.cos((lam @ lam.T) * np.pi / nb_steps)
    lam[:, 0] = 0.5
    lam[:, -1] = 0.5 * lam[:, -1]
    lam = lam * 2.0 / nb_steps
    W = np.arange(0, nb_steps + 1, 1, dtype=np.float64).reshape(-1, 1)
    W[np.arange(1, nb_steps + 1, 2)] = 0
    W = 2.0 / (1.0 - W ** 2)
    W[0] = 1
    W[np.arange(1, nb_steps + 1, 2)] = 0
    cc_weights = (lam.T @ W).astype(np.float32)                  # (nb_steps+1, 1)
    steps = np.cos(np.arange(0, nb_steps + 1, 1, dtype=np.float64).reshape(-1, 1)
                   * np.pi / nb_steps).astype(np.float32)        # (nb_steps+1, 1)
    return cc_weights, steps


# ---------------------------------------------------------------------------
# Pallas kernel factory: one batch tile of TB lanes per grid step.
# ---------------------------------------------------------------------------
def _make_inner_umnn_kernel(T1, TB, d_x, steps_np, cc_np):
    step_fac = [float(steps_np[t, 0] + 1.0) for t in range(T1)]   # (cos(t*pi/T) + 1), static
    cc = [float(cc_np[t, 0]) for t in range(T1)]                  # CC weights, static

    def kernel(z_ref, s_ref, w1_ref, b1_ref, w2_ref, b2_ref, w3_ref, b3_ref,
               out_ref, h1_buf):
        # z_ref  : (in_d, TB)   columns = [x0 ; h] per batch element
        # s_ref  : (in_d, TB)   columns = [(xT-x0)/2 ; 0] per batch element
        # w*_ref : transposed weights (out_features, in_features); biases as column vectors
        # w3_ref : (8, H2) -- row 0 is the real W3^T, rows 1..7 zero (keeps the matmul M>=8)
        # out_ref: (d_x, TB)
        # h1_buf : (H1, T1*TB) VMEM scratch -- layer-1 activations of every quadrature point
        zT = z_ref[...]
        sT = s_ref[...]
        w1 = w1_ref[...]

        # Layer 1, factored over the quadrature axis:  h1(t) = relu(pre1 + (steps[t]+1)*sfac)
        pre1 = jnp.dot(w1, zT, preferred_element_type=jnp.float32) + b1_ref[...]   # (H1, TB)
        sfac = jnp.dot(w1, sT, preferred_element_type=jnp.float32)                 # (H1, TB)
        for t in range(T1):
            # Static, lane-aligned slice store (t*TB is a multiple of 128).
            h1_buf[:, t * TB:(t + 1) * TB] = jnp.maximum(pre1 + step_fac[t] * sfac, 0.0)

        # Layers 2/3 over all T1*TB quadrature points at once (points on the lane axis),
        # as single wide MXU matmuls.
        h1 = h1_buf[...]                                                            # (H1, T1*TB)
        h2 = jnp.maximum(
            jnp.dot(w2_ref[...], h1, preferred_element_type=jnp.float32) + b2_ref[...], 0.0)
        o8 = jnp.dot(w3_ref[...], h2, preferred_element_type=jnp.float32)           # (8, T1*TB)
        o = o8[0:1, :] + b3_ref[...]                                                # (1, T1*TB)

        # PositiveIntegrandNN tail: ELU(o) + 1  (lane-dense, exp argument clamped so padded
        # lanes stay finite).
        dz = jnp.where(o > 0.0, o, jnp.exp(jnp.minimum(o, 0.0)) - 1.0) + 1.0

        # Clenshaw-Curtis reduction over the quadrature axis: static, lane-aligned slices,
        # accumulated into a few independent partials to keep the VALU dependency chain short.
        n_acc = min(4, T1)
        partial = [cc[a] * dz[:, a * TB:(a + 1) * TB] for a in range(n_acc)]
        for t in range(n_acc, T1):
            a = t % n_acc
            partial[a] = partial[a] + cc[t] * dz[:, t * TB:(t + 1) * TB]            # (1, TB)
        acc = partial[0]
        for a in range(1, n_acc):
            acc = acc + partial[a]

        # out = z_est * (xT - x0)/2 ; the scale rows are the first d_x rows of s_ref.
        out_ref[...] = acc * sT[0:d_x, :]

    return kernel


# ---------------------------------------------------------------------------
# Wrapper: module glue + tiling + pallas_call.
# ---------------------------------------------------------------------------
def inner_umnn_forward(x, h, params, nb_steps=50):
    w1, b1, w2, b2, w3, b3 = params
    B, d_x = x.shape
    d_h = h.shape[1]
    in_d = d_x + d_h
    H1 = w1.shape[1]
    H2 = w2.shape[1]
    T1 = nb_steps + 1
    cc_np, steps_np = _cc_weights_and_steps(nb_steps)

    # ---- InnerUMNN glue (tiny O(B*d) XLA ops) ------------------------------
    xmax = jnp.max(x) + 10.0                        # xfinal = xmax everywhere
    scale = (xmax - x) * 0.5                        # (B, d_x) == (xT - x0)/2

    # Batch tile width (lane axis), padded batch.
    TB = min(512, 128 * ((B + 127) // 128))
    B_pad = TB * ((B + TB - 1) // TB)
    pad = B_pad - B

    zT = jnp.concatenate([x, h], axis=1).astype(jnp.float32).T                       # (in_d, B)
    sT = jnp.concatenate([scale, jnp.zeros((B, d_h), x.dtype)], axis=1).astype(jnp.float32).T
    if pad:
        zT = jnp.pad(zT, ((0, 0), (0, pad)))        # zero pads -> finite dz, zero scale -> 0 out
        sT = jnp.pad(sT, ((0, 0), (0, pad)))

    # Transposed parameters (out_features on sublanes), all f32.
    w1T = w1.T.astype(jnp.float32)                                                   # (H1, in_d)
    b1T = jnp.reshape(b1, (-1, 1)).astype(jnp.float32)                               # (H1, 1)
    w2T = w2.T.astype(jnp.float32)                                                   # (H2, H1)
    b2T = jnp.reshape(b2, (-1, 1)).astype(jnp.float32)                               # (H2, 1)
    w3p = jnp.zeros((8, H2), jnp.float32).at[0, :].set(
        jnp.reshape(w3, (-1,)).astype(jnp.float32))                                  # (8, H2)
    b3r = jnp.reshape(b3, (1, 1)).astype(jnp.float32)                                # (1, 1)

    kernel = _make_inner_umnn_kernel(T1, TB, d_x, steps_np, cc_np)

    tiled = lambda rows: pl.BlockSpec((rows, TB), lambda i: (0, i))
    const = lambda shape: pl.BlockSpec(shape, lambda i: (0, 0))

    outT = pl.pallas_call(
        kernel,
        out_shape=jax.ShapeDtypeStruct((d_x, B_pad), jnp.float32),
        grid=(B_pad // TB,),
        in_specs=[
            tiled(in_d),          # zT      (in_d, B_pad)
            tiled(in_d),          # sT      (in_d, B_pad)
            const((H1, in_d)),    # w1T
            const((H1, 1)),       # b1T
            const((H2, H1)),      # w2T
            const((H2, 1)),       # b2T
            const((8, H2)),       # w3 (row-padded)
            const((1, 1)),        # b3
        ],
        out_specs=pl.BlockSpec((d_x, TB), lambda i: (0, i)),
        scratch_shapes=[pltpu.VMEM((H1, T1 * TB), jnp.float32)],
        compiler_params=pltpu.CompilerParams(
            dimension_semantics=("parallel",),
            vmem_limit_bytes=48 * 1024 * 1024,
        ),
    )(zT, sT, w1T, b1T, w2T, b2T, w3p, b3r)

    return outT.T[:B, :]                                                             # (B, d_x)


# ---------------------------------------------------------------------------
# Deterministic parameter init (PyTorch-Linear-style uniform bounds) and a
# pure-JAX reference for the correctness check.
# ---------------------------------------------------------------------------
def init_params(key, in_d, hidden_layers):
    hs = [in_d] + list(hidden_layers) + [1]
    params = []
    for h0, h1 in zip(hs, hs[1:]):
        key, k1, k2 = jax.random.split(key, 3)
        bound = 1.0 / np.sqrt(h0)
        W = jax.random.uniform(k1, (h0, h1), jnp.float32, -bound, bound)  # stored (in, out)
        b = jax.random.uniform(k2, (1, h1), jnp.float32, -bound, bound)
        params.extend([W, b])
    return tuple(params)


def reference(x, h, params, nb_steps=50):
    w1, b1, w2, b2, w3, b3 = params
    B, d_x = x.shape
    d_h = h.shape[1]
    T1 = nb_steps + 1
    cc_np, steps_np = _cc_weights_and_steps(nb_steps)
    cc = jnp.asarray(cc_np)
    steps = jnp.asarray(steps_np)

    xmax = jnp.max(x) + 10.0
    xfinal = jnp.zeros_like(x) + xmax
    x0, xT = x, xfinal
    X_steps = x0[:, None, :] + (xT[:, None, :] - x0[:, None, :]) * (steps[None, :, :] + 1.0) / 2.0
    X_flat = X_steps.reshape(B * T1, d_x)
    h_flat = jnp.broadcast_to(h[:, None, :], (B, T1, d_h)).reshape(B * T1, d_h)
    Z = jnp.concatenate([X_flat, h_flat], axis=1)

    hp = jax.lax.Precision.HIGHEST
    h1 = jnp.maximum(jnp.dot(Z, w1, precision=hp) + b1, 0.0)
    h2 = jnp.maximum(jnp.dot(h1, w2, precision=hp) + b2, 0.0)
    o = jnp.dot(h2, w3, precision=hp) + b3
    dz = jnp.where(o > 0.0, o, jnp.exp(jnp.minimum(o, 0.0)) - 1.0) + 1.0
    dzs = dz.reshape(B, T1, 1) * cc[None, :, :]
    z_est = dzs.sum(1)                                                   # (B, 1)
    return z_est * (xT - x0) / 2.0


if __name__ == "__main__":
    B, d_x, d_h = 8, 1, 7          # Integrand sees cat((x, h), 1) -> in_d = 8
    in_d = d_x + d_h
    hidden_layers = [32, 32]
    nb_steps = 50                  # module default

    key = jax.random.PRNGKey(0)
    kx, kh, kp = jax.random.split(key, 3)
    x = jax.random.normal(kx, (B, d_x), jnp.float32)
    h = jax.random.normal(kh, (B, d_h), jnp.float32)
    params = init_params(kp, in_d, hidden_layers)

    fwd = jax.jit(inner_umnn_forward, static_argnums=(3,))
    out = jax.block_until_ready(fwd(x, h, params, nb_steps))

    ref = reference(x, h, params, nb_steps)
    assert out.shape == (B, d_x)
    np.testing.assert_allclose(np.asarray(out), np.asarray(ref), rtol=1e-4, atol=1e-4)
    print("KERNEL_OK")
</pallas_src>

<mosaic_0001>
module attributes {stable_mosaic.version = 11 : i64} {
  func.func @kernel(%arg0: i32, %arg1: memref<8x128xf32, #tpu.memory_space<vmem>>, %arg2: memref<8x128xf32, #tpu.memory_space<vmem>>, %arg3: memref<32x8xf32, #tpu.memory_space<vmem>>, %arg4: memref<32x1xf32, #tpu.memory_space<vmem>>, %arg5: memref<32x32xf32, #tpu.memory_space<vmem>>, %arg6: memref<32x1xf32, #tpu.memory_space<vmem>>, %arg7: memref<8x32xf32, #tpu.memory_space<vmem>>, %arg8: memref<1x1xf32, #tpu.memory_space<vmem>>, %arg9: memref<1x128xf32, #tpu.memory_space<vmem>>, %arg10: memref<32x6528xf32, #tpu.memory_space<vmem>>) attributes {dimension_semantics = [#tpu.dimension_semantics<parallel>], iteration_bounds = array<i64: 1>, scalar_prefetch = 0 : i64, scratch_operands = 1 : i64, tpu.core_type = #tpu.core_type<tc>, window_params = [{transform_indices = @transform_0, window_bounds = array<i64: 8, 128>}, {transform_indices = @transform_1, window_bounds = array<i64: 8, 128>}, {pipeline_mode = #tpu.pipeline_mode<synchronous>, transform_indices = @transform_2, window_bounds = array<i64: 32, 8>}, {pipeline_mode = #tpu.pipeline_mode<synchronous>, transform_indices = @transform_3, window_bounds = array<i64: 32, 1>}, {pipeline_mode = #tpu.pipeline_mode<synchronous>, transform_indices = @transform_4, window_bounds = array<i64: 32, 32>}, {pipeline_mode = #tpu.pipeline_mode<synchronous>, transform_indices = @transform_5, window_bounds = array<i64: 32, 1>}, {pipeline_mode = #tpu.pipeline_mode<synchronous>, transform_indices = @transform_6, window_bounds = array<i64: 8, 32>}, {pipeline_mode = #tpu.pipeline_mode<synchronous>, transform_indices = @transform_7, window_bounds = array<i64: 1, 1>}, {transform_indices = @transform_8, window_bounds = array<i64: 1, 128>}]} {
    %c0 = arith.constant 0 : index
    %c0_0 = arith.constant 0 : index
    %0 = vector.load %arg1[%c0, %c0_0] : memref<8x128xf32, #tpu.memory_space<vmem>>, vector<8x128xf32>
    %c0_1 = arith.constant 0 : index
    %c0_2 = arith.constant 0 : index
    %1 = vector.load %arg2[%c0_1, %c0_2] : memref<8x128xf32, #tpu.memory_space<vmem>>, vector<8x128xf32>
    %c0_3 = arith.constant 0 : index
    %c0_4 = arith.constant 0 : index
    %2 = vector.load %arg3[%c0_3, %c0_4] : memref<32x8xf32, #tpu.memory_space<vmem>>, vector<32x8xf32>
    %cst = arith.constant dense<0.000000e+00> : vector<32x128xf32>
    %3 = tpu.matmul %2, %0, %cst {dimension_numbers = #tpu.dot_dimension_numbers<[1], [0], [0], [1], [0, 0, 1, 1], [], []>} : vector<32x8xf32>, vector<8x128xf32>, vector<32x128xf32> -> vector<32x128xf32>
    %c0_5 = arith.constant 0 : index
    %c0_6 = arith.constant 0 : index
    %4 = vector.load %arg4[%c0_5, %c0_6] : memref<32x1xf32, #tpu.memory_space<vmem>>, vector<32x1xf32>
    %5 = vector.broadcast %4 : vector<32x1xf32> to vector<32x128xf32>
    %6 = arith.addf %3, %5 : vector<32x128xf32>
    %cst_7 = arith.constant dense<0.000000e+00> : vector<32x128xf32>
    %7 = tpu.matmul %2, %1, %cst_7 {dimension_numbers = #tpu.dot_dimension_numbers<[1], [0], [0], [1], [0, 0, 1, 1], [], []>} : vector<32x8xf32>, vector<8x128xf32>, vector<32x128xf32> -> vector<32x128xf32>
    %cst_8 = arith.constant 2.000000e+00 : f32
    %8 = vector.broadcast %cst_8 : f32 to vector<32x128xf32>
    %9 = arith.mulf %8, %7 : vector<32x128xf32>
    %10 = arith.addf %6, %9 : vector<32x128xf32>
    %cst_9 = arith.constant 0.000000e+00 : f32
    %11 = vector.broadcast %cst_9 : f32 to vector<32x128xf32>
    %12 = arith.maximumf %10, %11 : vector<32x128xf32>
    %c0_10 = arith.constant 0 : index
    %c0_11 = arith.constant 0 : index
    %13 = vector.load %arg10[%c0_10, %c0_11] : memref<32x6528xf32, #tpu.memory_space<vmem>>, vector<32x128xf32>
    tpu.vector_store %arg10[%c0_10, %c0_11], %12 {strides = array<i32>} : memref<32x6528xf32, #tpu.memory_space<vmem>>, vector<32x128xf32>,
    %cst_12 = arith.constant 1.99802673 : f32
    %14 = vector.broadcast %cst_12 : f32 to vector<32x128xf32>
    %15 = arith.mulf %14, %7 : vector<32x128xf32>
    %16 = arith.addf %6, %15 : vector<32x128xf32>
    %cst_13 = arith.constant 0.000000e+00 : f32
    %17 = vector.broadcast %cst_13 : f32 to vector<32x128xf32>
    %18 = arith.maximumf %16, %17 : vector<32x128xf32>
    %c0_14 = arith.constant 0 : index
    %c128 = arith.constant 128 : index
    %19 = vector.load %arg10[%c0_14, %c128] : memref<32x6528xf32, #tpu.memory_space<vmem>>, vector<32x128xf32>
    tpu.vector_store %arg10[%c0_14, %c128], %18 {strides = array<i32>} : memref<32x6528xf32, #tpu.memory_space<vmem>>, vector<32x128xf32>,
    %cst_15 = arith.constant 1.99211478 : f32
    %20 = vector.broadcast %cst_15 : f32 to vector<32x128xf32>
    %21 = arith.mulf %20, %7 : vector<32x128xf32>
    %22 = arith.addf %6, %21 : vector<32x128xf32>
    %cst_16 = arith.constant 0.000000e+00 : f32
    %23 = vector.broadcast %cst_16 : f32 to vector<32x128xf32>
    %24 = arith.maximumf %22, %23 : vector<32x128xf32>
    %c0_17 = arith.constant 0 : index
    %c256 = arith.constant 256 : index
    %25 = vector.load %arg10[%c0_17, %c256] : memref<32x6528xf32, #tpu.memory_space<vmem>>, vector<32x128xf32>
    tpu.vector_store %arg10[%c0_17, %c256], %24 {strides = array<i32>} : memref<32x6528xf32, #tpu.memory_space<vmem>>, vector<32x128xf32>,
    %cst_18 = arith.constant 1.98228717 : f32
    %26 = vector.broadcast %cst_18 : f32 to vector<32x128xf32>
    %27 = arith.mulf %26, %7 : vector<32x128xf32>
    %28 = arith.addf %6, %27 : vector<32x128xf32>
    %cst_19 = arith.constant 0.000000e+00 : f32
    %29 = vector.broadcast %cst_19 : f32 to vector<32x128xf32>
    %30 = arith.maximumf %28, %29 : vector<32x128xf32>
    %c0_20 = arith.constant 0 : index
    %c384 = arith.constant 384 : index
    %31 = vector.load %arg10[%c0_20, %c384] : memref<32x6528xf32, #tpu.memory_space<vmem>>, vector<32x128xf32>
    tpu.vector_store %arg10[%c0_20, %c384], %30 {strides = array<i32>} : memref<32x6528xf32, #tpu.memory_space<vmem>>, vector<32x128xf32>,
    %cst_21 = arith.constant 1.96858311 : f32
    %32 = vector.broadcast %cst_21 : f32 to vector<32x128xf32>
    %33 = arith.mulf %32, %7 : vector<32x128xf32>
    %34 = arith.addf %6, %33 : vector<32x128xf32>
    %cst_22 = arith.constant 0.000000e+00 : f32
    %35 = vector.broadcast %cst_22 : f32 to vector<32x128xf32>
    %36 = arith.maximumf %34, %35 : vector<32x128xf32>
    %c0_23 = arith.constant 0 : index
    %c512 = arith.constant 512 : index
    %37 = vector.load %arg10[%c0_23, %c512] : memref<32x6528xf32, #tpu.memory_space<vmem>>, vector<32x128xf32>
    tpu.vector_store %arg10[%c0_23, %c512], %36 {strides = array<i32>} : memref<32x6528xf32, #tpu.memory_space<vmem>>, vector<32x128xf32>,
    %cst_24 = arith.constant 1.95105648 : f32
    %38 = vector.broadcast %cst_24 : f32 to vector<32x128xf32>
    %39 = arith.mulf %38, %7 : vector<32x128xf32>
    %40 = arith.addf %6, %39 : vector<32x128xf32>
    %cst_25 = arith.constant 0.000000e+00 : f32
    %41 = vector.broadcast %cst_25 : f32 to vector<32x128xf32>
    %42 = arith.maximumf %40, %41 : vector<32x128xf32>
    %c0_26 = arith.constant 0 : index
    %c640 = arith.constant 640 : index
    %43 = vector.load %arg10[%c0_26, %c640] : memref<32x6528xf32, #tpu.memory_space<vmem>>, vector<32x128xf32>
    tpu.vector_store %arg10[%c0_26, %c640], %42 {strides = array<i32>} : memref<32x6528xf32, #tpu.memory_space<vmem>>, vector<32x128xf32>,
    %cst_27 = arith.constant 1.92977643 : f32
    %44 = vector.broadcast %cst_27 : f32 to vector<32x128xf32>
    %45 = arith.mulf %44, %7 : vector<32x128xf32>
    %46 = arith.addf %6, %45 : vector<32x128xf32>
    %cst_28 = arith.constant 0.000000e+00 : f32
    %47 = vector.broadcast %cst_28 : f32 to vector<32x128xf32>
    %48 = arith.maximumf %46, %47 : vector<32x128xf32>
    %c0_29 = arith.constant 0 : index
    %c768 = arith.constant 768 : index
    %49 = vector.load %arg10[%c0_29, %c768] : memref<32x6528xf32, #tpu.memory_space<vmem>>, vector<32x128xf32>
    tpu.vector_store %arg10[%c0_29, %c768], %48 {strides = array<i32>} : memref<32x6528xf32, #tpu.memory_space<vmem>>, vector<32x128xf32>,
    %cst_30 = arith.constant 1.90482712 : f32
    %50 = vector.broadcast %cst_30 : f32 to vector<32x128xf32>
    %51 = arith.mulf %50, %7 : vector<32x128xf32>
    %52 = arith.addf %6, %51 : vector<32x128xf32>
    %cst_31 = arith.constant 0.000000e+00 : f32
    %53 = vector.broadcast %cst_31 : f32 to vector<32x128xf32>
    %54 = arith.maximumf %52, %53 : vector<32x128xf32>
    %c0_32 = arith.constant 0 : index
    %c896 = arith.constant 896 : index
    %55 = vector.load %arg10[%c0_32, %c896] : memref<32x6528xf32, #tpu.memory_space<vmem>>, vector<32x128xf32>
    tpu.vector_store %arg10[%c0_32, %c896], %54 {strides = array<i32>} : memref<32x6528xf32, #tpu.memory_space<vmem>>, vector<32x128xf32>,
    %cst_33 = arith.constant 1.87630665 : f32
    %56 = vector.broadcast %cst_33 : f32 to vector<32x128xf32>
    %57 = arith.mulf %56, %7 : vector<32x128xf32>
    %58 = arith.addf %6, %57 : vector<32x128xf32>
    %cst_34 = arith.constant 0.000000e+00 : f32
    %59 = vector.broadcast %cst_34 : f32 to vector<32x128xf32>
    %60 = arith.maximumf %58, %59 : vector<32x128xf32>
    %c0_35 = arith.constant 0 : index
    %c1024 = arith.constant 1024 : index
    %61 = vector.load %arg10[%c0_35, %c1024] : memref<32x6528xf32, #tpu.memory_space<vmem>>, vector<32x128xf32>
    tpu.vector_store %arg10[%c0_35, %c1024], %60 {strides = array<i32>} : memref<32x6528xf32, #tpu.memory_space<vmem>>, vector<32x128xf32>,
    %cst_36 = arith.constant 1.84432793 : f32
    %62 = vector.broadcast %cst_36 : f32 to vector<32x128xf32>
    %63 = arith.mulf %62, %7 : vector<32x128xf32>
    %64 = arith.addf %6, %63 : vector<32x128xf32>
    %cst_37 = arith.constant 0.000000e+00 : f32
    %65 = vector.broadcast %cst_37 : f32 to vector<32x128xf32>
    %66 = arith.maximumf %64, %65 : vector<32x128xf32>
    %c0_38 = arith.constant 0 : index
    %c1152 = arith.constant 1152 : index
    %67 = vector.load %arg10[%c0_38, %c1152] : memref<32x6528xf32, #tpu.memory_space<vmem>>, vector<32x128xf32>
    tpu.vector_store %arg10[%c0_38, %c1152], %66 {strides = array<i32>} : memref<32x6528xf32, #tpu.memory_space<vmem>>, vector<32x128xf32>,
    %cst_39 = arith.constant 1.80901694 : f32
    %68 = vector.broadcast %cst_39 : f32 to vector<32x128xf32>
    %69 = arith.mulf %68, %7 : vector<32x128xf32>
    %70 = arith.addf %6, %69 : vector<32x128xf32>
    %cst_40 = arith.constant 0.000000e+00 : f32
    %71 = vector.broadcast %cst_40 : f32 to vector<32x128xf32>
    %72 = arith.maximumf %70, %71 : vector<32x128xf32>
    %c0_41 = arith.constant 0 : index
    %c1280 = arith.constant 1280 : index
    %73 = vector.load %arg10[%c0_41, %c1280] : memref<32x6528xf32, #tpu.memory_space<vmem>>, vector<32x128xf32>
    tpu.vector_store %arg10[%c0_41, %c1280], %72 {strides = array<i32>} : memref<32x6528xf32, #tpu.memory_space<vmem>>, vector<32x128xf32>,
    %cst_42 = arith.constant 1.7705133 : f32
    %74 = vector.broadcast %cst_42 : f32 to vector<32x128xf32>
    %75 = arith.mulf %74, %7 : vector<32x128xf32>
    %76 = arith.addf %6, %75 : vector<32x128xf32>
    %cst_43 = arith.constant 0.000000e+00 : f32
    %77 = vector.broadcast %cst_43 : f32 to vector<32x128xf32>
    %78 = arith.maximumf %76, %77 : vector<32x128xf32>
    %c0_44 = arith.constant 0 : index
    %c1408 = arith.constant 1408 : index
    %79 = vector.load %arg10[%c0_44, %c1408] : memref<32x6528xf32, #tpu.memory_space<vmem>>, vector<32x128xf32>
    tpu.vector_store %arg10[%c0_44, %c1408], %78 {strides = array<i32>} : memref<32x6528xf32, #tpu.memory_space<vmem>>, vector<32x128xf32>,
    %cst_45 = arith.constant 1.72896862 : f32
    %80 = vector.broadcast %cst_45 : f32 to vector<32x128xf32>
    %81 = arith.mulf %80, %7 : vector<32x128xf32>
    %82 = arith.addf %6, %81 : vector<32x128xf32>
    %cst_46 = arith.constant 0.000000e+00 : f32
    %83 = vector.broadcast %cst_46 : f32 to vector<32x128xf32>
    %84 = arith.maximumf %82, %83 : vector<32x128xf32>
    %c0_47 = arith.constant 0 : index
    %c1536 = arith.constant 1536 : index
    %85 = vector.load %arg10[%c0_47, %c1536] : memref<32x6528xf32, #tpu.memory_space<vmem>>, vector<32x128xf32>
    tpu.vector_store %arg10[%c0_47, %c1536], %84 {strides = array<i32>} : memref<32x6528xf32, #tpu.memory_space<vmem>>, vector<32x128xf32>,
    %cst_48 = arith.constant 1.68454719 : f32
    %86 = vector.broadcast %cst_48 : f32 to vector<32x128xf32>
    %87 = arith.mulf %86, %7 : vector<32x128xf32>
    %88 = arith.addf %6, %87 : vector<32x128xf32>
    %cst_49 = arith.constant 0.000000e+00 : f32
    %89 = vector.broadcast %cst_49 : f32 to vector<32x128xf32>
    %90 = arith.maximumf %88, %89 : vector<32x128xf32>
    %c0_50 = arith.constant 0 : index
    %c1664 = arith.constant 1664 : index
    %91 = vector.load %arg10[%c0_50, %c1664] : memref<32x6528xf32, #tpu.memory_space<vmem>>, vector<32x128xf32>
    tpu.vector_store %arg10[%c0_50, %c1664], %90 {strides = array<i32>} : memref<32x6528xf32, #tpu.memory_space<vmem>>, vector<32x128xf32>,
    %cst_51 = arith.constant 1.63742399 : f32
    %92 = vector.broadcast %cst_51 : f32 to vector<32x128xf32>
    %93 = arith.mulf %92, %7 : vector<32x128xf32>
    %94 = arith.addf %6, %93 : vector<32x128xf32>
    %cst_52 = arith.constant 0.000000e+00 : f32
    %95 = vector.broadcast %cst_52 : f32 to vector<32x128xf32>
    %96 = arith.maximumf %94, %95 : vector<32x128xf32>
    %c0_53 = arith.constant 0 : index
    %c1792 = arith.constant 1792 : index
    %97 = vector.load %arg10[%c0_53, %c1792] : memref<32x6528xf32, #tpu.memory_space<vmem>>, vector<32x128xf32>
    tpu.vector_store %arg10[%c0_53, %c1792], %96 {strides = array<i32>} : memref<32x6528xf32, #tpu.memory_space<vmem>>, vector<32x128xf32>,
    %cst_54 = arith.constant 1.58778524 : f32
    %98 = vector.broadcast %cst_54 : f32 to vector<32x128xf32>
    %99 = arith.mulf %98, %7 : vector<32x128xf32>
    %100 = arith.addf %6, %99 : vector<32x128xf32>
    %cst_55 = arith.constant 0.000000e+00 : f32
    %101 = vector.broadcast %cst_55 : f32 to vector<32x128xf32>
    %102 = arith.maximumf %100, %101 : vector<32x128xf32>
    %c0_56 = arith.constant 0 : index
    %c1920 = arith.constant 1920 : index
    %103 = vector.load %arg10[%c0_56, %c1920] : memref<32x6528xf32, #tpu.memory_space<vmem>>, vector<32x128xf32>
    tpu.vector_store %arg10[%c0_56, %c1920], %102 {strides = array<i32>} : memref<32x6528xf32, #tpu.memory_space<vmem>>, vector<32x128xf32>,
    %cst_57 = arith.constant 1.5358268 : f32
    %104 = vector.broadcast %cst_57 : f32 to vector<32x128xf32>
    %105 = arith.mulf %104, %7 : vector<32x128xf32>
    %106 = arith.addf %6, %105 : vector<32x128xf32>
    %cst_58 = arith.constant 0.000000e+00 : f32
    %107 = vector.broadcast %cst_58 : f32 to vector<32x128xf32>
    %108 = arith.maximumf %106, %107 : vector<32x128xf32>
    %c0_59 = arith.constant 0 : index
    %c2048 = arith.constant 2048 : index
    %109 = vector.load %arg10[%c0_59, %c2048] : memref<32x6528xf32, #tpu.memory_space<vmem>>, vector<32x128xf32>
    tpu.vector_store %arg10[%c0_59, %c2048], %108 {strides = array<i32>} : memref<32x6528xf32, #tpu.memory_space<vmem>>, vector<32x128xf32>,
    %cst_60 = arith.constant 1.48175371 : f32
    %110 = vector.broadcast %cst_60 : f32 to vector<32x128xf32>
    %111 = arith.mulf %110, %7 : vector<32x128xf32>
    %112 = arith.addf %6, %111 : vector<32x128xf32>
    %cst_61 = arith.constant 0.000000e+00 : f32
    %113 = vector.broadcast %cst_61 : f32 to vector<32x128xf32>
    %114 = arith.maximumf %112, %113 : vector<32x128xf32>
    %c0_62 = arith.constant 0 : index
    %c2176 = arith.constant 2176 : index
    %115 = vector.load %arg10[%c0_62, %c2176] : memref<32x6528xf32, #tpu.memory_space<vmem>>, vector<32x128xf32>
    tpu.vector_store %arg10[%c0_62, %c2176], %114 {strides = array<i32>} : memref<32x6528xf32, #tpu.memory_space<vmem>>, vector<32x128xf32>,
    %cst_63 = arith.constant 1.42577934 : f32
    %116 = vector.broadcast %cst_63 : f32 to vector<32x128xf32>
    %117 = arith.mulf %116, %7 : vector<32x128xf32>
    %118 = arith.addf %6, %117 : vector<32x128xf32>
    %cst_64 = arith.constant 0.000000e+00 : f32
    %119 = vector.broadcast %cst_64 : f32 to vector<32x128xf32>
    %120 = arith.maximumf %118, %119 : vector<32x128xf32>
    %c0_65 = arith.constant 0 : index
    %c2304 = arith.constant 2304 : index
    %121 = vector.load %arg10[%c0_65, %c2304] : memref<32x6528xf32, #tpu.memory_space<vmem>>, vector<32x128xf32>
    tpu.vector_store %arg10[%c0_65, %c2304], %120 {strides = array<i32>} : memref<32x6528xf32, #tpu.memory_space<vmem>>, vector<32x128xf32>,
    %cst_66 = arith.constant 1.36812449 : f32
    %122 = vector.broadcast %cst_66 : f32 to vector<32x128xf32>
    %123 = arith.mulf %122, %7 : vector<32x128xf32>
    %124 = arith.addf %6, %123 : vector<32x128xf32>
    %cst_67 = arith.constant 0.000000e+00 : f32
    %125 = vector.broadcast %cst_67 : f32 to vector<32x128xf32>
    %126 = arith.maximumf %124, %125 : vector<32x128xf32>
    %c0_68 = arith.constant 0 : index
    %c2432 = arith.constant 2432 : index
    %127 = vector.load %arg10[%c0_68, %c2432] : memref<32x6528xf32, #tpu.memory_space<vmem>>, vector<32x128xf32>
    tpu.vector_store %arg10[%c0_68, %c2432], %126 {strides = array<i32>} : memref<32x6528xf32, #tpu.memory_space<vmem>>, vector<32x128xf32>,
    %cst_69 = arith.constant 1.30901694 : f32
    %128 = vector.broadcast %cst_69 : f32 to vector<32x128xf32>
    %129 = arith.mulf %128, %7 : vector<32x128xf32>
    %130 = arith.addf %6, %129 : vector<32x128xf32>
    %cst_70 = arith.constant 0.000000e+00 : f32
    %131 = vector.broadcast %cst_70 : f32 to vector<32x128xf32>
    %132 = arith.maximumf %130, %131 : vector<32x128xf32>
    %c0_71 = arith.constant 0 : index
    %c2560 = arith.constant 2560 : index
    %133 = vector.load %arg10[%c0_71, %c2560] : memref<32x6528xf32, #tpu.memory_space<vmem>>, vector<32x128xf32>
    tpu.vector_store %arg10[%c0_71, %c2560], %132 {strides = array<i32>} : memref<32x6528xf32, #tpu.memory_space<vmem>>, vector<32x128xf32>,
    %cst_72 = arith.constant 1.24868989 : f32
    %134 = vector.broadcast %cst_72 : f32 to vector<32x128xf32>
    %135 = arith.mulf %134, %7 : vector<32x128xf32>
    %136 = arith.addf %6, %135 : vector<32x128xf32>
    %cst_73 = arith.constant 0.000000e+00 : f32
    %137 = vector.broadcast %cst_73 : f32 to vector<32x128xf32>
    %138 = arith.maximumf %136, %137 : vector<32x128xf32>
    %c0_74 = arith.constant 0 : index
    %c2688 = arith.constant 2688 : index
    %139 = vector.load %arg10[%c0_74, %c2688] : memref<32x6528xf32, #tpu.memory_space<vmem>>, vector<32x128xf32>
    tpu.vector_store %arg10[%c0_74, %c2688], %138 {strides = array<i32>} : memref<32x6528xf32, #tpu.memory_space<vmem>>, vector<32x128xf32>,
    %cst_75 = arith.constant 1.18738127 : f32
    %140 = vector.broadcast %cst_75 : f32 to vector<32x128xf32>
    %141 = arith.mulf %140, %7 : vector<32x128xf32>
    %142 = arith.addf %6, %141 : vector<32x128xf32>
    %cst_76 = arith.constant 0.000000e+00 : f32
    %143 = vector.broadcast %cst_76 : f32 to vector<32x128xf32>
    %144 = arith.maximumf %142, %143 : vector<32x128xf32>
    %c0_77 = arith.constant 0 : index
    %c2816 = arith.constant 2816 : index
    %145 = vector.load %arg10[%c0_77, %c2816] : memref<32x6528xf32, #tpu.memory_space<vmem>>, vector<32x128xf32>
    tpu.vector_store %arg10[%c0_77, %c2816], %144 {strides = array<i32>} : memref<32x6528xf32, #tpu.memory_space<vmem>>, vector<32x128xf32>,
    %cst_78 = arith.constant 1.12533319 : f32
    %146 = vector.broadcast %cst_78 : f32 to vector<32x128xf32>
    %147 = arith.mulf %146, %7 : vector<32x128xf32>
    %148 = arith.addf %6, %147 : vector<32x128xf32>
    %cst_79 = arith.constant 0.000000e+00 : f32
    %149 = vector.broadcast %cst_79 : f32 to vector<32x128xf32>
    %150 = arith.maximumf %148, %149 : vector<32x128xf32>
    %c0_80 = arith.constant 0 : index
    %c2944 = arith.constant 2944 : index
    %151 = vector.load %arg10[%c0_80, %c2944] : memref<32x6528xf32, #tpu.memory_space<vmem>>, vector<32x128xf32>
    tpu.vector_store %arg10[%c0_80, %c2944], %150 {strides = array<i32>} : memref<32x6528xf32, #tpu.memory_space<vmem>>, vector<32x128xf32>,
    %cst_81 = arith.constant 1.06279051 : f32
    %152 = vector.broadcast %cst_81 : f32 to vector<32x128xf32>
    %153 = arith.mulf %152, %7 : vector<32x128xf32>
    %154 = arith.addf %6, %153 : vector<32x128xf32>
    %cst_82 = arith.constant 0.000000e+00 : f32
    %155 = vector.broadcast %cst_82 : f32 to vector<32x128xf32>
    %156 = arith.maximumf %154, %155 : vector<32x128xf32>
    %c0_83 = arith.constant 0 : index
    %c3072 = arith.constant 3072 : index
    %157 = vector.load %arg10[%c0_83, %c3072] : memref<32x6528xf32, #tpu.memory_space<vmem>>, vector<32x128xf32>
    tpu.vector_store %arg10[%c0_83, %c3072], %156 {strides = array<i32>} : memref<32x6528xf32, #tpu.memory_space<vmem>>, vector<32x128xf32>,
    %cst_84 = arith.constant 1.000000e+00 : f32
    %158 = vector.broadcast %cst_84 : f32 to vector<32x128xf32>
    %159 = arith.mulf %158, %7 : vector<32x128xf32>
    %160 = arith.addf %6, %159 : vector<32x128xf32>
    %cst_85 = arith.constant 0.000000e+00 : f32
    %161 = vector.broadcast %cst_85 : f32 to vector<32x128xf32>
    %162 = arith.maximumf %160, %161 : vector<32x128xf32>
    %c0_86 = arith.constant 0 : index
    %c3200 = arith.constant 3200 : index
    %163 = vector.load %arg10[%c0_86, %c3200] : memref<32x6528xf32, #tpu.memory_space<vmem>>, vector<32x128xf32>
    tpu.vector_store %arg10[%c0_86, %c3200], %162 {strides = array<i32>} : memref<32x6528xf32, #tpu.memory_space<vmem>>, vector<32x128xf32>,
    %cst_87 = arith.constant 0.937209486 : f32
    %164 = vector.broadcast %cst_87 : f32 to vector<32x128xf32>
    %165 = arith.mulf %164, %7 : vector<32x128xf32>
    %166 = arith.addf %6, %165 : vector<32x128xf32>
    %cst_88 = arith.constant 0.000000e+00 : f32
    %167 = vector.broadcast %cst_88 : f32 to vector<32x128xf32>
    %168 = arith.maximumf %166, %167 : vector<32x128xf32>
    %c0_89 = arith.constant 0 : index
    %c3328 = arith.constant 3328 : index
    %169 = vector.load %arg10[%c0_89, %c3328] : memref<32x6528xf32, #tpu.memory_space<vmem>>, vector<32x128xf32>
    tpu.vector_store %arg10[%c0_89, %c3328], %168 {strides = array<i32>} : memref<32x6528xf32, #tpu.memory_space<vmem>>, vector<32x128xf32>,
    %cst_90 = arith.constant 0.87466675 : f32
    %170 = vector.broadcast %cst_90 : f32 to vector<32x128xf32>
    %171 = arith.mulf %170, %7 : vector<32x128xf32>
    %172 = arith.addf %6, %171 : vector<32x128xf32>
    %cst_91 = arith.constant 0.000000e+00 : f32
    %173 = vector.broadcast %cst_91 : f32 to vector<32x128xf32>
    %174 = arith.maximumf %172, %173 : vector<32x128xf32>
    %c0_92 = arith.constant 0 : index
    %c3456 = arith.constant 3456 : index
    %175 = vector.load %arg10[%c0_92, %c3456] : memref<32x6528xf32, #tpu.memory_space<vmem>>, vector<32x128xf32>
    tpu.vector_store %arg10[%c0_92, %c3456], %174 {strides = array<i32>} : memref<32x6528xf32, #tpu.memory_space<vmem>>, vector<32x128xf32>,
    %cst_93 = arith.constant 0.812618672 : f32
    %176 = vector.broadcast %cst_93 : f32 to vector<32x128xf32>
    %177 = arith.mulf %176, %7 : vector<32x128xf32>
    %178 = arith.addf %6, %177 : vector<32x128xf32>
    %cst_94 = arith.constant 0.000000e+00 : f32
    %179 = vector.broadcast %cst_94 : f32 to vector<32x128xf32>
    %180 = arith.maximumf %178, %179 : vector<32x128xf32>
    %c0_95 = arith.constant 0 : index
    %c3584 = arith.constant 3584 : index
    %181 = vector.load %arg10[%c0_95, %c3584] : memref<32x6528xf32, #tpu.memory_space<vmem>>, vector<32x128xf32>
    tpu.vector_store %arg10[%c0_95, %c3584], %180 {strides = array<i32>} : memref<32x6528xf32, #tpu.memory_space<vmem>>, vector<32x128xf32>,
    %cst_96 = arith.constant 0.75131011 : f32
    %182 = vector.broadcast %cst_96 : f32 to vector<32x128xf32>
    %183 = arith.mulf %182, %7 : vector<32x128xf32>
    %184 = arith.addf %6, %183 : vector<32x128xf32>
    %cst_97 = arith.constant 0.000000e+00 : f32
    %185 = vector.broadcast %cst_97 : f32 to vector<32x128xf32>
    %186 = arith.maximumf %184, %185 : vector<32x128xf32>
    %c0_98 = arith.constant 0 : index
    %c3712 = arith.constant 3712 : index
    %187 = vector.load %arg10[%c0_98, %c3712] : memref<32x6528xf32, #tpu.memory_space<vmem>>, vector<32x128xf32>
    tpu.vector_store %arg10[%c0_98, %c3712], %186 {strides = array<i32>} : memref<32x6528xf32, #tpu.memory_space<vmem>>, vector<32x128xf32>,
    %cst_99 = arith.constant 0.690982997 : f32
    %188 = vector.broadcast %cst_99 : f32 to vector<32x128xf32>
    %189 = arith.mulf %188, %7 : vector<32x128xf32>
    %190 = arith.addf %6, %189 : vector<32x128xf32>
    %cst_100 = arith.constant 0.000000e+00 : f32
    %191 = vector.broadcast %cst_100 : f32 to vector<32x128xf32>
    %192 = arith.maximumf %190, %191 : vector<32x128xf32>
    %c0_101 = arith.constant 0 : index
    %c3840 = arith.constant 3840 : index
    %193 = vector.load %arg10[%c0_101, %c3840] : memref<32x6528xf32, #tpu.memory_space<vmem>>, vector<32x128xf32>
    tpu.vector_store %arg10[%c0_101, %c3840], %192 {strides = array<i32>} : memref<32x6528xf32, #tpu.memory_space<vmem>>, vector<32x128xf32>,
    %cst_102 = arith.constant 0.631875455 : f32
    %194 = vector.broadcast %cst_102 : f32 to vector<32x128xf32>
    %195 = arith.mulf %194, %7 : vector<32x128xf32>
    %196 = arith.addf %6, %195 : vector<32x128xf32>
    %cst_103 = arith.constant 0.000000e+00 : f32
    %197 = vector.broadcast %cst_103 : f32 to vector<32x128xf32>
    %198 = arith.maximumf %196, %197 : vector<32x128xf32>
    %c0_104 = arith.constant 0 : index
    %c3968 = arith.constant 3968 : index
    %199 = vector.load %arg10[%c0_104, %c3968] : memref<32x6528xf32, #tpu.memory_space<vmem>>, vector<32x128xf32>
    tpu.vector_store %arg10[%c0_104, %c3968], %198 {strides = array<i32>} : memref<32x6528xf32, #tpu.memory_space<vmem>>, vector<32x128xf32>,
    %cst_105 = arith.constant 0.574220717 : f32
    %200 = vector.broadcast %cst_105 : f32 to vector<32x128xf32>
    %201 = arith.mulf %200, %7 : vector<32x128xf32>
    %202 = arith.addf %6, %201 : vector<32x128xf32>
    %cst_106 = arith.constant 0.000000e+00 : f32
    %203 = vector.broadcast %cst_106 : f32 to vector<32x128xf32>
    %204 = arith.maximumf %202, %203 : vector<32x128xf32>
    %c0_107 = arith.constant 0 : index
    %c4096 = arith.constant 4096 : index
    %205 = vector.load %arg10[%c0_107, %c4096] : memref<32x6528xf32, #tpu.memory_space<vmem>>, vector<32x128xf32>
    tpu.vector_store %arg10[%c0_107, %c4096], %204 {strides = array<i32>} : memref<32x6528xf32, #tpu.memory_space<vmem>>, vector<32x128xf32>,
    %cst_108 = arith.constant 0.518246293 : f32
    %206 = vector.broadcast %cst_108 : f32 to vector<32x128xf32>
    %207 = arith.mulf %206, %7 : vector<32x128xf32>
    %208 = arith.addf %6, %207 : vector<32x128xf32>
    %cst_109 = arith.constant 0.000000e+00 : f32
    %209 = vector.broadcast %cst_109 : f32 to vector<32x128xf32>
    %210 = arith.maximumf %208, %209 : vector<32x128xf32>
    %c0_110 = arith.constant 0 : index
    %c4224 = arith.constant 4224 : index
    %211 = vector.load %arg10[%c0_110, %c4224] : memref<32x6528xf32, #tpu.memory_space<vmem>>, vector<32x128xf32>
    tpu.vector_store %arg10[%c0_110, %c4224], %210 {strides = array<i32>} : memref<32x6528xf32, #tpu.memory_space<vmem>>, vector<32x128xf32>,
    %cst_111 = arith.constant 0.464173198 : f32
    %212 = vector.broadcast %cst_111 : f32 to vector<32x128xf32>
    %213 = arith.mulf %212, %7 : vector<32x128xf32>
    %214 = arith.addf %6, %213 : vector<32x128xf32>
    %cst_112 = arith.constant 0.000000e+00 : f32
    %215 = vector.broadcast %cst_112 : f32 to vector<32x128xf32>
    %216 = arith.maximumf %214, %215 : vector<32x128xf32>
    %c0_113 = arith.constant 0 : index
    %c4352 = arith.constant 4352 : index
    %217 = vector.load %arg10[%c0_113, %c4352] : memref<32x6528xf32, #tpu.memory_space<vmem>>, vector<32x128xf32>
    tpu.vector_store %arg10[%c0_113, %c4352], %216 {strides = array<i32>} : memref<32x6528xf32, #tpu.memory_space<vmem>>, vector<32x128xf32>,
    %cst_114 = arith.constant 0.412214756 : f32
    %218 = vector.broadcast %cst_114 : f32 to vector<32x128xf32>
    %219 = arith.mulf %218, %7 : vector<32x128xf32>
    %220 = arith.addf %6, %219 : vector<32x128xf32>
    %cst_115 = arith.constant 0.000000e+00 : f32
    %221 = vector.broadcast %cst_115 : f32 to vector<32x128xf32>
    %222 = arith.maximumf %220, %221 : vector<32x128xf32>
    %c0_116 = arith.constant 0 : index
    %c4480 = arith.constant 4480 : index
    %223 = vector.load %arg10[%c0_116, %c4480] : memref<32x6528xf32, #tpu.memory_space<vmem>>, vector<32x128xf32>
    tpu.vector_store %arg10[%c0_116, %c4480], %222 {strides = array<i32>} : memref<32x6528xf32, #tpu.memory_space<vmem>>, vector<32x128xf32>,
    %cst_117 = arith.constant 3.625760e-01 : f32
    %224 = vector.broadcast %cst_117 : f32 to vector<32x128xf32>
    %225 = arith.mulf %224, %7 : vector<32x128xf32>
    %226 = arith.addf %6, %225 : vector<32x128xf32>
    %cst_118 = arith.constant 0.000000e+00 : f32
    %227 = vector.broadcast %cst_118 : f32 to vector<32x128xf32>
    %228 = arith.maximumf %226, %227 : vector<32x128xf32>
    %c0_119 = arith.constant 0 : index
    %c4608 = arith.constant 4608 : index
    %229 = vector.load %arg10[%c0_119, %c4608] : memref<32x6528xf32, #tpu.memory_space<vmem>>, vector<32x128xf32>
    tpu.vector_store %arg10[%c0_119, %c4608], %228 {strides = array<i32>} : memref<32x6528xf32, #tpu.memory_space<vmem>>, vector<32x128xf32>,
    %cst_120 = arith.constant 0.315452874 : f32
    %230 = vector.broadcast %cst_120 : f32 to vector<32x128xf32>
    %231 = arith.mulf %230, %7 : vector<32x128xf32>
    %232 = arith.addf %6, %231 : vector<32x128xf32>
    %cst_121 = arith.constant 0.000000e+00 : f32
    %233 = vector.broadcast %cst_121 : f32 to vector<32x128xf32>
    %234 = arith.maximumf %232, %233 : vector<32x128xf32>
    %c0_122 = arith.constant 0 : index
    %c4736 = arith.constant 4736 : index
    %235 = vector.load %arg10[%c0_122, %c4736] : memref<32x6528xf32, #tpu.memory_space<vmem>>, vector<32x128xf32>
    tpu.vector_store %arg10[%c0_122, %c4736], %234 {strides = array<i32>} : memref<32x6528xf32, #tpu.memory_space<vmem>>, vector<32x128xf32>,
    %cst_123 = arith.constant 0.27103138 : f32
    %236 = vector.broadcast %cst_123 : f32 to vector<32x128xf32>
    %237 = arith.mulf %236, %7 : vector<32x128xf32>
    %238 = arith.addf %6, %237 : vector<32x128xf32>
    %cst_124 = arith.constant 0.000000e+00 : f32
    %239 = vector.broadcast %cst_124 : f32 to vector<32x128xf32>
    %240 = arith.maximumf %238, %239 : vector<32x128xf32>
    %c0_125 = arith.constant 0 : index
    %c4864 = arith.constant 4864 : index
    %241 = vector.load %arg10[%c0_125, %c4864] : memref<32x6528xf32, #tpu.memory_space<vmem>>, vector<32x128xf32>
    tpu.vector_store %arg10[%c0_125, %c4864], %240 {strides = array<i32>} : memref<32x6528xf32, #tpu.memory_space<vmem>>, vector<32x128xf32>,
    %cst_126 = arith.constant 0.229486763 : f32
    %242 = vector.broadcast %cst_126 : f32 to vector<32x128xf32>
    %243 = arith.mulf %242, %7 : vector<32x128xf32>
    %244 = arith.addf %6, %243 : vector<32x128xf32>
    %cst_127 = arith.constant 0.000000e+00 : f32
    %245 = vector.broadcast %cst_127 : f32 to vector<32x128xf32>
    %246 = arith.maximumf %244, %245 : vector<32x128xf32>
    %c0_128 = arith.constant 0 : index
    %c4992 = arith.constant 4992 : index
    %247 = vector.load %arg10[%c0_128, %c4992] : memref<32x6528xf32, #tpu.memory_space<vmem>>, vector<32x128xf32>
    tpu.vector_store %arg10[%c0_128, %c4992], %246 {strides = array<i32>} : memref<32x6528xf32, #tpu.memory_space<vmem>>, vector<32x128xf32>,
    %cst_129 = arith.constant 1.909830e-01 : f32
    %248 = vector.broadcast %cst_129 : f32 to vector<32x128xf32>
    %249 = arith.mulf %248, %7 : vector<32x128xf32>
    %250 = arith.addf %6, %249 : vector<32x128xf32>
    %cst_130 = arith.constant 0.000000e+00 : f32
    %251 = vector.broadcast %cst_130 : f32 to vector<32x128xf32>
    %252 = arith.maximumf %250, %251 : vector<32x128xf32>
    %c0_131 = arith.constant 0 : index
    %c5120 = arith.constant 5120 : index
    %253 = vector.load %arg10[%c0_131, %c5120] : memref<32x6528xf32, #tpu.memory_space<vmem>>, vector<32x128xf32>
    tpu.vector_store %arg10[%c0_131, %c5120], %252 {strides = array<i32>} : memref<32x6528xf32, #tpu.memory_space<vmem>>, vector<32x128xf32>,
    %cst_132 = arith.constant 0.155672073 : f32
    %254 = vector.broadcast %cst_132 : f32 to vector<32x128xf32>
    %255 = arith.mulf %254, %7 : vector<32x128xf32>
    %256 = arith.addf %6, %255 : vector<32x128xf32>
    %cst_133 = arith.constant 0.000000e+00 : f32
    %257 = vector.broadcast %cst_133 : f32 to vector<32x128xf32>
    %258 = arith.maximumf %256, %257 : vector<32x128xf32>
    %c0_134 = arith.constant 0 : index
    %c5248 = arith.constant 5248 : index
    %259 = vector.load %arg10[%c0_134, %c5248] : memref<32x6528xf32, #tpu.memory_space<vmem>>, vector<32x128xf32>
    tpu.vector_store %arg10[%c0_134, %c5248], %258 {strides = array<i32>} : memref<32x6528xf32, #tpu.memory_space<vmem>>, vector<32x128xf32>,
    %cst_135 = arith.constant 0.123693347 : f32
    %260 = vector.broadcast %cst_135 : f32 to vector<32x128xf32>
    %261 = arith.mulf %260, %7 : vector<32x128xf32>
    %262 = arith.addf %6, %261 : vector<32x128xf32>
    %cst_136 = arith.constant 0.000000e+00 : f32
    %263 = vector.broadcast %cst_136 : f32 to vector<32x128xf32>
    %264 = arith.maximumf %262, %263 : vector<32x128xf32>
    %c0_137 = arith.constant 0 : index
    %c5376 = arith.constant 5376 : index
    %265 = vector.load %arg10[%c0_137, %c5376] : memref<32x6528xf32, #tpu.memory_space<vmem>>, vector<32x128xf32>
    tpu.vector_store %arg10[%c0_137, %c5376], %264 {strides = array<i32>} : memref<32x6528xf32, #tpu.memory_space<vmem>>, vector<32x128xf32>,
    %cst_138 = arith.constant 0.0951729416 : f32
    %266 = vector.broadcast %cst_138 : f32 to vector<32x128xf32>
    %267 = arith.mulf %266, %7 : vector<32x128xf32>
    %268 = arith.addf %6, %267 : vector<32x128xf32>
    %cst_139 = arith.constant 0.000000e+00 : f32
    %269 = vector.broadcast %cst_139 : f32 to vector<32x128xf32>
    %270 = arith.maximumf %268, %269 : vector<32x128xf32>
    %c0_140 = arith.constant 0 : index
    %c5504 = arith.constant 5504 : index
    %271 = vector.load %arg10[%c0_140, %c5504] : memref<32x6528xf32, #tpu.memory_space<vmem>>, vector<32x128xf32>
    tpu.vector_store %arg10[%c0_140, %c5504], %270 {strides = array<i32>} : memref<32x6528xf32, #tpu.memory_space<vmem>>, vector<32x128xf32>,
    %cst_141 = arith.constant 0.0702235103 : f32
    %272 = vector.broadcast %cst_141 : f32 to vector<32x128xf32>
    %273 = arith.mulf %272, %7 : vector<32x128xf32>
    %274 = arith.addf %6, %273 : vector<32x128xf32>
    %cst_142 = arith.constant 0.000000e+00 : f32
    %275 = vector.broadcast %cst_142 : f32 to vector<32x128xf32>
    %276 = arith.maximumf %274, %275 : vector<32x128xf32>
    %c0_143 = arith.constant 0 : index
    %c5632 = arith.constant 5632 : index
    %277 = vector.load %arg10[%c0_143, %c5632] : memref<32x6528xf32, #tpu.memory_space<vmem>>, vector<32x128xf32>
    tpu.vector_store %arg10[%c0_143, %c5632], %276 {strides = array<i32>} : memref<32x6528xf32, #tpu.memory_space<vmem>>, vector<32x128xf32>,
    %cst_144 = arith.constant 0.04894346 : f32
    %278 = vector.broadcast %cst_144 : f32 to vector<32x128xf32>
    %279 = arith.mulf %278, %7 : vector<32x128xf32>
    %280 = arith.addf %6, %279 : vector<32x128xf32>
    %cst_145 = arith.constant 0.000000e+00 : f32
    %281 = vector.broadcast %cst_145 : f32 to vector<32x128xf32>
    %282 = arith.maximumf %280, %281 : vector<32x128xf32>
    %c0_146 = arith.constant 0 : index
    %c5760 = arith.constant 5760 : index
    %283 = vector.load %arg10[%c0_146, %c5760] : memref<32x6528xf32, #tpu.memory_space<vmem>>, vector<32x128xf32>
    tpu.vector_store %arg10[%c0_146, %c5760], %282 {strides = array<i32>} : memref<32x6528xf32, #tpu.memory_space<vmem>>, vector<32x128xf32>,
    %cst_147 = arith.constant 0.0314168334 : f32
    %284 = vector.broadcast %cst_147 : f32 to vector<32x128xf32>
    %285 = arith.mulf %284, %7 : vector<32x128xf32>
    %286 = arith.addf %6, %285 : vector<32x128xf32>
    %cst_148 = arith.constant 0.000000e+00 : f32
    %287 = vector.broadcast %cst_148 : f32 to vector<32x128xf32>
    %288 = arith.maximumf %286, %287 : vector<32x128xf32>
    %c0_149 = arith.constant 0 : index
    %c5888 = arith.constant 5888 : index
    %289 = vector.load %arg10[%c0_149, %c5888] : memref<32x6528xf32, #tpu.memory_space<vmem>>, vector<32x128xf32>
    tpu.vector_store %arg10[%c0_149, %c5888], %288 {strides = array<i32>} : memref<32x6528xf32, #tpu.memory_space<vmem>>, vector<32x128xf32>,
    %cst_150 = arith.constant 0.0177127719 : f32
    %290 = vector.broadcast %cst_150 : f32 to vector<32x128xf32>
    %291 = arith.mulf %290, %7 : vector<32x128xf32>
    %292 = arith.addf %6, %291 : vector<32x128xf32>
    %cst_151 = arith.constant 0.000000e+00 : f32
    %293 = vector.broadcast %cst_151 : f32 to vector<32x128xf32>
    %294 = arith.maximumf %292, %293 : vector<32x128xf32>
    %c0_152 = arith.constant 0 : index
    %c6016 = arith.constant 6016 : index
    %295 = vector.load %arg10[%c0_152, %c6016] : memref<32x6528xf32, #tpu.memory_space<vmem>>, vector<32x128xf32>
    tpu.vector_store %arg10[%c0_152, %c6016], %294 {strides = array<i32>} : memref<32x6528xf32, #tpu.memory_space<vmem>>, vector<32x128xf32>,
    %cst_153 = arith.constant 0.00788527727 : f32
    %296 = vector.broadcast %cst_153 : f32 to vector<32x128xf32>
    %297 = arith.mulf %296, %7 : vector<32x128xf32>
    %298 = arith.addf %6, %297 : vector<32x128xf32>
    %cst_154 = arith.constant 0.000000e+00 : f32
    %299 = vector.broadcast %cst_154 : f32 to vector<32x128xf32>
    %300 = arith.maximumf %298, %299 : vector<32x128xf32>
    %c0_155 = arith.constant 0 : index
    %c6144 = arith.constant 6144 : index
    %301 = vector.load %arg10[%c0_155, %c6144] : memref<32x6528xf32, #tpu.memory_space<vmem>>, vector<32x128xf32>
    tpu.vector_store %arg10[%c0_155, %c6144], %300 {strides = array<i32>} : memref<32x6528xf32, #tpu.memory_space<vmem>>, vector<32x128xf32>,
    %cst_156 = arith.constant 0.00197327137 : f32
    %302 = vector.broadcast %cst_156 : f32 to vector<32x128xf32>
    %303 = arith.mulf %302, %7 : vector<32x128xf32>
    %304 = arith.addf %6, %303 : vector<32x128xf32>
    %cst_157 = arith.constant 0.000000e+00 : f32
    %305 = vector.broadcast %cst_157 : f32 to vector<32x128xf32>
    %306 = arith.maximumf %304, %305 : vector<32x128xf32>
    %c0_158 = arith.constant 0 : index
    %c6272 = arith.constant 6272 : index
    %307 = vector.load %arg10[%c0_158, %c6272] : memref<32x6528xf32, #tpu.memory_space<vmem>>, vector<32x128xf32>
    tpu.vector_store %arg10[%c0_158, %c6272], %306 {strides = array<i32>} : memref<32x6528xf32, #tpu.memory_space<vmem>>, vector<32x128xf32>,
    %cst_159 = arith.constant 0.000000e+00 : f32
    %308 = vector.broadcast %cst_159 : f32 to vector<32x128xf32>
    %309 = arith.mulf %308, %7 : vector<32x128xf32>
    %310 = arith.addf %6, %309 : vector<32x128xf32>
    %cst_160 = arith.constant 0.000000e+00 : f32
    %311 = vector.broadcast %cst_160 : f32 to vector<32x128xf32>
    %312 = arith.maximumf %310, %311 : vector<32x128xf32>
    %c0_161 = arith.constant 0 : index
    %c6400 = arith.constant 6400 : index
    %313 = vector.load %arg10[%c0_161, %c6400] : memref<32x6528xf32, #tpu.memory_space<vmem>>, vector<32x128xf32>
    tpu.vector_store %arg10[%c0_161, %c6400], %312 {strides = array<i32>} : memref<32x6528xf32, #tpu.memory_space<vmem>>, vector<32x128xf32>,
    %c0_162 = arith.constant 0 : index
    %c0_163 = arith.constant 0 : index
    %314 = vector.load %arg10[%c0_162, %c0_163] : memref<32x6528xf32, #tpu.memory_space<vmem>>, vector<32x6528xf32>
    %c0_164 = arith.constant 0 : index
    %c0_165 = arith.constant 0 : index
    %315 = vector.load %arg5[%c0_164, %c0_165] : memref<32x32xf32, #tpu.memory_space<vmem>>, vector<32x32xf32>
    %cst_166 = arith.constant dense<0.000000e+00> : vector<32x6528xf32>
    %316 = tpu.matmul %315, %314, %cst_166 {dimension_numbers = #tpu.dot_dimension_numbers<[1], [0], [0], [1], [0, 0, 1, 1], [], []>} : vector<32x32xf32>, vector<32x6528xf32>, vector<32x6528xf32> -> vector<32x6528xf32>
    %c0_167 = arith.constant 0 : index
    %c0_168 = arith.constant 0 : index
    %317 = vector.load %arg6[%c0_167, %c0_168] : memref<32x1xf32, #tpu.memory_space<vmem>>, vector<32x1xf32>
    %318 = vector.broadcast %317 : vector<32x1xf32> to vector<32x6528xf32>
    %319 = arith.addf %316, %318 : vector<32x6528xf32>
    %cst_169 = arith.constant 0.000000e+00 : f32
    %320 = vector.broadcast %cst_169 : f32 to vector<32x6528xf32>
    %321 = arith.maximumf %319, %320 : vector<32x6528xf32>
    %c0_170 = arith.constant 0 : index
    %c0_171 = arith.constant 0 : index
    %322 = vector.load %arg7[%c0_170, %c0_171] : memref<8x32xf32, #tpu.memory_space<vmem>>, vector<8x32xf32>
    %cst_172 = arith.constant dense<0.000000e+00> : vector<8x6528xf32>
    %323 = tpu.matmul %322, %321, %cst_172 {dimension_numbers = #tpu.dot_dimension_numbers<[1], [0], [0], [1], [0, 0, 1, 1], [], []>} : vector<8x32xf32>, vector<32x6528xf32>, vector<8x6528xf32> -> vector<8x6528xf32>
    %324 = vector.extract_strided_slice %323 {offsets = [0, 0], sizes = [1, 6528], strides = [1, 1]} : vector<8x6528xf32> to vector<1x6528xf32>
    %c0_173 = arith.constant 0 : index
    %c0_174 = arith.constant 0 : index
    %325 = vector.load %arg8[%c0_173, %c0_174] : memref<1x1xf32, #tpu.memory_space<vmem>>, vector<1x1xf32>
    %326 = vector.broadcast %325 : vector<1x1xf32> to vector<1x6528xf32>
    %327 = arith.addf %324, %326 : vector<1x6528xf32>
    %cst_175 = arith.constant 0.000000e+00 : f32
    %328 = vector.broadcast %cst_175 : f32 to vector<1x6528xf32>
    %329 = arith.cmpf ogt, %327, %328 : vector<1x6528xf32>
    %cst_176 = arith.constant 0.000000e+00 : f32
    %330 = vector.broadcast %cst_176 : f32 to vector<1x6528xf32>
    %331 = arith.minimumf %327, %330 : vector<1x6528xf32>
    %332 = math.exp %331 : vector<1x6528xf32>
    %cst_177 = arith.constant 1.000000e+00 : f32
    %333 = vector.broadcast %cst_177 : f32 to vector<1x6528xf32>
    %334 = arith.subf %332, %333 : vector<1x6528xf32>
    %335 = arith.select %329, %327, %334 : vector<1x6528xi1>, vector<1x6528xf32>
    %cst_178 = arith.constant 1.000000e+00 : f32
    %336 = vector.broadcast %cst_178 : f32 to vector<1x6528xf32>
    %337 = arith.addf %335, %336 : vector<1x6528xf32>
    %338 = vector.extract_strided_slice %337 {offsets = [0, 0], sizes = [1, 128], strides = [1, 1]} : vector<1x6528xf32> to vector<1x128xf32>
    %cst_179 = arith.constant 3.92156857E-4 : f32
    %339 = vector.broadcast %cst_179 : f32 to vector<1x128xf32>
    %340 = arith.mulf %339, %338 : vector<1x128xf32>
    %341 = vector.extract_strided_slice %337 {offsets = [0, 128], sizes = [1, 128], strides = [1, 1]} : vector<1x6528xf32> to vector<1x128xf32>
    %cst_180 = arith.constant 0.0038675759 : f32
    %342 = vector.broadcast %cst_180 : f32 to vector<1x128xf32>
    %343 = arith.mulf %342, %341 : vector<1x128xf32>
    %344 = vector.extract_strided_slice %337 {offsets = [0, 256], sizes = [1, 128], strides = [1, 1]} : vector<1x6528xf32> to vector<1x128xf32>
    %cst_181 = arith.constant 0.00789187104 : f32
    %345 = vector.broadcast %cst_181 : f32 to vector<1x128xf32>
    %346 = arith.mulf %345, %344 : vector<1x128xf32>
    %347 = vector.extract_strided_slice %337 {offsets = [0, 384], sizes = [1, 128], strides = [1, 1]} : vector<1x6528xf32> to vector<1x128xf32>
    %cst_182 = arith.constant 0.0117731765 : f32
    %348 = vector.broadcast %cst_182 : f32 to vector<1x128xf32>
    %349 = arith.mulf %348, %347 : vector<1x128xf32>
    %350 = vector.extract_strided_slice %337 {offsets = [0, 512], sizes = [1, 128], strides = [1, 1]} : vector<1x6528xf32> to vector<1x128xf32>
    %cst_183 = arith.constant 0.0156193366 : f32
    %351 = vector.broadcast %cst_183 : f32 to vector<1x128xf32>
    %352 = arith.mulf %351, %350 : vector<1x128xf32>
    %353 = arith.addf %340, %352 : vector<1x128xf32>
    %354 = vector.extract_strided_slice %337 {offsets = [0, 640], sizes = [1, 128], strides = [1, 1]} : vector<1x6528xf32> to vector<1x128xf32>
    %cst_184 = arith.constant 0.0194256939 : f32
    %355 = vector.broadcast %cst_184 : f32 to vector<1x128xf32>
    %356 = arith.mulf %355, %354 : vector<1x128xf32>
    %357 = arith.addf %343, %356 : vector<1x128xf32>
    %358 = vector.extract_strided_slice %337 {offsets = [0, 768], sizes = [1, 128], strides = [1, 1]} : vector<1x6528xf32> to vector<1x128xf32>
    %cst_185 = arith.constant 0.0231185257 : f32
    %359 = vector.broadcast %cst_185 : f32 to vector<1x128xf32>
    %360 = arith.mulf %359, %358 : vector<1x128xf32>
    %361 = arith.addf %346, %360 : vector<1x128xf32>
    %362 = vector.extract_strided_slice %337 {offsets = [0, 896], sizes = [1, 128], strides = [1, 1]} : vector<1x6528xf32> to vector<1x128xf32>
    %cst_186 = arith.constant 0.0267650522 : f32
    %363 = vector.broadcast %cst_186 : f32 to vector<1x128xf32>
    %364 = arith.mulf %363, %362 : vector<1x128xf32>
    %365 = arith.addf %349, %364 : vector<1x128xf32>
    %366 = vector.extract_strided_slice %337 {offsets = [0, 1024], sizes = [1, 128], strides = [1, 1]} : vector<1x6528xf32> to vector<1x128xf32>
    %cst_187 = arith.constant 0.0302561838 : f32
    %367 = vector.broadcast %cst_187 : f32 to vector<1x128xf32>
    %368 = arith.mulf %367, %366 : vector<1x128xf32>
    %369 = arith.addf %353, %368 : vector<1x128xf32>
    %370 = vector.extract_strided_slice %337 {offsets = [0, 1152], sizes = [1, 128], strides = [1, 1]} : vector<1x6528xf32> to vector<1x128xf32>
    %cst_188 = arith.constant 0.0336807966 : f32
    %371 = vector.broadcast %cst_188 : f32 to vector<1x128xf32>
    %372 = arith.mulf %371, %370 : vector<1x128xf32>
    %373 = arith.addf %357, %372 : vector<1x128xf32>
    %374 = vector.extract_strided_slice %337 {offsets = [0, 1280], sizes = [1, 128], strides = [1, 1]} : vector<1x6528xf32> to vector<1x128xf32>
    %cst_189 = arith.constant 0.0369174667 : f32
    %375 = vector.broadcast %cst_189 : f32 to vector<1x128xf32>
    %376 = arith.mulf %375, %374 : vector<1x128xf32>
    %377 = arith.addf %361, %376 : vector<1x128xf32>
    %378 = vector.extract_strided_slice %337 {offsets = [0, 1408], sizes = [1, 128], strides = [1, 1]} : vector<1x6528xf32> to vector<1x128xf32>
    %cst_190 = arith.constant 0.0400649719 : f32
    %379 = vector.broadcast %cst_190 : f32 to vector<1x128xf32>
    %380 = arith.mulf %379, %378 : vector<1x128xf32>
    %381 = arith.addf %365, %380 : vector<1x128xf32>
    %382 = vector.extract_strided_slice %337 {offsets = [0, 1536], sizes = [1, 128], strides = [1, 1]} : vector<1x6528xf32> to vector<1x128xf32>
    %cst_191 = arith.constant 0.0429967158 : f32
    %383 = vector.broadcast %cst_191 : f32 to vector<1x128xf32>
    %384 = arith.mulf %383, %382 : vector<1x128xf32>
    %385 = arith.addf %369, %384 : vector<1x128xf32>
    %386 = vector.extract_strided_slice %337 {offsets = [0, 1664], sizes = [1, 128], strides = [1, 1]} : vector<1x6528xf32> to vector<1x128xf32>
    %cst_192 = arith.constant 0.045817256 : f32
    %387 = vector.broadcast %cst_192 : f32 to vector<1x128xf32>
    %388 = arith.mulf %387, %386 : vector<1x128xf32>
    %389 = arith.addf %373, %388 : vector<1x128xf32>
    %390 = vector.extract_strided_slice %337 {offsets = [0, 1792], sizes = [1, 128], strides = [1, 1]} : vector<1x6528xf32> to vector<1x128xf32>
    %cst_193 = arith.constant 0.0483978428 : f32
    %391 = vector.broadcast %cst_193 : f32 to vector<1x128xf32>
    %392 = arith.mulf %391, %390 : vector<1x128xf32>
    %393 = arith.addf %377, %392 : vector<1x128xf32>
    %394 = vector.extract_strided_slice %337 {offsets = [0, 1920], sizes = [1, 128], strides = [1, 1]} : vector<1x6528xf32> to vector<1x128xf32>
    %cst_194 = arith.constant 0.0508470684 : f32
    %395 = vector.broadcast %cst_194 : f32 to vector<1x128xf32>
    %396 = arith.mulf %395, %394 : vector<1x128xf32>
    %397 = arith.addf %381, %396 : vector<1x128xf32>
    %398 = vector.extract_strided_slice %337 {offsets = [0, 2048], sizes = [1, 128], strides = [1, 1]} : vector<1x6528xf32> to vector<1x128xf32>
    %cst_195 = arith.constant 0.0530355759 : f32
    %399 = vector.broadcast %cst_195 : f32 to vector<1x128xf32>
    %400 = arith.mulf %399, %398 : vector<1x128xf32>
    %401 = arith.addf %385, %400 : vector<1x128xf32>
    %402 = vector.extract_strided_slice %337 {offsets = [0, 2176], sizes = [1, 128], strides = [1, 1]} : vector<1x6528xf32> to vector<1x128xf32>
    %cst_196 = arith.constant 0.0550751463 : f32
    %403 = vector.broadcast %cst_196 : f32 to vector<1x128xf32>
    %404 = arith.mulf %403, %402 : vector<1x128xf32>
    %405 = arith.addf %389, %404 : vector<1x128xf32>
    %406 = vector.extract_strided_slice %337 {offsets = [0, 2304], sizes = [1, 128], strides = [1, 1]} : vector<1x6528xf32> to vector<1x128xf32>
    %cst_197 = arith.constant 0.0568367355 : f32
    %407 = vector.broadcast %cst_197 : f32 to vector<1x128xf32>
    %408 = arith.mulf %407, %406 : vector<1x128xf32>
    %409 = arith.addf %393, %408 : vector<1x128xf32>
    %410 = vector.extract_strided_slice %337 {offsets = [0, 2432], sizes = [1, 128], strides = [1, 1]} : vector<1x6528xf32> to vector<1x128xf32>
    %cst_198 = arith.constant 0.0584348477 : f32
    %411 = vector.broadcast %cst_198 : f32 to vector<1x128xf32>
    %412 = arith.mulf %411, %410 : vector<1x128xf32>
    %413 = arith.addf %397, %412 : vector<1x128xf32>
    %414 = vector.extract_strided_slice %337 {offsets = [0, 2560], sizes = [1, 128], strides = [1, 1]} : vector<1x6528xf32> to vector<1x128xf32>
    %cst_199 = arith.constant 0.0597413443 : f32
    %415 = vector.broadcast %cst_199 : f32 to vector<1x128xf32>
    %416 = arith.mulf %415, %414 : vector<1x128xf32>
    %417 = arith.addf %401, %416 : vector<1x128xf32>
    %418 = vector.extract_strided_slice %337 {offsets = [0, 2688], sizes = [1, 128], strides = [1, 1]} : vector<1x6528xf32> to vector<1x128xf32>
    %cst_200 = arith.constant 6.087320e-02 : f32
    %419 = vector.broadcast %cst_200 : f32 to vector<1x128xf32>
    %420 = arith.mulf %419, %418 : vector<1x128xf32>
    %421 = arith.addf %405, %420 : vector<1x128xf32>
    %422 = vector.extract_strided_slice %337 {offsets = [0, 2816], sizes = [1, 128], strides = [1, 1]} : vector<1x6528xf32> to vector<1x128xf32>
    %cst_201 = arith.constant 0.0617035851 : f32
    %423 = vector.broadcast %cst_201 : f32 to vector<1x128xf32>
    %424 = arith.mulf %423, %422 : vector<1x128xf32>
    %425 = arith.addf %409, %424 : vector<1x128xf32>
    %426 = vector.extract_strided_slice %337 {offsets = [0, 2944], sizes = [1, 128], strides = [1, 1]} : vector<1x6528xf32> to vector<1x128xf32>
    %cst_202 = arith.constant 0.0623517632 : f32
    %427 = vector.broadcast %cst_202 : f32 to vector<1x128xf32>
    %428 = arith.mulf %427, %426 : vector<1x128xf32>
    %429 = arith.addf %413, %428 : vector<1x128xf32>
    %430 = vector.extract_strided_slice %337 {offsets = [0, 3072], sizes = [1, 128], strides = [1, 1]} : vector<1x6528xf32> to vector<1x128xf32>
    %cst_203 = arith.constant 6.269250e-02 : f32
    %431 = vector.broadcast %cst_203 : f32 to vector<1x128xf32>
    %432 = arith.mulf %431, %430 : vector<1x128xf32>
    %433 = arith.addf %417, %432 : vector<1x128xf32>
    %434 = vector.extract_strided_slice %337 {offsets = [0, 3200], sizes = [1, 128], strides = [1, 1]} : vector<1x6528xf32> to vector<1x128xf32>
    %cst_204 = arith.constant 0.0628472194 : f32
    %435 = vector.broadcast %cst_204 : f32 to vector<1x128xf32>
    %436 = arith.mulf %435, %434 : vector<1x128xf32>
    %437 = arith.addf %421, %436 : vector<1x128xf32>
    %438 = vector.extract_strided_slice %337 {offsets = [0, 3328], sizes = [1, 128], strides = [1, 1]} : vector<1x6528xf32> to vector<1x128xf32>
    %cst_205 = arith.constant 6.269250e-02 : f32
    %439 = vector.broadcast %cst_205 : f32 to vector<1x128xf32>
    %440 = arith.mulf %439, %438 : vector<1x128xf32>
    %441 = arith.addf %425, %440 : vector<1x128xf32>
    %442 = vector.extract_strided_slice %337 {offsets = [0, 3456], sizes = [1, 128], strides = [1, 1]} : vector<1x6528xf32> to vector<1x128xf32>
    %cst_206 = arith.constant 0.0623517632 : f32
    %443 = vector.broadcast %cst_206 : f32 to vector<1x128xf32>
    %444 = arith.mulf %443, %442 : vector<1x128xf32>
    %445 = arith.addf %429, %444 : vector<1x128xf32>
    %446 = vector.extract_strided_slice %337 {offsets = [0, 3584], sizes = [1, 128], strides = [1, 1]} : vector<1x6528xf32> to vector<1x128xf32>
    %cst_207 = arith.constant 0.0617035851 : f32
    %447 = vector.broadcast %cst_207 : f32 to vector<1x128xf32>
    %448 = arith.mulf %447, %446 : vector<1x128xf32>
    %449 = arith.addf %433, %448 : vector<1x128xf32>
    %450 = vector.extract_strided_slice %337 {offsets = [0, 3712], sizes = [1, 128], strides = [1, 1]} : vector<1x6528xf32> to vector<1x128xf32>
    %cst_208 = arith.constant 6.087320e-02 : f32
    %451 = vector.broadcast %cst_208 : f32 to vector<1x128xf32>
    %452 = arith.mulf %451, %450 : vector<1x128xf32>
    %453 = arith.addf %437, %452 : vector<1x128xf32>
    %454 = vector.extract_strided_slice %337 {offsets = [0, 3840], sizes = [1, 128], strides = [1, 1]} : vector<1x6528xf32> to vector<1x128xf32>
    %cst_209 = arith.constant 0.0597413443 : f32
    %455 = vector.broadcast %cst_209 : f32 to vector<1x128xf32>
    %456 = arith.mulf %455, %454 : vector<1x128xf32>
    %457 = arith.addf %441, %456 : vector<1x128xf32>
    %458 = vector.extract_strided_slice %337 {offsets = [0, 3968], sizes = [1, 128], strides = [1, 1]} : vector<1x6528xf32> to vector<1x128xf32>
    %cst_210 = arith.constant 0.0584348477 : f32
    %459 = vector.broadcast %cst_210 : f32 to vector<1x128xf32>
    %460 = arith.mulf %459, %458 : vector<1x128xf32>
    %461 = arith.addf %445, %460 : vector<1x128xf32>
    %462 = vector.extract_strided_slice %337 {offsets = [0, 4096], sizes = [1, 128], strides = [1, 1]} : vector<1x6528xf32> to vector<1x128xf32>
    %cst_211 = arith.constant 0.0568367355 : f32
    %463 = vector.broadcast %cst_211 : f32 to vector<1x128xf32>
    %464 = arith.mulf %463, %462 : vector<1x128xf32>
    %465 = arith.addf %449, %464 : vector<1x128xf32>
    %466 = vector.extract_strided_slice %337 {offsets = [0, 4224], sizes = [1, 128], strides = [1, 1]} : vector<1x6528xf32> to vector<1x128xf32>
    %cst_212 = arith.constant 0.0550751463 : f32
    %467 = vector.broadcast %cst_212 : f32 to vector<1x128xf32>
    %468 = arith.mulf %467, %466 : vector<1x128xf32>
    %469 = arith.addf %453, %468 : vector<1x128xf32>
    %470 = vector.extract_strided_slice %337 {offsets = [0, 4352], sizes = [1, 128], strides = [1, 1]} : vector<1x6528xf32> to vector<1x128xf32>
    %cst_213 = arith.constant 0.0530355759 : f32
    %471 = vector.broadcast %cst_213 : f32 to vector<1x128xf32>
    %472 = arith.mulf %471, %470 : vector<1x128xf32>
    %473 = arith.addf %457, %472 : vector<1x128xf32>
    %474 = vector.extract_strided_slice %337 {offsets = [0, 4480], sizes = [1, 128], strides = [1, 1]} : vector<1x6528xf32> to vector<1x128xf32>
    %cst_214 = arith.constant 0.0508470684 : f32
    %475 = vector.broadcast %cst_214 : f32 to vector<1x128xf32>
    %476 = arith.mulf %475, %474 : vector<1x128xf32>
    %477 = arith.addf %461, %476 : vector<1x128xf32>
    %478 = vector.extract_strided_slice %337 {offsets = [0, 4608], sizes = [1, 128], strides = [1, 1]} : vector<1x6528xf32> to vector<1x128xf32>
    %cst_215 = arith.constant 0.0483978428 : f32
    %479 = vector.broadcast %cst_215 : f32 to vector<1x128xf32>
    %480 = arith.mulf %479, %478 : vector<1x128xf32>
    %481 = arith.addf %465, %480 : vector<1x128xf32>
    %482 = vector.extract_strided_slice %337 {offsets = [0, 4736], sizes = [1, 128], strides = [1, 1]} : vector<1x6528xf32> to vector<1x128xf32>
    %cst_216 = arith.constant 0.045817256 : f32
    %483 = vector.broadcast %cst_216 : f32 to vector<1x128xf32>
    %484 = arith.mulf %483, %482 : vector<1x128xf32>
    %485 = arith.addf %469, %484 : vector<1x128xf32>
    %486 = vector.extract_strided_slice %337 {offsets = [0, 4864], sizes = [1, 128], strides = [1, 1]} : vector<1x6528xf32> to vector<1x128xf32>
    %cst_217 = arith.constant 0.0429967158 : f32
    %487 = vector.broadcast %cst_217 : f32 to vector<1x128xf32>
    %488 = arith.mulf %487, %486 : vector<1x128xf32>
    %489 = arith.addf %473, %488 : vector<1x128xf32>
    %490 = vector.extract_strided_slice %337 {offsets = [0, 4992], sizes = [1, 128], strides = [1, 1]} : vector<1x6528xf32> to vector<1x128xf32>
    %cst_218 = arith.constant 0.0400649719 : f32
    %491 = vector.broadcast %cst_218 : f32 to vector<1x128xf32>
    %492 = arith.mulf %491, %490 : vector<1x128xf32>
    %493 = arith.addf %477, %492 : vector<1x128xf32>
    %494 = vector.extract_strided_slice %337 {offsets = [0, 5120], sizes = [1, 128], strides = [1, 1]} : vector<1x6528xf32> to vector<1x128xf32>
    %cst_219 = arith.constant 0.0369174667 : f32
    %495 = vector.broadcast %cst_219 : f32 to vector<1x128xf32>
    %496 = arith.mulf %495, %494 : vector<1x128xf32>
    %497 = arith.addf %481, %496 : vector<1x128xf32>
    %498 = vector.extract_strided_slice %337 {offsets = [0, 5248], sizes = [1, 128], strides = [1, 1]} : vector<1x6528xf32> to vector<1x128xf32>
    %cst_220 = arith.constant 0.0336807966 : f32
    %499 = vector.broadcast %cst_220 : f32 to vector<1x128xf32>
    %500 = arith.mulf %499, %498 : vector<1x128xf32>
    %501 = arith.addf %485, %500 : vector<1x128xf32>
    %502 = vector.extract_strided_slice %337 {offsets = [0, 5376], sizes = [1, 128], strides = [1, 1]} : vector<1x6528xf32> to vector<1x128xf32>
    %cst_221 = arith.constant 0.0302561838 : f32
    %503 = vector.broadcast %cst_221 : f32 to vector<1x128xf32>
    %504 = arith.mulf %503, %502 : vector<1x128xf32>
    %505 = arith.addf %489, %504 : vector<1x128xf32>
    %506 = vector.extract_strided_slice %337 {offsets = [0, 5504], sizes = [1, 128], strides = [1, 1]} : vector<1x6528xf32> to vector<1x128xf32>
    %cst_222 = arith.constant 0.0267650522 : f32
    %507 = vector.broadcast %cst_222 : f32 to vector<1x128xf32>
    %508 = arith.mulf %507, %506 : vector<1x128xf32>
    %509 = arith.addf %493, %508 : vector<1x128xf32>
    %510 = vector.extract_strided_slice %337 {offsets = [0, 5632], sizes = [1, 128], strides = [1, 1]} : vector<1x6528xf32> to vector<1x128xf32>
    %cst_223 = arith.constant 0.0231185257 : f32
    %511 = vector.broadcast %cst_223 : f32 to vector<1x128xf32>
    %512 = arith.mulf %511, %510 : vector<1x128xf32>
    %513 = arith.addf %497, %512 : vector<1x128xf32>
    %514 = vector.extract_strided_slice %337 {offsets = [0, 5760], sizes = [1, 128], strides = [1, 1]} : vector<1x6528xf32> to vector<1x128xf32>
    %cst_224 = arith.constant 0.0194256939 : f32
    %515 = vector.broadcast %cst_224 : f32 to vector<1x128xf32>
    %516 = arith.mulf %515, %514 : vector<1x128xf32>
    %517 = arith.addf %501, %516 : vector<1x128xf32>
    %518 = vector.extract_strided_slice %337 {offsets = [0, 5888], sizes = [1, 128], strides = [1, 1]} : vector<1x6528xf32> to vector<1x128xf32>
    %cst_225 = arith.constant 0.0156193366 : f32
    %519 = vector.broadcast %cst_225 : f32 to vector<1x128xf32>
    %520 = arith.mulf %519, %518 : vector<1x128xf32>
    %521 = arith.addf %505, %520 : vector<1x128xf32>
    %522 = vector.extract_strided_slice %337 {offsets = [0, 6016], sizes = [1, 128], strides = [1, 1]} : vector<1x6528xf32> to vector<1x128xf32>
    %cst_226 = arith.constant 0.0117731765 : f32
    %523 = vector.broadcast %cst_226 : f32 to vector<1x128xf32>
    %524 = arith.mulf %523, %522 : vector<1x128xf32>
    %525 = arith.addf %509, %524 : vector<1x128xf32>
    %526 = vector.extract_strided_slice %337 {offsets = [0, 6144], sizes = [1, 128], strides = [1, 1]} : vector<1x6528xf32> to vector<1x128xf32>
    %cst_227 = arith.constant 0.00789187104 : f32
    %527 = vector.broadcast %cst_227 : f32 to vector<1x128xf32>
    %528 = arith.mulf %527, %526 : vector<1x128xf32>
    %529 = arith.addf %513, %528 : vector<1x128xf32>
    %530 = vector.extract_strided_slice %337 {offsets = [0, 6272], sizes = [1, 128], strides = [1, 1]} : vector<1x6528xf32> to vector<1x128xf32>
    %cst_228 = arith.constant 0.0038675759 : f32
    %531 = vector.broadcast %cst_228 : f32 to vector<1x128xf32>
    %532 = arith.mulf %531, %530 : vector<1x128xf32>
    %533 = arith.addf %517, %532 : vector<1x128xf32>
    %534 = vector.extract_strided_slice %337 {offsets = [0, 6400], sizes = [1, 128], strides = [1, 1]} : vector<1x6528xf32> to vector<1x128xf32>
    %cst_229 = arith.constant 3.92156857E-4 : f32
    %535 = vector.broadcast %cst_229 : f32 to vector<1x128xf32>
    %536 = arith.mulf %535, %534 : vector<1x128xf32>
    %537 = arith.addf %521, %536 : vector<1x128xf32>
    %538 = arith.addf %529, %533 : vector<1x128xf32>
    %539 = arith.addf %538, %537 : vector<1x128xf32>
    %540 = arith.addf %539, %525 : vector<1x128xf32>
    %541 = vector.extract_strided_slice %1 {offsets = [0, 0], sizes = [1, 128], strides = [1, 1]} : vector<8x128xf32> to vector<1x128xf32>
    %542 = arith.mulf %540, %541 : vector<1x128xf32>
    %c0_230 = arith.constant 0 : index
    %c0_231 = arith.constant 0 : index
    %543 = vector.load %arg9[%c0_230, %c0_231] : memref<1x128xf32, #tpu.memory_space<vmem>>, vector<1x128xf32>
    tpu.vector_store %arg9[%c0_230, %c0_231], %542 {strides = array<i32>} : memref<1x128xf32, #tpu.memory_space<vmem>>, vector<1x128xf32>,
    return
  }
  func.func @transform_0(%arg0: i32) -> (i32, i32) {
    %c0_i32 = arith.constant 0 : i32
    %c0_i32_0 = arith.constant 0 : i32
    return %c0_i32, %arg0 : i32, i32
  }
  func.func @transform_1(%arg0: i32) -> (i32, i32) {
    %c0_i32 = arith.constant 0 : i32
    %c0_i32_0 = arith.constant 0 : i32
    return %c0_i32, %arg0 : i32, i32
  }
  func.func @transform_2(%arg0: i32) -> (i32, i32) {
    %c0_i32 = arith.constant 0 : i32
    %c0_i32_0 = arith.constant 0 : i32
    %c0_i32_1 = arith.constant 0 : i32
    return %c0_i32, %c0_i32_0 : i32, i32
  }
  func.func @transform_3(%arg0: i32) -> (i32, i32) {
    %c0_i32 = arith.constant 0 : i32
    %c0_i32_0 = arith.constant 0 : i32
    %c0_i32_1 = arith.constant 0 : i32
    return %c0_i32, %c0_i32_0 : i32, i32
  }
  func.func @transform_4(%arg0: i32) -> (i32, i32) {
    %c0_i32 = arith.constant 0 : i32
    %c0_i32_0 = arith.constant 0 : i32
    %c0_i32_1 = arith.constant 0 : i32
    return %c0_i32, %c0_i32_0 : i32, i32
  }
  func.func @transform_5(%arg0: i32) -> (i32, i32) {
    %c0_i32 = arith.constant 0 : i32
    %c0_i32_0 = arith.constant 0 : i32
    %c0_i32_1 = arith.constant 0 : i32
    return %c0_i32, %c0_i32_0 : i32, i32
  }
  func.func @transform_6(%arg0: i32) -> (i32, i32) {
    %c0_i32 = arith.constant 0 : i32
    %c0_i32_0 = arith.constant 0 : i32
    %c0_i32_1 = arith.constant 0 : i32
    return %c0_i32, %c0_i32_0 : i32, i32
  }
  func.func @transform_7(%arg0: i32) -> (i32, i32) {
    %c0_i32 = arith.constant 0 : i32
    %c0_i32_0 = arith.constant 0 : i32
    %c0_i32_1 = arith.constant 0 : i32
    return %c0_i32, %c0_i32_0 : i32, i32
  }
  func.func @transform_8(%arg0: i32) -> (i32, i32) {
    %c0_i32 = arith.constant 0 : i32
    %c0_i32_0 = arith.constant 0 : i32
    return %c0_i32, %arg0 : i32, i32
  }
}

</mosaic_0001>

<llo_original>
// kernel: inner_umnn_forward.1
$region0: #{inner_umnn_forward.1}
  #allocation0 [shape = 'u32[]', space=smem, size = 0x4, offset = 0x4, fixed_abs, tag = 'smem constant byte address 0x4 - core index']
  #allocation1 [shape = 'u32[144,128]{1,0:T(1,128)}', space=vmem, size = 0x12000, scoped, tag = 'internal scratch']
  #allocation2 [shape = 'f32[32,6528]{1,0:T(8,128)}', space=vmem, size = 0xcc000, scoped, tag = 'scratch operand']
  #allocation3 [shape = 'f32[1,1]{1,0:T(1,128)S(1)}', space=vmem, size = 0x200, scoped, tag = 'scoped memory for inner_umnn_forward.1']
  %s0 = inlined_call_operand.vmem [shape: f32[8,128], index: 0, kind: input, shape index: {}]
  %s1 = inlined_call_operand.vmem [shape: f32[8,128], index: 1, kind: input, shape index: {}]
  %s2 = inlined_call_operand.vmem [shape: f32[32,8], index: 2, kind: input, shape index: {}]
  %s3 = inlined_call_operand.vmem [shape: f32[32,1], index: 3, kind: input, shape index: {}]
  %s4 = inlined_call_operand.vmem [shape: f32[32,32], index: 4, kind: input, shape index: {}]
  %s5 = inlined_call_operand.vmem [shape: f32[32,1], index: 5, kind: input, shape index: {}]
  %s6 = inlined_call_operand.vmem [shape: f32[8,32], index: 6, kind: input, shape index: {}]
  %s7 = inlined_call_operand.<no memory space> [shape: f32[1,1], index: 7, kind: input, shape index: {}]
  %s8 = inlined_call_operand.vmem [shape: f32[1,128], index: 8, kind: output, shape index: {}]
  %s9 = sld [smem:[#allocation0]]
  $region42: #{inner_umnn_forward.1} parent=0
    _
  %s11 = ssub.s32 1, %s9
  %s12 = scalar_select 0, %s11, %s9
  %v13 = vstv %s7
  %14 = vst [vmem:[#allocation3] sm:$0x1] %v13
  // Predicated region
  $region2: #{inner_umnn_forward.1} parent=0 // pred_check
    _
  $region3: #{inner_umnn_forward.1} parent=0 // pred_check_branch
    %16 = sbr.rel (0) target = $region5
  $region4: #{inner_umnn_forward.1} parent=0 // pred_region
    _
  $region5: #{inner_umnn_forward.1} parent=0 // pred_fallthru
    _
  // Predicated region
  $region6: #{inner_umnn_forward.1} parent=0 // pred_check
    _
  $region7: #{inner_umnn_forward.1} parent=0 // pred_check_branch
    %18 = sbr.rel (0) target = $region9
  $region8: #{inner_umnn_forward.1} parent=0 // pred_region
    _
  $region9: #{inner_umnn_forward.1} parent=0 // pred_fallthru
    _
  // Predicated region
  $region10: #{inner_umnn_forward.1} parent=0 // pred_check
    _
  $region11: #{inner_umnn_forward.1} parent=0 // pred_check_branch
    %20 = sbr.rel (0) target = $region13
  $region12: #{inner_umnn_forward.1} parent=0 // pred_region
    _
  $region13: #{inner_umnn_forward.1} parent=0 // pred_fallthru
    _
  // Predicated region
  $region14: #{inner_umnn_forward.1} parent=0 // pred_check
    _
  $region15: #{inner_umnn_forward.1} parent=0 // pred_check_branch
    %22 = sbr.rel (0) target = $region17
  $region16: #{inner_umnn_forward.1} parent=0 // pred_region
    _
  $region17: #{inner_umnn_forward.1} parent=0 // pred_fallthru
    _
  // Predicated region
  $region18: #{inner_umnn_forward.1} parent=0 // pred_check
    _
  $region19: #{inner_umnn_forward.1} parent=0 // pred_check_branch
    %24 = sbr.rel (0) target = $region21
  $region20: #{inner_umnn_forward.1} parent=0 // pred_region
    _
  $region21: #{inner_umnn_forward.1} parent=0 // pred_fallthru
    _
  // Predicated region
  $region22: #{inner_umnn_forward.1} parent=0 // pred_check
    _
  $region23: #{inner_umnn_forward.1} parent=0 // pred_check_branch
    %26 = sbr.rel (0) target = $region25
  $region24: #{inner_umnn_forward.1} parent=0 // pred_region
    _
  $region25: #{inner_umnn_forward.1} parent=0 // pred_fallthru
    _
  // Predicated region
  $region26: #{inner_umnn_forward.1} parent=0 // pred_check
    _
  $region27: #{inner_umnn_forward.1} parent=0 // pred_check_branch
    %28 = sbr.rel (0) target = $region29
  $region28: #{inner_umnn_forward.1} parent=0 // pred_region
    _
  $region29: #{inner_umnn_forward.1} parent=0 // pred_fallthru
    _
  // Predicated region
  $region30: #{inner_umnn_forward.1} parent=0 // pred_check
    _
  $region31: #{inner_umnn_forward.1} parent=0 // pred_check_branch
    %30 = sbr.rel (0) target = $region33
  $region32: #{inner_umnn_forward.1} parent=0 // pred_region
    _
  $region33: #{inner_umnn_forward.1} parent=0 // pred_fallthru
    _
  %v31 = vld [vmem:[%s0] sm:$0xff]
  %v32 = vld [vmem:[%s1] sm:$0xff]
  %v33 = vld [vmem:[%s2] sm:$0xff]
  %v34 = vld [vmem:[%s2 + $0x8] sm:$0xff]
  %v35 = vld [vmem:[%s2 + $0x10] sm:$0xff]
  %v36 = vld [vmem:[%s2 + $0x18] sm:$0xff]
  %v37 = vld [vmem:[%s3] sm:$0xff]
  %v38 = vld [vmem:[%s3 + $0x8] sm:$0xff]
  %v39 = vld [vmem:[%s3 + $0x10] sm:$0xff]
  %v40 = vld [vmem:[%s3 + $0x18] sm:$0xff]
  %42 = vset.pattern.permute.xlu0 0
  %43 = vperm.xlu0 %42, %v37
  %v44 = vpop.permute.xlu0 %43
  %47 = vset.pattern.permute.xlu0 0
  %48 = vperm.xlu0 %47, %v38
  %v49 = vpop.permute.xlu0 %48
  %52 = vset.pattern.permute.xlu0 0
  %53 = vperm.xlu0 %52, %v39
  %v54 = vpop.permute.xlu0 %53
  %57 = vset.pattern.permute.xlu0 0
  %58 = vperm.xlu0 %57, %v40
  %v59 = vpop.permute.xlu0 %58
  %vm61 = vcmask 64512
  %v63 = vsel %vm61, %v33, 0
  %v66 = vsel %vm61, %v34, 0
  %v69 = vsel %vm61, %v35, 0
  %v72 = vsel %vm61, %v36, 0
  %74 = vmatprep.subr.mxu0 0.0
  %75 = vmatpush1.msra.mxu0 %v31
  %76 = vmatprep.subr.mxu0 0.0
  %77 = vmatpush1.msra.mxu0 0.0
  %78 = vmatprep.subr.mxu0 0.0
  %79 = vmatpush1.msra.mxu0 0.0
  %80 = vmatprep.subr.mxu0 0.0
  %81 = vmatpush1.msra.mxu0 0.0
  %82 = vmatprep.subr.mxu0 0.0
  %83 = vmatpush1.msra.mxu0 0.0
  %84 = vmatprep.subr.mxu0 0.0
  %85 = vmatpush1.msra.mxu0 0.0
  %86 = vmatprep.subr.mxu0 0.0
  %87 = vmatpush1.msra.mxu0 0.0
  %88 = vmatprep.subr.mxu0 0.0
  %89 = vmatpush1.msra.mxu0 0.0
  %90 = vmatprep.subr.mxu0 0.0
  %91 = vmatpush1.msra.mxu0 0.0
  %92 = vmatprep.subr.mxu0 0.0
  %93 = vmatpush1.msra.mxu0 0.0
  %94 = vmatprep.subr.mxu0 0.0
  %95 = vmatpush1.msra.mxu0 0.0
  %96 = vmatprep.subr.mxu0 0.0
  %97 = vmatpush1.msra.mxu0 0.0
  %98 = vmatprep.subr.mxu0 0.0
  %99 = vmatpush1.msra.mxu0 0.0
  %100 = vmatprep.subr.mxu0 0.0
  %101 = vmatpush1.msra.mxu0 0.0
  %102 = vmatprep.subr.mxu0 0.0
  %103 = vmatpush1.msra.mxu0 0.0
  %104 = vmatprep.subr.mxu0 0.0
  %105 = vmatpush1.msra.mxu0 0.0
  %106 = vmatprep.subr.mxu0 0.0
  %107 = vmatpush1.msra.mxu0 0.0
  %108 = vmatprep.subr.mxu0 0.0
  %109 = vmatpush1.msra.mxu0 0.0
  %110 = vmatprep.subr.mxu0 0.0
  %111 = vmatpush1.msra.mxu0 0.0
  %112 = vmatprep.subr.mxu0 0.0
  %113 = vmatpush1.msra.mxu0 0.0
  %114 = vmatprep.subr.mxu0 0.0
  %115 = vmatpush1.msra.mxu0 0.0
  %116 = vmatprep.subr.mxu0 0.0
  %117 = vmatpush1.msra.mxu0 0.0
  %118 = vmatprep.subr.mxu0 0.0
  %119 = vmatpush1.msra.mxu0 0.0
  %120 = vmatprep.subr.mxu0 0.0
  %121 = vmatpush1.msra.mxu0 0.0
  %122 = vmatprep.subr.mxu0 0.0
  %123 = vmatpush1.msra.mxu0 0.0
  %124 = vmatprep.subr.mxu0 0.0
  %125 = vmatpush1.msra.mxu0 0.0
  %126 = vmatprep.subr.mxu0 0.0
  %127 = vmatpush1.msra.mxu0 0.0
  %128 = vmatprep.subr.mxu0 0.0
  %129 = vmatpush1.msra.mxu0 0.0
  %130 = vmatprep.subr.mxu0 0.0
  %131 = vmatpush1.msra.mxu0 0.0
  %132 = vmatprep.subr.mxu0 0.0
  %133 = vmatpush1.msra.mxu0 0.0
  %134 = vmatprep.subr.mxu0 0.0
  %135 = vmatpush1.msra.mxu0 0.0
  %136 = vmatprep.subr.mxu0 0.0
  %137 = vmatpush1.msra.mxu0 0.0
  %138 = vmatprep.mubr.f32.mxu0 0.0
  %139 = vmatmul.mubr.f32.gmra.mrb[0].mxu0 %v63
  %v140 = vpop.f32.mrb[0].mxu0
  %v141 = vadd.f32 %v44, %v140
  %v142 = vpop.f32.mrb[0].mxu0
  %143 = vmatprep.mubr.f32.mxu0 0.0
  %144 = vmatmul.mubr.f32.gmra.mrb[0].mxu0 %v66
  %v145 = vpop.f32.mrb[0].mxu0
  %v146 = vadd.f32 %v49, %v145
  %v147 = vpop.f32.mrb[0].mxu0
  %148 = vmatprep.mubr.f32.mxu0 0.0
  %149 = vmatmul.mubr.f32.gmra.mrb[0].mxu0 %v69
  %v150 = vpop.f32.mrb[0].mxu0
  %v151 = vadd.f32 %v54, %v150
  %v152 = vpop.f32.mrb[0].mxu0
  %153 = vmatprep.mubr.f32.mxu0 0.0
  %154 = vmatmul.mubr.f32.gmra.mrb[0].mxu0 %v72
  %v155 = vpop.f32.mrb[0].mxu0
  %v156 = vadd.f32 %v59, %v155
  %v157 = vpop.f32.mrb[0].mxu0
  %158 = vdwg.mxu0
  %159 = vmatprep.subr.mxu0 0.0
  %160 = vmatpush1.msra.mxu0 %v32
  %161 = vmatprep.subr.mxu0 0.0
  %162 = vmatpush1.msra.mxu0 0.0
  %163 = vmatprep.subr.mxu0 0.0
  %164 = vmatpush1.msra.mxu0 0.0
  %165 = vmatprep.subr.mxu0 0.0
  %166 = vmatpush1.msra.mxu0 0.0
  %167 = vmatprep.subr.mxu0 0.0
  %168 = vmatpush1.msra.mxu0 0.0
  %169 = vmatprep.subr.mxu0 0.0
  %170 = vmatpush1.msra.mxu0 0.0
  %171 = vmatprep.subr.mxu0 0.0
  %172 = vmatpush1.msra.mxu0 0.0
  %173 = vmatprep.subr.mxu0 0.0
  %174 = vmatpush1.msra.mxu0 0.0
  %175 = vmatprep.subr.mxu0 0.0
  %176 = vmatpush1.msra.mxu0 0.0
  %177 = vmatprep.subr.mxu0 0.0
  %178 = vmatpush1.msra.mxu0 0.0
  %179 = vmatprep.subr.mxu0 0.0
  %180 = vmatpush1.msra.mxu0 0.0
  %181 = vmatprep.subr.mxu0 0.0
  %182 = vmatpush1.msra.mxu0 0.0
  %183 = vmatprep.subr.mxu0 0.0
  %184 = vmatpush1.msra.mxu0 0.0
  %185 = vmatprep.subr.mxu0 0.0
  %186 = vmatpush1.msra.mxu0 0.0
  %187 = vmatprep.subr.mxu0 0.0
  %188 = vmatpush1.msra.mxu0 0.0
  %189 = vmatprep.subr.mxu0 0.0
  %190 = vmatpush1.msra.mxu0 0.0
  %191 = vmatprep.subr.mxu0 0.0
  %192 = vmatpush1.msra.mxu0 0.0
  %193 = vmatprep.subr.mxu0 0.0
  %194 = vmatpush1.msra.mxu0 0.0
  %195 = vmatprep.subr.mxu0 0.0
  %196 = vmatpush1.msra.mxu0 0.0
  %197 = vmatprep.subr.mxu0 0.0
  %198 = vmatpush1.msra.mxu0 0.0
  %199 = vmatprep.subr.mxu0 0.0
  %200 = vmatpush1.msra.mxu0 0.0
  %201 = vmatprep.subr.mxu0 0.0
  %202 = vmatpush1.msra.mxu0 0.0
  %203 = vmatprep.subr.mxu0 0.0
  %204 = vmatpush1.msra.mxu0 0.0
  %205 = vmatprep.subr.mxu0 0.0
  %206 = vmatpush1.msra.mxu0 0.0
  %207 = vmatprep.subr.mxu0 0.0
  %208 = vmatpush1.msra.mxu0 0.0
  %209 = vmatprep.subr.mxu0 0.0
  %210 = vmatpush1.msra.mxu0 0.0
  %211 = vmatprep.subr.mxu0 0.0
  %212 = vmatpush1.msra.mxu0 0.0
  %213 = vmatprep.subr.mxu0 0.0
  %214 = vmatpush1.msra.mxu0 0.0
  %215 = vmatprep.subr.mxu0 0.0
  %216 = vmatpush1.msra.mxu0 0.0
  %217 = vmatprep.subr.mxu0 0.0
  %218 = vmatpush1.msra.mxu0 0.0
  %219 = vmatprep.subr.mxu0 0.0
  %220 = vmatpush1.msra.mxu0 0.0
  %221 = vmatprep.subr.mxu0 0.0
  %222 = vmatpush1.msra.mxu0 0.0
  %223 = vmatprep.mubr.f32.mxu0 0.0
  %224 = vmatmul.mubr.f32.gmra.mrb[0].mxu0 %v63
  %v225 = vpop.f32.mrb[0].mxu0
  %v226 = vadd.f32 0.0, %v225
  %v227 = vpop.f32.mrb[0].mxu0
  %228 = vmatprep.mubr.f32.mxu0 0.0
  %229 = vmatmul.mubr.f32.gmra.mrb[0].mxu0 %v66
  %v230 = vpop.f32.mrb[0].mxu0
  %v231 = vadd.f32 0.0, %v230
  %v232 = vpop.f32.mrb[0].mxu0
  %233 = vmatprep.mubr.f32.mxu0 0.0
  %234 = vmatmul.mubr.f32.gmra.mrb[0].mxu0 %v69
  %v235 = vpop.f32.mrb[0].mxu0
  %v236 = vadd.f32 0.0, %v235
  %v237 = vpop.f32.mrb[0].mxu0
  %238 = vmatprep.mubr.f32.mxu0 0.0
  %239 = vmatmul.mubr.f32.gmra.mrb[0].mxu0 %v72
  %v240 = vpop.f32.mrb[0].mxu0
  %v241 = vadd.f32 0.0, %v240
  %v242 = vpop.f32.mrb[0].mxu0
  %243 = vdwg.mxu0
  %v244 = vmul.f32 %v226, 2.0
  %v245 = vmul.f32 %v231, 2.0
  %v246 = vmul.f32 %v236, 2.0
  %v247 = vmul.f32 %v241, 2.0
  %v248 = vadd.f32 %v141, %v244
  %v249 = vadd.f32 %v146, %v245
  %v250 = vadd.f32 %v151, %v246
  %v251 = vadd.f32 %v156, %v247
  %v252 = vmax.f32 %v248, 0.0
  %v253 = vmax.f32 %v249, 0.0
  %v254 = vmax.f32 %v250, 0.0
  %v255 = vmax.f32 %v251, 0.0
  %256 = vst [vmem:[#allocation2] sm:$0xff] %v252
  %257 = vst [vmem:[#allocation2 + $0x198] sm:$0xff] %v253
  %258 = vst [vmem:[#allocation2 + $0x330] sm:$0xff] %v254
  %259 = vst [vmem:[#allocation2 + $0x4c8] sm:$0xff] %v255
  %v260 = vmul.f32 %v226, 1.9980267
  %v261 = vmul.f32 %v231, 1.9980267
  %v262 = vmul.f32 %v236, 1.9980267
  %v263 = vmul.f32 %v241, 1.9980267
  %v264 = vadd.f32 %v141, %v260
  %v265 = vadd.f32 %v146, %v261
  %v266 = vadd.f32 %v151, %v262
  %v267 = vadd.f32 %v156, %v263
  %v268 = vmax.f32 %v264, 0.0
  %v269 = vmax.f32 %v265, 0.0
  %v270 = vmax.f32 %v266, 0.0
  %v271 = vmax.f32 %v267, 0.0
  %272 = vst [vmem:[#allocation2 + $0x8] sm:$0xff] %v268
  %273 = vst [vmem:[#allocation2 + $0x1a0] sm:$0xff] %v269
  %274 = vst [vmem:[#allocation2 + $0x338] sm:$0xff] %v270
  %275 = vst [vmem:[#allocation2 + $0x4d0] sm:$0xff] %v271
  %v276 = vmul.f32 %v226, 1.9921148
  %v277 = vmul.f32 %v231, 1.9921148
  %v278 = vmul.f32 %v236, 1.9921148
  %v279 = vmul.f32 %v241, 1.9921148
  %v280 = vadd.f32 %v141, %v276
  %v281 = vadd.f32 %v146, %v277
  %v282 = vadd.f32 %v151, %v278
  %v283 = vadd.f32 %v156, %v279
  %v284 = vmax.f32 %v280, 0.0
  %v285 = vmax.f32 %v281, 0.0
  %v286 = vmax.f32 %v282, 0.0
  %v287 = vmax.f32 %v283, 0.0
  %288 = vst [vmem:[#allocation2 + $0x10] sm:$0xff] %v284
  %289 = vst [vmem:[#allocation2 + $0x1a8] sm:$0xff] %v285
  %290 = vst [vmem:[#allocation2 + $0x340] sm:$0xff] %v286
  %291 = vst [vmem:[#allocation2 + $0x4d8] sm:$0xff] %v287
  %v292 = vmul.f32 %v226, 1.9822872
  %v293 = vmul.f32 %v231, 1.9822872
  %v294 = vmul.f32 %v236, 1.9822872
  %v295 = vmul.f32 %v241, 1.9822872
  %v296 = vadd.f32 %v141, %v292
  %v297 = vadd.f32 %v146, %v293
  %v298 = vadd.f32 %v151, %v294
  %v299 = vadd.f32 %v156, %v295
  %v300 = vmax.f32 %v296, 0.0
  %v301 = vmax.f32 %v297, 0.0
  %v302 = vmax.f32 %v298, 0.0
  %v303 = vmax.f32 %v299, 0.0
  %304 = vst [vmem:[#allocation2 + $0x18] sm:$0xff] %v300
  %305 = vst [vmem:[#allocation2 + $0x1b0] sm:$0xff] %v301
  %306 = vst [vmem:[#allocation2 + $0x348] sm:$0xff] %v302
  %307 = vst [vmem:[#allocation2 + $0x4e0] sm:$0xff] %v303
  %v308 = vmul.f32 %v226, 1.9685831
  %v309 = vmul.f32 %v231, 1.9685831
  %v310 = vmul.f32 %v236, 1.9685831
  %v311 = vmul.f32 %v241, 1.9685831
  %v312 = vadd.f32 %v141, %v308
  %v313 = vadd.f32 %v146, %v309
  %v314 = vadd.f32 %v151, %v310
  %v315 = vadd.f32 %v156, %v311
  %v316 = vmax.f32 %v312, 0.0
  %v317 = vmax.f32 %v313, 0.0
  %v318 = vmax.f32 %v314, 0.0
  %v319 = vmax.f32 %v315, 0.0
  %320 = vst [vmem:[#allocation2 + $0x20] sm:$0xff] %v316
  %321 = vst [vmem:[#allocation2 + $0x1b8] sm:$0xff] %v317
  %322 = vst [vmem:[#allocation2 + $0x350] sm:$0xff] %v318
  %323 = vst [vmem:[#allocation2 + $0x4e8] sm:$0xff] %v319
  %v324 = vmul.f32 %v226, 1.9510565
  %v325 = vmul.f32 %v231, 1.9510565
  %v326 = vmul.f32 %v236, 1.9510565
  %v327 = vmul.f32 %v241, 1.9510565
  %v328 = vadd.f32 %v141, %v324
  %v329 = vadd.f32 %v146, %v325
  %v330 = vadd.f32 %v151, %v326
  %v331 = vadd.f32 %v156, %v327
  %v332 = vmax.f32 %v328, 0.0
  %v333 = vmax.f32 %v329, 0.0
  %v334 = vmax.f32 %v330, 0.0
  %v335 = vmax.f32 %v331, 0.0
  %336 = vst [vmem:[#allocation2 + $0x28] sm:$0xff] %v332
  %337 = vst [vmem:[#allocation2 + $0x1c0] sm:$0xff] %v333
  %338 = vst [vmem:[#allocation2 + $0x358] sm:$0xff] %v334
  %339 = vst [vmem:[#allocation2 + $0x4f0] sm:$0xff] %v335
  %v340 = vmul.f32 %v226, 1.9297764
  %v341 = vmul.f32 %v231, 1.9297764
  %v342 = vmul.f32 %v236, 1.9297764
  %v343 = vmul.f32 %v241, 1.9297764
  %v344 = vadd.f32 %v141, %v340
  %v345 = vadd.f32 %v146, %v341
  %v346 = vadd.f32 %v151, %v342
  %v347 = vadd.f32 %v156, %v343
  %v348 = vmax.f32 %v344, 0.0
  %v349 = vmax.f32 %v345, 0.0
  %v350 = vmax.f32 %v346, 0.0
  %v351 = vmax.f32 %v347, 0.0
  %352 = vst [vmem:[#allocation2 + $0x30] sm:$0xff] %v348
  %353 = vst [vmem:[#allocation2 + $0x1c8] sm:$0xff] %v349
  %354 = vst [vmem:[#allocation2 + $0x360] sm:$0xff] %v350
  %355 = vst [vmem:[#allocation2 + $0x4f8] sm:$0xff] %v351
  %v356 = vmul.f32 %v226, 1.9048271
  %v357 = vmul.f32 %v231, 1.9048271
  %v358 = vmul.f32 %v236, 1.9048271
  %v359 = vmul.f32 %v241, 1.9048271
  %v360 = vadd.f32 %v141, %v356
  %v361 = vadd.f32 %v146, %v357
  %v362 = vadd.f32 %v151, %v358
  %v363 = vadd.f32 %v156, %v359
  %v364 = vmax.f32 %v360, 0.0
  %v365 = vmax.f32 %v361, 0.0
  %v366 = vmax.f32 %v362, 0.0
  %v367 = vmax.f32 %v363, 0.0
  %368 = vst [vmem:[#allocation2 + $0x38] sm:$0xff] %v364
  %369 = vst [vmem:[#allocation2 + $0x1d0] sm:$0xff] %v365
  %370 = vst [vmem:[#allocation2 + $0x368] sm:$0xff] %v366
  %371 = vst [vmem:[#allocation2 + $0x500] sm:$0xff] %v367
  %v372 = vmul.f32 %v226, 1.8763067
  %v373 = vmul.f32 %v231, 1.8763067
  %v374 = vmul.f32 %v236, 1.8763067
  %v375 = vmul.f32 %v241, 1.8763067
  %v376 = vadd.f32 %v141, %v372
  %v377 = vadd.f32 %v146, %v373
  %v378 = vadd.f32 %v151, %v374
  %v379 = vadd.f32 %v156, %v375
  %v380 = vmax.f32 %v376, 0.0
  %v381 = vmax.f32 %v377, 0.0
  %v382 = vmax.f32 %v378, 0.0
  %v383 = vmax.f32 %v379, 0.0
  %384 = vst [vmem:[#allocation2 + $0x40] sm:$0xff] %v380
  %385 = vst [vmem:[#allocation2 + $0x1d8] sm:$0xff] %v381
  %386 = vst [vmem:[#allocation2 + $0x370] sm:$0xff] %v382
  %387 = vst [vmem:[#allocation2 + $0x508] sm:$0xff] %v383
  %v388 = vmul.f32 %v226, 1.8443279
  %v389 = vmul.f32 %v231, 1.8443279
  %v390 = vmul.f32 %v236, 1.8443279
  %v391 = vmul.f32 %v241, 1.8443279
  %v392 = vadd.f32 %v141, %v388
  %v393 = vadd.f32 %v146, %v389
  %v394 = vadd.f32 %v151, %v390
  %v395 = vadd.f32 %v156, %v391
  %v396 = vmax.f32 %v392, 0.0
  %v397 = vmax.f32 %v393, 0.0
  %v398 = vmax.f32 %v394, 0.0
  %v399 = vmax.f32 %v395, 0.0
  %400 = vst [vmem:[#allocation2 + $0x48] sm:$0xff] %v396
  %401 = vst [vmem:[#allocation2 + $0x1e0] sm:$0xff] %v397
  %402 = vst [vmem:[#allocation2 + $0x378] sm:$0xff] %v398
  %403 = vst [vmem:[#allocation2 + $0x510] sm:$0xff] %v399
  %v404 = vmul.f32 %v226, 1.809017
  %v405 = vmul.f32 %v231, 1.809017
  %v406 = vmul.f32 %v236, 1.809017
  %v407 = vmul.f32 %v241, 1.809017
  %v408 = vadd.f32 %v141, %v404
  %v409 = vadd.f32 %v146, %v405
  %v410 = vadd.f32 %v151, %v406
  %v411 = vadd.f32 %v156, %v407
  %v412 = vmax.f32 %v408, 0.0
  %v413 = vmax.f32 %v409, 0.0
  %v414 = vmax.f32 %v410, 0.0
  %v415 = vmax.f32 %v411, 0.0
  %416 = vst [vmem:[#allocation2 + $0x50] sm:$0xff] %v412
  %417 = vst [vmem:[#allocation2 + $0x1e8] sm:$0xff] %v413
  %418 = vst [vmem:[#allocation2 + $0x380] sm:$0xff] %v414
  %419 = vst [vmem:[#allocation2 + $0x518] sm:$0xff] %v415
  %v420 = vmul.f32 %v226, 1.7705133
  %v421 = vmul.f32 %v231, 1.7705133
  %v422 = vmul.f32 %v236, 1.7705133
  %v423 = vmul.f32 %v241, 1.7705133
  %v424 = vadd.f32 %v141, %v420
  %v425 = vadd.f32 %v146, %v421
  %v426 = vadd.f32 %v151, %v422
  %v427 = vadd.f32 %v156, %v423
  %v428 = vmax.f32 %v424, 0.0
  %v429 = vmax.f32 %v425, 0.0
  %v430 = vmax.f32 %v426, 0.0
  %v431 = vmax.f32 %v427, 0.0
  %432 = vst [vmem:[#allocation2 + $0x58] sm:$0xff] %v428
  %433 = vst [vmem:[#allocation2 + $0x1f0] sm:$0xff] %v429
  %434 = vst [vmem:[#allocation2 + $0x388] sm:$0xff] %v430
  %435 = vst [vmem:[#allocation2 + $0x520] sm:$0xff] %v431
  %v436 = vmul.f32 %v226, 1.7289686
  %v437 = vmul.f32 %v231, 1.7289686
  %v438 = vmul.f32 %v236, 1.7289686
  %v439 = vmul.f32 %v241, 1.7289686
  %v440 = vadd.f32 %v141, %v436
  %v441 = vadd.f32 %v146, %v437
  %v442 = vadd.f32 %v151, %v438
  %v443 = vadd.f32 %v156, %v439
  %v444 = vmax.f32 %v440, 0.0
  %v445 = vmax.f32 %v441, 0.0
  %v446 = vmax.f32 %v442, 0.0
  %v447 = vmax.f32 %v443, 0.0
  %448 = vst [vmem:[#allocation2 + $0x60] sm:$0xff] %v444
  %449 = vst [vmem:[#allocation2 + $0x1f8] sm:$0xff] %v445
  %450 = vst [vmem:[#allocation2 + $0x390] sm:$0xff] %v446
  %451 = vst [vmem:[#allocation2 + $0x528] sm:$0xff] %v447
  %v452 = vmul.f32 %v226, 1.6845472
  %v453 = vmul.f32 %v231, 1.6845472
  %v454 = vmul.f32 %v236, 1.6845472
  %v455 = vmul.f32 %v241, 1.6845472
  %v456 = vadd.f32 %v141, %v452
  %v457 = vadd.f32 %v146, %v453
  %v458 = vadd.f32 %v151, %v454
  %v459 = vadd.f32 %v156, %v455
  %v460 = vmax.f32 %v456, 0.0
  %v461 = vmax.f32 %v457, 0.0
  %v462 = vmax.f32 %v458, 0.0
  %v463 = vmax.f32 %v459, 0.0
  %464 = vst [vmem:[#allocation2 + $0x68] sm:$0xff] %v460
  %465 = vst [vmem:[#allocation2 + $0x200] sm:$0xff] %v461
  %466 = vst [vmem:[#allocation2 + $0x398] sm:$0xff] %v462
  %467 = vst [vmem:[#allocation2 + $0x530] sm:$0xff] %v463
  %v468 = vmul.f32 %v226, 1.637424
  %v469 = vmul.f32 %v231, 1.637424
  %v470 = vmul.f32 %v236, 1.637424
  %v471 = vmul.f32 %v241, 1.637424
  %v472 = vadd.f32 %v141, %v468
  %v473 = vadd.f32 %v146, %v469
  %v474 = vadd.f32 %v151, %v470
  %v475 = vadd.f32 %v156, %v471
  %v476 = vmax.f32 %v472, 0.0
  %v477 = vmax.f32 %v473, 0.0
  %v478 = vmax.f32 %v474, 0.0
  %v479 = vmax.f32 %v475, 0.0
  %480 = vst [vmem:[#allocation2 + $0x70] sm:$0xff] %v476
  %481 = vst [vmem:[#allocation2 + $0x208] sm:$0xff] %v477
  %482 = vst [vmem:[#allocation2 + $0x3a0] sm:$0xff] %v478
  %483 = vst [vmem:[#allocation2 + $0x538] sm:$0xff] %v479
  %v484 = vmul.f32 %v226, 1.5877852
  %v485 = vmul.f32 %v231, 1.5877852
  %v486 = vmul.f32 %v236, 1.5877852
  %v487 = vmul.f32 %v241, 1.5877852
  %v488 = vadd.f32 %v141, %v484
  %v489 = vadd.f32 %v146, %v485
  %v490 = vadd.f32 %v151, %v486
  %v491 = vadd.f32 %v156, %v487
  %v492 = vmax.f32 %v488, 0.0
  %v493 = vmax.f32 %v489, 0.0
  %v494 = vmax.f32 %v490, 0.0
  %v495 = vmax.f32 %v491, 0.0
  %496 = vst [vmem:[#allocation2 + $0x78] sm:$0xff] %v492
  %497 = vst [vmem:[#allocation2 + $0x210] sm:$0xff] %v493
  %498 = vst [vmem:[#allocation2 + $0x3a8] sm:$0xff] %v494
  %499 = vst [vmem:[#allocation2 + $0x540] sm:$0xff] %v495
  %v500 = vmul.f32 %v226, 1.5358268
  %v501 = vmul.f32 %v231, 1.5358268
  %v502 = vmul.f32 %v236, 1.5358268
  %v503 = vmul.f32 %v241, 1.5358268
  %v504 = vadd.f32 %v141, %v500
  %v505 = vadd.f32 %v146, %v501
  %v506 = vadd.f32 %v151, %v502
  %v507 = vadd.f32 %v156, %v503
  %v508 = vmax.f32 %v504, 0.0
  %v509 = vmax.f32 %v505, 0.0
  %v510 = vmax.f32 %v506, 0.0
  %v511 = vmax.f32 %v507, 0.0
  %512 = vst [vmem:[#allocation2 + $0x80] sm:$0xff] %v508
  %513 = vst [vmem:[#allocation2 + $0x218] sm:$0xff] %v509
  %514 = vst [vmem:[#allocation2 + $0x3b0] sm:$0xff] %v510
  %515 = vst [vmem:[#allocation2 + $0x548] sm:$0xff] %v511
  %v516 = vmul.f32 %v226, 1.4817537
  %v517 = vmul.f32 %v231, 1.4817537
  %v518 = vmul.f32 %v236, 1.4817537
  %v519 = vmul.f32 %v241, 1.4817537
  %v520 = vadd.f32 %v141, %v516
  %v521 = vadd.f32 %v146, %v517
  %v522 = vadd.f32 %v151, %v518
  %v523 = vadd.f32 %v156, %v519
  %v524 = vmax.f32 %v520, 0.0
  %v525 = vmax.f32 %v521, 0.0
  %v526 = vmax.f32 %v522, 0.0
  %v527 = vmax.f32 %v523, 0.0
  %528 = vst [vmem:[#allocation2 + $0x88] sm:$0xff] %v524
  %529 = vst [vmem:[#allocation2 + $0x220] sm:$0xff] %v525
  %530 = vst [vmem:[#allocation2 + $0x3b8] sm:$0xff] %v526
  %531 = vst [vmem:[#allocation2 + $0x550] sm:$0xff] %v527
  %v532 = vmul.f32 %v226, 1.4257793
  %v533 = vmul.f32 %v231, 1.4257793
  %v534 = vmul.f32 %v236, 1.4257793
  %v535 = vmul.f32 %v241, 1.4257793
  %v536 = vadd.f32 %v141, %v532
  %v537 = vadd.f32 %v146, %v533
  %v538 = vadd.f32 %v151, %v534
  %v539 = vadd.f32 %v156, %v535
  %v540 = vmax.f32 %v536, 0.0
  %v541 = vmax.f32 %v537, 0.0
  %v542 = vmax.f32 %v538, 0.0
  %v543 = vmax.f32 %v539, 0.0
  %544 = vst [vmem:[#allocation2 + $0x90] sm:$0xff] %v540
  %545 = vst [vmem:[#allocation2 + $0x228] sm:$0xff] %v541
  %546 = vst [vmem:[#allocation2 + $0x3c0] sm:$0xff] %v542
  %547 = vst [vmem:[#allocation2 + $0x558] sm:$0xff] %v543
  %v548 = vmul.f32 %v226, 1.3681245
  %v549 = vmul.f32 %v231, 1.3681245
  %v550 = vmul.f32 %v236, 1.3681245
  %v551 = vmul.f32 %v241, 1.3681245
  %v552 = vadd.f32 %v141, %v548
  %v553 = vadd.f32 %v146, %v549
  %v554 = vadd.f32 %v151, %v550
  %v555 = vadd.f32 %v156, %v551
  %v556 = vmax.f32 %v552, 0.0
  %v557 = vmax.f32 %v553, 0.0
  %v558 = vmax.f32 %v554, 0.0
  %v559 = vmax.f32 %v555, 0.0
  %560 = vst [vmem:[#allocation2 + $0x98] sm:$0xff] %v556
  %561 = vst [vmem:[#allocation2 + $0x230] sm:$0xff] %v557
  %562 = vst [vmem:[#allocation2 + $0x3c8] sm:$0xff] %v558
  %563 = vst [vmem:[#allocation2 + $0x560] sm:$0xff] %v559
  %v564 = vmul.f32 %v226, 1.309017
  %v565 = vmul.f32 %v231, 1.309017
  %v566 = vmul.f32 %v236, 1.309017
  %v567 = vmul.f32 %v241, 1.309017
  %v568 = vadd.f32 %v141, %v564
  %v569 = vadd.f32 %v146, %v565
  %v570 = vadd.f32 %v151, %v566
  %v571 = vadd.f32 %v156, %v567
  %v572 = vmax.f32 %v568, 0.0
  %v573 = vmax.f32 %v569, 0.0
  %v574 = vmax.f32 %v570, 0.0
  %v575 = vmax.f32 %v571, 0.0
  %576 = vst [vmem:[#allocation2 + $0xa0] sm:$0xff] %v572
  %577 = vst [vmem:[#allocation2 + $0x238] sm:$0xff] %v573
  %578 = vst [vmem:[#allocation2 + $0x3d0] sm:$0xff] %v574
  %579 = vst [vmem:[#allocation2 + $0x568] sm:$0xff] %v575
  %v580 = vmul.f32 %v226, 1.2486899
  %v581 = vmul.f32 %v231, 1.2486899
  %v582 = vmul.f32 %v236, 1.2486899
  %v583 = vmul.f32 %v241, 1.2486899
  %v584 = vadd.f32 %v141, %v580
  %v585 = vadd.f32 %v146, %v581
  %v586 = vadd.f32 %v151, %v582
  %v587 = vadd.f32 %v156, %v583
  %v588 = vmax.f32 %v584, 0.0
  %v589 = vmax.f32 %v585, 0.0
  %v590 = vmax.f32 %v586, 0.0
  %v591 = vmax.f32 %v587, 0.0
  %592 = vst [vmem:[#allocation2 + $0xa8] sm:$0xff] %v588
  %593 = vst [vmem:[#allocation2 + $0x240] sm:$0xff] %v589
  %594 = vst [vmem:[#allocation2 + $0x3d8] sm:$0xff] %v590
  %595 = vst [vmem:[#allocation2 + $0x570] sm:$0xff] %v591
  %v596 = vmul.f32 %v226, 1.1873813
  %v597 = vmul.f32 %v231, 1.1873813
  %v598 = vmul.f32 %v236, 1.1873813
  %v599 = vmul.f32 %v241, 1.1873813
  %v600 = vadd.f32 %v141, %v596
  %v601 = vadd.f32 %v146, %v597
  %v602 = vadd.f32 %v151, %v598
  %v603 = vadd.f32 %v156, %v599
  %v604 = vmax.f32 %v600, 0.0
  %v605 = vmax.f32 %v601, 0.0
  %v606 = vmax.f32 %v602, 0.0
  %v607 = vmax.f32 %v603, 0.0
  %608 = vst [vmem:[#allocation2 + $0xb0] sm:$0xff] %v604
  %609 = vst [vmem:[#allocation2 + $0x248] sm:$0xff] %v605
  %610 = vst [vmem:[#allocation2 + $0x3e0] sm:$0xff] %v606
  %611 = vst [vmem:[#allocation2 + $0x578] sm:$0xff] %v607
  %v612 = vmul.f32 %v226, 1.1253332
  %v613 = vmul.f32 %v231, 1.1253332
  %v614 = vmul.f32 %v236, 1.1253332
  %v615 = vmul.f32 %v241, 1.1253332
  %v616 = vadd.f32 %v141, %v612
  %v617 = vadd.f32 %v146, %v613
  %v618 = vadd.f32 %v151, %v614
  %v619 = vadd.f32 %v156, %v615
  %v620 = vmax.f32 %v616, 0.0
  %v621 = vmax.f32 %v617, 0.0
  %v622 = vmax.f32 %v618, 0.0
  %v623 = vmax.f32 %v619, 0.0
  %624 = vst [vmem:[#allocation2 + $0xb8] sm:$0xff] %v620
  %625 = vst [vmem:[#allocation2 + $0x250] sm:$0xff] %v621
  %626 = vst [vmem:[#allocation2 + $0x3e8] sm:$0xff] %v622
  %627 = vst [vmem:[#allocation2 + $0x580] sm:$0xff] %v623
  %v628 = vmul.f32 %v226, 1.0627905
  %v629 = vmul.f32 %v231, 1.0627905
  %v630 = vmul.f32 %v236, 1.0627905
  %v631 = vmul.f32 %v241, 1.0627905
  %v632 = vadd.f32 %v141, %v628
  %v633 = vadd.f32 %v146, %v629
  %v634 = vadd.f32 %v151, %v630
  %v635 = vadd.f32 %v156, %v631
  %v636 = vmax.f32 %v632, 0.0
  %v637 = vmax.f32 %v633, 0.0
  %v638 = vmax.f32 %v634, 0.0
  %v639 = vmax.f32 %v635, 0.0
  %640 = vst [vmem:[#allocation2 + $0xc0] sm:$0xff] %v636
  %641 = vst [vmem:[#allocation2 + $0x258] sm:$0xff] %v637
  %642 = vst [vmem:[#allocation2 + $0x3f0] sm:$0xff] %v638
  %643 = vst [vmem:[#allocation2 + $0x588] sm:$0xff] %v639
  %v644 = vadd.f32 %v141, %v226
  %v645 = vadd.f32 %v146, %v231
  %v646 = vadd.f32 %v151, %v236
  %v647 = vadd.f32 %v156, %v241
  %v648 = vmax.f32 %v644, 0.0
  %v649 = vmax.f32 %v645, 0.0
  %v650 = vmax.f32 %v646, 0.0
  %v651 = vmax.f32 %v647, 0.0
  %652 = vst [vmem:[#allocation2 + $0xc8] sm:$0xff] %v648
  %653 = vst [vmem:[#allocation2 + $0x260] sm:$0xff] %v649
  %654 = vst [vmem:[#allocation2 + $0x3f8] sm:$0xff] %v650
  %655 = vst [vmem:[#allocation2 + $0x590] sm:$0xff] %v651
  %v656 = vmul.f32 %v226, 0.9372095
  %v657 = vmul.f32 %v231, 0.9372095
  %v658 = vmul.f32 %v236, 0.9372095
  %v659 = vmul.f32 %v241, 0.9372095
  %v660 = vadd.f32 %v141, %v656
  %v661 = vadd.f32 %v146, %v657
  %v662 = vadd.f32 %v151, %v658
  %v663 = vadd.f32 %v156, %v659
  %v664 = vmax.f32 %v660, 0.0
  %v665 = vmax.f32 %v661, 0.0
  %v666 = vmax.f32 %v662, 0.0
  %v667 = vmax.f32 %v663, 0.0
  %668 = vst [vmem:[#allocation2 + $0xd0] sm:$0xff] %v664
  %669 = vst [vmem:[#allocation2 + $0x268] sm:$0xff] %v665
  %670 = vst [vmem:[#allocation2 + $0x400] sm:$0xff] %v666
  %671 = vst [vmem:[#allocation2 + $0x598] sm:$0xff] %v667
  %v672 = vmul.f32 %v226, 0.87466675
  %v673 = vmul.f32 %v231, 0.87466675
  %v674 = vmul.f32 %v236, 0.87466675
  %v675 = vmul.f32 %v241, 0.87466675
  %v676 = vadd.f32 %v141, %v672
  %v677 = vadd.f32 %v146, %v673
  %v678 = vadd.f32 %v151, %v674
  %v679 = vadd.f32 %v156, %v675
  %v680 = vmax.f32 %v676, 0.0
  %v681 = vmax.f32 %v677, 0.0
  %v682 = vmax.f32 %v678, 0.0
  %v683 = vmax.f32 %v679, 0.0
  %684 = vst [vmem:[#allocation2 + $0xd8] sm:$0xff] %v680
  %685 = vst [vmem:[#allocation2 + $0x270] sm:$0xff] %v681
  %686 = vst [vmem:[#allocation2 + $0x408] sm:$0xff] %v682
  %687 = vst [vmem:[#allocation2 + $0x5a0] sm:$0xff] %v683
  %v688 = vmul.f32 %v226, 0.8126187
  %v689 = vmul.f32 %v231, 0.8126187
  %v690 = vmul.f32 %v236, 0.8126187
  %v691 = vmul.f32 %v241, 0.8126187
  %v692 = vadd.f32 %v141, %v688
  %v693 = vadd.f32 %v146, %v689
  %v694 = vadd.f32 %v151, %v690
  %v695 = vadd.f32 %v156, %v691
  %v696 = vmax.f32 %v692, 0.0
  %v697 = vmax.f32 %v693, 0.0
  %v698 = vmax.f32 %v694, 0.0
  %v699 = vmax.f32 %v695, 0.0
  %700 = vst [vmem:[#allocation2 + $0xe0] sm:$0xff] %v696
  %701 = vst [vmem:[#allocation2 + $0x278] sm:$0xff] %v697
  %702 = vst [vmem:[#allocation2 + $0x410] sm:$0xff] %v698
  %703 = vst [vmem:[#allocation2 + $0x5a8] sm:$0xff] %v699
  %v704 = vmul.f32 %v226, 0.7513101
  %v705 = vmul.f32 %v231, 0.7513101
  %v706 = vmul.f32 %v236, 0.7513101
  %v707 = vmul.f32 %v241, 0.7513101
  %v708 = vadd.f32 %v141, %v704
  %v709 = vadd.f32 %v146, %v705
  %v710 = vadd.f32 %v151, %v706
  %v711 = vadd.f32 %v156, %v707
  %v712 = vmax.f32 %v708, 0.0
  %v713 = vmax.f32 %v709, 0.0
  %v714 = vmax.f32 %v710, 0.0
  %v715 = vmax.f32 %v711, 0.0
  %716 = vst [vmem:[#allocation2 + $0xe8] sm:$0xff] %v712
  %717 = vst [vmem:[#allocation2 + $0x280] sm:$0xff] %v713
  %718 = vst [vmem:[#allocation2 + $0x418] sm:$0xff] %v714
  %719 = vst [vmem:[#allocation2 + $0x5b0] sm:$0xff] %v715
  %v720 = vmul.f32 %v226, 0.690983
  %v721 = vmul.f32 %v231, 0.690983
  %v722 = vmul.f32 %v236, 0.690983
  %v723 = vmul.f32 %v241, 0.690983
  %v724 = vadd.f32 %v141, %v720
  %v725 = vadd.f32 %v146, %v721
  %v726 = vadd.f32 %v151, %v722
  %v727 = vadd.f32 %v156, %v723
  %v728 = vmax.f32 %v724, 0.0
  %v729 = vmax.f32 %v725, 0.0
  %v730 = vmax.f32 %v726, 0.0
  %v731 = vmax.f32 %v727, 0.0
  %732 = vst [vmem:[#allocation2 + $0xf0] sm:$0xff] %v728
  %733 = vst [vmem:[#allocation2 + $0x288] sm:$0xff] %v729
  %734 = vst [vmem:[#allocation2 + $0x420] sm:$0xff] %v730
  %735 = vst [vmem:[#allocation2 + $0x5b8] sm:$0xff] %v731
  %v736 = vmul.f32 %v226, 0.63187546
  %v737 = vmul.f32 %v231, 0.63187546
  %v738 = vmul.f32 %v236, 0.63187546
  %v739 = vmul.f32 %v241, 0.63187546
  %v740 = vadd.f32 %v141, %v736
  %v741 = vadd.f32 %v146, %v737
  %v742 = vadd.f32 %v151, %v738
  %v743 = vadd.f32 %v156, %v739
  %v744 = vmax.f32 %v740, 0.0
  %v745 = vmax.f32 %v741, 0.0
  %v746 = vmax.f32 %v742, 0.0
  %v747 = vmax.f32 %v743, 0.0
  %748 = vst [vmem:[#allocation2 + $0xf8] sm:$0xff] %v744
  %749 = vst [vmem:[#allocation2 + $0x290] sm:$0xff] %v745
  %750 = vst [vmem:[#allocation2 + $0x428] sm:$0xff] %v746
  %751 = vst [vmem:[#allocation2 + $0x5c0] sm:$0xff] %v747
  %v752 = vmul.f32 %v226, 0.5742207
  %v753 = vmul.f32 %v231, 0.5742207
  %v754 = vmul.f32 %v236, 0.5742207
  %v755 = vmul.f32 %v241, 0.5742207
  %v756 = vadd.f32 %v141, %v752
  %v757 = vadd.f32 %v146, %v753
  %v758 = vadd.f32 %v151, %v754
  %v759 = vadd.f32 %v156, %v755
  %v760 = vmax.f32 %v756, 0.0
  %v761 = vmax.f32 %v757, 0.0
  %v762 = vmax.f32 %v758, 0.0
  %v763 = vmax.f32 %v759, 0.0
  %764 = vst [vmem:[#allocation2 + $0x100] sm:$0xff] %v760
  %765 = vst [vmem:[#allocation2 + $0x298] sm:$0xff] %v761
  %766 = vst [vmem:[#allocation2 + $0x430] sm:$0xff] %v762
  %767 = vst [vmem:[#allocation2 + $0x5c8] sm:$0xff] %v763
  %v768 = vmul.f32 %v226, 0.5182463
  %v769 = vmul.f32 %v231, 0.5182463
  %v770 = vmul.f32 %v236, 0.5182463
  %v771 = vmul.f32 %v241, 0.5182463
  %v772 = vadd.f32 %v141, %v768
  %v773 = vadd.f32 %v146, %v769
  %v774 = vadd.f32 %v151, %v770
  %v775 = vadd.f32 %v156, %v771
  %v776 = vmax.f32 %v772, 0.0
  %v777 = vmax.f32 %v773, 0.0
  %v778 = vmax.f32 %v774, 0.0
  %v779 = vmax.f32 %v775, 0.0
  %780 = vst [vmem:[#allocation2 + $0x108] sm:$0xff] %v776
  %781 = vst [vmem:[#allocation2 + $0x2a0] sm:$0xff] %v777
  %782 = vst [vmem:[#allocation2 + $0x438] sm:$0xff] %v778
  %783 = vst [vmem:[#allocation2 + $0x5d0] sm:$0xff] %v779
  %v784 = vmul.f32 %v226, 0.4641732
  %v785 = vmul.f32 %v231, 0.4641732
  %v786 = vmul.f32 %v236, 0.4641732
  %v787 = vmul.f32 %v241, 0.4641732
  %v788 = vadd.f32 %v141, %v784
  %v789 = vadd.f32 %v146, %v785
  %v790 = vadd.f32 %v151, %v786
  %v791 = vadd.f32 %v156, %v787
  %v792 = vmax.f32 %v788, 0.0
  %v793 = vmax.f32 %v789, 0.0
  %v794 = vmax.f32 %v790, 0.0
  %v795 = vmax.f32 %v791, 0.0
  %796 = vst [vmem:[#allocation2 + $0x110] sm:$0xff] %v792
  %797 = vst [vmem:[#allocation2 + $0x2a8] sm:$0xff] %v793
  %798 = vst [vmem:[#allocation2 + $0x440] sm:$0xff] %v794
  %799 = vst [vmem:[#allocation2 + $0x5d8] sm:$0xff] %v795
  %v800 = vmul.f32 %v226, 0.41221476
  %v801 = vmul.f32 %v231, 0.41221476
  %v802 = vmul.f32 %v236, 0.41221476
  %v803 = vmul.f32 %v241, 0.41221476
  %v804 = vadd.f32 %v141, %v800
  %v805 = vadd.f32 %v146, %v801
  %v806 = vadd.f32 %v151, %v802
  %v807 = vadd.f32 %v156, %v803
  %v808 = vmax.f32 %v804, 0.0
  %v809 = vmax.f32 %v805, 0.0
  %v810 = vmax.f32 %v806, 0.0
  %v811 = vmax.f32 %v807, 0.0
  %812 = vst [vmem:[#allocation2 + $0x118] sm:$0xff] %v808
  %813 = vst [vmem:[#allocation2 + $0x2b0] sm:$0xff] %v809
  %814 = vst [vmem:[#allocation2 + $0x448] sm:$0xff] %v810
  %815 = vst [vmem:[#allocation2 + $0x5e0] sm:$0xff] %v811
  %v816 = vmul.f32 %v226, 0.362576
  %v817 = vmul.f32 %v231, 0.362576
  %v818 = vmul.f32 %v236, 0.362576
  %v819 = vmul.f32 %v241, 0.362576
  %v820 = vadd.f32 %v141, %v816
  %v821 = vadd.f32 %v146, %v817
  %v822 = vadd.f32 %v151, %v818
  %v823 = vadd.f32 %v156, %v819
  %v824 = vmax.f32 %v820, 0.0
  %v825 = vmax.f32 %v821, 0.0
  %v826 = vmax.f32 %v822, 0.0
  %v827 = vmax.f32 %v823, 0.0
  %828 = vst [vmem:[#allocation2 + $0x120] sm:$0xff] %v824
  %829 = vst [vmem:[#allocation2 + $0x2b8] sm:$0xff] %v825
  %830 = vst [vmem:[#allocation2 + $0x450] sm:$0xff] %v826
  %831 = vst [vmem:[#allocation2 + $0x5e8] sm:$0xff] %v827
  %v832 = vmul.f32 %v226, 0.31545287
  %v833 = vmul.f32 %v231, 0.31545287
  %v834 = vmul.f32 %v236, 0.31545287
  %v835 = vmul.f32 %v241, 0.31545287
  %v836 = vadd.f32 %v141, %v832
  %v837 = vadd.f32 %v146, %v833
  %v838 = vadd.f32 %v151, %v834
  %v839 = vadd.f32 %v156, %v835
  %v840 = vmax.f32 %v836, 0.0
  %v841 = vmax.f32 %v837, 0.0
  %v842 = vmax.f32 %v838, 0.0
  %v843 = vmax.f32 %v839, 0.0
  %844 = vst [vmem:[#allocation2 + $0x128] sm:$0xff] %v840
  %845 = vst [vmem:[#allocation2 + $0x2c0] sm:$0xff] %v841
  %846 = vst [vmem:[#allocation2 + $0x458] sm:$0xff] %v842
  %847 = vst [vmem:[#allocation2 + $0x5f0] sm:$0xff] %v843
  %v848 = vmul.f32 %v226, 0.27103138
  %v849 = vmul.f32 %v231, 0.27103138
  %v850 = vmul.f32 %v236, 0.27103138
  %v851 = vmul.f32 %v241, 0.27103138
  %v852 = vadd.f32 %v141, %v848
  %v853 = vadd.f32 %v146, %v849
  %v854 = vadd.f32 %v151, %v850
  %v855 = vadd.f32 %v156, %v851
  %v856 = vmax.f32 %v852, 0.0
  %v857 = vmax.f32 %v853, 0.0
  %v858 = vmax.f32 %v854, 0.0
  %v859 = vmax.f32 %v855, 0.0
  %860 = vst [vmem:[#allocation2 + $0x130] sm:$0xff] %v856
  %861 = vst [vmem:[#allocation2 + $0x2c8] sm:$0xff] %v857
  %862 = vst [vmem:[#allocation2 + $0x460] sm:$0xff] %v858
  %863 = vst [vmem:[#allocation2 + $0x5f8] sm:$0xff] %v859
  %v864 = vmul.f32 %v226, 0.22948676
  %v865 = vmul.f32 %v231, 0.22948676
  %v866 = vmul.f32 %v236, 0.22948676
  %v867 = vmul.f32 %v241, 0.22948676
  %v868 = vadd.f32 %v141, %v864
  %v869 = vadd.f32 %v146, %v865
  %v870 = vadd.f32 %v151, %v866
  %v871 = vadd.f32 %v156, %v867
  %v872 = vmax.f32 %v868, 0.0
  %v873 = vmax.f32 %v869, 0.0
  %v874 = vmax.f32 %v870, 0.0
  %v875 = vmax.f32 %v871, 0.0
  %876 = vst [vmem:[#allocation2 + $0x138] sm:$0xff] %v872
  %877 = vst [vmem:[#allocation2 + $0x2d0] sm:$0xff] %v873
  %878 = vst [vmem:[#allocation2 + $0x468] sm:$0xff] %v874
  %879 = vst [vmem:[#allocation2 + $0x600] sm:$0xff] %v875
  %v880 = vmul.f32 %v226, 0.190983
  %v881 = vmul.f32 %v231, 0.190983
  %v882 = vmul.f32 %v236, 0.190983
  %v883 = vmul.f32 %v241, 0.190983
  %v884 = vadd.f32 %v141, %v880
  %v885 = vadd.f32 %v146, %v881
  %v886 = vadd.f32 %v151, %v882
  %v887 = vadd.f32 %v156, %v883
  %v888 = vmax.f32 %v884, 0.0
  %v889 = vmax.f32 %v885, 0.0
  %v890 = vmax.f32 %v886, 0.0
  %v891 = vmax.f32 %v887, 0.0
  %892 = vst [vmem:[#allocation2 + $0x140] sm:$0xff] %v888
  %893 = vst [vmem:[#allocation2 + $0x2d8] sm:$0xff] %v889
  %894 = vst [vmem:[#allocation2 + $0x470] sm:$0xff] %v890
  %895 = vst [vmem:[#allocation2 + $0x608] sm:$0xff] %v891
  %v896 = vmul.f32 %v226, 0.15567207
  %v897 = vmul.f32 %v231, 0.15567207
  %v898 = vmul.f32 %v236, 0.15567207
  %v899 = vmul.f32 %v241, 0.15567207
  %v900 = vadd.f32 %v141, %v896
  %v901 = vadd.f32 %v146, %v897
  %v902 = vadd.f32 %v151, %v898
  %v903 = vadd.f32 %v156, %v899
  %v904 = vmax.f32 %v900, 0.0
  %v905 = vmax.f32 %v901, 0.0
  %v906 = vmax.f32 %v902, 0.0
  %v907 = vmax.f32 %v903, 0.0
  %908 = vst [vmem:[#allocation2 + $0x148] sm:$0xff] %v904
  %909 = vst [vmem:[#allocation2 + $0x2e0] sm:$0xff] %v905
  %910 = vst [vmem:[#allocation2 + $0x478] sm:$0xff] %v906
  %911 = vst [vmem:[#allocation2 + $0x610] sm:$0xff] %v907
  %v912 = vmul.f32 %v226, 0.12369335
  %v913 = vmul.f32 %v231, 0.12369335
  %v914 = vmul.f32 %v236, 0.12369335
  %v915 = vmul.f32 %v241, 0.12369335
  %v916 = vadd.f32 %v141, %v912
  %v917 = vadd.f32 %v146, %v913
  %v918 = vadd.f32 %v151, %v914
  %v919 = vadd.f32 %v156, %v915
  %v920 = vmax.f32 %v916, 0.0
  %v921 = vmax.f32 %v917, 0.0
  %v922 = vmax.f32 %v918, 0.0
  %v923 = vmax.f32 %v919, 0.0
  %924 = vst [vmem:[#allocation2 + $0x150] sm:$0xff] %v920
  %925 = vst [vmem:[#allocation2 + $0x2e8] sm:$0xff] %v921
  %926 = vst [vmem:[#allocation2 + $0x480] sm:$0xff] %v922
  %927 = vst [vmem:[#allocation2 + $0x618] sm:$0xff] %v923
  %v928 = vmul.f32 %v226, 0.09517294
  %v929 = vmul.f32 %v231, 0.09517294
  %v930 = vmul.f32 %v236, 0.09517294
  %v931 = vmul.f32 %v241, 0.09517294
  %v932 = vadd.f32 %v141, %v928
  %v933 = vadd.f32 %v146, %v929
  %v934 = vadd.f32 %v151, %v930
  %v935 = vadd.f32 %v156, %v931
  %v936 = vmax.f32 %v932, 0.0
  %v937 = vmax.f32 %v933, 0.0
  %v938 = vmax.f32 %v934, 0.0
  %v939 = vmax.f32 %v935, 0.0
  %940 = vst [vmem:[#allocation2 + $0x158] sm:$0xff] %v936
  %941 = vst [vmem:[#allocation2 + $0x2f0] sm:$0xff] %v937
  %942 = vst [vmem:[#allocation2 + $0x488] sm:$0xff] %v938
  %943 = vst [vmem:[#allocation2 + $0x620] sm:$0xff] %v939
  %v944 = vmul.f32 %v226, 0.07022351
  %v945 = vmul.f32 %v231, 0.07022351
  %v946 = vmul.f32 %v236, 0.07022351
  %v947 = vmul.f32 %v241, 0.07022351
  %v948 = vadd.f32 %v141, %v944
  %v949 = vadd.f32 %v146, %v945
  %v950 = vadd.f32 %v151, %v946
  %v951 = vadd.f32 %v156, %v947
  %v952 = vmax.f32 %v948, 0.0
  %v953 = vmax.f32 %v949, 0.0
  %v954 = vmax.f32 %v950, 0.0
  %v955 = vmax.f32 %v951, 0.0
  %956 = vst [vmem:[#allocation2 + $0x160] sm:$0xff] %v952
  %957 = vst [vmem:[#allocation2 + $0x2f8] sm:$0xff] %v953
  %958 = vst [vmem:[#allocation2 + $0x490] sm:$0xff] %v954
  %959 = vst [vmem:[#allocation2 + $0x628] sm:$0xff] %v955
  %v960 = vmul.f32 %v226, 0.04894346
  %v961 = vmul.f32 %v231, 0.04894346
  %v962 = vmul.f32 %v236, 0.04894346
  %v963 = vmul.f32 %v241, 0.04894346
  %v964 = vadd.f32 %v141, %v960
  %v965 = vadd.f32 %v146, %v961
  %v966 = vadd.f32 %v151, %v962
  %v967 = vadd.f32 %v156, %v963
  %v968 = vmax.f32 %v964, 0.0
  %v969 = vmax.f32 %v965, 0.0
  %v970 = vmax.f32 %v966, 0.0
  %v971 = vmax.f32 %v967, 0.0
  %972 = vst [vmem:[#allocation2 + $0x168] sm:$0xff] %v968
  %973 = vst [vmem:[#allocation2 + $0x300] sm:$0xff] %v969
  %974 = vst [vmem:[#allocation2 + $0x498] sm:$0xff] %v970
  %975 = vst [vmem:[#allocation2 + $0x630] sm:$0xff] %v971
  %v976 = vmul.f32 %v226, 0.031416833
  %v977 = vmul.f32 %v231, 0.031416833
  %v978 = vmul.f32 %v236, 0.031416833
  %v979 = vmul.f32 %v241, 0.031416833
  %v980 = vadd.f32 %v141, %v976
  %v981 = vadd.f32 %v146, %v977
  %v982 = vadd.f32 %v151, %v978
  %v983 = vadd.f32 %v156, %v979
  %v984 = vmax.f32 %v980, 0.0
  %v985 = vmax.f32 %v981, 0.0
  %v986 = vmax.f32 %v982, 0.0
  %v987 = vmax.f32 %v983, 0.0
  %988 = vst [vmem:[#allocation2 + $0x170] sm:$0xff] %v984
  %989 = vst [vmem:[#allocation2 + $0x308] sm:$0xff] %v985
  %990 = vst [vmem:[#allocation2 + $0x4a0] sm:$0xff] %v986
  %991 = vst [vmem:[#allocation2 + $0x638] sm:$0xff] %v987
  %v992 = vmul.f32 %v226, 0.017712772
  %v993 = vmul.f32 %v231, 0.017712772
  %v994 = vmul.f32 %v236, 0.017712772
  %v995 = vmul.f32 %v241, 0.017712772
  %v996 = vadd.f32 %v141, %v992
  %v997 = vadd.f32 %v146, %v993
  %v998 = vadd.f32 %v151, %v994
  %v999 = vadd.f32 %v156, %v995
  %v1000 = vmax.f32 %v996, 0.0
  %v1001 = vmax.f32 %v997, 0.0
  %v1002 = vmax.f32 %v998, 0.0
  %v1003 = vmax.f32 %v999, 0.0
  %1004 = vst [vmem:[#allocation2 + $0x178] sm:$0xff] %v1000
  %1005 = vst [vmem:[#allocation2 + $0x310] sm:$0xff] %v1001
  %1006 = vst [vmem:[#allocation2 + $0x4a8] sm:$0xff] %v1002
  %1007 = vst [vmem:[#allocation2 + $0x640] sm:$0xff] %v1003
  %v1008 = vmul.f32 %v226, 0.007885277
  %v1009 = vmul.f32 %v231, 0.007885277
  %v1010 = vmul.f32 %v236, 0.007885277
  %v1011 = vmul.f32 %v241, 0.007885277
  %v1012 = vadd.f32 %v141, %v1008
  %v1013 = vadd.f32 %v146, %v1009
  %v1014 = vadd.f32 %v151, %v1010
  %v1015 = vadd.f32 %v156, %v1011
  %v1016 = vmax.f32 %v1012, 0.0
  %v1017 = vmax.f32 %v1013, 0.0
  %v1018 = vmax.f32 %v1014, 0.0
  %v1019 = vmax.f32 %v1015, 0.0
  %1020 = vst [vmem:[#allocation2 + $0x180] sm:$0xff] %v1016
  %1021 = vst [vmem:[#allocation2 + $0x318] sm:$0xff] %v1017
  %1022 = vst [vmem:[#allocation2 + $0x4b0] sm:$0xff] %v1018
  %1023 = vst [vmem:[#allocation2 + $0x648] sm:$0xff] %v1019
  %v1024 = vmul.f32 %v226, 0.0019732714
  %v1025 = vmul.f32 %v231, 0.0019732714
  %v1026 = vmul.f32 %v236, 0.0019732714
  %v1027 = vmul.f32 %v241, 0.0019732714
  %v1028 = vadd.f32 %v141, %v1024
  %v1029 = vadd.f32 %v146, %v1025
  %v1030 = vadd.f32 %v151, %v1026
  %v1031 = vadd.f32 %v156, %v1027
  %v1032 = vmax.f32 %v1028, 0.0
  %v1033 = vmax.f32 %v1029, 0.0
  %v1034 = vmax.f32 %v1030, 0.0
  %v1035 = vmax.f32 %v1031, 0.0
  %1036 = vst [vmem:[#allocation2 + $0x188] sm:$0xff] %v1032
  %1037 = vst [vmem:[#allocation2 + $0x320] sm:$0xff] %v1033
  %1038 = vst [vmem:[#allocation2 + $0x4b8] sm:$0xff] %v1034
  %1039 = vst [vmem:[#allocation2 + $0x650] sm:$0xff] %v1035
  %v1040 = vmul.f32 %v226, 0.0
  %v1041 = vmul.f32 %v231, 0.0
  %v1042 = vmul.f32 %v236, 0.0
  %v1043 = vmul.f32 %v241, 0.0
  %v1044 = vadd.f32 %v141, %v1040
  %v1045 = vadd.f32 %v146, %v1041
  %v1046 = vadd.f32 %v151, %v1042
  %v1047 = vadd.f32 %v156, %v1043
  %v1048 = vmax.f32 %v1044, 0.0
  %v1049 = vmax.f32 %v1045, 0.0
  %v1050 = vmax.f32 %v1046, 0.0
  %v1051 = vmax.f32 %v1047, 0.0
  %1052 = vst [vmem:[#allocation2 + $0x190] sm:$0xff] %v1048
  %1053 = vst [vmem:[#allocation2 + $0x328] sm:$0xff] %v1049
  %1054 = vst [vmem:[#allocation2 + $0x4c0] sm:$0xff] %v1050
  %1055 = vst [vmem:[#allocation2 + $0x658] sm:$0xff] %v1051
  %v1056 = vld [vmem:[#allocation2] sm:$0xff]
  %v1057 = vld [vmem:[#allocation2 + $0x8] sm:$0xff]
  %v1058 = vld [vmem:[#allocation2 + $0x10] sm:$0xff]
  %v1059 = vld [vmem:[#allocation2 + $0x18] sm:$0xff]
  %v1060 = vld [vmem:[#allocation2 + $0x20] sm:$0xff]
  %v1061 = vld [vmem:[#allocation2 + $0x28] sm:$0xff]
  %v1062 = vld [vmem:[#allocation2 + $0x30] sm:$0xff]
  %v1063 = vld [vmem:[#allocation2 + $0x38] sm:$0xff]
  %v1064 = vld [vmem:[#allocation2 + $0x40] sm:$0xff]
  %v1065 = vld [vmem:[#allocation2 + $0x48] sm:$0xff]
  %v1066 = vld [vmem:[#allocation2 + $0x50] sm:$0xff]
  %v1067 = vld [vmem:[#allocation2 + $0x58] sm:$0xff]
  %v1068 = vld [vmem:[#allocation2 + $0x60] sm:$0xff]
  %v1069 = vld [vmem:[#allocation2 + $0x68] sm:$0xff]
  %v1070 = vld [vmem:[#allocation2 + $0x70] sm:$0xff]
  %v1071 = vld [vmem:[#allocation2 + $0x78] sm:$0xff]
  %v1072 = vld [vmem:[#allocation2 + $0x80] sm:$0xff]
  %v1073 = vld [vmem:[#allocation2 + $0x88] sm:$0xff]
  %v1074 = vld [vmem:[#allocation2 + $0x90] sm:$0xff]
  %v1075 = vld [vmem:[#allocation2 + $0x98] sm:$0xff]
  %v1076 = vld [vmem:[#allocation2 + $0xa0] sm:$0xff]
  %v1077 = vld [vmem:[#allocation2 + $0xa8] sm:$0xff]
  %v1078 = vld [vmem:[#allocation2 + $0xb0] sm:$0xff]
  %v1079 = vld [vmem:[#allocation2 + $0xb8] sm:$0xff]
  %v1080 = vld [vmem:[#allocation2 + $0xc0] sm:$0xff]
  %v1081 = vld [vmem:[#allocation2 + $0xc8] sm:$0xff]
  %v1082 = vld [vmem:[#allocation2 + $0xd0] sm:$0xff]
  %v1083 = vld [vmem:[#allocation2 + $0xd8] sm:$0xff]
  %v1084 = vld [vmem:[#allocation2 + $0xe0] sm:$0xff]
  %v1085 = vld [vmem:[#allocation2 + $0xe8] sm:$0xff]
  %v1086 = vld [vmem:[#allocation2 + $0xf0] sm:$0xff]
  %v1087 = vld [vmem:[#allocation2 + $0xf8] sm:$0xff]
  %v1088 = vld [vmem:[#allocation2 + $0x100] sm:$0xff]
  %v1089 = vld [vmem:[#allocation2 + $0x108] sm:$0xff]
  %v1090 = vld [vmem:[#allocation2 + $0x110] sm:$0xff]
  %v1091 = vld [vmem:[#allocation2 + $0x118] sm:$0xff]
  %v1092 = vld [vmem:[#allocation2 + $0x120] sm:$0xff]
  %v1093 = vld [vmem:[#allocation2 + $0x128] sm:$0xff]
  %v1094 = vld [vmem:[#allocation2 + $0x130] sm:$0xff]
  %v1095 = vld [vmem:[#allocation2 + $0x138] sm:$0xff]
  %v1096 = vld [vmem:[#allocation2 + $0x140] sm:$0xff]
  %v1097 = vld [vmem:[#allocation2 + $0x148] sm:$0xff]
  %v1098 = vld [vmem:[#allocation2 + $0x150] sm:$0xff]
  %v1099 = vld [vmem:[#allocation2 + $0x158] sm:$0xff]
  %v1100 = vld [vmem:[#allocation2 + $0x160] sm:$0xff]
  %v1101 = vld [vmem:[#allocation2 + $0x168] sm:$0xff]
  %v1102 = vld [vmem:[#allocation2 + $0x170] sm:$0xff]
  %v1103 = vld [vmem:[#allocation2 + $0x178] sm:$0xff]
  %v1104 = vld [vmem:[#allocation2 + $0x180] sm:$0xff]
  %v1105 = vld [vmem:[#allocation2 + $0x188] sm:$0xff]
  %v1106 = vld [vmem:[#allocation2 + $0x190] sm:$0xff]
  %v1107 = vld [vmem:[#allocation2 + $0x198] sm:$0xff]
  %v1108 = vld [vmem:[#allocation2 + $0x1a0] sm:$0xff]
  %v1109 = vld [vmem:[#allocation2 + $0x1a8] sm:$0xff]
  %v1110 = vld [vmem:[#allocation2 + $0x1b0] sm:$0xff]
  %v1111 = vld [vmem:[#allocation2 + $0x1b8] sm:$0xff]
  %v1112 = vld [vmem:[#allocation2 + $0x1c0] sm:$0xff]
  %v1113 = vld [vmem:[#allocation2 + $0x1c8] sm:$0xff]
  %v1114 = vld [vmem:[#allocation2 + $0x1d0] sm:$0xff]
  %v1115 = vld [vmem:[#allocation2 + $0x1d8] sm:$0xff]
  %v1116 = vld [vmem:[#allocation2 + $0x1e0] sm:$0xff]
  %v1117 = vld [vmem:[#allocation2 + $0x1e8] sm:$0xff]
  %v1118 = vld [vmem:[#allocation2 + $0x1f0] sm:$0xff]
  %v1119 = vld [vmem:[#allocation2 + $0x1f8] sm:$0xff]
  %v1120 = vld [vmem:[#allocation2 + $0x200] sm:$0xff]
  %v1121 = vld [vmem:[#allocation2 + $0x208] sm:$0xff]
  %v1122 = vld [vmem:[#allocation2 + $0x210] sm:$0xff]
  %v1123 = vld [vmem:[#allocation2 + $0x218] sm:$0xff]
  %v1124 = vld [vmem:[#allocation2 + $0x220] sm:$0xff]
  %v1125 = vld [vmem:[#allocation2 + $0x228] sm:$0xff]
  %v1126 = vld [vmem:[#allocation2 + $0x230] sm:$0xff]
  %v1127 = vld [vmem:[#allocation2 + $0x238] sm:$0xff]
  %v1128 = vld [vmem:[#allocation2 + $0x240] sm:$0xff]
  %v1129 = vld [vmem:[#allocation2 + $0x248] sm:$0xff]
  %v1130 = vld [vmem:[#allocation2 + $0x250] sm:$0xff]
  %v1131 = vld [vmem:[#allocation2 + $0x258] sm:$0xff]
  %v1132 = vld [vmem:[#allocation2 + $0x260] sm:$0xff]
  %v1133 = vld [vmem:[#allocation2 + $0x268] sm:$0xff]
  %v1134 = vld [vmem:[#allocation2 + $0x270] sm:$0xff]
  %v1135 = vld [vmem:[#allocation2 + $0x278] sm:$0xff]
  %v1136 = vld [vmem:[#allocation2 + $0x280] sm:$0xff]
  %v1137 = vld [vmem:[#allocation2 + $0x288] sm:$0xff]
  %v1138 = vld [vmem:[#allocation2 + $0x290] sm:$0xff]
  %v1139 = vld [vmem:[#allocation2 + $0x298] sm:$0xff]
  %v1140 = vld [vmem:[#allocation2 + $0x2a0] sm:$0xff]
  %v1141 = vld [vmem:[#allocation2 + $0x2a8] sm:$0xff]
  %v1142 = vld [vmem:[#allocation2 + $0x2b0] sm:$0xff]
  %v1143 = vld [vmem:[#allocation2 + $0x2b8] sm:$0xff]
  %v1144 = vld [vmem:[#allocation2 + $0x2c0] sm:$0xff]
  %v1145 = vld [vmem:[#allocation2 + $0x2c8] sm:$0xff]
  %v1146 = vld [vmem:[#allocation2 + $0x2d0] sm:$0xff]
  %v1147 = vld [vmem:[#allocation2 + $0x2d8] sm:$0xff]
  %v1148 = vld [vmem:[#allocation2 + $0x2e0] sm:$0xff]
  %v1149 = vld [vmem:[#allocation2 + $0x2e8] sm:$0xff]
  %v1150 = vld [vmem:[#allocation2 + $0x2f0] sm:$0xff]
  %v1151 = vld [vmem:[#allocation2 + $0x2f8] sm:$0xff]
  %v1152 = vld [vmem:[#allocation2 + $0x300] sm:$0xff]
  %v1153 = vld [vmem:[#allocation2 + $0x308] sm:$0xff]
  %v1154 = vld [vmem:[#allocation2 + $0x310] sm:$0xff]
  %v1155 = vld [vmem:[#allocation2 + $0x318] sm:$0xff]
  %v1156 = vld [vmem:[#allocation2 + $0x320] sm:$0xff]
  %v1157 = vld [vmem:[#allocation2 + $0x328] sm:$0xff]
  %v1158 = vld [vmem:[#allocation2 + $0x330] sm:$0xff]
  %v1159 = vld [vmem:[#allocation2 + $0x338] sm:$0xff]
  %v1160 = vld [vmem:[#allocation2 + $0x340] sm:$0xff]
  %v1161 = vld [vmem:[#allocation2 + $0x348] sm:$0xff]
  %v1162 = vld [vmem:[#allocation2 + $0x350] sm:$0xff]
  %v1163 = vld [vmem:[#allocation2 + $0x358] sm:$0xff]
  %v1164 = vld [vmem:[#allocation2 + $0x360] sm:$0xff]
  %v1165 = vld [vmem:[#allocation2 + $0x368] sm:$0xff]
  %v1166 = vld [vmem:[#allocation2 + $0x370] sm:$0xff]
  %v1167 = vld [vmem:[#allocation2 + $0x378] sm:$0xff]
  %v1168 = vld [vmem:[#allocation2 + $0x380] sm:$0xff]
  %v1169 = vld [vmem:[#allocation2 + $0x388] sm:$0xff]
  %v1170 = vld [vmem:[#allocation2 + $0x390] sm:$0xff]
  %v1171 = vld [vmem:[#allocation2 + $0x398] sm:$0xff]
  %v1172 = vld [vmem:[#allocation2 + $0x3a0] sm:$0xff]
  %v1173 = vld [vmem:[#allocation2 + $0x3a8] sm:$0xff]
  %v1174 = vld [vmem:[#allocation2 + $0x3b0] sm:$0xff]
  %v1175 = vld [vmem:[#allocation2 + $0x3b8] sm:$0xff]
  %v1176 = vld [vmem:[#allocation2 + $0x3c0] sm:$0xff]
  %v1177 = vld [vmem:[#allocation2 + $0x3c8] sm:$0xff]
  %v1178 = vld [vmem:[#allocation2 + $0x3d0] sm:$0xff]
  %v1179 = vld [vmem:[#allocation2 + $0x3d8] sm:$0xff]
  %v1180 = vld [vmem:[#allocation2 + $0x3e0] sm:$0xff]
  %v1181 = vld [vmem:[#allocation2 + $0x3e8] sm:$0xff]
  %v1182 = vld [vmem:[#allocation2 + $0x3f0] sm:$0xff]
  %v1183 = vld [vmem:[#allocation2 + $0x3f8] sm:$0xff]
  %v1184 = vld [vmem:[#allocation2 + $0x400] sm:$0xff]
  %v1185 = vld [vmem:[#allocation2 + $0x408] sm:$0xff]
  %v1186 = vld [vmem:[#allocation2 + $0x410] sm:$0xff]
  %v1187 = vld [vmem:[#allocation2 + $0x418] sm:$0xff]
  %v1188 = vld [vmem:[#allocation2 + $0x420] sm:$0xff]
  %v1189 = vld [vmem:[#allocation2 + $0x428] sm:$0xff]
  %v1190 = vld [vmem:[#allocation2 + $0x430] sm:$0xff]
  %v1191 = vld [vmem:[#allocation2 + $0x438] sm:$0xff]
  %v1192 = vld [vmem:[#allocation2 + $0x440] sm:$0xff]
  %v1193 = vld [vmem:[#allocation2 + $0x448] sm:$0xff]
  %v1194 = vld [vmem:[#allocation2 + $0x450] sm:$0xff]
  %v1195 = vld [vmem:[#allocation2 + $0x458] sm:$0xff]
  %v1196 = vld [vmem:[#allocation2 + $0x460] sm:$0xff]
  %v1197 = vld [vmem:[#allocation2 + $0x468] sm:$0xff]
  %v1198 = vld [vmem:[#allocation2 + $0x470] sm:$0xff]
  %v1199 = vld [vmem:[#allocation2 + $0x478] sm:$0xff]
  %v1200 = vld [vmem:[#allocation2 + $0x480] sm:$0xff]
  %v1201 = vld [vmem:[#allocation2 + $0x488] sm:$0xff]
  %v1202 = vld [vmem:[#allocation2 + $0x490] sm:$0xff]
  %v1203 = vld [vmem:[#allocation2 + $0x498] sm:$0xff]
  %v1204 = vld [vmem:[#allocation2 + $0x4a0] sm:$0xff]
  %v1205 = vld [vmem:[#allocation2 + $0x4a8] sm:$0xff]
  %v1206 = vld [vmem:[#allocation2 + $0x4b0] sm:$0xff]
  %v1207 = vld [vmem:[#allocation2 + $0x4b8] sm:$0xff]
  %v1208 = vld [vmem:[#allocation2 + $0x4c0] sm:$0xff]
  %v1209 = vld [vmem:[#allocation2 + $0x4c8] sm:$0xff]
  %v1210 = vld [vmem:[#allocation2 + $0x4d0] sm:$0xff]
  %v1211 = vld [vmem:[#allocation2 + $0x4d8] sm:$0xff]
  %v1212 = vld [vmem:[#allocation2 + $0x4e0] sm:$0xff]
  %v1213 = vld [vmem:[#allocation2 + $0x4e8] sm:$0xff]
  %v1214 = vld [vmem:[#allocation2 + $0x4f0] sm:$0xff]
  %v1215 = vld [vmem:[#allocation2 + $0x4f8] sm:$0xff]
  %v1216 = vld [vmem:[#allocation2 + $0x500] sm:$0xff]
  %v1217 = vld [vmem:[#allocation2 + $0x508] sm:$0xff]
  %v1218 = vld [vmem:[#allocation2 + $0x510] sm:$0xff]
  %v1219 = vld [vmem:[#allocation2 + $0x518] sm:$0xff]
  %v1220 = vld [vmem:[#allocation2 + $0x520] sm:$0xff]
  %v1221 = vld [vmem:[#allocation2 + $0x528] sm:$0xff]
  %v1222 = vld [vmem:[#allocation2 + $0x530] sm:$0xff]
  %v1223 = vld [vmem:[#allocation2 + $0x538] sm:$0xff]
  %v1224 = vld [vmem:[#allocation2 + $0x540] sm:$0xff]
  %v1225 = vld [vmem:[#allocation2 + $0x548] sm:$0xff]
  %v1226 = vld [vmem:[#allocation2 + $0x550] sm:$0xff]
  %v1227 = vld [vmem:[#allocation2 + $0x558] sm:$0xff]
  %v1228 = vld [vmem:[#allocation2 + $0x560] sm:$0xff]
  %v1229 = vld [vmem:[#allocation2 + $0x568] sm:$0xff]
  %v1230 = vld [vmem:[#allocation2 + $0x570] sm:$0xff]
  %v1231 = vld [vmem:[#allocation2 + $0x578] sm:$0xff]
  %v1232 = vld [vmem:[#allocation2 + $0x580] sm:$0xff]
  %v1233 = vld [vmem:[#allocation2 + $0x588] sm:$0xff]
  %v1234 = vld [vmem:[#allocation2 + $0x590] sm:$0xff]
  %v1235 = vld [vmem:[#allocation2 + $0x598] sm:$0xff]
  %v1236 = vld [vmem:[#allocation2 + $0x5a0] sm:$0xff]
  %v1237 = vld [vmem:[#allocation2 + $0x5a8] sm:$0xff]
  %v1238 = vld [vmem:[#allocation2 + $0x5b0] sm:$0xff]
  %v1239 = vld [vmem:[#allocation2 + $0x5b8] sm:$0xff]
  %v1240 = vld [vmem:[#allocation2 + $0x5c0] sm:$0xff]
  %v1241 = vld [vmem:[#allocation2 + $0x5c8] sm:$0xff]
  %v1242 = vld [vmem:[#allocation2 + $0x5d0] sm:$0xff]
  %v1243 = vld [vmem:[#allocation2 + $0x5d8] sm:$0xff]
  %v1244 = vld [vmem:[#allocation2 + $0x5e0] sm:$0xff]
  %v1245 = vld [vmem:[#allocation2 + $0x5e8] sm:$0xff]
  %v1246 = vld [vmem:[#allocation2 + $0x5f0] sm:$0xff]
  %v1247 = vld [vmem:[#allocation2 + $0x5f8] sm:$0xff]
  %v1248 = vld [vmem:[#allocation2 + $0x600] sm:$0xff]
  %v1249 = vld [vmem:[#allocation2 + $0x608] sm:$0xff]
  %v1250 = vld [vmem:[#allocation2 + $0x610] sm:$0xff]
  %v1251 = vld [vmem:[#allocation2 + $0x618] sm:$0xff]
  %v1252 = vld [vmem:[#allocation2 + $0x620] sm:$0xff]
  %v1253 = vld [vmem:[#allocation2 + $0x628] sm:$0xff]
  %v1254 = vld [vmem:[#allocation2 + $0x630] sm:$0xff]
  %v1255 = vld [vmem:[#allocation2 + $0x638] sm:$0xff]
  %v1256 = vld [vmem:[#allocation2 + $0x640] sm:$0xff]
  %v1257 = vld [vmem:[#allocation2 + $0x648] sm:$0xff]
  %v1258 = vld [vmem:[#allocation2 + $0x650] sm:$0xff]
  %v1259 = vld [vmem:[#allocation2 + $0x658] sm:$0xff]
  %v1260 = vld [vmem:[%s4] sm:$0xff]
  %v1261 = vld [vmem:[%s4 + $0x8] sm:$0xff]
  %v1262 = vld [vmem:[%s4 + $0x10] sm:$0xff]
  %v1263 = vld [vmem:[%s4 + $0x18] sm:$0xff]
  %v1264 = vld [vmem:[%s5] sm:$0xff]
  %v1265 = vld [vmem:[%s5 + $0x8] sm:$0xff]
  %v1266 = vld [vmem:[%s5 + $0x10] sm:$0xff]
  %v1267 = vld [vmem:[%s5 + $0x18] sm:$0xff]
  %1269 = vset.pattern.permute.xlu0 0
  %1270 = vperm.xlu0 %1269, %v1264
  %v1271 = vpop.permute.xlu0 %1270
  %1274 = vset.pattern.permute.xlu0 0
  %1275 = vperm.xlu0 %1274, %v1265
  %v1276 = vpop.permute.xlu0 %1275
  %1279 = vset.pattern.permute.xlu0 0
  %1280 = vperm.xlu0 %1279, %v1266
  %v1281 = vpop.permute.xlu0 %1280
  %1284 = vset.pattern.permute.xlu0 0
  %1285 = vperm.xlu0 %1284, %v1267
  %v1286 = vpop.permute.xlu0 %1285
  %vm1288 = vcmask 261120
  %v1290 = vsel %vm1288, %v1260, 0
  %v1293 = vsel %vm1288, %v1261, 0
  %v1296 = vsel %vm1288, %v1262, 0
  %v1299 = vsel %vm1288, %v1263, 0
  %1301 = vmatprep.subr.mxu0 %v1057
  %1302 = vmatpush1.msra.mxu0 %v1056
  %1303 = vmatprep.subr.mxu0 %v1108
  %1304 = vmatpush1.msra.mxu0 %v1107
  %1305 = vmatprep.subr.mxu0 %v1159
  %1306 = vmatpush1.msra.mxu0 %v1158
  %1307 = vmatprep.subr.mxu0 %v1210
  %1308 = vmatpush1.msra.mxu0 %v1209
  %1309 = vmatprep.subr.mxu0 0.0
  %1310 = vmatpush1.msra.mxu0 0.0
  %1311 = vmatprep.subr.mxu0 0.0
  %1312 = vmatpush1.msra.mxu0 0.0
  %1313 = vmatprep.subr.mxu0 0.0
  %1314 = vmatpush1.msra.mxu0 0.0
  %1315 = vmatprep.subr.mxu0 0.0
  %1316 = vmatpush1.msra.mxu0 0.0
  %1317 = vmatprep.subr.mxu0 0.0
  %1318 = vmatpush1.msra.mxu0 0.0
  %1319 = vmatprep.subr.mxu0 0.0
  %1320 = vmatpush1.msra.mxu0 0.0
  %1321 = vmatprep.subr.mxu0 0.0
  %1322 = vmatpush1.msra.mxu0 0.0
  %1323 = vmatprep.subr.mxu0 0.0
  %1324 = vmatpush1.msra.mxu0 0.0
  %1325 = vmatprep.subr.mxu0 0.0
  %1326 = vmatpush1.msra.mxu0 0.0
  %1327 = vmatprep.subr.mxu0 0.0
  %1328 = vmatpush1.msra.mxu0 0.0
  %1329 = vmatprep.subr.mxu0 0.0
  %1330 = vmatpush1.msra.mxu0 0.0
  %1331 = vmatprep.subr.mxu0 0.0
  %1332 = vmatpush1.msra.mxu0 0.0
  %1333 = vmatprep.subr.mxu0 0.0
  %1334 = vmatpush1.msra.mxu0 0.0
  %1335 = vmatprep.subr.mxu0 0.0
  %1336 = vmatpush1.msra.mxu0 0.0
  %1337 = vmatprep.subr.mxu0 0.0
  %1338 = vmatpush1.msra.mxu0 0.0
  %1339 = vmatprep.subr.mxu0 0.0
  %1340 = vmatpush1.msra.mxu0 0.0
  %1341 = vmatprep.subr.mxu0 0.0
  %1342 = vmatpush1.msra.mxu0 0.0
  %1343 = vmatprep.subr.mxu0 0.0
  %1344 = vmatpush1.msra.mxu0 0.0
  %1345 = vmatprep.subr.mxu0 0.0
  %1346 = vmatpush1.msra.mxu0 0.0
  %1347 = vmatprep.subr.mxu0 0.0
  %1348 = vmatpush1.msra.mxu0 0.0
  %1349 = vmatprep.subr.mxu0 0.0
  %1350 = vmatpush1.msra.mxu0 0.0
  %1351 = vmatprep.subr.mxu0 0.0
  %1352 = vmatpush1.msra.mxu0 0.0
  %1353 = vmatprep.subr.mxu0 0.0
  %1354 = vmatpush1.msra.mxu0 0.0
  %1355 = vmatprep.subr.mxu0 0.0
  %1356 = vmatpush1.msra.mxu0 0.0
  %1357 = vmatprep.subr.mxu0 0.0
  %1358 = vmatpush1.msra.mxu0 0.0
  %1359 = vmatprep.subr.mxu0 0.0
  %1360 = vmatpush1.msra.mxu0 0.0
  %1361 = vmatprep.subr.mxu0 0.0
  %1362 = vmatpush1.msra.mxu0 0.0
  %1363 = vmatprep.subr.mxu0 0.0
  %1364 = vmatpush1.msra.mxu0 0.0
  %1365 = vmatprep.mubr.f32.mxu0 0.0
  %1366 = vmatmul.mubr.f32.gmra.mrb[0].mxu0 %v1290
  %v1367 = vpop.f32.mrb[0].mxu0
  %v1368 = vadd.f32 %v1271, %v1367
  %v1369 = vpop.f32.mrb[0].mxu0
  %v1370 = vadd.f32 %v1271, %v1369
  %1371 = vmatprep.mubr.f32.mxu0 0.0
  %1372 = vmatmul.mubr.f32.gmra.mrb[0].mxu0 %v1293
  %v1373 = vpop.f32.mrb[0].mxu0
  %v1374 = vadd.f32 %v1276, %v1373
  %v1375 = vpop.f32.mrb[0].mxu0
  %v1376 = vadd.f32 %v1276, %v1375
  %1377 = vmatprep.mubr.f32.mxu0 0.0
  %1378 = vmatmul.mubr.f32.gmra.mrb[0].mxu0 %v1296
  %v1379 = vpop.f32.mrb[0].mxu0
  %v1380 = vadd.f32 %v1281, %v1379
  %v1381 = vpop.f32.mrb[0].mxu0
  %v1382 = vadd.f32 %v1281, %v1381
  %1383 = vmatprep.mubr.f32.mxu0 0.0
  %1384 = vmatmul.mubr.f32.gmra.mrb[0].mxu0 %v1299
  %v1385 = vpop.f32.mrb[0].mxu0
  %v1386 = vadd.f32 %v1286, %v1385
  %v1387 = vpop.f32.mrb[0].mxu0
  %v1388 = vadd.f32 %v1286, %v1387
  %1389 = vdwg.mxu0
  %1390 = vmatprep.subr.mxu0 %v1059
  %1391 = vmatpush1.msra.mxu0 %v1058
  %1392 = vmatprep.subr.mxu0 %v1110
  %1393 = vmatpush1.msra.mxu0 %v1109
  %1394 = vmatprep.subr.mxu0 %v1161
  %1395 = vmatpush1.msra.mxu0 %v1160
  %1396 = vmatprep.subr.mxu0 %v1212
  %1397 = vmatpush1.msra.mxu0 %v1211
  %1398 = vmatprep.subr.mxu0 0.0
  %1399 = vmatpush1.msra.mxu0 0.0
  %1400 = vmatprep.subr.mxu0 0.0
  %1401 = vmatpush1.msra.mxu0 0.0
  %1402 = vmatprep.subr.mxu0 0.0
  %1403 = vmatpush1.msra.mxu0 0.0
  %1404 = vmatprep.subr.mxu0 0.0
  %1405 = vmatpush1.msra.mxu0 0.0
  %1406 = vmatprep.subr.mxu0 0.0
  %1407 = vmatpush1.msra.mxu0 0.0
  %1408 = vmatprep.subr.mxu0 0.0
  %1409 = vmatpush1.msra.mxu0 0.0
  %1410 = vmatprep.subr.mxu0 0.0
  %1411 = vmatpush1.msra.mxu0 0.0
  %1412 = vmatprep.subr.mxu0 0.0
  %1413 = vmatpush1.msra.mxu0 0.0
  %1414 = vmatprep.subr.mxu0 0.0
  %1415 = vmatpush1.msra.mxu0 0.0
  %1416 = vmatprep.subr.mxu0 0.0
  %1417 = vmatpush1.msra.mxu0 0.0
  %1418 = vmatprep.subr.mxu0 0.0
  %1419 = vmatpush1.msra.mxu0 0.0
  %1420 = vmatprep.subr.mxu0 0.0
  %1421 = vmatpush1.msra.mxu0 0.0
  %1422 = vmatprep.subr.mxu0 0.0
  %1423 = vmatpush1.msra.mxu0 0.0
  %1424 = vmatprep.subr.mxu0 0.0
  %1425 = vmatpush1.msra.mxu0 0.0
  %1426 = vmatprep.subr.mxu0 0.0
  %1427 = vmatpush1.msra.mxu0 0.0
  %1428 = vmatprep.subr.mxu0 0.0
  %1429 = vmatpush1.msra.mxu0 0.0
  %1430 = vmatprep.subr.mxu0 0.0
  %1431 = vmatpush1.msra.mxu0 0.0
  %1432 = vmatprep.subr.mxu0 0.0
  %1433 = vmatpush1.msra.mxu0 0.0
  %1434 = vmatprep.subr.mxu0 0.0
  %1435 = vmatpush1.msra.mxu0 0.0
  %1436 = vmatprep.subr.mxu0 0.0
  %1437 = vmatpush1.msra.mxu0 0.0
  %1438 = vmatprep.subr.mxu0 0.0
  %1439 = vmatpush1.msra.mxu0 0.0
  %1440 = vmatprep.subr.mxu0 0.0
  %1441 = vmatpush1.msra.mxu0 0.0
  %1442 = vmatprep.subr.mxu0 0.0
  %1443 = vmatpush1.msra.mxu0 0.0
  %1444 = vmatprep.subr.mxu0 0.0
  %1445 = vmatpush1.msra.mxu0 0.0
  %1446 = vmatprep.subr.mxu0 0.0
  %1447 = vmatpush1.msra.mxu0 0.0
  %1448 = vmatprep.subr.mxu0 0.0
  %1449 = vmatpush1.msra.mxu0 0.0
  %1450 = vmatprep.subr.mxu0 0.0
  %1451 = vmatpush1.msra.mxu0 0.0
  %1452 = vmatprep.subr.mxu0 0.0
  %1453 = vmatpush1.msra.mxu0 0.0
  %1454 = vmatprep.mubr.f32.mxu0 0.0
  %1455 = vmatmul.mubr.f32.gmra.mrb[0].mxu0 %v1290
  %v1456 = vpop.f32.mrb[0].mxu0
  %v1457 = vadd.f32 %v1271, %v1456
  %v1458 = vpop.f32.mrb[0].mxu0
  %v1459 = vadd.f32 %v1271, %v1458
  %1460 = vmatprep.mubr.f32.mxu0 0.0
  %1461 = vmatmul.mubr.f32.gmra.mrb[0].mxu0 %v1293
  %v1462 = vpop.f32.mrb[0].mxu0
  %v1463 = vadd.f32 %v1276, %v1462
  %v1464 = vpop.f32.mrb[0].mxu0
  %v1465 = vadd.f32 %v1276, %v1464
  %1466 = vmatprep.mubr.f32.mxu0 0.0
  %1467 = vmatmul.mubr.f32.gmra.mrb[0].mxu0 %v1296
  %v1468 = vpop.f32.mrb[0].mxu0
  %v1469 = vadd.f32 %v1281, %v1468
  %v1470 = vpop.f32.mrb[0].mxu0
  %v1471 = vadd.f32 %v1281, %v1470
  %1472 = vmatprep.mubr.f32.mxu0 0.0
  %1473 = vmatmul.mubr.f32.gmra.mrb[0].mxu0 %v1299
  %v1474 = vpop.f32.mrb[0].mxu0
  %v1475 = vadd.f32 %v1286, %v1474
  %v1476 = vpop.f32.mrb[0].mxu0
  %v1477 = vadd.f32 %v1286, %v1476
  %1478 = vdwg.mxu0
  %1479 = vmatprep.subr.mxu0 %v1061
  %1480 = vmatpush1.msra.mxu0 %v1060
  %1481 = vmatprep.subr.mxu0 %v1112
  %1482 = vmatpush1.msra.mxu0 %v1111
  %1483 = vmatprep.subr.mxu0 %v1163
  %1484 = vmatpush1.msra.mxu0 %v1162
  %1485 = vmatprep.subr.mxu0 %v1214
  %1486 = vmatpush1.msra.mxu0 %v1213
  %1487 = vmatprep.subr.mxu0 0.0
  %1488 = vmatpush1.msra.mxu0 0.0
  %1489 = vmatprep.subr.mxu0 0.0
  %1490 = vmatpush1.msra.mxu0 0.0
  %1491 = vmatprep.subr.mxu0 0.0
  %1492 = vmatpush1.msra.mxu0 0.0
  %1493 = vmatprep.subr.mxu0 0.0
  %1494 = vmatpush1.msra.mxu0 0.0
  %1495 = vmatprep.subr.mxu0 0.0
  %1496 = vmatpush1.msra.mxu0 0.0
  %1497 = vmatprep.subr.mxu0 0.0
  %1498 = vmatpush1.msra.mxu0 0.0
  %1499 = vmatprep.subr.mxu0 0.0
  %1500 = vmatpush1.msra.mxu0 0.0
  %1501 = vmatprep.subr.mxu0 0.0
  %1502 = vmatpush1.msra.mxu0 0.0
  %1503 = vmatprep.subr.mxu0 0.0
  %1504 = vmatpush1.msra.mxu0 0.0
  %1505 = vmatprep.subr.mxu0 0.0
  %1506 = vmatpush1.msra.mxu0 0.0
  %1507 = vmatprep.subr.mxu0 0.0
  %1508 = vmatpush1.msra.mxu0 0.0
  %1509 = vmatprep.subr.mxu0 0.0
  %1510 = vmatpush1.msra.mxu0 0.0
  %1511 = vmatprep.subr.mxu0 0.0
  %1512 = vmatpush1.msra.mxu0 0.0
  %1513 = vmatprep.subr.mxu0 0.0
  %1514 = vmatpush1.msra.mxu0 0.0
  %1515 = vmatprep.subr.mxu0 0.0
  %1516 = vmatpush1.msra.mxu0 0.0
  %1517 = vmatprep.subr.mxu0 0.0
  %1518 = vmatpush1.msra.mxu0 0.0
  %1519 = vmatprep.subr.mxu0 0.0
  %1520 = vmatpush1.msra.mxu0 0.0
  %1521 = vmatprep.subr.mxu0 0.0
  %1522 = vmatpush1.msra.mxu0 0.0
  %1523 = vmatprep.subr.mxu0 0.0
  %1524 = vmatpush1.msra.mxu0 0.0
  %1525 = vmatprep.subr.mxu0 0.0
  %1526 = vmatpush1.msra.mxu0 0.0
  %1527 = vmatprep.subr.mxu0 0.0
  %1528 = vmatpush1.msra.mxu0 0.0
  %1529 = vmatprep.subr.mxu0 0.0
  %1530 = vmatpush1.msra.mxu0 0.0
  %1531 = vmatprep.subr.mxu0 0.0
  %1532 = vmatpush1.msra.mxu0 0.0
  %1533 = vmatprep.subr.mxu0 0.0
  %1534 = vmatpush1.msra.mxu0 0.0
  %1535 = vmatprep.subr.mxu0 0.0
  %1536 = vmatpush1.msra.mxu0 0.0
  %1537 = vmatprep.subr.mxu0 0.0
  %1538 = vmatpush1.msra.mxu0 0.0
  %1539 = vmatprep.subr.mxu0 0.0
  %1540 = vmatpush1.msra.mxu0 0.0
  %1541 = vmatprep.subr.mxu0 0.0
  %1542 = vmatpush1.msra.mxu0 0.0
  %1543 = vmatprep.mubr.f32.mxu0 0.0
  %1544 = vmatmul.mubr.f32.gmra.mrb[0].mxu0 %v1290
  %v1545 = vpop.f32.mrb[0].mxu0
  %v1546 = vadd.f32 %v1271, %v1545
  %v1547 = vpop.f32.mrb[0].mxu0
  %v1548 = vadd.f32 %v1271, %v1547
  %1549 = vmatprep.mubr.f32.mxu0 0.0
  %1550 = vmatmul.mubr.f32.gmra.mrb[0].mxu0 %v1293
  %v1551 = vpop.f32.mrb[0].mxu0
  %v1552 = vadd.f32 %v1276, %v1551
  %v1553 = vpop.f32.mrb[0].mxu0
  %v1554 = vadd.f32 %v1276, %v1553
  %1555 = vmatprep.mubr.f32.mxu0 0.0
  %1556 = vmatmul.mubr.f32.gmra.mrb[0].mxu0 %v1296
  %v1557 = vpop.f32.mrb[0].mxu0
  %v1558 = vadd.f32 %v1281, %v1557
  %v1559 = vpop.f32.mrb[0].mxu0
  %v1560 = vadd.f32 %v1281, %v1559
  %1561 = vmatprep.mubr.f32.mxu0 0.0
  %1562 = vmatmul.mubr.f32.gmra.mrb[0].mxu0 %v1299
  %v1563 = vpop.f32.mrb[0].mxu0
  %v1564 = vadd.f32 %v1286, %v1563
  %v1565 = vpop.f32.mrb[0].mxu0
  %v1566 = vadd.f32 %v1286, %v1565
  %1567 = vdwg.mxu0
  %1568 = vmatprep.subr.mxu0 %v1063
  %1569 = vmatpush1.msra.mxu0 %v1062
  %1570 = vmatprep.subr.mxu0 %v1114
  %1571 = vmatpush1.msra.mxu0 %v1113
  %1572 = vmatprep.subr.mxu0 %v1165
  %1573 = vmatpush1.msra.mxu0 %v1164
  %1574 = vmatprep.subr.mxu0 %v1216
  %1575 = vmatpush1.msra.mxu0 %v1215
  %1576 = vmatprep.subr.mxu0 0.0
  %1577 = vmatpush1.msra.mxu0 0.0
  %1578 = vmatprep.subr.mxu0 0.0
  %1579 = vmatpush1.msra.mxu0 0.0
  %1580 = vmatprep.subr.mxu0 0.0
  %1581 = vmatpush1.msra.mxu0 0.0
  %1582 = vmatprep.subr.mxu0 0.0
  %1583 = vmatpush1.msra.mxu0 0.0
  %1584 = vmatprep.subr.mxu0 0.0
  %1585 = vmatpush1.msra.mxu0 0.0
  %1586 = vmatprep.subr.mxu0 0.0
  %1587 = vmatpush1.msra.mxu0 0.0
  %1588 = vmatprep.subr.mxu0 0.0
  %1589 = vmatpush1.msra.mxu0 0.0
  %1590 = vmatprep.subr.mxu0 0.0
  %1591 = vmatpush1.msra.mxu0 0.0
  %1592 = vmatprep.subr.mxu0 0.0
  %1593 = vmatpush1.msra.mxu0 0.0
  %1594 = vmatprep.subr.mxu0 0.0
  %1595 = vmatpush1.msra.mxu0 0.0
  %1596 = vmatprep.subr.mxu0 0.0
  %1597 = vmatpush1.msra.mxu0 0.0
  %1598 = vmatprep.subr.mxu0 0.0
  %1599 = vmatpush1.msra.mxu0 0.0
  %1600 = vmatprep.subr.mxu0 0.0
  %1601 = vmatpush1.msra.mxu0 0.0
  %1602 = vmatprep.subr.mxu0 0.0
  %1603 = vmatpush1.msra.mxu0 0.0
  %1604 = vmatprep.subr.mxu0 0.0
  %1605 = vmatpush1.msra.mxu0 0.0
  %1606 = vmatprep.subr.mxu0 0.0
  %1607 = vmatpush1.msra.mxu0 0.0
  %1608 = vmatprep.subr.mxu0 0.0
  %1609 = vmatpush1.msra.mxu0 0.0
  %1610 = vmatprep.subr.mxu0 0.0
  %1611 = vmatpush1.msra.mxu0 0.0
  %1612 = vmatprep.subr.mxu0 0.0
  %1613 = vmatpush1.msra.mxu0 0.0
  %1614 = vmatprep.subr.mxu0 0.0
  %1615 = vmatpush1.msra.mxu0 0.0
  %1616 = vmatprep.subr.mxu0 0.0
  %1617 = vmatpush1.msra.mxu0 0.0
  %1618 = vmatprep.subr.mxu0 0.0
  %1619 = vmatpush1.msra.mxu0 0.0
  %1620 = vmatprep.subr.mxu0 0.0
  %1621 = vmatpush1.msra.mxu0 0.0
  %1622 = vmatprep.subr.mxu0 0.0
  %1623 = vmatpush1.msra.mxu0 0.0
  %1624 = vmatprep.subr.mxu0 0.0
  %1625 = vmatpush1.msra.mxu0 0.0
  %1626 = vmatprep.subr.mxu0 0.0
  %1627 = vmatpush1.msra.mxu0 0.0
  %1628 = vmatprep.subr.mxu0 0.0
  %1629 = vmatpush1.msra.mxu0 0.0
  %1630 = vmatprep.subr.mxu0 0.0
  %1631 = vmatpush1.msra.mxu0 0.0
  %1632 = vmatprep.mubr.f32.mxu0 0.0
  %1633 = vmatmul.mubr.f32.gmra.mrb[0].mxu0 %v1290
  %v1634 = vpop.f32.mrb[0].mxu0
  %v1635 = vadd.f32 %v1271, %v1634
  %v1636 = vpop.f32.mrb[0].mxu0
  %v1637 = vadd.f32 %v1271, %v1636
  %1638 = vmatprep.mubr.f32.mxu0 0.0
  %1639 = vmatmul.mubr.f32.gmra.mrb[0].mxu0 %v1293
  %v1640 = vpop.f32.mrb[0].mxu0
  %v1641 = vadd.f32 %v1276, %v1640
  %v1642 = vpop.f32.mrb[0].mxu0
  %v1643 = vadd.f32 %v1276, %v1642
  %1644 = vmatprep.mubr.f32.mxu0 0.0
  %1645 = vmatmul.mubr.f32.gmra.mrb[0].mxu0 %v1296
  %v1646 = vpop.f32.mrb[0].mxu0
  %v1647 = vadd.f32 %v1281, %v1646
  %v1648 = vpop.f32.mrb[0].mxu0
  %v1649 = vadd.f32 %v1281, %v1648
  %1650 = vmatprep.mubr.f32.mxu0 0.0
  %1651 = vmatmul.mubr.f32.gmra.mrb[0].mxu0 %v1299
  %v1652 = vpop.f32.mrb[0].mxu0
  %v1653 = vadd.f32 %v1286, %v1652
  %v1654 = vpop.f32.mrb[0].mxu0
  %v1655 = vadd.f32 %v1286, %v1654
  %1656 = vdwg.mxu0
  %1657 = vmatprep.subr.mxu0 %v1065
  %1658 = vmatpush1.msra.mxu0 %v1064
  %1659 = vmatprep.subr.mxu0 %v1116
  %1660 = vmatpush1.msra.mxu0 %v1115
  %1661 = vmatprep.subr.mxu0 %v1167
  %1662 = vmatpush1.msra.mxu0 %v1166
  %1663 = vmatprep.subr.mxu0 %v1218
  %1664 = vmatpush1.msra.mxu0 %v1217
  %1665 = vmatprep.subr.mxu0 0.0
  %1666 = vmatpush1.msra.mxu0 0.0
  %1667 = vmatprep.subr.mxu0 0.0
  %1668 = vmatpush1.msra.mxu0 0.0
  %1669 = vmatprep.subr.mxu0 0.0
  %1670 = vmatpush1.msra.mxu0 0.0
  %1671 = vmatprep.subr.mxu0 0.0
  %1672 = vmatpush1.msra.mxu0 0.0
  %1673 = vmatprep.subr.mxu0 0.0
  %1674 = vmatpush1.msra.mxu0 0.0
  %1675 = vmatprep.subr.mxu0 0.0
  %1676 = vmatpush1.msra.mxu0 0.0
  %1677 = vmatprep.subr.mxu0 0.0
  %1678 = vmatpush1.msra.mxu0 0.0
  %1679 = vmatprep.subr.mxu0 0.0
  %1680 = vmatpush1.msra.mxu0 0.0
  %1681 = vmatprep.subr.mxu0 0.0
  %1682 = vmatpush1.msra.mxu0 0.0
  %1683 = vmatprep.subr.mxu0 0.0
  %1684 = vmatpush1.msra.mxu0 0.0
  %1685 = vmatprep.subr.mxu0 0.0
  %1686 = vmatpush1.msra.mxu0 0.0
  %1687 = vmatprep.subr.mxu0 0.0
  %1688 = vmatpush1.msra.mxu0 0.0
  %1689 = vmatprep.subr.mxu0 0.0
  %1690 = vmatpush1.msra.mxu0 0.0
  %1691 = vmatprep.subr.mxu0 0.0
  %1692 = vmatpush1.msra.mxu0 0.0
  %1693 = vmatprep.subr.mxu0 0.0
  %1694 = vmatpush1.msra.mxu0 0.0
  %1695 = vmatprep.subr.mxu0 0.0
  %1696 = vmatpush1.msra.mxu0 0.0
  %1697 = vmatprep.subr.mxu0 0.0
  %1698 = vmatpush1.msra.mxu0 0.0
  %1699 = vmatprep.subr.mxu0 0.0
  %1700 = vmatpush1.msra.mxu0 0.0
  %1701 = vmatprep.subr.mxu0 0.0
  %1702 = vmatpush1.msra.mxu0 0.0
  %1703 = vmatprep.subr.mxu0 0.0
  %1704 = vmatpush1.msra.mxu0 0.0
  %1705 = vmatprep.subr.mxu0 0.0
  %1706 = vmatpush1.msra.mxu0 0.0
  %1707 = vmatprep.subr.mxu0 0.0
  %1708 = vmatpush1.msra.mxu0 0.0
  %1709 = vmatprep.subr.mxu0 0.0
  %1710 = vmatpush1.msra.mxu0 0.0
  %1711 = vmatprep.subr.mxu0 0.0
  %1712 = vmatpush1.msra.mxu0 0.0
  %1713 = vmatprep.subr.mxu0 0.0
  %1714 = vmatpush1.msra.mxu0 0.0
  %1715 = vmatprep.subr.mxu0 0.0
  %1716 = vmatpush1.msra.mxu0 0.0
  %1717 = vmatprep.subr.mxu0 0.0
  %1718 = vmatpush1.msra.mxu0 0.0
  %1719 = vmatprep.subr.mxu0 0.0
  %1720 = vmatpush1.msra.mxu0 0.0
  %1721 = vmatprep.mubr.f32.mxu0 0.0
  %1722 = vmatmul.mubr.f32.gmra.mrb[0].mxu0 %v1290
  %v1723 = vpop.f32.mrb[0].mxu0
  %v1724 = vadd.f32 %v1271, %v1723
  %v1725 = vpop.f32.mrb[0].mxu0
  %v1726 = vadd.f32 %v1271, %v1725
  %1727 = vmatprep.mubr.f32.mxu0 0.0
  %1728 = vmatmul.mubr.f32.gmra.mrb[0].mxu0 %v1293
  %v1729 = vpop.f32.mrb[0].mxu0
  %v1730 = vadd.f32 %v1276, %v1729
  %v1731 = vpop.f32.mrb[0].mxu0
  %v1732 = vadd.f32 %v1276, %v1731
  %1733 = vmatprep.mubr.f32.mxu0 0.0
  %1734 = vmatmul.mubr.f32.gmra.mrb[0].mxu0 %v1296
  %v1735 = vpop.f32.mrb[0].mxu0
  %v1736 = vadd.f32 %v1281, %v1735
  %v1737 = vpop.f32.mrb[0].mxu0
  %v1738 = vadd.f32 %v1281, %v1737
  %1739 = vmatprep.mubr.f32.mxu0 0.0
  %1740 = vmatmul.mubr.f32.gmra.mrb[0].mxu0 %v1299
  %v1741 = vpop.f32.mrb[0].mxu0
  %v1742 = vadd.f32 %v1286, %v1741
  %v1743 = vpop.f32.mrb[0].mxu0
  %v1744 = vadd.f32 %v1286, %v1743
  %1745 = vdwg.mxu0
  %1746 = vmatprep.subr.mxu0 %v1067
  %1747 = vmatpush1.msra.mxu0 %v1066
  %1748 = vmatprep.subr.mxu0 %v1118
  %1749 = vmatpush1.msra.mxu0 %v1117
  %1750 = vmatprep.subr.mxu0 %v1169
  %1751 = vmatpush1.msra.mxu0 %v1168
  %1752 = vmatprep.subr.mxu0 %v1220
  %1753 = vmatpush1.msra.mxu0 %v1219
  %1754 = vmatprep.subr.mxu0 0.0
  %1755 = vmatpush1.msra.mxu0 0.0
  %1756 = vmatprep.subr.mxu0 0.0
  %1757 = vmatpush1.msra.mxu0 0.0
  %1758 = vmatprep.subr.mxu0 0.0
  %1759 = vmatpush1.msra.mxu0 0.0
  %1760 = vmatprep.subr.mxu0 0.0
  %1761 = vmatpush1.msra.mxu0 0.0
  %1762 = vmatprep.subr.mxu0 0.0
  %1763 = vmatpush1.msra.mxu0 0.0
  %1764 = vmatprep.subr.mxu0 0.0
  %1765 = vmatpush1.msra.mxu0 0.0
  %1766 = vmatprep.subr.mxu0 0.0
  %1767 = vmatpush1.msra.mxu0 0.0
  %1768 = vmatprep.subr.mxu0 0.0
  %1769 = vmatpush1.msra.mxu0 0.0
  %1770 = vmatprep.subr.mxu0 0.0
  %1771 = vmatpush1.msra.mxu0 0.0
  %1772 = vmatprep.subr.mxu0 0.0
  %1773 = vmatpush1.msra.mxu0 0.0
  %1774 = vmatprep.subr.mxu0 0.0
  %1775 = vmatpush1.msra.mxu0 0.0
  %1776 = vmatprep.subr.mxu0 0.0
  %1777 = vmatpush1.msra.mxu0 0.0
  %1778 = vmatprep.subr.mxu0 0.0
  %1779 = vmatpush1.msra.mxu0 0.0
  %1780 = vmatprep.subr.mxu0 0.0
  %1781 = vmatpush1.msra.mxu0 0.0
  %1782 = vmatprep.subr.mxu0 0.0
  %1783 = vmatpush1.msra.mxu0 0.0
  %1784 = vmatprep.subr.mxu0 0.0
  %1785 = vmatpush1.msra.mxu0 0.0
  %1786 = vmatprep.subr.mxu0 0.0
  %1787 = vmatpush1.msra.mxu0 0.0
  %1788 = vmatprep.subr.mxu0 0.0
  %1789 = vmatpush1.msra.mxu0 0.0
  %1790 = vmatprep.subr.mxu0 0.0
  %1791 = vmatpush1.msra.mxu0 0.0
  %1792 = vmatprep.subr.mxu0 0.0
  %1793 = vmatpush1.msra.mxu0 0.0
  %1794 = vmatprep.subr.mxu0 0.0
  %1795 = vmatpush1.msra.mxu0 0.0
  %1796 = vmatprep.subr.mxu0 0.0
  %1797 = vmatpush1.msra.mxu0 0.0
  %1798 = vmatprep.subr.mxu0 0.0
  %1799 = vmatpush1.msra.mxu0 0.0
  %1800 = vmatprep.subr.mxu0 0.0
  %1801 = vmatpush1.msra.mxu0 0.0
  %1802 = vmatprep.subr.mxu0 0.0
  %1803 = vmatpush1.msra.mxu0 0.0
  %1804 = vmatprep.subr.mxu0 0.0
  %1805 = vmatpush1.msra.mxu0 0.0
  %1806 = vmatprep.subr.mxu0 0.0
  %1807 = vmatpush1.msra.mxu0 0.0
  %1808 = vmatprep.subr.mxu0 0.0
  %1809 = vmatpush1.msra.mxu0 0.0
  %1810 = vmatprep.mubr.f32.mxu0 0.0
  %1811 = vmatmul.mubr.f32.gmra.mrb[0].mxu0 %v1290
  %v1812 = vpop.f32.mrb[0].mxu0
  %v1813 = vadd.f32 %v1271, %v1812
  %v1814 = vpop.f32.mrb[0].mxu0
  %v1815 = vadd.f32 %v1271, %v1814
  %1816 = vmatprep.mubr.f32.mxu0 0.0
  %1817 = vmatmul.mubr.f32.gmra.mrb[0].mxu0 %v1293
  %v1818 = vpop.f32.mrb[0].mxu0
  %v1819 = vadd.f32 %v1276, %v1818
  %v1820 = vpop.f32.mrb[0].mxu0
  %v1821 = vadd.f32 %v1276, %v1820
  %1822 = vmatprep.mubr.f32.mxu0 0.0
  %1823 = vmatmul.mubr.f32.gmra.mrb[0].mxu0 %v1296
  %v1824 = vpop.f32.mrb[0].mxu0
  %v1825 = vadd.f32 %v1281, %v1824
  %v1826 = vpop.f32.mrb[0].mxu0
  %v1827 = vadd.f32 %v1281, %v1826
  %1828 = vmatprep.mubr.f32.mxu0 0.0
  %1829 = vmatmul.mubr.f32.gmra.mrb[0].mxu0 %v1299
  %v1830 = vpop.f32.mrb[0].mxu0
  %v1831 = vadd.f32 %v1286, %v1830
  %v1832 = vpop.f32.mrb[0].mxu0
  %v1833 = vadd.f32 %v1286, %v1832
  %1834 = vdwg.mxu0
  %1835 = vmatprep.subr.mxu0 %v1069
  %1836 = vmatpush1.msra.mxu0 %v1068
  %1837 = vmatprep.subr.mxu0 %v1120
  %1838 = vmatpush1.msra.mxu0 %v1119
  %1839 = vmatprep.subr.mxu0 %v1171
  %1840 = vmatpush1.msra.mxu0 %v1170
  %1841 = vmatprep.subr.mxu0 %v1222
  %1842 = vmatpush1.msra.mxu0 %v1221
  %1843 = vmatprep.subr.mxu0 0.0
  %1844 = vmatpush1.msra.mxu0 0.0
  %1845 = vmatprep.subr.mxu0 0.0
  %1846 = vmatpush1.msra.mxu0 0.0
  %1847 = vmatprep.subr.mxu0 0.0
  %1848 = vmatpush1.msra.mxu0 0.0
  %1849 = vmatprep.subr.mxu0 0.0
  %1850 = vmatpush1.msra.mxu0 0.0
  %1851 = vmatprep.subr.mxu0 0.0
  %1852 = vmatpush1.msra.mxu0 0.0
  %1853 = vmatprep.subr.mxu0 0.0
  %1854 = vmatpush1.msra.mxu0 0.0
  %1855 = vmatprep.subr.mxu0 0.0
  %1856 = vmatpush1.msra.mxu0 0.0
  %1857 = vmatprep.subr.mxu0 0.0
  %1858 = vmatpush1.msra.mxu0 0.0
  %1859 = vmatprep.subr.mxu0 0.0
  %1860 = vmatpush1.msra.mxu0 0.0
  %1861 = vmatprep.subr.mxu0 0.0
  %1862 = vmatpush1.msra.mxu0 0.0
  %1863 = vmatprep.subr.mxu0 0.0
  %1864 = vmatpush1.msra.mxu0 0.0
  %1865 = vmatprep.subr.mxu0 0.0
  %1866 = vmatpush1.msra.mxu0 0.0
  %1867 = vmatprep.subr.mxu0 0.0
  %1868 = vmatpush1.msra.mxu0 0.0
  %1869 = vmatprep.subr.mxu0 0.0
  %1870 = vmatpush1.msra.mxu0 0.0
  %1871 = vmatprep.subr.mxu0 0.0
  %1872 = vmatpush1.msra.mxu0 0.0
  %1873 = vmatprep.subr.mxu0 0.0
  %1874 = vmatpush1.msra.mxu0 0.0
  %1875 = vmatprep.subr.mxu0 0.0
  %1876 = vmatpush1.msra.mxu0 0.0
  %1877 = vmatprep.subr.mxu0 0.0
  %1878 = vmatpush1.msra.mxu0 0.0
  %1879 = vmatprep.subr.mxu0 0.0
  %1880 = vmatpush1.msra.mxu0 0.0
  %1881 = vmatprep.subr.mxu0 0.0
  %1882 = vmatpush1.msra.mxu0 0.0
  %1883 = vmatprep.subr.mxu0 0.0
  %1884 = vmatpush1.msra.mxu0 0.0
  %1885 = vmatprep.subr.mxu0 0.0
  %1886 = vmatpush1.msra.mxu0 0.0
  %1887 = vmatprep.subr.mxu0 0.0
  %1888 = vmatpush1.msra.mxu0 0.0
  %1889 = vmatprep.subr.mxu0 0.0
  %1890 = vmatpush1.msra.mxu0 0.0
  %1891 = vmatprep.subr.mxu0 0.0
  %1892 = vmatpush1.msra.mxu0 0.0
  %1893 = vmatprep.subr.mxu0 0.0
  %1894 = vmatpush1.msra.mxu0 0.0
  %1895 = vmatprep.subr.mxu0 0.0
  %1896 = vmatpush1.msra.mxu0 0.0
  %1897 = vmatprep.subr.mxu0 0.0
  %1898 = vmatpush1.msra.mxu0 0.0
  %1899 = vmatprep.mubr.f32.mxu0 0.0
  %1900 = vmatmul.mubr.f32.gmra.mrb[0].mxu0 %v1290
  %v1901 = vpop.f32.mrb[0].mxu0
  %v1902 = vadd.f32 %v1271, %v1901
  %v1903 = vpop.f32.mrb[0].mxu0
  %v1904 = vadd.f32 %v1271, %v1903
  %1905 = vmatprep.mubr.f32.mxu0 0.0
  %1906 = vmatmul.mubr.f32.gmra.mrb[0].mxu0 %v1293
  %v1907 = vpop.f32.mrb[0].mxu0
  %v1908 = vadd.f32 %v1276, %v1907
  %v1909 = vpop.f32.mrb[0].mxu0
  %v1910 = vadd.f32 %v1276, %v1909
  %1911 = vmatprep.mubr.f32.mxu0 0.0
  %1912 = vmatmul.mubr.f32.gmra.mrb[0].mxu0 %v1296
  %v1913 = vpop.f32.mrb[0].mxu0
  %v1914 = vadd.f32 %v1281, %v1913
  %v1915 = vpop.f32.mrb[0].mxu0
  %v1916 = vadd.f32 %v1281, %v1915
  %1917 = vmatprep.mubr.f32.mxu0 0.0
  %1918 = vmatmul.mubr.f32.gmra.mrb[0].mxu0 %v1299
  %v1919 = vpop.f32.mrb[0].mxu0
  %v1920 = vadd.f32 %v1286, %v1919
  %v1921 = vpop.f32.mrb[0].mxu0
  %v1922 = vadd.f32 %v1286, %v1921
  %1923 = vdwg.mxu0
  %1924 = vmatprep.subr.mxu0 %v1071
  %1925 = vmatpush1.msra.mxu0 %v1070
  %1926 = vmatprep.subr.mxu0 %v1122
  %1927 = vmatpush1.msra.mxu0 %v1121
  %1928 = vmatprep.subr.mxu0 %v1173
  %1929 = vmatpush1.msra.mxu0 %v1172
  %1930 = vmatprep.subr.mxu0 %v1224
  %1931 = vmatpush1.msra.mxu0 %v1223
  %1932 = vmatprep.subr.mxu0 0.0
  %1933 = vmatpush1.msra.mxu0 0.0
  %1934 = vmatprep.subr.mxu0 0.0
  %1935 = vmatpush1.msra.mxu0 0.0
  %1936 = vmatprep.subr.mxu0 0.0
  %1937 = vmatpush1.msra.mxu0 0.0
  %1938 = vmatprep.subr.mxu0 0.0
  %1939 = vmatpush1.msra.mxu0 0.0
  %1940 = vmatprep.subr.mxu0 0.0
  %1941 = vmatpush1.msra.mxu0 0.0
  %1942 = vmatprep.subr.mxu0 0.0
  %1943 = vmatpush1.msra.mxu0 0.0
  %1944 = vmatprep.subr.mxu0 0.0
  %1945 = vmatpush1.msra.mxu0 0.0
  %1946 = vmatprep.subr.mxu0 0.0
  %1947 = vmatpush1.msra.mxu0 0.0
  %1948 = vmatprep.subr.mxu0 0.0
  %1949 = vmatpush1.msra.mxu0 0.0
  %1950 = vmatprep.subr.mxu0 0.0
  %1951 = vmatpush1.msra.mxu0 0.0
  %1952 = vmatprep.subr.mxu0 0.0
  %1953 = vmatpush1.msra.mxu0 0.0
  %1954 = vmatprep.subr.mxu0 0.0
  %1955 = vmatpush1.msra.mxu0 0.0
  %1956 = vmatprep.subr.mxu0 0.0
  %1957 = vmatpush1.msra.mxu0 0.0
  %1958 = vmatprep.subr.mxu0 0.0
  %1959 = vmatpush1.msra.mxu0 0.0
  %1960 = vmatprep.subr.mxu0 0.0
  %1961 = vmatpush1.msra.mxu0 0.0
  %1962 = vmatprep.subr.mxu0 0.0
  %1963 = vmatpush1.msra.mxu0 0.0
  %1964 = vmatprep.subr.mxu0 0.0
  %1965 = vmatpush1.msra.mxu0 0.0
  %1966 = vmatprep.subr.mxu0 0.0
  %1967 = vmatpush1.msra.mxu0 0.0
  %1968 = vmatprep.subr.mxu0 0.0
  %1969 = vmatpush1.msra.mxu0 0.0
  %1970 = vmatprep.subr.mxu0 0.0
  %1971 = vmatpush1.msra.mxu0 0.0
  %1972 = vmatprep.subr.mxu0 0.0
  %1973 = vmatpush1.msra.mxu0 0.0
  %1974 = vmatprep.subr.mxu0 0.0
  %1975 = vmatpush1.msra.mxu0 0.0
  %1976 = vmatprep.subr.mxu0 0.0
  %1977 = vmatpush1.msra.mxu0 0.0
  %1978 = vmatprep.subr.mxu0 0.0
  %1979 = vmatpush1.msra.mxu0 0.0
  %1980 = vmatprep.subr.mxu0 0.0
  %1981 = vmatpush1.msra.mxu0 0.0
  %1982 = vmatprep.subr.mxu0 0.0
  %1983 = vmatpush1.msra.mxu0 0.0
  %1984 = vmatprep.subr.mxu0 0.0
  %1985 = vmatpush1.msra.mxu0 0.0
  %1986 = vmatprep.subr.mxu0 0.0
  %1987 = vmatpush1.msra.mxu0 0.0
  %1988 = vmatprep.mubr.f32.mxu0 0.0
  %1989 = vmatmul.mubr.f32.gmra.mrb[0].mxu0 %v1290
  %v1990 = vpop.f32.mrb[0].mxu0
  %v1991 = vadd.f32 %v1271, %v1990
  %v1992 = vpop.f32.mrb[0].mxu0
  %v1993 = vadd.f32 %v1271, %v1992
  %1994 = vmatprep.mubr.f32.mxu0 0.0
  %1995 = vmatmul.mubr.f32.gmra.mrb[0].mxu0 %v1293
  %v1996 = vpop.f32.mrb[0].mxu0
  %v1997 = vadd.f32 %v1276, %v1996
  %v1998 = vpop.f32.mrb[0].mxu0
  %v1999 = vadd.f32 %v1276, %v1998
  %2000 = vmatprep.mubr.f32.mxu0 0.0
  %2001 = vmatmul.mubr.f32.gmra.mrb[0].mxu0 %v1296
  %v2002 = vpop.f32.mrb[0].mxu0
  %v2003 = vadd.f32 %v1281, %v2002
  %v2004 = vpop.f32.mrb[0].mxu0
  %v2005 = vadd.f32 %v1281, %v2004
  %2006 = vmatprep.mubr.f32.mxu0 0.0
  %2007 = vmatmul.mubr.f32.gmra.mrb[0].mxu0 %v1299
  %v2008 = vpop.f32.mrb[0].mxu0
  %v2009 = vadd.f32 %v1286, %v2008
  %v2010 = vpop.f32.mrb[0].mxu0
  %v2011 = vadd.f32 %v1286, %v2010
  %2012 = vdwg.mxu0
  %2013 = vmatprep.subr.mxu0 %v1073
  %2014 = vmatpush1.msra.mxu0 %v1072
  %2015 = vmatprep.subr.mxu0 %v1124
  %2016 = vmatpush1.msra.mxu0 %v1123
  %2017 = vmatprep.subr.mxu0 %v1175
  %2018 = vmatpush1.msra.mxu0 %v1174
  %2019 = vmatprep.subr.mxu0 %v1226
  %2020 = vmatpush1.msra.mxu0 %v1225
  %2021 = vmatprep.subr.mxu0 0.0
  %2022 = vmatpush1.msra.mxu0 0.0
  %2023 = vmatprep.subr.mxu0 0.0
  %2024 = vmatpush1.msra.mxu0 0.0
  %2025 = vmatprep.subr.mxu0 0.0
  %2026 = vmatpush1.msra.mxu0 0.0
  %2027 = vmatprep.subr.mxu0 0.0
  %2028 = vmatpush1.msra.mxu0 0.0
  %2029 = vmatprep.subr.mxu0 0.0
  %2030 = vmatpush1.msra.mxu0 0.0
  %2031 = vmatprep.subr.mxu0 0.0
  %2032 = vmatpush1.msra.mxu0 0.0
  %2033 = vmatprep.subr.mxu0 0.0
  %2034 = vmatpush1.msra.mxu0 0.0
  %2035 = vmatprep.subr.mxu0 0.0
  %2036 = vmatpush1.msra.mxu0 0.0
  %2037 = vmatprep.subr.mxu0 0.0
  %2038 = vmatpush1.msra.mxu0 0.0
  %2039 = vmatprep.subr.mxu0 0.0
  %2040 = vmatpush1.msra.mxu0 0.0
  %2041 = vmatprep.subr.mxu0 0.0
  %2042 = vmatpush1.msra.mxu0 0.0
  %2043 = vmatprep.subr.mxu0 0.0
  %2044 = vmatpush1.msra.mxu0 0.0
  %2045 = vmatprep.subr.mxu0 0.0
  %2046 = vmatpush1.msra.mxu0 0.0
  %2047 = vmatprep.subr.mxu0 0.0
  %2048 = vmatpush1.msra.mxu0 0.0
  %2049 = vmatprep.subr.mxu0 0.0
  %2050 = vmatpush1.msra.mxu0 0.0
  %2051 = vmatprep.subr.mxu0 0.0
  %2052 = vmatpush1.msra.mxu0 0.0
  %2053 = vmatprep.subr.mxu0 0.0
  %2054 = vmatpush1.msra.mxu0 0.0
  %2055 = vmatprep.subr.mxu0 0.0
  %2056 = vmatpush1.msra.mxu0 0.0
  %2057 = vmatprep.subr.mxu0 0.0
  %2058 = vmatpush1.msra.mxu0 0.0
  %2059 = vmatprep.subr.mxu0 0.0
  %2060 = vmatpush1.msra.mxu0 0.0
  %2061 = vmatprep.subr.mxu0 0.0
  %2062 = vmatpush1.msra.mxu0 0.0
  %2063 = vmatprep.subr.mxu0 0.0
  %2064 = vmatpush1.msra.mxu0 0.0
  %2065 = vmatprep.subr.mxu0 0.0
  %2066 = vmatpush1.msra.mxu0 0.0
  %2067 = vmatprep.subr.mxu0 0.0
  %2068 = vmatpush1.msra.mxu0 0.0
  %2069 = vmatprep.subr.mxu0 0.0
  %2070 = vmatpush1.msra.mxu0 0.0
  %2071 = vmatprep.subr.mxu0 0.0
  %2072 = vmatpush1.msra.mxu0 0.0
  %2073 = vmatprep.subr.mxu0 0.0
  %2074 = vmatpush1.msra.mxu0 0.0
  %2075 = vmatprep.subr.mxu0 0.0
  %2076 = vmatpush1.msra.mxu0 0.0
  %2077 = vmatprep.mubr.f32.mxu0 0.0
  %2078 = vmatmul.mubr.f32.gmra.mrb[0].mxu0 %v1290
  %v2079 = vpop.f32.mrb[0].mxu0
  %v2080 = vadd.f32 %v1271, %v2079
  %v2081 = vpop.f32.mrb[0].mxu0
  %v2082 = vadd.f32 %v1271, %v2081
  %2083 = vmatprep.mubr.f32.mxu0 0.0
  %2084 = vmatmul.mubr.f32.gmra.mrb[0].mxu0 %v1293
  %v2085 = vpop.f32.mrb[0].mxu0
  %v2086 = vadd.f32 %v1276, %v2085
  %v2087 = vpop.f32.mrb[0].mxu0
  %v2088 = vadd.f32 %v1276, %v2087
  %2089 = vmatprep.mubr.f32.mxu0 0.0
  %2090 = vmatmul.mubr.f32.gmra.mrb[0].mxu0 %v1296
  %v2091 = vpop.f32.mrb[0].mxu0
  %v2092 = vadd.f32 %v1281, %v2091
  %v2093 = vpop.f32.mrb[0].mxu0
  %v2094 = vadd.f32 %v1281, %v2093
  %2095 = vmatprep.mubr.f32.mxu0 0.0
  %2096 = vmatmul.mubr.f32.gmra.mrb[0].mxu0 %v1299
  %v2097 = vpop.f32.mrb[0].mxu0
  %v2098 = vadd.f32 %v1286, %v2097
  %v2099 = vpop.f32.mrb[0].mxu0
  %v2100 = vadd.f32 %v1286, %v2099
  %2101 = vdwg.mxu0
  %2102 = vmatprep.subr.mxu0 %v1075
  %2103 = vmatpush1.msra.mxu0 %v1074
  %2104 = vmatprep.subr.mxu0 %v1126
  %2105 = vmatpush1.msra.mxu0 %v1125
  %2106 = vmatprep.subr.mxu0 %v1177
  %2107 = vmatpush1.msra.mxu0 %v1176
  %2108 = vmatprep.subr.mxu0 %v1228
  %2109 = vmatpush1.msra.mxu0 %v1227
  %2110 = vmatprep.subr.mxu0 0.0
  %2111 = vmatpush1.msra.mxu0 0.0
  %2112 = vmatprep.subr.mxu0 0.0
  %2113 = vmatpush1.msra.mxu0 0.0
  %2114 = vmatprep.subr.mxu0 0.0
  %2115 = vmatpush1.msra.mxu0 0.0
  %2116 = vmatprep.subr.mxu0 0.0
  %2117 = vmatpush1.msra.mxu0 0.0
  %2118 = vmatprep.subr.mxu0 0.0
  %2119 = vmatpush1.msra.mxu0 0.0
  %2120 = vmatprep.subr.mxu0 0.0
  %2121 = vmatpush1.msra.mxu0 0.0
  %2122 = vmatprep.subr.mxu0 0.0
  %2123 = vmatpush1.msra.mxu0 0.0
  %2124 = vmatprep.subr.mxu0 0.0
  %2125 = vmatpush1.msra.mxu0 0.0
  %2126 = vmatprep.subr.mxu0 0.0
  %2127 = vmatpush1.msra.mxu0 0.0
  %2128 = vmatprep.subr.mxu0 0.0
  %2129 = vmatpush1.msra.mxu0 0.0
  %2130 = vmatprep.subr.mxu0 0.0
  %2131 = vmatpush1.msra.mxu0 0.0
  %2132 = vmatprep.subr.mxu0 0.0
  %2133 = vmatpush1.msra.mxu0 0.0
  %2134 = vmatprep.subr.mxu0 0.0
  %2135 = vmatpush1.msra.mxu0 0.0
  %2136 = vmatprep.subr.mxu0 0.0
  %2137 = vmatpush1.msra.mxu0 0.0
  %2138 = vmatprep.subr.mxu0 0.0
  %2139 = vmatpush1.msra.mxu0 0.0
  %2140 = vmatprep.subr.mxu0 0.0
  %2141 = vmatpush1.msra.mxu0 0.0
  %2142 = vmatprep.subr.mxu0 0.0
  %2143 = vmatpush1.msra.mxu0 0.0
  %2144 = vmatprep.subr.mxu0 0.0
  %2145 = vmatpush1.msra.mxu0 0.0
  %2146 = vmatprep.subr.mxu0 0.0
  %2147 = vmatpush1.msra.mxu0 0.0
  %2148 = vmatprep.subr.mxu0 0.0
  %2149 = vmatpush1.msra.mxu0 0.0
  %2150 = vmatprep.subr.mxu0 0.0
  %2151 = vmatpush1.msra.mxu0 0.0
  %2152 = vmatprep.subr.mxu0 0.0
  %2153 = vmatpush1.msra.mxu0 0.0
  %2154 = vmatprep.subr.mxu0 0.0
  %2155 = vmatpush1.msra.mxu0 0.0
  %2156 = vmatprep.subr.mxu0 0.0
  %2157 = vmatpush1.msra.mxu0 0.0
  %2158 = vmatprep.subr.mxu0 0.0
  %2159 = vmatpush1.msra.mxu0 0.0
  %2160 = vmatprep.subr.mxu0 0.0
  %2161 = vmatpush1.msra.mxu0 0.0
  %2162 = vmatprep.subr.mxu0 0.0
  %2163 = vmatpush1.msra.mxu0 0.0
  %2164 = vmatprep.subr.mxu0 0.0
  %2165 = vmatpush1.msra.mxu0 0.0
  %2166 = vmatprep.mubr.f32.mxu0 0.0
  %2167 = vmatmul.mubr.f32.gmra.mrb[0].mxu0 %v1290
  %v2168 = vpop.f32.mrb[0].mxu0
  %v2169 = vadd.f32 %v1271, %v2168
  %v2170 = vpop.f32.mrb[0].mxu0
  %v2171 = vadd.f32 %v1271, %v2170
  %2172 = vmatprep.mubr.f32.mxu0 0.0
  %2173 = vmatmul.mubr.f32.gmra.mrb[0].mxu0 %v1293
  %v2174 = vpop.f32.mrb[0].mxu0
  %v2175 = vadd.f32 %v1276, %v2174
  %v2176 = vpop.f32.mrb[0].mxu0
  %v2177 = vadd.f32 %v1276, %v2176
  %2178 = vmatprep.mubr.f32.mxu0 0.0
  %2179 = vmatmul.mubr.f32.gmra.mrb[0].mxu0 %v1296
  %v2180 = vpop.f32.mrb[0].mxu0
  %v2181 = vadd.f32 %v1281, %v2180
  %v2182 = vpop.f32.mrb[0].mxu0
  %v2183 = vadd.f32 %v1281, %v2182
  %2184 = vmatprep.mubr.f32.mxu0 0.0
  %2185 = vmatmul.mubr.f32.gmra.mrb[0].mxu0 %v1299
  %v2186 = vpop.f32.mrb[0].mxu0
  %v2187 = vadd.f32 %v1286, %v2186
  %v2188 = vpop.f32.mrb[0].mxu0
  %v2189 = vadd.f32 %v1286, %v2188
  %2190 = vdwg.mxu0
  %2191 = vmatprep.subr.mxu0 %v1077
  %2192 = vmatpush1.msra.mxu0 %v1076
  %2193 = vmatprep.subr.mxu0 %v1128
  %2194 = vmatpush1.msra.mxu0 %v1127
  %2195 = vmatprep.subr.mxu0 %v1179
  %2196 = vmatpush1.msra.mxu0 %v1178
  %2197 = vmatprep.subr.mxu0 %v1230
  %2198 = vmatpush1.msra.mxu0 %v1229
  %2199 = vmatprep.subr.mxu0 0.0
  %2200 = vmatpush1.msra.mxu0 0.0
  %2201 = vmatprep.subr.mxu0 0.0
  %2202 = vmatpush1.msra.mxu0 0.0
  %2203 = vmatprep.subr.mxu0 0.0
  %2204 = vmatpush1.msra.mxu0 0.0
  %2205 = vmatprep.subr.mxu0 0.0
  %2206 = vmatpush1.msra.mxu0 0.0
  %2207 = vmatprep.subr.mxu0 0.0
  %2208 = vmatpush1.msra.mxu0 0.0
  %2209 = vmatprep.subr.mxu0 0.0
  %2210 = vmatpush1.msra.mxu0 0.0
  %2211 = vmatprep.subr.mxu0 0.0
  %2212 = vmatpush1.msra.mxu0 0.0
  %2213 = vmatprep.subr.mxu0 0.0
  %2214 = vmatpush1.msra.mxu0 0.0
  %2215 = vmatprep.subr.mxu0 0.0
  %2216 = vmatpush1.msra.mxu0 0.0
  %2217 = vmatprep.subr.mxu0 0.0
  %2218 = vmatpush1.msra.mxu0 0.0
  %2219 = vmatprep.subr.mxu0 0.0
  %2220 = vmatpush1.msra.mxu0 0.0
  %2221 = vmatprep.subr.mxu0 0.0
  %2222 = vmatpush1.msra.mxu0 0.0
  %2223 = vmatprep.subr.mxu0 0.0
  %2224 = vmatpush1.msra.mxu0 0.0
  %2225 = vmatprep.subr.mxu0 0.0
  %2226 = vmatpush1.msra.mxu0 0.0
  %2227 = vmatprep.subr.mxu0 0.0
  %2228 = vmatpush1.msra.mxu0 0.0
  %2229 = vmatprep.subr.mxu0 0.0
  %2230 = vmatpush1.msra.mxu0 0.0
  %2231 = vmatprep.subr.mxu0 0.0
  %2232 = vmatpush1.msra.mxu0 0.0
  %2233 = vmatprep.subr.mxu0 0.0
  %2234 = vmatpush1.msra.mxu0 0.0
  %2235 = vmatprep.subr.mxu0 0.0
  %2236 = vmatpush1.msra.mxu0 0.0
  %2237 = vmatprep.subr.mxu0 0.0
  %2238 = vmatpush1.msra.mxu0 0.0
  %2239 = vmatprep.subr.mxu0 0.0
  %2240 = vmatpush1.msra.mxu0 0.0
  %2241 = vmatprep.subr.mxu0 0.0
  %2242 = vmatpush1.msra.mxu0 0.0
  %2243 = vmatprep.subr.mxu0 0.0
  %2244 = vmatpush1.msra.mxu0 0.0
  %2245 = vmatprep.subr.mxu0 0.0
  %2246 = vmatpush1.msra.mxu0 0.0
  %2247 = vmatprep.subr.mxu0 0.0
  %2248 = vmatpush1.msra.mxu0 0.0
  %2249 = vmatprep.subr.mxu0 0.0
  %2250 = vmatpush1.msra.mxu0 0.0
  %2251 = vmatprep.subr.mxu0 0.0
  %2252 = vmatpush1.msra.mxu0 0.0
  %2253 = vmatprep.subr.mxu0 0.0
  %2254 = vmatpush1.msra.mxu0 0.0
  %2255 = vmatprep.mubr.f32.mxu0 0.0
  %2256 = vmatmul.mubr.f32.gmra.mrb[0].mxu0 %v1290
  %v2257 = vpop.f32.mrb[0].mxu0
  %v2258 = vadd.f32 %v1271, %v2257
  %v2259 = vpop.f32.mrb[0].mxu0
  %v2260 = vadd.f32 %v1271, %v2259
  %2261 = vmatprep.mubr.f32.mxu0 0.0
  %2262 = vmatmul.mubr.f32.gmra.mrb[0].mxu0 %v1293
  %v2263 = vpop.f32.mrb[0].mxu0
  %v2264 = vadd.f32 %v1276, %v2263
  %v2265 = vpop.f32.mrb[0].mxu0
  %v2266 = vadd.f32 %v1276, %v2265
  %2267 = vmatprep.mubr.f32.mxu0 0.0
  %2268 = vmatmul.mubr.f32.gmra.mrb[0].mxu0 %v1296
  %v2269 = vpop.f32.mrb[0].mxu0
  %v2270 = vadd.f32 %v1281, %v2269
  %v2271 = vpop.f32.mrb[0].mxu0
  %v2272 = vadd.f32 %v1281, %v2271
  %2273 = vmatprep.mubr.f32.mxu0 0.0
  %2274 = vmatmul.mubr.f32.gmra.mrb[0].mxu0 %v1299
  %v2275 = vpop.f32.mrb[0].mxu0
  %v2276 = vadd.f32 %v1286, %v2275
  %v2277 = vpop.f32.mrb[0].mxu0
  %v2278 = vadd.f32 %v1286, %v2277
  %2279 = vdwg.mxu0
  %2280 = vmatprep.subr.mxu0 %v1079
  %2281 = vmatpush1.msra.mxu0 %v1078
  %2282 = vmatprep.subr.mxu0 %v1130
  %2283 = vmatpush1.msra.mxu0 %v1129
  %2284 = vmatprep.subr.mxu0 %v1181
  %2285 = vmatpush1.msra.mxu0 %v1180
  %2286 = vmatprep.subr.mxu0 %v1232
  %2287 = vmatpush1.msra.mxu0 %v1231
  %2288 = vmatprep.subr.mxu0 0.0
  %2289 = vmatpush1.msra.mxu0 0.0
  %2290 = vmatprep.subr.mxu0 0.0
  %2291 = vmatpush1.msra.mxu0 0.0
  %2292 = vmatprep.subr.mxu0 0.0
  %2293 = vmatpush1.msra.mxu0 0.0
  %2294 = vmatprep.subr.mxu0 0.0
  %2295 = vmatpush1.msra.mxu0 0.0
  %2296 = vmatprep.subr.mxu0 0.0
  %2297 = vmatpush1.msra.mxu0 0.0
  %2298 = vmatprep.subr.mxu0 0.0
  %2299 = vmatpush1.msra.mxu0 0.0
  %2300 = vmatprep.subr.mxu0 0.0
  %2301 = vmatpush1.msra.mxu0 0.0
  %2302 = vmatprep.subr.mxu0 0.0
  %2303 = vmatpush1.msra.mxu0 0.0
  %2304 = vmatprep.subr.mxu0 0.0
  %2305 = vmatpush1.msra.mxu0 0.0
  %2306 = vmatprep.subr.mxu0 0.0
  %2307 = vmatpush1.msra.mxu0 0.0
  %2308 = vmatprep.subr.mxu0 0.0
  %2309 = vmatpush1.msra.mxu0 0.0
  %2310 = vmatprep.subr.mxu0 0.0
  %2311 = vmatpush1.msra.mxu0 0.0
  %2312 = vmatprep.subr.mxu0 0.0
  %2313 = vmatpush1.msra.mxu0 0.0
  %2314 = vmatprep.subr.mxu0 0.0
  %2315 = vmatpush1.msra.mxu0 0.0
  %2316 = vmatprep.subr.mxu0 0.0
  %2317 = vmatpush1.msra.mxu0 0.0
  %2318 = vmatprep.subr.mxu0 0.0
  %2319 = vmatpush1.msra.mxu0 0.0
  %2320 = vmatprep.subr.mxu0 0.0
  %2321 = vmatpush1.msra.mxu0 0.0
  %2322 = vmatprep.subr.mxu0 0.0
  %2323 = vmatpush1.msra.mxu0 0.0
  %2324 = vmatprep.subr.mxu0 0.0
  %2325 = vmatpush1.msra.mxu0 0.0
  %2326 = vmatprep.subr.mxu0 0.0
  %2327 = vmatpush1.msra.mxu0 0.0
  %2328 = vmatprep.subr.mxu0 0.0
  %2329 = vmatpush1.msra.mxu0 0.0
  %2330 = vmatprep.subr.mxu0 0.0
  %2331 = vmatpush1.msra.mxu0 0.0
  %2332 = vmatprep.subr.mxu0 0.0
  %2333 = vmatpush1.msra.mxu0 0.0
  %2334 = vmatprep.subr.mxu0 0.0
  %2335 = vmatpush1.msra.mxu0 0.0
  %2336 = vmatprep.subr.mxu0 0.0
  %2337 = vmatpush1.msra.mxu0 0.0
  %2338 = vmatprep.subr.mxu0 0.0
  %2339 = vmatpush1.msra.mxu0 0.0
  %2340 = vmatprep.subr.mxu0 0.0
  %2341 = vmatpush1.msra.mxu0 0.0
  %2342 = vmatprep.subr.mxu0 0.0
  %2343 = vmatpush1.msra.mxu0 0.0
  %2344 = vmatprep.mubr.f32.mxu0 0.0
  %2345 = vmatmul.mubr.f32.gmra.mrb[0].mxu0 %v1290
  %v2346 = vpop.f32.mrb[0].mxu0
  %v2347 = vadd.f32 %v1271, %v2346
  %v2348 = vpop.f32.mrb[0].mxu0
  %v2349 = vadd.f32 %v1271, %v2348
  %2350 = vmatprep.mubr.f32.mxu0 0.0
  %2351 = vmatmul.mubr.f32.gmra.mrb[0].mxu0 %v1293
  %v2352 = vpop.f32.mrb[0].mxu0
  %v2353 = vadd.f32 %v1276, %v2352
  %v2354 = vpop.f32.mrb[0].mxu0
  %v2355 = vadd.f32 %v1276, %v2354
  %2356 = vmatprep.mubr.f32.mxu0 0.0
  %2357 = vmatmul.mubr.f32.gmra.mrb[0].mxu0 %v1296
  %v2358 = vpop.f32.mrb[0].mxu0
  %v2359 = vadd.f32 %v1281, %v2358
  %v2360 = vpop.f32.mrb[0].mxu0
  %v2361 = vadd.f32 %v1281, %v2360
  %2362 = vmatprep.mubr.f32.mxu0 0.0
  %2363 = vmatmul.mubr.f32.gmra.mrb[0].mxu0 %v1299
  %v2364 = vpop.f32.mrb[0].mxu0
  %v2365 = vadd.f32 %v1286, %v2364
  %v2366 = vpop.f32.mrb[0].mxu0
  %v2367 = vadd.f32 %v1286, %v2366
  %2368 = vdwg.mxu0
  %2369 = vmatprep.subr.mxu0 %v1081
  %2370 = vmatpush1.msra.mxu0 %v1080
  %2371 = vmatprep.subr.mxu0 %v1132
  %2372 = vmatpush1.msra.mxu0 %v1131
  %2373 = vmatprep.subr.mxu0 %v1183
  %2374 = vmatpush1.msra.mxu0 %v1182
  %2375 = vmatprep.subr.mxu0 %v1234
  %2376 = vmatpush1.msra.mxu0 %v1233
  %2377 = vmatprep.subr.mxu0 0.0
  %2378 = vmatpush1.msra.mxu0 0.0
  %2379 = vmatprep.subr.mxu0 0.0
  %2380 = vmatpush1.msra.mxu0 0.0
  %2381 = vmatprep.subr.mxu0 0.0
  %2382 = vmatpush1.msra.mxu0 0.0
  %2383 = vmatprep.subr.mxu0 0.0
  %2384 = vmatpush1.msra.mxu0 0.0
  %2385 = vmatprep.subr.mxu0 0.0
  %2386 = vmatpush1.msra.mxu0 0.0
  %2387 = vmatprep.subr.mxu0 0.0
  %2388 = vmatpush1.msra.mxu0 0.0
  %2389 = vmatprep.subr.mxu0 0.0
  %2390 = vmatpush1.msra.mxu0 0.0
  %2391 = vmatprep.subr.mxu0 0.0
  %2392 = vmatpush1.msra.mxu0 0.0
  %2393 = vmatprep.subr.mxu0 0.0
  %2394 = vmatpush1.msra.mxu0 0.0
  %2395 = vmatprep.subr.mxu0 0.0
  %2396 = vmatpush1.msra.mxu0 0.0
  %2397 = vmatprep.subr.mxu0 0.0
  %2398 = vmatpush1.msra.mxu0 0.0
  %2399 = vmatprep.subr.mxu0 0.0
  %2400 = vmatpush1.msra.mxu0 0.0
  %2401 = vmatprep.subr.mxu0 0.0
  %2402 = vmatpush1.msra.mxu0 0.0
  %2403 = vmatprep.subr.mxu0 0.0
  %2404 = vmatpush1.msra.mxu0 0.0
  %2405 = vmatprep.subr.mxu0 0.0
  %2406 = vmatpush1.msra.mxu0 0.0
  %2407 = vmatprep.subr.mxu0 0.0
  %2408 = vmatpush1.msra.mxu0 0.0
  %2409 = vmatprep.subr.mxu0 0.0
  %2410 = vmatpush1.msra.mxu0 0.0
  %2411 = vmatprep.subr.mxu0 0.0
  %2412 = vmatpush1.msra.mxu0 0.0
  %2413 = vmatprep.subr.mxu0 0.0
  %2414 = vmatpush1.msra.mxu0 0.0
  %2415 = vmatprep.subr.mxu0 0.0
  %2416 = vmatpush1.msra.mxu0 0.0
  %2417 = vmatprep.subr.mxu0 0.0
  %2418 = vmatpush1.msra.mxu0 0.0
  %2419 = vmatprep.subr.mxu0 0.0
  %2420 = vmatpush1.msra.mxu0 0.0
  %2421 = vmatprep.subr.mxu0 0.0
  %2422 = vmatpush1.msra.mxu0 0.0
  %2423 = vmatprep.subr.mxu0 0.0
  %2424 = vmatpush1.msra.mxu0 0.0
  %2425 = vmatprep.subr.mxu0 0.0
  %2426 = vmatpush1.msra.mxu0 0.0
  %2427 = vmatprep.subr.mxu0 0.0
  %2428 = vmatpush1.msra.mxu0 0.0
  %2429 = vmatprep.subr.mxu0 0.0
  %2430 = vmatpush1.msra.mxu0 0.0
  %2431 = vmatprep.subr.mxu0 0.0
  %2432 = vmatpush1.msra.mxu0 0.0
  %2433 = vmatprep.mubr.f32.mxu0 0.0
  %2434 = vmatmul.mubr.f32.gmra.mrb[0].mxu0 %v1290
  %v2435 = vpop.f32.mrb[0].mxu0
  %v2436 = vadd.f32 %v1271, %v2435
  %v2437 = vpop.f32.mrb[0].mxu0
  %v2438 = vadd.f32 %v1271, %v2437
  %2439 = vmatprep.mubr.f32.mxu0 0.0
  %2440 = vmatmul.mubr.f32.gmra.mrb[0].mxu0 %v1293
  %v2441 = vpop.f32.mrb[0].mxu0
  %v2442 = vadd.f32 %v1276, %v2441
  %v2443 = vpop.f32.mrb[0].mxu0
  %v2444 = vadd.f32 %v1276, %v2443
  %2445 = vmatprep.mubr.f32.mxu0 0.0
  %2446 = vmatmul.mubr.f32.gmra.mrb[0].mxu0 %v1296
  %v2447 = vpop.f32.mrb[0].mxu0
  %v2448 = vadd.f32 %v1281, %v2447
  %v2449 = vpop.f32.mrb[0].mxu0
  %v2450 = vadd.f32 %v1281, %v2449
  %2451 = vmatprep.mubr.f32.mxu0 0.0
  %2452 = vmatmul.mubr.f32.gmra.mrb[0].mxu0 %v1299
  %v2453 = vpop.f32.mrb[0].mxu0
  %v2454 = vadd.f32 %v1286, %v2453
  %v2455 = vpop.f32.mrb[0].mxu0
  %v2456 = vadd.f32 %v1286, %v2455
  %2457 = vdwg.mxu0
  %2458 = vmatprep.subr.mxu0 %v1083
  %2459 = vmatpush1.msra.mxu0 %v1082
  %2460 = vmatprep.subr.mxu0 %v1134
  %2461 = vmatpush1.msra.mxu0 %v1133
  %2462 = vmatprep.subr.mxu0 %v1185
  %2463 = vmatpush1.msra.mxu0 %v1184
  %2464 = vmatprep.subr.mxu0 %v1236
  %2465 = vmatpush1.msra.mxu0 %v1235
  %2466 = vmatprep.subr.mxu0 0.0
  %2467 = vmatpush1.msra.mxu0 0.0
  %2468 = vmatprep.subr.mxu0 0.0
  %2469 = vmatpush1.msra.mxu0 0.0
  %2470 = vmatprep.subr.mxu0 0.0
  %2471 = vmatpush1.msra.mxu0 0.0
  %2472 = vmatprep.subr.mxu0 0.0
  %2473 = vmatpush1.msra.mxu0 0.0
  %2474 = vmatprep.subr.mxu0 0.0
  %2475 = vmatpush1.msra.mxu0 0.0
  %2476 = vmatprep.subr.mxu0 0.0
  %2477 = vmatpush1.msra.mxu0 0.0
  %2478 = vmatprep.subr.mxu0 0.0
  %2479 = vmatpush1.msra.mxu0 0.0
  %2480 = vmatprep.subr.mxu0 0.0
  %2481 = vmatpush1.msra.mxu0 0.0
  %2482 = vmatprep.subr.mxu0 0.0
  %2483 = vmatpush1.msra.mxu0 0.0
  %2484 = vmatprep.subr.mxu0 0.0
  %2485 = vmatpush1.msra.mxu0 0.0
  %2486 = vmatprep.subr.mxu0 0.0
  %2487 = vmatpush1.msra.mxu0 0.0
  %2488 = vmatprep.subr.mxu0 0.0
  %2489 = vmatpush1.msra.mxu0 0.0
  %2490 = vmatprep.subr.mxu0 0.0
  %2491 = vmatpush1.msra.mxu0 0.0
  %2492 = vmatprep.subr.mxu0 0.0
  %2493 = vmatpush1.msra.mxu0 0.0
  %2494 = vmatprep.subr.mxu0 0.0
  %2495 = vmatpush1.msra.mxu0 0.0
  %2496 = vmatprep.subr.mxu0 0.0
  %2497 = vmatpush1.msra.mxu0 0.0
  %2498 = vmatprep.subr.mxu0 0.0
  %2499 = vmatpush1.msra.mxu0 0.0
  %2500 = vmatprep.subr.mxu0 0.0
  %2501 = vmatpush1.msra.mxu0 0.0
  %2502 = vmatprep.subr.mxu0 0.0
  %2503 = vmatpush1.msra.mxu0 0.0
  %2504 = vmatprep.subr.mxu0 0.0
  %2505 = vmatpush1.msra.mxu0 0.0
  %2506 = vmatprep.subr.mxu0 0.0
  %2507 = vmatpush1.msra.mxu0 0.0
  %2508 = vmatprep.subr.mxu0 0.0
  %2509 = vmatpush1.msra.mxu0 0.0
  %2510 = vmatprep.subr.mxu0 0.0
  %2511 = vmatpush1.msra.mxu0 0.0
  %2512 = vmatprep.subr.mxu0 0.0
  %2513 = vmatpush1.msra.mxu0 0.0
  %2514 = vmatprep.subr.mxu0 0.0
  %2515 = vmatpush1.msra.mxu0 0.0
  %2516 = vmatprep.subr.mxu0 0.0
  %2517 = vmatpush1.msra.mxu0 0.0
  %2518 = vmatprep.subr.mxu0 0.0
  %2519 = vmatpush1.msra.mxu0 0.0
  %2520 = vmatprep.subr.mxu0 0.0
  %2521 = vmatpush1.msra.mxu0 0.0
  %2522 = vmatprep.mubr.f32.mxu0 0.0
  %2523 = vmatmul.mubr.f32.gmra.mrb[0].mxu0 %v1290
  %v2524 = vpop.f32.mrb[0].mxu0
  %v2525 = vadd.f32 %v1271, %v2524
  %v2526 = vpop.f32.mrb[0].mxu0
  %v2527 = vadd.f32 %v1271, %v2526
  %2528 = vmatprep.mubr.f32.mxu0 0.0
  %2529 = vmatmul.mubr.f32.gmra.mrb[0].mxu0 %v1293
  %v2530 = vpop.f32.mrb[0].mxu0
  %v2531 = vadd.f32 %v1276, %v2530
  %v2532 = vpop.f32.mrb[0].mxu0
  %v2533 = vadd.f32 %v1276, %v2532
  %2534 = vmatprep.mubr.f32.mxu0 0.0
  %2535 = vmatmul.mubr.f32.gmra.mrb[0].mxu0 %v1296
  %v2536 = vpop.f32.mrb[0].mxu0
  %v2537 = vadd.f32 %v1281, %v2536
  %v2538 = vpop.f32.mrb[0].mxu0
  %v2539 = vadd.f32 %v1281, %v2538
  %2540 = vmatprep.mubr.f32.mxu0 0.0
  %2541 = vmatmul.mubr.f32.gmra.mrb[0].mxu0 %v1299
  %v2542 = vpop.f32.mrb[0].mxu0
  %v2543 = vadd.f32 %v1286, %v2542
  %v2544 = vpop.f32.mrb[0].mxu0
  %v2545 = vadd.f32 %v1286, %v2544
  %2546 = vdwg.mxu0
  %2547 = vmatprep.subr.mxu0 %v1085
  %2548 = vmatpush1.msra.mxu0 %v1084
  %2549 = vmatprep.subr.mxu0 %v1136
  %2550 = vmatpush1.msra.mxu0 %v1135
  %2551 = vmatprep.subr.mxu0 %v1187
  %2552 = vmatpush1.msra.mxu0 %v1186
  %2553 = vmatprep.subr.mxu0 %v1238
  %2554 = vmatpush1.msra.mxu0 %v1237
  %2555 = vmatprep.subr.mxu0 0.0
  %2556 = vmatpush1.msra.mxu0 0.0
  %2557 = vmatprep.subr.mxu0 0.0
  %2558 = vmatpush1.msra.mxu0 0.0
  %2559 = vmatprep.subr.mxu0 0.0
  %2560 = vmatpush1.msra.mxu0 0.0
  %2561 = vmatprep.subr.mxu0 0.0
  %2562 = vmatpush1.msra.mxu0 0.0
  %2563 = vmatprep.subr.mxu0 0.0
  %2564 = vmatpush1.msra.mxu0 0.0
  %2565 = vmatprep.subr.mxu0 0.0
  %2566 = vmatpush1.msra.mxu0 0.0
  %2567 = vmatprep.subr.mxu0 0.0
  %2568 = vmatpush1.msra.mxu0 0.0
  %2569 = vmatprep.subr.mxu0 0.0
  %2570 = vmatpush1.msra.mxu0 0.0
  %2571 = vmatprep.subr.mxu0 0.0
  %2572 = vmatpush1.msra.mxu0 0.0
  %2573 = vmatprep.subr.mxu0 0.0
  %2574 = vmatpush1.msra.mxu0 0.0
  %2575 = vmatprep.subr.mxu0 0.0
  %2576 = vmatpush1.msra.mxu0 0.0
  %2577 = vmatprep.subr.mxu0 0.0
  %2578 = vmatpush1.msra.mxu0 0.0
  %2579 = vmatprep.subr.mxu0 0.0
  %2580 = vmatpush1.msra.mxu0 0.0
  %2581 = vmatprep.subr.mxu0 0.0
  %2582 = vmatpush1.msra.mxu0 0.0
  %2583 = vmatprep.subr.mxu0 0.0
  %2584 = vmatpush1.msra.mxu0 0.0
  %2585 = vmatprep.subr.mxu0 0.0
  %2586 = vmatpush1.msra.mxu0 0.0
  %2587 = vmatprep.subr.mxu0 0.0
  %2588 = vmatpush1.msra.mxu0 0.0
  %2589 = vmatprep.subr.mxu0 0.0
  %2590 = vmatpush1.msra.mxu0 0.0
  %2591 = vmatprep.subr.mxu0 0.0
  %2592 = vmatpush1.msra.mxu0 0.0
  %2593 = vmatprep.subr.mxu0 0.0
  %2594 = vmatpush1.msra.mxu0 0.0
  %2595 = vmatprep.subr.mxu0 0.0
  %2596 = vmatpush1.msra.mxu0 0.0
  %2597 = vmatprep.subr.mxu0 0.0
  %2598 = vmatpush1.msra.mxu0 0.0
  %2599 = vmatprep.subr.mxu0 0.0
  %2600 = vmatpush1.msra.mxu0 0.0
  %2601 = vmatprep.subr.mxu0 0.0
  %2602 = vmatpush1.msra.mxu0 0.0
  %2603 = vmatprep.subr.mxu0 0.0
  %2604 = vmatpush1.msra.mxu0 0.0
  %2605 = vmatprep.subr.mxu0 0.0
  %2606 = vmatpush1.msra.mxu0 0.0
  %2607 = vmatprep.subr.mxu0 0.0
  %2608 = vmatpush1.msra.mxu0 0.0
  %2609 = vmatprep.subr.mxu0 0.0
  %2610 = vmatpush1.msra.mxu0 0.0
  %2611 = vmatprep.mubr.f32.mxu0 0.0
  %2612 = vmatmul.mubr.f32.gmra.mrb[0].mxu0 %v1290
  %v2613 = vpop.f32.mrb[0].mxu0
  %v2614 = vadd.f32 %v1271, %v2613
  %v2615 = vpop.f32.mrb[0].mxu0
  %v2616 = vadd.f32 %v1271, %v2615
  %2617 = vmatprep.mubr.f32.mxu0 0.0
  %2618 = vmatmul.mubr.f32.gmra.mrb[0].mxu0 %v1293
  %v2619 = vpop.f32.mrb[0].mxu0
  %v2620 = vadd.f32 %v1276, %v2619
  %v2621 = vpop.f32.mrb[0].mxu0
  %v2622 = vadd.f32 %v1276, %v2621
  %2623 = vmatprep.mubr.f32.mxu0 0.0
  %2624 = vmatmul.mubr.f32.gmra.mrb[0].mxu0 %v1296
  %v2625 = vpop.f32.mrb[0].mxu0
  %v2626 = vadd.f32 %v1281, %v2625
  %v2627 = vpop.f32.mrb[0].mxu0
  %v2628 = vadd.f32 %v1281, %v2627
  %2629 = vmatprep.mubr.f32.mxu0 0.0
  %2630 = vmatmul.mubr.f32.gmra.mrb[0].mxu0 %v1299
  %v2631 = vpop.f32.mrb[0].mxu0
  %v2632 = vadd.f32 %v1286, %v2631
  %v2633 = vpop.f32.mrb[0].mxu0
  %v2634 = vadd.f32 %v1286, %v2633
  %2635 = vdwg.mxu0
  %2636 = vmatprep.subr.mxu0 %v1087
  %2637 = vmatpush1.msra.mxu0 %v1086
  %2638 = vmatprep.subr.mxu0 %v1138
  %2639 = vmatpush1.msra.mxu0 %v1137
  %2640 = vmatprep.subr.mxu0 %v1189
  %2641 = vmatpush1.msra.mxu0 %v1188
  %2642 = vmatprep.subr.mxu0 %v1240
  %2643 = vmatpush1.msra.mxu0 %v1239
  %2644 = vmatprep.subr.mxu0 0.0
  %2645 = vmatpush1.msra.mxu0 0.0
  %2646 = vmatprep.subr.mxu0 0.0
  %2647 = vmatpush1.msra.mxu0 0.0
  %2648 = vmatprep.subr.mxu0 0.0
  %2649 = vmatpush1.msra.mxu0 0.0
  %2650 = vmatprep.subr.mxu0 0.0
  %2651 = vmatpush1.msra.mxu0 0.0
  %2652 = vmatprep.subr.mxu0 0.0
  %2653 = vmatpush1.msra.mxu0 0.0
  %2654 = vmatprep.subr.mxu0 0.0
  %2655 = vmatpush1.msra.mxu0 0.0
  %2656 = vmatprep.subr.mxu0 0.0
  %2657 = vmatpush1.msra.mxu0 0.0
  %2658 = vmatprep.subr.mxu0 0.0
  %2659 = vmatpush1.msra.mxu0 0.0
  %2660 = vmatprep.subr.mxu0 0.0
  %2661 = vmatpush1.msra.mxu0 0.0
  %2662 = vmatprep.subr.mxu0 0.0
  %2663 = vmatpush1.msra.mxu0 0.0
  %2664 = vmatprep.subr.mxu0 0.0
  %2665 = vmatpush1.msra.mxu0 0.0
  %2666 = vmatprep.subr.mxu0 0.0
  %2667 = vmatpush1.msra.mxu0 0.0
  %2668 = vmatprep.subr.mxu0 0.0
  %2669 = vmatpush1.msra.mxu0 0.0
  %2670 = vmatprep.subr.mxu0 0.0
  %2671 = vmatpush1.msra.mxu0 0.0
  %2672 = vmatprep.subr.mxu0 0.0
  %2673 = vmatpush1.msra.mxu0 0.0
  %2674 = vmatprep.subr.mxu0 0.0
  %2675 = vmatpush1.msra.mxu0 0.0
  %2676 = vmatprep.subr.mxu0 0.0
  %2677 = vmatpush1.msra.mxu0 0.0
  %2678 = vmatprep.subr.mxu0 0.0
  %2679 = vmatpush1.msra.mxu0 0.0
  %2680 = vmatprep.subr.mxu0 0.0
  %2681 = vmatpush1.msra.mxu0 0.0
  %2682 = vmatprep.subr.mxu0 0.0
  %2683 = vmatpush1.msra.mxu0 0.0
  %2684 = vmatprep.subr.mxu0 0.0
  %2685 = vmatpush1.msra.mxu0 0.0
  %2686 = vmatprep.subr.mxu0 0.0
  %2687 = vmatpush1.msra.mxu0 0.0
  %2688 = vmatprep.subr.mxu0 0.0
  %2689 = vmatpush1.msra.mxu0 0.0
  %2690 = vmatprep.subr.mxu0 0.0
  %2691 = vmatpush1.msra.mxu0 0.0
  %2692 = vmatprep.subr.mxu0 0.0
  %2693 = vmatpush1.msra.mxu0 0.0
  %2694 = vmatprep.subr.mxu0 0.0
  %2695 = vmatpush1.msra.mxu0 0.0
  %2696 = vmatprep.subr.mxu0 0.0
  %2697 = vmatpush1.msra.mxu0 0.0
  %2698 = vmatprep.subr.mxu0 0.0
  %2699 = vmatpush1.msra.mxu0 0.0
  %2700 = vmatprep.mubr.f32.mxu0 0.0
  %2701 = vmatmul.mubr.f32.gmra.mrb[0].mxu0 %v1290
  %v2702 = vpop.f32.mrb[0].mxu0
  %v2703 = vadd.f32 %v1271, %v2702
  %v2704 = vpop.f32.mrb[0].mxu0
  %v2705 = vadd.f32 %v1271, %v2704
  %2706 = vmatprep.mubr.f32.mxu0 0.0
  %2707 = vmatmul.mubr.f32.gmra.mrb[0].mxu0 %v1293
  %v2708 = vpop.f32.mrb[0].mxu0
  %v2709 = vadd.f32 %v1276, %v2708
  %v2710 = vpop.f32.mrb[0].mxu0
  %v2711 = vadd.f32 %v1276, %v2710
  %2712 = vmatprep.mubr.f32.mxu0 0.0
  %2713 = vmatmul.mubr.f32.gmra.mrb[0].mxu0 %v1296
  %v2714 = vpop.f32.mrb[0].mxu0
  %v2715 = vadd.f32 %v1281, %v2714
  %v2716 = vpop.f32.mrb[0].mxu0
  %v2717 = vadd.f32 %v1281, %v2716
  %2718 = vmatprep.mubr.f32.mxu0 0.0
  %2719 = vmatmul.mubr.f32.gmra.mrb[0].mxu0 %v1299
  %v2720 = vpop.f32.mrb[0].mxu0
  %v2721 = vadd.f32 %v1286, %v2720
  %v2722 = vpop.f32.mrb[0].mxu0
  %v2723 = vadd.f32 %v1286, %v2722
  %2724 = vdwg.mxu0
  %2725 = vmatprep.subr.mxu0 %v1089
  %2726 = vmatpush1.msra.mxu0 %v1088
  %2727 = vmatprep.subr.mxu0 %v1140
  %2728 = vmatpush1.msra.mxu0 %v1139
  %2729 = vmatprep.subr.mxu0 %v1191
  %2730 = vmatpush1.msra.mxu0 %v1190
  %2731 = vmatprep.subr.mxu0 %v1242
  %2732 = vmatpush1.msra.mxu0 %v1241
  %2733 = vmatprep.subr.mxu0 0.0
  %2734 = vmatpush1.msra.mxu0 0.0
  %2735 = vmatprep.subr.mxu0 0.0
  %2736 = vmatpush1.msra.mxu0 0.0
  %2737 = vmatprep.subr.mxu0 0.0
  %2738 = vmatpush1.msra.mxu0 0.0
  %2739 = vmatprep.subr.mxu0 0.0
  %2740 = vmatpush1.msra.mxu0 0.0
  %2741 = vmatprep.subr.mxu0 0.0
  %2742 = vmatpush1.msra.mxu0 0.0
  %2743 = vmatprep.subr.mxu0 0.0
  %2744 = vmatpush1.msra.mxu0 0.0
  %2745 = vmatprep.subr.mxu0 0.0
  %2746 = vmatpush1.msra.mxu0 0.0
  %2747 = vmatprep.subr.mxu0 0.0
  %2748 = vmatpush1.msra.mxu0 0.0
  %2749 = vmatprep.subr.mxu0 0.0
  %2750 = vmatpush1.msra.mxu0 0.0
  %2751 = vmatprep.subr.mxu0 0.0
  %2752 = vmatpush1.msra.mxu0 0.0
  %2753 = vmatprep.subr.mxu0 0.0
  %2754 = vmatpush1.msra.mxu0 0.0
  %2755 = vmatprep.subr.mxu0 0.0
  %2756 = vmatpush1.msra.mxu0 0.0
  %2757 = vmatprep.subr.mxu0 0.0
  %2758 = vmatpush1.msra.mxu0 0.0
  %2759 = vmatprep.subr.mxu0 0.0
  %2760 = vmatpush1.msra.mxu0 0.0
  %2761 = vmatprep.subr.mxu0 0.0
  %2762 = vmatpush1.msra.mxu0 0.0
  %2763 = vmatprep.subr.mxu0 0.0
  %2764 = vmatpush1.msra.mxu0 0.0
  %2765 = vmatprep.subr.mxu0 0.0
  %2766 = vmatpush1.msra.mxu0 0.0
  %2767 = vmatprep.subr.mxu0 0.0
  %2768 = vmatpush1.msra.mxu0 0.0
  %2769 = vmatprep.subr.mxu0 0.0
  %2770 = vmatpush1.msra.mxu0 0.0
  %2771 = vmatprep.subr.mxu0 0.0
  %2772 = vmatpush1.msra.mxu0 0.0
  %2773 = vmatprep.subr.mxu0 0.0
  %2774 = vmatpush1.msra.mxu0 0.0
  %2775 = vmatprep.subr.mxu0 0.0
  %2776 = vmatpush1.msra.mxu0 0.0
  %2777 = vmatprep.subr.mxu0 0.0
  %2778 = vmatpush1.msra.mxu0 0.0
  %2779 = vmatprep.subr.mxu0 0.0
  %2780 = vmatpush1.msra.mxu0 0.0
  %2781 = vmatprep.subr.mxu0 0.0
  %2782 = vmatpush1.msra.mxu0 0.0
  %2783 = vmatprep.subr.mxu0 0.0
  %2784 = vmatpush1.msra.mxu0 0.0
  %2785 = vmatprep.subr.mxu0 0.0
  %2786 = vmatpush1.msra.mxu0 0.0
  %2787 = vmatprep.subr.mxu0 0.0
  %2788 = vmatpush1.msra.mxu0 0.0
  %2789 = vmatprep.mubr.f32.mxu0 0.0
  %2790 = vmatmul.mubr.f32.gmra.mrb[0].mxu0 %v1290
  %v2791 = vpop.f32.mrb[0].mxu0
  %v2792 = vadd.f32 %v1271, %v2791
  %v2793 = vpop.f32.mrb[0].mxu0
  %v2794 = vadd.f32 %v1271, %v2793
  %2795 = vmatprep.mubr.f32.mxu0 0.0
  %2796 = vmatmul.mubr.f32.gmra.mrb[0].mxu0 %v1293
  %v2797 = vpop.f32.mrb[0].mxu0
  %v2798 = vadd.f32 %v1276, %v2797
  %v2799 = vpop.f32.mrb[0].mxu0
  %v2800 = vadd.f32 %v1276, %v2799
  %2801 = vmatprep.mubr.f32.mxu0 0.0
  %2802 = vmatmul.mubr.f32.gmra.mrb[0].mxu0 %v1296
  %v2803 = vpop.f32.mrb[0].mxu0
  %v2804 = vadd.f32 %v1281, %v2803
  %v2805 = vpop.f32.mrb[0].mxu0
  %v2806 = vadd.f32 %v1281, %v2805
  %2807 = vmatprep.mubr.f32.mxu0 0.0
  %2808 = vmatmul.mubr.f32.gmra.mrb[0].mxu0 %v1299
  %v2809 = vpop.f32.mrb[0].mxu0
  %v2810 = vadd.f32 %v1286, %v2809
  %v2811 = vpop.f32.mrb[0].mxu0
  %v2812 = vadd.f32 %v1286, %v2811
  %2813 = vdwg.mxu0
  %2814 = vmatprep.subr.mxu0 %v1091
  %2815 = vmatpush1.msra.mxu0 %v1090
  %2816 = vmatprep.subr.mxu0 %v1142
  %2817 = vmatpush1.msra.mxu0 %v1141
  %2818 = vmatprep.subr.mxu0 %v1193
  %2819 = vmatpush1.msra.mxu0 %v1192
  %2820 = vmatprep.subr.mxu0 %v1244
  %2821 = vmatpush1.msra.mxu0 %v1243
  %2822 = vmatprep.subr.mxu0 0.0
  %2823 = vmatpush1.msra.mxu0 0.0
  %2824 = vmatprep.subr.mxu0 0.0
  %2825 = vmatpush1.msra.mxu0 0.0
  %2826 = vmatprep.subr.mxu0 0.0
  %2827 = vmatpush1.msra.mxu0 0.0
  %2828 = vmatprep.subr.mxu0 0.0
  %2829 = vmatpush1.msra.mxu0 0.0
  %2830 = vmatprep.subr.mxu0 0.0
  %2831 = vmatpush1.msra.mxu0 0.0
  %2832 = vmatprep.subr.mxu0 0.0
  %2833 = vmatpush1.msra.mxu0 0.0
  %2834 = vmatprep.subr.mxu0 0.0
  %2835 = vmatpush1.msra.mxu0 0.0
  %2836 = vmatprep.subr.mxu0 0.0
  %2837 = vmatpush1.msra.mxu0 0.0
  %2838 = vmatprep.subr.mxu0 0.0
  %2839 = vmatpush1.msra.mxu0 0.0
  %2840 = vmatprep.subr.mxu0 0.0
  %2841 = vmatpush1.msra.mxu0 0.0
  %2842 = vmatprep.subr.mxu0 0.0
  %2843 = vmatpush1.msra.mxu0 0.0
  %2844 = vmatprep.subr.mxu0 0.0
  %2845 = vmatpush1.msra.mxu0 0.0
  %2846 = vmatprep.subr.mxu0 0.0
  %2847 = vmatpush1.msra.mxu0 0.0
  %2848 = vmatprep.subr.mxu0 0.0
  %2849 = vmatpush1.msra.mxu0 0.0
  %2850 = vmatprep.subr.mxu0 0.0
  %2851 = vmatpush1.msra.mxu0 0.0
  %2852 = vmatprep.subr.mxu0 0.0
  %2853 = vmatpush1.msra.mxu0 0.0
  %2854 = vmatprep.subr.mxu0 0.0
  %2855 = vmatpush1.msra.mxu0 0.0
  %2856 = vmatprep.subr.mxu0 0.0
  %2857 = vmatpush1.msra.mxu0 0.0
  %2858 = vmatprep.subr.mxu0 0.0
  %2859 = vmatpush1.msra.mxu0 0.0
  %2860 = vmatprep.subr.mxu0 0.0
  %2861 = vmatpush1.msra.mxu0 0.0
  %2862 = vmatprep.subr.mxu0 0.0
  %2863 = vmatpush1.msra.mxu0 0.0
  %2864 = vmatprep.subr.mxu0 0.0
  %2865 = vmatpush1.msra.mxu0 0.0
  %2866 = vmatprep.subr.mxu0 0.0
  %2867 = vmatpush1.msra.mxu0 0.0
  %2868 = vmatprep.subr.mxu0 0.0
  %2869 = vmatpush1.msra.mxu0 0.0
  %2870 = vmatprep.subr.mxu0 0.0
  %2871 = vmatpush1.msra.mxu0 0.0
  %2872 = vmatprep.subr.mxu0 0.0
  %2873 = vmatpush1.msra.mxu0 0.0
  %2874 = vmatprep.subr.mxu0 0.0
  %2875 = vmatpush1.msra.mxu0 0.0
  %2876 = vmatprep.subr.mxu0 0.0
  %2877 = vmatpush1.msra.mxu0 0.0
  %2878 = vmatprep.mubr.f32.mxu0 0.0
  %2879 = vmatmul.mubr.f32.gmra.mrb[0].mxu0 %v1290
  %v2880 = vpop.f32.mrb[0].mxu0
  %v2881 = vadd.f32 %v1271, %v2880
  %v2882 = vpop.f32.mrb[0].mxu0
  %v2883 = vadd.f32 %v1271, %v2882
  %2884 = vmatprep.mubr.f32.mxu0 0.0
  %2885 = vmatmul.mubr.f32.gmra.mrb[0].mxu0 %v1293
  %v2886 = vpop.f32.mrb[0].mxu0
  %v2887 = vadd.f32 %v1276, %v2886
  %v2888 = vpop.f32.mrb[0].mxu0
  %v2889 = vadd.f32 %v1276, %v2888
  %2890 = vmatprep.mubr.f32.mxu0 0.0
  %2891 = vmatmul.mubr.f32.gmra.mrb[0].mxu0 %v1296
  %v2892 = vpop.f32.mrb[0].mxu0
  %v2893 = vadd.f32 %v1281, %v2892
  %v2894 = vpop.f32.mrb[0].mxu0
  %v2895 = vadd.f32 %v1281, %v2894
  %2896 = vmatprep.mubr.f32.mxu0 0.0
  %2897 = vmatmul.mubr.f32.gmra.mrb[0].mxu0 %v1299
  %v2898 = vpop.f32.mrb[0].mxu0
  %v2899 = vadd.f32 %v1286, %v2898
  %v2900 = vpop.f32.mrb[0].mxu0
  %v2901 = vadd.f32 %v1286, %v2900
  %2902 = vdwg.mxu0
  %2903 = vmatprep.subr.mxu0 %v1093
  %2904 = vmatpush1.msra.mxu0 %v1092
  %2905 = vmatprep.subr.mxu0 %v1144
  %2906 = vmatpush1.msra.mxu0 %v1143
  %2907 = vmatprep.subr.mxu0 %v1195
  %2908 = vmatpush1.msra.mxu0 %v1194
  %2909 = vmatprep.subr.mxu0 %v1246
  %2910 = vmatpush1.msra.mxu0 %v1245
  %2911 = vmatprep.subr.mxu0 0.0
  %2912 = vmatpush1.msra.mxu0 0.0
  %2913 = vmatprep.subr.mxu0 0.0
  %2914 = vmatpush1.msra.mxu0 0.0
  %2915 = vmatprep.subr.mxu0 0.0
  %2916 = vmatpush1.msra.mxu0 0.0
  %2917 = vmatprep.subr.mxu0 0.0
  %2918 = vmatpush1.msra.mxu0 0.0
  %2919 = vmatprep.subr.mxu0 0.0
  %2920 = vmatpush1.msra.mxu0 0.0
  %2921 = vmatprep.subr.mxu0 0.0
  %2922 = vmatpush1.msra.mxu0 0.0
  %2923 = vmatprep.subr.mxu0 0.0
  %2924 = vmatpush1.msra.mxu0 0.0
  %2925 = vmatprep.subr.mxu0 0.0
  %2926 = vmatpush1.msra.mxu0 0.0
  %2927 = vmatprep.subr.mxu0 0.0
  %2928 = vmatpush1.msra.mxu0 0.0
  %2929 = vmatprep.subr.mxu0 0.0
  %2930 = vmatpush1.msra.mxu0 0.0
  %2931 = vmatprep.subr.mxu0 0.0
  %2932 = vmatpush1.msra.mxu0 0.0
  %2933 = vmatprep.subr.mxu0 0.0
  %2934 = vmatpush1.msra.mxu0 0.0
  %2935 = vmatprep.subr.mxu0 0.0
  %2936 = vmatpush1.msra.mxu0 0.0
  %2937 = vmatprep.subr.mxu0 0.0
  %2938 = vmatpush1.msra.mxu0 0.0
  %2939 = vmatprep.subr.mxu0 0.0
  %2940 = vmatpush1.msra.mxu0 0.0
  %2941 = vmatprep.subr.mxu0 0.0
  %2942 = vmatpush1.msra.mxu0 0.0
  %2943 = vmatprep.subr.mxu0 0.0
  %2944 = vmatpush1.msra.mxu0 0.0
  %2945 = vmatprep.subr.mxu0 0.0
  %2946 = vmatpush1.msra.mxu0 0.0
  %2947 = vmatprep.subr.mxu0 0.0
  %2948 = vmatpush1.msra.mxu0 0.0
  %2949 = vmatprep.subr.mxu0 0.0
  %2950 = vmatpush1.msra.mxu0 0.0
  %2951 = vmatprep.subr.mxu0 0.0
  %2952 = vmatpush1.msra.mxu0 0.0
  %2953 = vmatprep.subr.mxu0 0.0
  %2954 = vmatpush1.msra.mxu0 0.0
  %2955 = vmatprep.subr.mxu0 0.0
  %2956 = vmatpush1.msra.mxu0 0.0
  %2957 = vmatprep.subr.mxu0 0.0
  %2958 = vmatpush1.msra.mxu0 0.0
  %2959 = vmatprep.subr.mxu0 0.0
  %2960 = vmatpush1.msra.mxu0 0.0
  %2961 = vmatprep.subr.mxu0 0.0
  %2962 = vmatpush1.msra.mxu0 0.0
  %2963 = vmatprep.subr.mxu0 0.0
  %2964 = vmatpush1.msra.mxu0 0.0
  %2965 = vmatprep.subr.mxu0 0.0
  %2966 = vmatpush1.msra.mxu0 0.0
  %2967 = vmatprep.mubr.f32.mxu0 0.0
  %2968 = vmatmul.mubr.f32.gmra.mrb[0].mxu0 %v1290
  %v2969 = vpop.f32.mrb[0].mxu0
  %v2970 = vadd.f32 %v1271, %v2969
  %v2971 = vpop.f32.mrb[0].mxu0
  %v2972 = vadd.f32 %v1271, %v2971
  %2973 = vmatprep.mubr.f32.mxu0 0.0
  %2974 = vmatmul.mubr.f32.gmra.mrb[0].mxu0 %v1293
  %v2975 = vpop.f32.mrb[0].mxu0
  %v2976 = vadd.f32 %v1276, %v2975
  %v2977 = vpop.f32.mrb[0].mxu0
  %v2978 = vadd.f32 %v1276, %v2977
  %2979 = vmatprep.mubr.f32.mxu0 0.0
  %2980 = vmatmul.mubr.f32.gmra.mrb[0].mxu0 %v1296
  %v2981 = vpop.f32.mrb[0].mxu0
  %v2982 = vadd.f32 %v1281, %v2981
  %v2983 = vpop.f32.mrb[0].mxu0
  %v2984 = vadd.f32 %v1281, %v2983
  %2985 = vmatprep.mubr.f32.mxu0 0.0
  %2986 = vmatmul.mubr.f32.gmra.mrb[0].mxu0 %v1299
  %v2987 = vpop.f32.mrb[0].mxu0
  %v2988 = vadd.f32 %v1286, %v2987
  %v2989 = vpop.f32.mrb[0].mxu0
  %v2990 = vadd.f32 %v1286, %v2989
  %2991 = vdwg.mxu0
  %2992 = vmatprep.subr.mxu0 %v1095
  %2993 = vmatpush1.msra.mxu0 %v1094
  %2994 = vmatprep.subr.mxu0 %v1146
  %2995 = vmatpush1.msra.mxu0 %v1145
  %2996 = vmatprep.subr.mxu0 %v1197
  %2997 = vmatpush1.msra.mxu0 %v1196
  %2998 = vmatprep.subr.mxu0 %v1248
  %2999 = vmatpush1.msra.mxu0 %v1247
  %3000 = vmatprep.subr.mxu0 0.0
  %3001 = vmatpush1.msra.mxu0 0.0
  %3002 = vmatprep.subr.mxu0 0.0
  %3003 = vmatpush1.msra.mxu0 0.0
  %3004 = vmatprep.subr.mxu0 0.0
  %3005 = vmatpush1.msra.mxu0 0.0
  %3006 = vmatprep.subr.mxu0 0.0
  %3007 = vmatpush1.msra.mxu0 0.0
  %3008 = vmatprep.subr.mxu0 0.0
  %3009 = vmatpush1.msra.mxu0 0.0
  %3010 = vmatprep.subr.mxu0 0.0
  %3011 = vmatpush1.msra.mxu0 0.0
  %3012 = vmatprep.subr.mxu0 0.0
  %3013 = vmatpush1.msra.mxu0 0.0
  %3014 = vmatprep.subr.mxu0 0.0
  %3015 = vmatpush1.msra.mxu0 0.0
  %3016 = vmatprep.subr.mxu0 0.0
  %3017 = vmatpush1.msra.mxu0 0.0
  %3018 = vmatprep.subr.mxu0 0.0
  %3019 = vmatpush1.msra.mxu0 0.0
  %3020 = vmatprep.subr.mxu0 0.0
  %3021 = vmatpush1.msra.mxu0 0.0
  %3022 = vmatprep.subr.mxu0 0.0
  %3023 = vmatpush1.msra.mxu0 0.0
  %3024 = vmatprep.subr.mxu0 0.0
  %3025 = vmatpush1.msra.mxu0 0.0
  %3026 = vmatprep.subr.mxu0 0.0
  %3027 = vmatpush1.msra.mxu0 0.0
  %3028 = vmatprep.subr.mxu0 0.0
  %3029 = vmatpush1.msra.mxu0 0.0
  %3030 = vmatprep.subr.mxu0 0.0
  %3031 = vmatpush1.msra.mxu0 0.0
  %3032 = vmatprep.subr.mxu0 0.0
  %3033 = vmatpush1.msra.mxu0 0.0
  %3034 = vmatprep.subr.mxu0 0.0
  %3035 = vmatpush1.msra.mxu0 0.0
  %3036 = vmatprep.subr.mxu0 0.0
  %3037 = vmatpush1.msra.mxu0 0.0
  %3038 = vmatprep.subr.mxu0 0.0
  %3039 = vmatpush1.msra.mxu0 0.0
  %3040 = vmatprep.subr.mxu0 0.0
  %3041 = vmatpush1.msra.mxu0 0.0
  %3042 = vmatprep.subr.mxu0 0.0
  %3043 = vmatpush1.msra.mxu0 0.0
  %3044 = vmatprep.subr.mxu0 0.0
  %3045 = vmatpush1.msra.mxu0 0.0
  %3046 = vmatprep.subr.mxu0 0.0
  %3047 = vmatpush1.msra.mxu0 0.0
  %3048 = vmatprep.subr.mxu0 0.0
  %3049 = vmatpush1.msra.mxu0 0.0
  %3050 = vmatprep.subr.mxu0 0.0
  %3051 = vmatpush1.msra.mxu0 0.0
  %3052 = vmatprep.subr.mxu0 0.0
  %3053 = vmatpush1.msra.mxu0 0.0
  %3054 = vmatprep.subr.mxu0 0.0
  %3055 = vmatpush1.msra.mxu0 0.0
  %3056 = vmatprep.mubr.f32.mxu0 0.0
  %3057 = vmatmul.mubr.f32.gmra.mrb[0].mxu0 %v1290
  %v3058 = vpop.f32.mrb[0].mxu0
  %v3059 = vadd.f32 %v1271, %v3058
  %v3060 = vpop.f32.mrb[0].mxu0
  %v3061 = vadd.f32 %v1271, %v3060
  %3062 = vmatprep.mubr.f32.mxu0 0.0
  %3063 = vmatmul.mubr.f32.gmra.mrb[0].mxu0 %v1293
  %v3064 = vpop.f32.mrb[0].mxu0
  %v3065 = vadd.f32 %v1276, %v3064
  %v3066 = vpop.f32.mrb[0].mxu0
  %v3067 = vadd.f32 %v1276, %v3066
  %3068 = vmatprep.mubr.f32.mxu0 0.0
  %3069 = vmatmul.mubr.f32.gmra.mrb[0].mxu0 %v1296
  %v3070 = vpop.f32.mrb[0].mxu0
  %v3071 = vadd.f32 %v1281, %v3070
  %v3072 = vpop.f32.mrb[0].mxu0
  %v3073 = vadd.f32 %v1281, %v3072
  %3074 = vmatprep.mubr.f32.mxu0 0.0
  %3075 = vmatmul.mubr.f32.gmra.mrb[0].mxu0 %v1299
  %v3076 = vpop.f32.mrb[0].mxu0
  %v3077 = vadd.f32 %v1286, %v3076
  %v3078 = vpop.f32.mrb[0].mxu0
  %v3079 = vadd.f32 %v1286, %v3078
  %3080 = vdwg.mxu0
  %3081 = vmatprep.subr.mxu0 %v1097
  %3082 = vmatpush1.msra.mxu0 %v1096
  %3083 = vmatprep.subr.mxu0 %v1148
  %3084 = vmatpush1.msra.mxu0 %v1147
  %3085 = vmatprep.subr.mxu0 %v1199
  %3086 = vmatpush1.msra.mxu0 %v1198
  %3087 = vmatprep.subr.mxu0 %v1250
  %3088 = vmatpush1.msra.mxu0 %v1249
  %3089 = vmatprep.subr.mxu0 0.0
  %3090 = vmatpush1.msra.mxu0 0.0
  %3091 = vmatprep.subr.mxu0 0.0
  %3092 = vmatpush1.msra.mxu0 0.0
  %3093 = vmatprep.subr.mxu0 0.0
  %3094 = vmatpush1.msra.mxu0 0.0
  %3095 = vmatprep.subr.mxu0 0.0
  %3096 = vmatpush1.msra.mxu0 0.0
  %3097 = vmatprep.subr.mxu0 0.0
  %3098 = vmatpush1.msra.mxu0 0.0
  %3099 = vmatprep.subr.mxu0 0.0
  %3100 = vmatpush1.msra.mxu0 0.0
  %3101 = vmatprep.subr.mxu0 0.0
  %3102 = vmatpush1.msra.mxu0 0.0
  %3103 = vmatprep.subr.mxu0 0.0
  %3104 = vmatpush1.msra.mxu0 0.0
  %3105 = vmatprep.subr.mxu0 0.0
  %3106 = vmatpush1.msra.mxu0 0.0
  %3107 = vmatprep.subr.mxu0 0.0
  %3108 = vmatpush1.msra.mxu0 0.0
  %3109 = vmatprep.subr.mxu0 0.0
  %3110 = vmatpush1.msra.mxu0 0.0
  %3111 = vmatprep.subr.mxu0 0.0
  %3112 = vmatpush1.msra.mxu0 0.0
  %3113 = vmatprep.subr.mxu0 0.0
  %3114 = vmatpush1.msra.mxu0 0.0
  %3115 = vmatprep.subr.mxu0 0.0
  %3116 = vmatpush1.msra.mxu0 0.0
  %3117 = vmatprep.subr.mxu0 0.0
  %3118 = vmatpush1.msra.mxu0 0.0
  %3119 = vmatprep.subr.mxu0 0.0
  %3120 = vmatpush1.msra.mxu0 0.0
  %3121 = vmatprep.subr.mxu0 0.0
  %3122 = vmatpush1.msra.mxu0 0.0
  %3123 = vmatprep.subr.mxu0 0.0
  %3124 = vmatpush1.msra.mxu0 0.0
  %3125 = vmatprep.subr.mxu0 0.0
  %3126 = vmatpush1.msra.mxu0 0.0
  %3127 = vmatprep.subr.mxu0 0.0
  %3128 = vmatpush1.msra.mxu0 0.0
  %3129 = vmatprep.subr.mxu0 0.0
  %3130 = vmatpush1.msra.mxu0 0.0
  %3131 = vmatprep.subr.mxu0 0.0
  %3132 = vmatpush1.msra.mxu0 0.0
  %3133 = vmatprep.subr.mxu0 0.0
  %3134 = vmatpush1.msra.mxu0 0.0
  %3135 = vmatprep.subr.mxu0 0.0
  %3136 = vmatpush1.msra.mxu0 0.0
  %3137 = vmatprep.subr.mxu0 0.0
  %3138 = vmatpush1.msra.mxu0 0.0
  %3139 = vmatprep.subr.mxu0 0.0
  %3140 = vmatpush1.msra.mxu0 0.0
  %3141 = vmatprep.subr.mxu0 0.0
  %3142 = vmatpush1.msra.mxu0 0.0
  %3143 = vmatprep.subr.mxu0 0.0
  %3144 = vmatpush1.msra.mxu0 0.0
  %3145 = vmatprep.mubr.f32.mxu0 0.0
  %3146 = vmatmul.mubr.f32.gmra.mrb[0].mxu0 %v1290
  %v3147 = vpop.f32.mrb[0].mxu0
  %v3148 = vadd.f32 %v1271, %v3147
  %v3149 = vpop.f32.mrb[0].mxu0
  %v3150 = vadd.f32 %v1271, %v3149
  %3151 = vmatprep.mubr.f32.mxu0 0.0
  %3152 = vmatmul.mubr.f32.gmra.mrb[0].mxu0 %v1293
  %v3153 = vpop.f32.mrb[0].mxu0
  %v3154 = vadd.f32 %v1276, %v3153
  %v3155 = vpop.f32.mrb[0].mxu0
  %v3156 = vadd.f32 %v1276, %v3155
  %3157 = vmatprep.mubr.f32.mxu0 0.0
  %3158 = vmatmul.mubr.f32.gmra.mrb[0].mxu0 %v1296
  %v3159 = vpop.f32.mrb[0].mxu0
  %v3160 = vadd.f32 %v1281, %v3159
  %v3161 = vpop.f32.mrb[0].mxu0
  %v3162 = vadd.f32 %v1281, %v3161
  %3163 = vmatprep.mubr.f32.mxu0 0.0
  %3164 = vmatmul.mubr.f32.gmra.mrb[0].mxu0 %v1299
  %v3165 = vpop.f32.mrb[0].mxu0
  %v3166 = vadd.f32 %v1286, %v3165
  %v3167 = vpop.f32.mrb[0].mxu0
  %v3168 = vadd.f32 %v1286, %v3167
  %3169 = vdwg.mxu0
  %3170 = vmatprep.subr.mxu0 %v1099
  %3171 = vmatpush1.msra.mxu0 %v1098
  %3172 = vmatprep.subr.mxu0 %v1150
  %3173 = vmatpush1.msra.mxu0 %v1149
  %3174 = vmatprep.subr.mxu0 %v1201
  %3175 = vmatpush1.msra.mxu0 %v1200
  %3176 = vmatprep.subr.mxu0 %v1252
  %3177 = vmatpush1.msra.mxu0 %v1251
  %3178 = vmatprep.subr.mxu0 0.0
  %3179 = vmatpush1.msra.mxu0 0.0
  %3180 = vmatprep.subr.mxu0 0.0
  %3181 = vmatpush1.msra.mxu0 0.0
  %3182 = vmatprep.subr.mxu0 0.0
  %3183 = vmatpush1.msra.mxu0 0.0
  %3184 = vmatprep.subr.mxu0 0.0
  %3185 = vmatpush1.msra.mxu0 0.0
  %3186 = vmatprep.subr.mxu0 0.0
  %3187 = vmatpush1.msra.mxu0 0.0
  %3188 = vmatprep.subr.mxu0 0.0
  %3189 = vmatpush1.msra.mxu0 0.0
  %3190 = vmatprep.subr.mxu0 0.0
  %3191 = vmatpush1.msra.mxu0 0.0
  %3192 = vmatprep.subr.mxu0 0.0
  %3193 = vmatpush1.msra.mxu0 0.0
  %3194 = vmatprep.subr.mxu0 0.0
  %3195 = vmatpush1.msra.mxu0 0.0
  %3196 = vmatprep.subr.mxu0 0.0
  %3197 = vmatpush1.msra.mxu0 0.0
  %3198 = vmatprep.subr.mxu0 0.0
  %3199 = vmatpush1.msra.mxu0 0.0
  %3200 = vmatprep.subr.mxu0 0.0
  %3201 = vmatpush1.msra.mxu0 0.0
  %3202 = vmatprep.subr.mxu0 0.0
  %3203 = vmatpush1.msra.mxu0 0.0
  %3204 = vmatprep.subr.mxu0 0.0
  %3205 = vmatpush1.msra.mxu0 0.0
  %3206 = vmatprep.subr.mxu0 0.0
  %3207 = vmatpush1.msra.mxu0 0.0
  %3208 = vmatprep.subr.mxu0 0.0
  %3209 = vmatpush1.msra.mxu0 0.0
  %3210 = vmatprep.subr.mxu0 0.0
  %3211 = vmatpush1.msra.mxu0 0.0
  %3212 = vmatprep.subr.mxu0 0.0
  %3213 = vmatpush1.msra.mxu0 0.0
  %3214 = vmatprep.subr.mxu0 0.0
  %3215 = vmatpush1.msra.mxu0 0.0
  %3216 = vmatprep.subr.mxu0 0.0
  %3217 = vmatpush1.msra.mxu0 0.0
  %3218 = vmatprep.subr.mxu0 0.0
  %3219 = vmatpush1.msra.mxu0 0.0
  %3220 = vmatprep.subr.mxu0 0.0
  %3221 = vmatpush1.msra.mxu0 0.0
  %3222 = vmatprep.subr.mxu0 0.0
  %3223 = vmatpush1.msra.mxu0 0.0
  %3224 = vmatprep.subr.mxu0 0.0
  %3225 = vmatpush1.msra.mxu0 0.0
  %3226 = vmatprep.subr.mxu0 0.0
  %3227 = vmatpush1.msra.mxu0 0.0
  %3228 = vmatprep.subr.mxu0 0.0
  %3229 = vmatpush1.msra.mxu0 0.0
  %3230 = vmatprep.subr.mxu0 0.0
  %3231 = vmatpush1.msra.mxu0 0.0
  %3232 = vmatprep.subr.mxu0 0.0
  %3233 = vmatpush1.msra.mxu0 0.0
  %3234 = vmatprep.mubr.f32.mxu0 0.0
  %3235 = vmatmul.mubr.f32.gmra.mrb[0].mxu0 %v1290
  %v3236 = vpop.f32.mrb[0].mxu0
  %v3237 = vadd.f32 %v1271, %v3236
  %v3238 = vpop.f32.mrb[0].mxu0
  %v3239 = vadd.f32 %v1271, %v3238
  %3240 = vmatprep.mubr.f32.mxu0 0.0
  %3241 = vmatmul.mubr.f32.gmra.mrb[0].mxu0 %v1293
  %v3242 = vpop.f32.mrb[0].mxu0
  %v3243 = vadd.f32 %v1276, %v3242
  %v3244 = vpop.f32.mrb[0].mxu0
  %v3245 = vadd.f32 %v1276, %v3244
  %3246 = vmatprep.mubr.f32.mxu0 0.0
  %3247 = vmatmul.mubr.f32.gmra.mrb[0].mxu0 %v1296
  %v3248 = vpop.f32.mrb[0].mxu0
  %v3249 = vadd.f32 %v1281, %v3248
  %v3250 = vpop.f32.mrb[0].mxu0
  %v3251 = vadd.f32 %v1281, %v3250
  %3252 = vmatprep.mubr.f32.mxu0 0.0
  %3253 = vmatmul.mubr.f32.gmra.mrb[0].mxu0 %v1299
  %v3254 = vpop.f32.mrb[0].mxu0
  %v3255 = vadd.f32 %v1286, %v3254
  %v3256 = vpop.f32.mrb[0].mxu0
  %v3257 = vadd.f32 %v1286, %v3256
  %3258 = vdwg.mxu0
  %3259 = vmatprep.subr.mxu0 %v1101
  %3260 = vmatpush1.msra.mxu0 %v1100
  %3261 = vmatprep.subr.mxu0 %v1152
  %3262 = vmatpush1.msra.mxu0 %v1151
  %3263 = vmatprep.subr.mxu0 %v1203
  %3264 = vmatpush1.msra.mxu0 %v1202
  %3265 = vmatprep.subr.mxu0 %v1254
  %3266 = vmatpush1.msra.mxu0 %v1253
  %3267 = vmatprep.subr.mxu0 0.0
  %3268 = vmatpush1.msra.mxu0 0.0
  %3269 = vmatprep.subr.mxu0 0.0
  %3270 = vmatpush1.msra.mxu0 0.0
  %3271 = vmatprep.subr.mxu0 0.0
  %3272 = vmatpush1.msra.mxu0 0.0
  %3273 = vmatprep.subr.mxu0 0.0
  %3274 = vmatpush1.msra.mxu0 0.0
  %3275 = vmatprep.subr.mxu0 0.0
  %3276 = vmatpush1.msra.mxu0 0.0
  %3277 = vmatprep.subr.mxu0 0.0
  %3278 = vmatpush1.msra.mxu0 0.0
  %3279 = vmatprep.subr.mxu0 0.0
  %3280 = vmatpush1.msra.mxu0 0.0
  %3281 = vmatprep.subr.mxu0 0.0
  %3282 = vmatpush1.msra.mxu0 0.0
  %3283 = vmatprep.subr.mxu0 0.0
  %3284 = vmatpush1.msra.mxu0 0.0
  %3285 = vmatprep.subr.mxu0 0.0
  %3286 = vmatpush1.msra.mxu0 0.0
  %3287 = vmatprep.subr.mxu0 0.0
  %3288 = vmatpush1.msra.mxu0 0.0
  %3289 = vmatprep.subr.mxu0 0.0
  %3290 = vmatpush1.msra.mxu0 0.0
  %3291 = vmatprep.subr.mxu0 0.0
  %3292 = vmatpush1.msra.mxu0 0.0
  %3293 = vmatprep.subr.mxu0 0.0
  %3294 = vmatpush1.msra.mxu0 0.0
  %3295 = vmatprep.subr.mxu0 0.0
  %3296 = vmatpush1.msra.mxu0 0.0
  %3297 = vmatprep.subr.mxu0 0.0
  %3298 = vmatpush1.msra.mxu0 0.0
  %3299 = vmatprep.subr.mxu0 0.0
  %3300 = vmatpush1.msra.mxu0 0.0
  %3301 = vmatprep.subr.mxu0 0.0
  %3302 = vmatpush1.msra.mxu0 0.0
  %3303 = vmatprep.subr.mxu0 0.0
  %3304 = vmatpush1.msra.mxu0 0.0
  %3305 = vmatprep.subr.mxu0 0.0
  %3306 = vmatpush1.msra.mxu0 0.0
  %3307 = vmatprep.subr.mxu0 0.0
  %3308 = vmatpush1.msra.mxu0 0.0
  %3309 = vmatprep.subr.mxu0 0.0
  %3310 = vmatpush1.msra.mxu0 0.0
  %3311 = vmatprep.subr.mxu0 0.0
  %3312 = vmatpush1.msra.mxu0 0.0
  %3313 = vmatprep.subr.mxu0 0.0
  %3314 = vmatpush1.msra.mxu0 0.0
  %3315 = vmatprep.subr.mxu0 0.0
  %3316 = vmatpush1.msra.mxu0 0.0
  %3317 = vmatprep.subr.mxu0 0.0
  %3318 = vmatpush1.msra.mxu0 0.0
  %3319 = vmatprep.subr.mxu0 0.0
  %3320 = vmatpush1.msra.mxu0 0.0
  %3321 = vmatprep.subr.mxu0 0.0
  %3322 = vmatpush1.msra.mxu0 0.0
  %3323 = vmatprep.mubr.f32.mxu0 0.0
  %3324 = vmatmul.mubr.f32.gmra.mrb[0].mxu0 %v1290
  %v3325 = vpop.f32.mrb[0].mxu0
  %v3326 = vadd.f32 %v1271, %v3325
  %v3327 = vpop.f32.mrb[0].mxu0
  %v3328 = vadd.f32 %v1271, %v3327
  %3329 = vmatprep.mubr.f32.mxu0 0.0
  %3330 = vmatmul.mubr.f32.gmra.mrb[0].mxu0 %v1293
  %v3331 = vpop.f32.mrb[0].mxu0
  %v3332 = vadd.f32 %v1276, %v3331
  %v3333 = vpop.f32.mrb[0].mxu0
  %v3334 = vadd.f32 %v1276, %v3333
  %3335 = vmatprep.mubr.f32.mxu0 0.0
  %3336 = vmatmul.mubr.f32.gmra.mrb[0].mxu0 %v1296
  %v3337 = vpop.f32.mrb[0].mxu0
  %v3338 = vadd.f32 %v1281, %v3337
  %v3339 = vpop.f32.mrb[0].mxu0
  %v3340 = vadd.f32 %v1281, %v3339
  %3341 = vmatprep.mubr.f32.mxu0 0.0
  %3342 = vmatmul.mubr.f32.gmra.mrb[0].mxu0 %v1299
  %v3343 = vpop.f32.mrb[0].mxu0
  %v3344 = vadd.f32 %v1286, %v3343
  %v3345 = vpop.f32.mrb[0].mxu0
  %v3346 = vadd.f32 %v1286, %v3345
  %3347 = vdwg.mxu0
  %3348 = vmatprep.subr.mxu0 %v1103
  %3349 = vmatpush1.msra.mxu0 %v1102
  %3350 = vmatprep.subr.mxu0 %v1154
  %3351 = vmatpush1.msra.mxu0 %v1153
  %3352 = vmatprep.subr.mxu0 %v1205
  %3353 = vmatpush1.msra.mxu0 %v1204
  %3354 = vmatprep.subr.mxu0 %v1256
  %3355 = vmatpush1.msra.mxu0 %v1255
  %3356 = vmatprep.subr.mxu0 0.0
  %3357 = vmatpush1.msra.mxu0 0.0
  %3358 = vmatprep.subr.mxu0 0.0
  %3359 = vmatpush1.msra.mxu0 0.0
  %3360 = vmatprep.subr.mxu0 0.0
  %3361 = vmatpush1.msra.mxu0 0.0
  %3362 = vmatprep.subr.mxu0 0.0
  %3363 = vmatpush1.msra.mxu0 0.0
  %3364 = vmatprep.subr.mxu0 0.0
  %3365 = vmatpush1.msra.mxu0 0.0
  %3366 = vmatprep.subr.mxu0 0.0
  %3367 = vmatpush1.msra.mxu0 0.0
  %3368 = vmatprep.subr.mxu0 0.0
  %3369 = vmatpush1.msra.mxu0 0.0
  %3370 = vmatprep.subr.mxu0 0.0
  %3371 = vmatpush1.msra.mxu0 0.0
  %3372 = vmatprep.subr.mxu0 0.0
  %3373 = vmatpush1.msra.mxu0 0.0
  %3374 = vmatprep.subr.mxu0 0.0
  %3375 = vmatpush1.msra.mxu0 0.0
  %3376 = vmatprep.subr.mxu0 0.0
  %3377 = vmatpush1.msra.mxu0 0.0
  %3378 = vmatprep.subr.mxu0 0.0
  %3379 = vmatpush1.msra.mxu0 0.0
  %3380 = vmatprep.subr.mxu0 0.0
  %3381 = vmatpush1.msra.mxu0 0.0
  %3382 = vmatprep.subr.mxu0 0.0
  %3383 = vmatpush1.msra.mxu0 0.0
  %3384 = vmatprep.subr.mxu0 0.0
  %3385 = vmatpush1.msra.mxu0 0.0
  %3386 = vmatprep.subr.mxu0 0.0
  %3387 = vmatpush1.msra.mxu0 0.0
  %3388 = vmatprep.subr.mxu0 0.0
  %3389 = vmatpush1.msra.mxu0 0.0
  %3390 = vmatprep.subr.mxu0 0.0
  %3391 = vmatpush1.msra.mxu0 0.0
  %3392 = vmatprep.subr.mxu0 0.0
  %3393 = vmatpush1.msra.mxu0 0.0
  %3394 = vmatprep.subr.mxu0 0.0
  %3395 = vmatpush1.msra.mxu0 0.0
  %3396 = vmatprep.subr.mxu0 0.0
  %3397 = vmatpush1.msra.mxu0 0.0
  %3398 = vmatprep.subr.mxu0 0.0
  %3399 = vmatpush1.msra.mxu0 0.0
  %3400 = vmatprep.subr.mxu0 0.0
  %3401 = vmatpush1.msra.mxu0 0.0
  %3402 = vmatprep.subr.mxu0 0.0
  %3403 = vmatpush1.msra.mxu0 0.0
  %3404 = vmatprep.subr.mxu0 0.0
  %3405 = vmatpush1.msra.mxu0 0.0
  %3406 = vmatprep.subr.mxu0 0.0
  %3407 = vmatpush1.msra.mxu0 0.0
  %3408 = vmatprep.subr.mxu0 0.0
  %3409 = vmatpush1.msra.mxu0 0.0
  %3410 = vmatprep.subr.mxu0 0.0
  %3411 = vmatpush1.msra.mxu0 0.0
  %3412 = vmatprep.mubr.f32.mxu0 0.0
  %3413 = vmatmul.mubr.f32.gmra.mrb[0].mxu0 %v1290
  %v3414 = vpop.f32.mrb[0].mxu0
  %v3415 = vadd.f32 %v1271, %v3414
  %v3416 = vpop.f32.mrb[0].mxu0
  %v3417 = vadd.f32 %v1271, %v3416
  %3418 = vmatprep.mubr.f32.mxu0 0.0
  %3419 = vmatmul.mubr.f32.gmra.mrb[0].mxu0 %v1293
  %v3420 = vpop.f32.mrb[0].mxu0
  %v3421 = vadd.f32 %v1276, %v3420
  %v3422 = vpop.f32.mrb[0].mxu0
  %v3423 = vadd.f32 %v1276, %v3422
  %3424 = vmatprep.mubr.f32.mxu0 0.0
  %3425 = vmatmul.mubr.f32.gmra.mrb[0].mxu0 %v1296
  %v3426 = vpop.f32.mrb[0].mxu0
  %v3427 = vadd.f32 %v1281, %v3426
  %v3428 = vpop.f32.mrb[0].mxu0
  %v3429 = vadd.f32 %v1281, %v3428
  %3430 = vmatprep.mubr.f32.mxu0 0.0
  %3431 = vmatmul.mubr.f32.gmra.mrb[0].mxu0 %v1299
  %v3432 = vpop.f32.mrb[0].mxu0
  %v3433 = vadd.f32 %v1286, %v3432
  %v3434 = vpop.f32.mrb[0].mxu0
  %v3435 = vadd.f32 %v1286, %v3434
  %3436 = vdwg.mxu0
  %3437 = vmatprep.subr.mxu0 %v1105
  %3438 = vmatpush1.msra.mxu0 %v1104
  %3439 = vmatprep.subr.mxu0 %v1156
  %3440 = vmatpush1.msra.mxu0 %v1155
  %3441 = vmatprep.subr.mxu0 %v1207
  %3442 = vmatpush1.msra.mxu0 %v1206
  %3443 = vmatprep.subr.mxu0 %v1258
  %3444 = vmatpush1.msra.mxu0 %v1257
  %3445 = vmatprep.subr.mxu0 0.0
  %3446 = vmatpush1.msra.mxu0 0.0
  %3447 = vmatprep.subr.mxu0 0.0
  %3448 = vmatpush1.msra.mxu0 0.0
  %3449 = vmatprep.subr.mxu0 0.0
  %3450 = vmatpush1.msra.mxu0 0.0
  %3451 = vmatprep.subr.mxu0 0.0
  %3452 = vmatpush1.msra.mxu0 0.0
  %3453 = vmatprep.subr.mxu0 0.0
  %3454 = vmatpush1.msra.mxu0 0.0
  %3455 = vmatprep.subr.mxu0 0.0
  %3456 = vmatpush1.msra.mxu0 0.0
  %3457 = vmatprep.subr.mxu0 0.0
  %3458 = vmatpush1.msra.mxu0 0.0
  %3459 = vmatprep.subr.mxu0 0.0
  %3460 = vmatpush1.msra.mxu0 0.0
  %3461 = vmatprep.subr.mxu0 0.0
  %3462 = vmatpush1.msra.mxu0 0.0
  %3463 = vmatprep.subr.mxu0 0.0
  %3464 = vmatpush1.msra.mxu0 0.0
  %3465 = vmatprep.subr.mxu0 0.0
  %3466 = vmatpush1.msra.mxu0 0.0
  %3467 = vmatprep.subr.mxu0 0.0
  %3468 = vmatpush1.msra.mxu0 0.0
  %3469 = vmatprep.subr.mxu0 0.0
  %3470 = vmatpush1.msra.mxu0 0.0
  %3471 = vmatprep.subr.mxu0 0.0
  %3472 = vmatpush1.msra.mxu0 0.0
  %3473 = vmatprep.subr.mxu0 0.0
  %3474 = vmatpush1.msra.mxu0 0.0
  %3475 = vmatprep.subr.mxu0 0.0
  %3476 = vmatpush1.msra.mxu0 0.0
  %3477 = vmatprep.subr.mxu0 0.0
  %3478 = vmatpush1.msra.mxu0 0.0
  %3479 = vmatprep.subr.mxu0 0.0
  %3480 = vmatpush1.msra.mxu0 0.0
  %3481 = vmatprep.subr.mxu0 0.0
  %3482 = vmatpush1.msra.mxu0 0.0
  %3483 = vmatprep.subr.mxu0 0.0
  %3484 = vmatpush1.msra.mxu0 0.0
  %3485 = vmatprep.subr.mxu0 0.0
  %3486 = vmatpush1.msra.mxu0 0.0
  %3487 = vmatprep.subr.mxu0 0.0
  %3488 = vmatpush1.msra.mxu0 0.0
  %3489 = vmatprep.subr.mxu0 0.0
  %3490 = vmatpush1.msra.mxu0 0.0
  %3491 = vmatprep.subr.mxu0 0.0
  %3492 = vmatpush1.msra.mxu0 0.0
  %3493 = vmatprep.subr.mxu0 0.0
  %3494 = vmatpush1.msra.mxu0 0.0
  %3495 = vmatprep.subr.mxu0 0.0
  %3496 = vmatpush1.msra.mxu0 0.0
  %3497 = vmatprep.subr.mxu0 0.0
  %3498 = vmatpush1.msra.mxu0 0.0
  %3499 = vmatprep.subr.mxu0 0.0
  %3500 = vmatpush1.msra.mxu0 0.0
  %3501 = vmatprep.mubr.f32.mxu0 0.0
  %3502 = vmatmul.mubr.f32.gmra.mrb[0].mxu0 %v1290
  %v3503 = vpop.f32.mrb[0].mxu0
  %v3504 = vadd.f32 %v1271, %v3503
  %v3505 = vpop.f32.mrb[0].mxu0
  %v3506 = vadd.f32 %v1271, %v3505
  %3507 = vmatprep.mubr.f32.mxu0 0.0
  %3508 = vmatmul.mubr.f32.gmra.mrb[0].mxu0 %v1293
  %v3509 = vpop.f32.mrb[0].mxu0
  %v3510 = vadd.f32 %v1276, %v3509
  %v3511 = vpop.f32.mrb[0].mxu0
  %v3512 = vadd.f32 %v1276, %v3511
  %3513 = vmatprep.mubr.f32.mxu0 0.0
  %3514 = vmatmul.mubr.f32.gmra.mrb[0].mxu0 %v1296
  %v3515 = vpop.f32.mrb[0].mxu0
  %v3516 = vadd.f32 %v1281, %v3515
  %v3517 = vpop.f32.mrb[0].mxu0
  %v3518 = vadd.f32 %v1281, %v3517
  %3519 = vmatprep.mubr.f32.mxu0 0.0
  %3520 = vmatmul.mubr.f32.gmra.mrb[0].mxu0 %v1299
  %v3521 = vpop.f32.mrb[0].mxu0
  %v3522 = vadd.f32 %v1286, %v3521
  %v3523 = vpop.f32.mrb[0].mxu0
  %v3524 = vadd.f32 %v1286, %v3523
  %3525 = vdwg.mxu0
  %3526 = vmatprep.subr.mxu0 0.0
  %3527 = vmatpush1.msra.mxu0 %v1106
  %3528 = vmatprep.subr.mxu0 0.0
  %3529 = vmatpush1.msra.mxu0 %v1157
  %3530 = vmatprep.subr.mxu0 0.0
  %3531 = vmatpush1.msra.mxu0 %v1208
  %3532 = vmatprep.subr.mxu0 0.0
  %3533 = vmatpush1.msra.mxu0 %v1259
  %3534 = vmatprep.subr.mxu0 0.0
  %3535 = vmatpush1.msra.mxu0 0.0
  %3536 = vmatprep.subr.mxu0 0.0
  %3537 = vmatpush1.msra.mxu0 0.0
  %3538 = vmatprep.subr.mxu0 0.0
  %3539 = vmatpush1.msra.mxu0 0.0
  %3540 = vmatprep.subr.mxu0 0.0
  %3541 = vmatpush1.msra.mxu0 0.0
  %3542 = vmatprep.subr.mxu0 0.0
  %3543 = vmatpush1.msra.mxu0 0.0
  %3544 = vmatprep.subr.mxu0 0.0
  %3545 = vmatpush1.msra.mxu0 0.0
  %3546 = vmatprep.subr.mxu0 0.0
  %3547 = vmatpush1.msra.mxu0 0.0
  %3548 = vmatprep.subr.mxu0 0.0
  %3549 = vmatpush1.msra.mxu0 0.0
  %3550 = vmatprep.subr.mxu0 0.0
  %3551 = vmatpush1.msra.mxu0 0.0
  %3552 = vmatprep.subr.mxu0 0.0
  %3553 = vmatpush1.msra.mxu0 0.0
  %3554 = vmatprep.subr.mxu0 0.0
  %3555 = vmatpush1.msra.mxu0 0.0
  %3556 = vmatprep.subr.mxu0 0.0
  %3557 = vmatpush1.msra.mxu0 0.0
  %3558 = vmatprep.subr.mxu0 0.0
  %3559 = vmatpush1.msra.mxu0 0.0
  %3560 = vmatprep.subr.mxu0 0.0
  %3561 = vmatpush1.msra.mxu0 0.0
  %3562 = vmatprep.subr.mxu0 0.0
  %3563 = vmatpush1.msra.mxu0 0.0
  %3564 = vmatprep.subr.mxu0 0.0
  %3565 = vmatpush1.msra.mxu0 0.0
  %3566 = vmatprep.subr.mxu0 0.0
  %3567 = vmatpush1.msra.mxu0 0.0
  %3568 = vmatprep.subr.mxu0 0.0
  %3569 = vmatpush1.msra.mxu0 0.0
  %3570 = vmatprep.subr.mxu0 0.0
  %3571 = vmatpush1.msra.mxu0 0.0
  %3572 = vmatprep.subr.mxu0 0.0
  %3573 = vmatpush1.msra.mxu0 0.0
  %3574 = vmatprep.subr.mxu0 0.0
  %3575 = vmatpush1.msra.mxu0 0.0
  %3576 = vmatprep.subr.mxu0 0.0
  %3577 = vmatpush1.msra.mxu0 0.0
  %3578 = vmatprep.subr.mxu0 0.0
  %3579 = vmatpush1.msra.mxu0 0.0
  %3580 = vmatprep.subr.mxu0 0.0
  %3581 = vmatpush1.msra.mxu0 0.0
  %3582 = vmatprep.subr.mxu0 0.0
  %3583 = vmatpush1.msra.mxu0 0.0
  %3584 = vmatprep.subr.mxu0 0.0
  %3585 = vmatpush1.msra.mxu0 0.0
  %3586 = vmatprep.subr.mxu0 0.0
  %3587 = vmatpush1.msra.mxu0 0.0
  %3588 = vmatprep.subr.mxu0 0.0
  %3589 = vmatpush1.msra.mxu0 0.0
  %3590 = vmatprep.mubr.f32.mxu0 0.0
  %3591 = vmatmul.mubr.f32.gmra.mrb[0].mxu0 %v1290
  %v3592 = vpop.f32.mrb[0].mxu0
  %v3593 = vadd.f32 %v1271, %v3592
  %v3594 = vpop.f32.mrb[0].mxu0
  %3595 = vmatprep.mubr.f32.mxu0 0.0
  %3596 = vmatmul.mubr.f32.gmra.mrb[0].mxu0 %v1293
  %v3597 = vpop.f32.mrb[0].mxu0
  %v3598 = vadd.f32 %v1276, %v3597
  %v3599 = vpop.f32.mrb[0].mxu0
  %3600 = vmatprep.mubr.f32.mxu0 0.0
  %3601 = vmatmul.mubr.f32.gmra.mrb[0].mxu0 %v1296
  %v3602 = vpop.f32.mrb[0].mxu0
  %v3603 = vadd.f32 %v1281, %v3602
  %v3604 = vpop.f32.mrb[0].mxu0
  %3605 = vmatprep.mubr.f32.mxu0 0.0
  %3606 = vmatmul.mubr.f32.gmra.mrb[0].mxu0 %v1299
  %v3607 = vpop.f32.mrb[0].mxu0
  %v3608 = vadd.f32 %v1286, %v3607
  %v3609 = vpop.f32.mrb[0].mxu0
  %3610 = vdwg.mxu0
  %v3611 = vmax.f32 %v1368, 0.0
  %v3612 = vmax.f32 %v1370, 0.0
  %v3613 = vmax.f32 %v1457, 0.0
  %v3614 = vmax.f32 %v1459, 0.0
  %v3615 = vmax.f32 %v1546, 0.0
  %v3616 = vmax.f32 %v1548, 0.0
  %v3617 = vmax.f32 %v1635, 0.0
  %v3618 = vmax.f32 %v1637, 0.0
  %v3619 = vmax.f32 %v1724, 0.0
  %v3620 = vmax.f32 %v1726, 0.0
  %v3621 = vmax.f32 %v1813, 0.0
  %v3622 = vmax.f32 %v1815, 0.0
  %v3623 = vmax.f32 %v1902, 0.0
  %v3624 = vmax.f32 %v1904, 0.0
  %v3625 = vmax.f32 %v1991, 0.0
  %v3626 = vmax.f32 %v1993, 0.0
  %v3627 = vmax.f32 %v2080, 0.0
  %v3628 = vmax.f32 %v2082, 0.0
  %v3629 = vmax.f32 %v2169, 0.0
  %v3630 = vmax.f32 %v2171, 0.0
  %v3631 = vmax.f32 %v2258, 0.0
  %v3632 = vmax.f32 %v2260, 0.0
  %v3633 = vmax.f32 %v2347, 0.0
  %v3634 = vmax.f32 %v2349, 0.0
  %v3635 = vmax.f32 %v2436, 0.0
  %v3636 = vmax.f32 %v2438, 0.0
  %v3637 = vmax.f32 %v2525, 0.0
  %v3638 = vmax.f32 %v2527, 0.0
  %v3639 = vmax.f32 %v2614, 0.0
  %v3640 = vmax.f32 %v2616, 0.0
  %v3641 = vmax.f32 %v2703, 0.0
  %v3642 = vmax.f32 %v2705, 0.0
  %v3643 = vmax.f32 %v2792, 0.0
  %v3644 = vmax.f32 %v2794, 0.0
  %v3645 = vmax.f32 %v2881, 0.0
  %v3646 = vmax.f32 %v2883, 0.0
  %v3647 = vmax.f32 %v2970, 0.0
  %v3648 = vmax.f32 %v2972, 0.0
  %v3649 = vmax.f32 %v3059, 0.0
  %v3650 = vmax.f32 %v3061, 0.0
  %v3651 = vmax.f32 %v3148, 0.0
  %v3652 = vmax.f32 %v3150, 0.0
  %v3653 = vmax.f32 %v3237, 0.0
  %v3654 = vmax.f32 %v3239, 0.0
  %v3655 = vmax.f32 %v3326, 0.0
  %v3656 = vmax.f32 %v3328, 0.0
  %v3657 = vmax.f32 %v3415, 0.0
  %v3658 = vmax.f32 %v3417, 0.0
  %v3659 = vmax.f32 %v3504, 0.0
  %v3660 = vmax.f32 %v3506, 0.0
  %v3661 = vmax.f32 %v3593, 0.0
  %v3662 = vmax.f32 %v1374, 0.0
  %v3663 = vmax.f32 %v1376, 0.0
  %v3664 = vmax.f32 %v1463, 0.0
  %v3665 = vmax.f32 %v1465, 0.0
  %v3666 = vmax.f32 %v1552, 0.0
  %v3667 = vmax.f32 %v1554, 0.0
  %v3668 = vmax.f32 %v1641, 0.0
  %v3669 = vmax.f32 %v1643, 0.0
  %v3670 = vmax.f32 %v1730, 0.0
  %v3671 = vmax.f32 %v1732, 0.0
  %v3672 = vmax.f32 %v1819, 0.0
  %v3673 = vmax.f32 %v1821, 0.0
  %v3674 = vmax.f32 %v1908, 0.0
  %v3675 = vmax.f32 %v1910, 0.0
  %v3676 = vmax.f32 %v1997, 0.0
  %v3677 = vmax.f32 %v1999, 0.0
  %v3678 = vmax.f32 %v2086, 0.0
  %v3679 = vmax.f32 %v2088, 0.0
  %v3680 = vmax.f32 %v2175, 0.0
  %v3681 = vmax.f32 %v2177, 0.0
  %v3682 = vmax.f32 %v2264, 0.0
  %v3683 = vmax.f32 %v2266, 0.0
  %v3684 = vmax.f32 %v2353, 0.0
  %v3685 = vmax.f32 %v2355, 0.0
  %v3686 = vmax.f32 %v2442, 0.0
  %v3687 = vmax.f32 %v2444, 0.0
  %v3688 = vmax.f32 %v2531, 0.0
  %v3689 = vmax.f32 %v2533, 0.0
  %v3690 = vmax.f32 %v2620, 0.0
  %v3691 = vmax.f32 %v2622, 0.0
  %v3692 = vmax.f32 %v2709, 0.0
  %v3693 = vmax.f32 %v2711, 0.0
  %v3694 = vmax.f32 %v2798, 0.0
  %v3695 = vmax.f32 %v2800, 0.0
  %v3696 = vmax.f32 %v2887, 0.0
  %v3697 = vmax.f32 %v2889, 0.0
  %v3698 = vmax.f32 %v2976, 0.0
  %v3699 = vmax.f32 %v2978, 0.0
  %v3700 = vmax.f32 %v3065, 0.0
  %v3701 = vmax.f32 %v3067, 0.0
  %v3702 = vmax.f32 %v3154, 0.0
  %v3703 = vmax.f32 %v3156, 0.0
  %v3704 = vmax.f32 %v3243, 0.0
  %v3705 = vmax.f32 %v3245, 0.0
  %v3706 = vmax.f32 %v3332, 0.0
  %v3707 = vmax.f32 %v3334, 0.0
  %v3708 = vmax.f32 %v3421, 0.0
  %v3709 = vmax.f32 %v3423, 0.0
  %v3710 = vmax.f32 %v3510, 0.0
  %v3711 = vmax.f32 %v3512, 0.0
  %v3712 = vmax.f32 %v3598, 0.0
  %v3713 = vmax.f32 %v1380, 0.0
  %v3714 = vmax.f32 %v1382, 0.0
  %v3715 = vmax.f32 %v1469, 0.0
  %v3716 = vmax.f32 %v1471, 0.0
  %v3717 = vmax.f32 %v1558, 0.0
  %v3718 = vmax.f32 %v1560, 0.0
  %v3719 = vmax.f32 %v1647, 0.0
  %v3720 = vmax.f32 %v1649, 0.0
  %v3721 = vmax.f32 %v1736, 0.0
  %v3722 = vmax.f32 %v1738, 0.0
  %v3723 = vmax.f32 %v1825, 0.0
  %v3724 = vmax.f32 %v1827, 0.0
  %v3725 = vmax.f32 %v1914, 0.0
  %v3726 = vmax.f32 %v1916, 0.0
  %v3727 = vmax.f32 %v2003, 0.0
  %v3728 = vmax.f32 %v2005, 0.0
  %v3729 = vmax.f32 %v2092, 0.0
  %v3730 = vmax.f32 %v2094, 0.0
  %v3731 = vmax.f32 %v2181, 0.0
  %v3732 = vmax.f32 %v2183, 0.0
  %v3733 = vmax.f32 %v2270, 0.0
  %v3734 = vmax.f32 %v2272, 0.0
  %v3735 = vmax.f32 %v2359, 0.0
  %v3736 = vmax.f32 %v2361, 0.0
  %v3737 = vmax.f32 %v2448, 0.0
  %v3738 = vmax.f32 %v2450, 0.0
  %v3739 = vmax.f32 %v2537, 0.0
  %v3740 = vmax.f32 %v2539, 0.0
  %v3741 = vmax.f32 %v2626, 0.0
  %v3742 = vmax.f32 %v2628, 0.0
  %v3743 = vmax.f32 %v2715, 0.0
  %v3744 = vmax.f32 %v2717, 0.0
  %v3745 = vmax.f32 %v2804, 0.0
  %v3746 = vmax.f32 %v2806, 0.0
  %v3747 = vmax.f32 %v2893, 0.0
  %v3748 = vmax.f32 %v2895, 0.0
  %v3749 = vmax.f32 %v2982, 0.0
  %v3750 = vmax.f32 %v2984, 0.0
  %v3751 = vmax.f32 %v3071, 0.0
  %v3752 = vmax.f32 %v3073, 0.0
  %v3753 = vmax.f32 %v3160, 0.0
  %v3754 = vmax.f32 %v3162, 0.0
  %v3755 = vmax.f32 %v3249, 0.0
  %v3756 = vmax.f32 %v3251, 0.0
  %v3757 = vmax.f32 %v3338, 0.0
  %v3758 = vmax.f32 %v3340, 0.0
  %v3759 = vmax.f32 %v3427, 0.0
  %v3760 = vmax.f32 %v3429, 0.0
  %v3761 = vmax.f32 %v3516, 0.0
  %v3762 = vmax.f32 %v3518, 0.0
  %v3763 = vmax.f32 %v3603, 0.0
  %v3764 = vmax.f32 %v1386, 0.0
  %v3765 = vmax.f32 %v1388, 0.0
  %v3766 = vmax.f32 %v1475, 0.0
  %v3767 = vmax.f32 %v1477, 0.0
  %v3768 = vmax.f32 %v1564, 0.0
  %v3769 = vmax.f32 %v1566, 0.0
  %v3770 = vmax.f32 %v1653, 0.0
  %v3771 = vmax.f32 %v1655, 0.0
  %v3772 = vmax.f32 %v1742, 0.0
  %v3773 = vmax.f32 %v1744, 0.0
  %v3774 = vmax.f32 %v1831, 0.0
  %v3775 = vmax.f32 %v1833, 0.0
  %v3776 = vmax.f32 %v1920, 0.0
  %v3777 = vmax.f32 %v1922, 0.0
  %v3778 = vmax.f32 %v2009, 0.0
  %v3779 = vmax.f32 %v2011, 0.0
  %v3780 = vmax.f32 %v2098, 0.0
  %v3781 = vmax.f32 %v2100, 0.0
  %v3782 = vmax.f32 %v2187, 0.0
  %v3783 = vmax.f32 %v2189, 0.0
  %v3784 = vmax.f32 %v2276, 0.0
  %v3785 = vmax.f32 %v2278, 0.0
  %v3786 = vmax.f32 %v2365, 0.0
  %v3787 = vmax.f32 %v2367, 0.0
  %v3788 = vmax.f32 %v2454, 0.0
  %v3789 = vmax.f32 %v2456, 0.0
  %v3790 = vmax.f32 %v2543, 0.0
  %v3791 = vmax.f32 %v2545, 0.0
  %v3792 = vmax.f32 %v2632, 0.0
  %v3793 = vmax.f32 %v2634, 0.0
  %v3794 = vmax.f32 %v2721, 0.0
  %v3795 = vmax.f32 %v2723, 0.0
  %v3796 = vmax.f32 %v2810, 0.0
  %v3797 = vmax.f32 %v2812, 0.0
  %v3798 = vmax.f32 %v2899, 0.0
  %v3799 = vmax.f32 %v2901, 0.0
  %v3800 = vmax.f32 %v2988, 0.0
  %v3801 = vmax.f32 %v2990, 0.0
  %v3802 = vmax.f32 %v3077, 0.0
  %v3803 = vmax.f32 %v3079, 0.0
  %v3804 = vmax.f32 %v3166, 0.0
  %v3805 = vmax.f32 %v3168, 0.0
  %v3806 = vmax.f32 %v3255, 0.0
  %v3807 = vmax.f32 %v3257, 0.0
  %v3808 = vmax.f32 %v3344, 0.0
  %v3809 = vmax.f32 %v3346, 0.0
  %v3810 = vmax.f32 %v3433, 0.0
  %v3811 = vmax.f32 %v3435, 0.0
  %v3812 = vmax.f32 %v3522, 0.0
  %v3813 = vmax.f32 %v3524, 0.0
  %v3814 = vmax.f32 %v3608, 0.0
  %v3815 = vld [vmem:[%s6] sm:$0xff]
  %v3817 = vsel %vm1288, %v3815, 0
  %3819 = vmatprep.subr.mxu0 %v3612
  %3820 = vmatpush1.msra.mxu0 %v3611
  %3821 = vmatprep.subr.mxu0 %v3663
  %3822 = vmatpush1.msra.mxu0 %v3662
  %3823 = vmatprep.subr.mxu0 %v3714
  %3824 = vmatpush1.msra.mxu0 %v3713
  %3825 = vmatprep.subr.mxu0 %v3765
  %3826 = vmatpush1.msra.mxu0 %v3764
  %3827 = vmatprep.subr.mxu0 0.0
  %3828 = vmatpush1.msra.mxu0 0.0
  %3829 = vmatprep.subr.mxu0 0.0
  %3830 = vmatpush1.msra.mxu0 0.0
  %3831 = vmatprep.subr.mxu0 0.0
  %3832 = vmatpush1.msra.mxu0 0.0
  %3833 = vmatprep.subr.mxu0 0.0
  %3834 = vmatpush1.msra.mxu0 0.0
  %3835 = vmatprep.subr.mxu0 0.0
  %3836 = vmatpush1.msra.mxu0 0.0
  %3837 = vmatprep.subr.mxu0 0.0
  %3838 = vmatpush1.msra.mxu0 0.0
  %3839 = vmatprep.subr.mxu0 0.0
  %3840 = vmatpush1.msra.mxu0 0.0
  %3841 = vmatprep.subr.mxu0 0.0
  %3842 = vmatpush1.msra.mxu0 0.0
  %3843 = vmatprep.subr.mxu0 0.0
  %3844 = vmatpush1.msra.mxu0 0.0
  %3845 = vmatprep.subr.mxu0 0.0
  %3846 = vmatpush1.msra.mxu0 0.0
  %3847 = vmatprep.subr.mxu0 0.0
  %3848 = vmatpush1.msra.mxu0 0.0
  %3849 = vmatprep.subr.mxu0 0.0
  %3850 = vmatpush1.msra.mxu0 0.0
  %3851 = vmatprep.subr.mxu0 0.0
  %3852 = vmatpush1.msra.mxu0 0.0
  %3853 = vmatprep.subr.mxu0 0.0
  %3854 = vmatpush1.msra.mxu0 0.0
  %3855 = vmatprep.subr.mxu0 0.0
  %3856 = vmatpush1.msra.mxu0 0.0
  %3857 = vmatprep.subr.mxu0 0.0
  %3858 = vmatpush1.msra.mxu0 0.0
  %3859 = vmatprep.subr.mxu0 0.0
  %3860 = vmatpush1.msra.mxu0 0.0
  %3861 = vmatprep.subr.mxu0 0.0
  %3862 = vmatpush1.msra.mxu0 0.0
  %3863 = vmatprep.subr.mxu0 0.0
  %3864 = vmatpush1.msra.mxu0 0.0
  %3865 = vmatprep.subr.mxu0 0.0
  %3866 = vmatpush1.msra.mxu0 0.0
  %3867 = vmatprep.subr.mxu0 0.0
  %3868 = vmatpush1.msra.mxu0 0.0
  %3869 = vmatprep.subr.mxu0 0.0
  %3870 = vmatpush1.msra.mxu0 0.0
  %3871 = vmatprep.subr.mxu0 0.0
  %3872 = vmatpush1.msra.mxu0 0.0
  %3873 = vmatprep.subr.mxu0 0.0
  %3874 = vmatpush1.msra.mxu0 0.0
  %3875 = vmatprep.subr.mxu0 0.0
  %3876 = vmatpush1.msra.mxu0 0.0
  %3877 = vmatprep.subr.mxu0 0.0
  %3878 = vmatpush1.msra.mxu0 0.0
  %3879 = vmatprep.subr.mxu0 0.0
  %3880 = vmatpush1.msra.mxu0 0.0
  %3881 = vmatprep.subr.mxu0 0.0
  %3882 = vmatpush1.msra.mxu0 0.0
  %3883 = vmatprep.mubr.f32.mxu0 0.0
  %3884 = vmatmul.mubr.f32.gmra.mrb[0].mxu0 %v3817
  %v3885 = vpop.f32.mrb[0].mxu0
  %v3886 = vadd.f32 0.0, %v3885
  %v3887 = vpop.f32.mrb[0].mxu0
  %v3888 = vadd.f32 0.0, %v3887
  %3889 = vdwg.mxu0
  %3890 = vmatprep.subr.mxu0 %v3614
  %3891 = vmatpush1.msra.mxu0 %v3613
  %3892 = vmatprep.subr.mxu0 %v3665
  %3893 = vmatpush1.msra.mxu0 %v3664
  %3894 = vmatprep.subr.mxu0 %v3716
  %3895 = vmatpush1.msra.mxu0 %v3715
  %3896 = vmatprep.subr.mxu0 %v3767
  %3897 = vmatpush1.msra.mxu0 %v3766
  %3898 = vmatprep.subr.mxu0 0.0
  %3899 = vmatpush1.msra.mxu0 0.0
  %3900 = vmatprep.subr.mxu0 0.0
  %3901 = vmatpush1.msra.mxu0 0.0
  %3902 = vmatprep.subr.mxu0 0.0
  %3903 = vmatpush1.msra.mxu0 0.0
  %3904 = vmatprep.subr.mxu0 0.0
  %3905 = vmatpush1.msra.mxu0 0.0
  %3906 = vmatprep.subr.mxu0 0.0
  %3907 = vmatpush1.msra.mxu0 0.0
  %3908 = vmatprep.subr.mxu0 0.0
  %3909 = vmatpush1.msra.mxu0 0.0
  %3910 = vmatprep.subr.mxu0 0.0
  %3911 = vmatpush1.msra.mxu0 0.0
  %3912 = vmatprep.subr.mxu0 0.0
  %3913 = vmatpush1.msra.mxu0 0.0
  %3914 = vmatprep.subr.mxu0 0.0
  %3915 = vmatpush1.msra.mxu0 0.0
  %3916 = vmatprep.subr.mxu0 0.0
  %3917 = vmatpush1.msra.mxu0 0.0
  %3918 = vmatprep.subr.mxu0 0.0
  %3919 = vmatpush1.msra.mxu0 0.0
  %3920 = vmatprep.subr.mxu0 0.0
  %3921 = vmatpush1.msra.mxu0 0.0
  %3922 = vmatprep.subr.mxu0 0.0
  %3923 = vmatpush1.msra.mxu0 0.0
  %3924 = vmatprep.subr.mxu0 0.0
  %3925 = vmatpush1.msra.mxu0 0.0
  %3926 = vmatprep.subr.mxu0 0.0
  %3927 = vmatpush1.msra.mxu0 0.0
  %3928 = vmatprep.subr.mxu0 0.0
  %3929 = vmatpush1.msra.mxu0 0.0
  %3930 = vmatprep.subr.mxu0 0.0
  %3931 = vmatpush1.msra.mxu0 0.0
  %3932 = vmatprep.subr.mxu0 0.0
  %3933 = vmatpush1.msra.mxu0 0.0
  %3934 = vmatprep.subr.mxu0 0.0
  %3935 = vmatpush1.msra.mxu0 0.0
  %3936 = vmatprep.subr.mxu0 0.0
  %3937 = vmatpush1.msra.mxu0 0.0
  %3938 = vmatprep.subr.mxu0 0.0
  %3939 = vmatpush1.msra.mxu0 0.0
  %3940 = vmatprep.subr.mxu0 0.0
  %3941 = vmatpush1.msra.mxu0 0.0
  %3942 = vmatprep.subr.mxu0 0.0
  %3943 = vmatpush1.msra.mxu0 0.0
  %3944 = vmatprep.subr.mxu0 0.0
  %3945 = vmatpush1.msra.mxu0 0.0
  %3946 = vmatprep.subr.mxu0 0.0
  %3947 = vmatpush1.msra.mxu0 0.0
  %3948 = vmatprep.subr.mxu0 0.0
  %3949 = vmatpush1.msra.mxu0 0.0
  %3950 = vmatprep.subr.mxu0 0.0
  %3951 = vmatpush1.msra.mxu0 0.0
  %3952 = vmatprep.subr.mxu0 0.0
  %3953 = vmatpush1.msra.mxu0 0.0
  %3954 = vmatprep.mubr.f32.mxu0 0.0
  %3955 = vmatmul.mubr.f32.gmra.mrb[0].mxu0 %v3817
  %v3956 = vpop.f32.mrb[0].mxu0
  %v3957 = vadd.f32 0.0, %v3956
  %v3958 = vpop.f32.mrb[0].mxu0
  %v3959 = vadd.f32 0.0, %v3958
  %3960 = vdwg.mxu0
  %3961 = vmatprep.subr.mxu0 %v3616
  %3962 = vmatpush1.msra.mxu0 %v3615
  %3963 = vmatprep.subr.mxu0 %v3667
  %3964 = vmatpush1.msra.mxu0 %v3666
  %3965 = vmatprep.subr.mxu0 %v3718
  %3966 = vmatpush1.msra.mxu0 %v3717
  %3967 = vmatprep.subr.mxu0 %v3769
  %3968 = vmatpush1.msra.mxu0 %v3768
  %3969 = vmatprep.subr.mxu0 0.0
  %3970 = vmatpush1.msra.mxu0 0.0
  %3971 = vmatprep.subr.mxu0 0.0
  %3972 = vmatpush1.msra.mxu0 0.0
  %3973 = vmatprep.subr.mxu0 0.0
  %3974 = vmatpush1.msra.mxu0 0.0
  %3975 = vmatprep.subr.mxu0 0.0
  %3976 = vmatpush1.msra.mxu0 0.0
  %3977 = vmatprep.subr.mxu0 0.0
  %3978 = vmatpush1.msra.mxu0 0.0
  %3979 = vmatprep.subr.mxu0 0.0
  %3980 = vmatpush1.msra.mxu0 0.0
  %3981 = vmatprep.subr.mxu0 0.0
  %3982 = vmatpush1.msra.mxu0 0.0
  %3983 = vmatprep.subr.mxu0 0.0
  %3984 = vmatpush1.msra.mxu0 0.0
  %3985 = vmatprep.subr.mxu0 0.0
  %3986 = vmatpush1.msra.mxu0 0.0
  %3987 = vmatprep.subr.mxu0 0.0
  %3988 = vmatpush1.msra.mxu0 0.0
  %3989 = vmatprep.subr.mxu0 0.0
  %3990 = vmatpush1.msra.mxu0 0.0
  %3991 = vmatprep.subr.mxu0 0.0
  %3992 = vmatpush1.msra.mxu0 0.0
  %3993 = vmatprep.subr.mxu0 0.0
  %3994 = vmatpush1.msra.mxu0 0.0
  %3995 = vmatprep.subr.mxu0 0.0
  %3996 = vmatpush1.msra.mxu0 0.0
  %3997 = vmatprep.subr.mxu0 0.0
  %3998 = vmatpush1.msra.mxu0 0.0
  %3999 = vmatprep.subr.mxu0 0.0
  %4000 = vmatpush1.msra.mxu0 0.0
  %4001 = vmatprep.subr.mxu0 0.0
  %4002 = vmatpush1.msra.mxu0 0.0
  %4003 = vmatprep.subr.mxu0 0.0
  %4004 = vmatpush1.msra.mxu0 0.0
  %4005 = vmatprep.subr.mxu0 0.0
  %4006 = vmatpush1.msra.mxu0 0.0
  %4007 = vmatprep.subr.mxu0 0.0
  %4008 = vmatpush1.msra.mxu0 0.0
  %4009 = vmatprep.subr.mxu0 0.0
  %4010 = vmatpush1.msra.mxu0 0.0
  %4011 = vmatprep.subr.mxu0 0.0
  %4012 = vmatpush1.msra.mxu0 0.0
  %4013 = vmatprep.subr.mxu0 0.0
  %4014 = vmatpush1.msra.mxu0 0.0
  %4015 = vmatprep.subr.mxu0 0.0
  %4016 = vmatpush1.msra.mxu0 0.0
  %4017 = vmatprep.subr.mxu0 0.0
  %4018 = vmatpush1.msra.mxu0 0.0
  %4019 = vmatprep.subr.mxu0 0.0
  %4020 = vmatpush1.msra.mxu0 0.0
  %4021 = vmatprep.subr.mxu0 0.0
  %4022 = vmatpush1.msra.mxu0 0.0
  %4023 = vmatprep.subr.mxu0 0.0
  %4024 = vmatpush1.msra.mxu0 0.0
  %4025 = vmatprep.mubr.f32.mxu0 0.0
  %4026 = vmatmul.mubr.f32.gmra.mrb[0].mxu0 %v3817
  %v4027 = vpop.f32.mrb[0].mxu0
  %v4028 = vadd.f32 0.0, %v4027
  %v4029 = vpop.f32.mrb[0].mxu0
  %v4030 = vadd.f32 0.0, %v4029
  %4031 = vdwg.mxu0
  %4032 = vmatprep.subr.mxu0 %v3618
  %4033 = vmatpush1.msra.mxu0 %v3617
  %4034 = vmatprep.subr.mxu0 %v3669
  %4035 = vmatpush1.msra.mxu0 %v3668
  %4036 = vmatprep.subr.mxu0 %v3720
  %4037 = vmatpush1.msra.mxu0 %v3719
  %4038 = vmatprep.subr.mxu0 %v3771
  %4039 = vmatpush1.msra.mxu0 %v3770
  %4040 = vmatprep.subr.mxu0 0.0
  %4041 = vmatpush1.msra.mxu0 0.0
  %4042 = vmatprep.subr.mxu0 0.0
  %4043 = vmatpush1.msra.mxu0 0.0
  %4044 = vmatprep.subr.mxu0 0.0
  %4045 = vmatpush1.msra.mxu0 0.0
  %4046 = vmatprep.subr.mxu0 0.0
  %4047 = vmatpush1.msra.mxu0 0.0
  %4048 = vmatprep.subr.mxu0 0.0
  %4049 = vmatpush1.msra.mxu0 0.0
  %4050 = vmatprep.subr.mxu0 0.0
  %4051 = vmatpush1.msra.mxu0 0.0
  %4052 = vmatprep.subr.mxu0 0.0
  %4053 = vmatpush1.msra.mxu0 0.0
  %4054 = vmatprep.subr.mxu0 0.0
  %4055 = vmatpush1.msra.mxu0 0.0
  %4056 = vmatprep.subr.mxu0 0.0
  %4057 = vmatpush1.msra.mxu0 0.0
  %4058 = vmatprep.subr.mxu0 0.0
  %4059 = vmatpush1.msra.mxu0 0.0
  %4060 = vmatprep.subr.mxu0 0.0
  %4061 = vmatpush1.msra.mxu0 0.0
  %4062 = vmatprep.subr.mxu0 0.0
  %4063 = vmatpush1.msra.mxu0 0.0
  %4064 = vmatprep.subr.mxu0 0.0
  %4065 = vmatpush1.msra.mxu0 0.0
  %4066 = vmatprep.subr.mxu0 0.0
  %4067 = vmatpush1.msra.mxu0 0.0
  %4068 = vmatprep.subr.mxu0 0.0
  %4069 = vmatpush1.msra.mxu0 0.0
  %4070 = vmatprep.subr.mxu0 0.0
  %4071 = vmatpush1.msra.mxu0 0.0
  %4072 = vmatprep.subr.mxu0 0.0
  %4073 = vmatpush1.msra.mxu0 0.0
  %4074 = vmatprep.subr.mxu0 0.0
  %4075 = vmatpush1.msra.mxu0 0.0
  %4076 = vmatprep.subr.mxu0 0.0
  %4077 = vmatpush1.msra.mxu0 0.0
  %4078 = vmatprep.subr.mxu0 0.0
  %4079 = vmatpush1.msra.mxu0 0.0
  %4080 = vmatprep.subr.mxu0 0.0
  %4081 = vmatpush1.msra.mxu0 0.0
  %4082 = vmatprep.subr.mxu0 0.0
  %4083 = vmatpush1.msra.mxu0 0.0
  %4084 = vmatprep.subr.mxu0 0.0
  %4085 = vmatpush1.msra.mxu0 0.0
  %4086 = vmatprep.subr.mxu0 0.0
  %4087 = vmatpush1.msra.mxu0 0.0
  %4088 = vmatprep.subr.mxu0 0.0
  %4089 = vmatpush1.msra.mxu0 0.0
  %4090 = vmatprep.subr.mxu0 0.0
  %4091 = vmatpush1.msra.mxu0 0.0
  %4092 = vmatprep.subr.mxu0 0.0
  %4093 = vmatpush1.msra.mxu0 0.0
  %4094 = vmatprep.subr.mxu0 0.0
  %4095 = vmatpush1.msra.mxu0 0.0
  %4096 = vmatprep.mubr.f32.mxu0 0.0
  %4097 = vmatmul.mubr.f32.gmra.mrb[0].mxu0 %v3817
  %v4098 = vpop.f32.mrb[0].mxu0
  %v4099 = vadd.f32 0.0, %v4098
  %v4100 = vpop.f32.mrb[0].mxu0
  %v4101 = vadd.f32 0.0, %v4100
  %4102 = vdwg.mxu0
  %4103 = vmatprep.subr.mxu0 %v3620
  %4104 = vmatpush1.msra.mxu0 %v3619
  %4105 = vmatprep.subr.mxu0 %v3671
  %4106 = vmatpush1.msra.mxu0 %v3670
  %4107 = vmatprep.subr.mxu0 %v3722
  %4108 = vmatpush1.msra.mxu0 %v3721
  %4109 = vmatprep.subr.mxu0 %v3773
  %4110 = vmatpush1.msra.mxu0 %v3772
  %4111 = vmatprep.subr.mxu0 0.0
  %4112 = vmatpush1.msra.mxu0 0.0
  %4113 = vmatprep.subr.mxu0 0.0
  %4114 = vmatpush1.msra.mxu0 0.0
  %4115 = vmatprep.subr.mxu0 0.0
  %4116 = vmatpush1.msra.mxu0 0.0
  %4117 = vmatprep.subr.mxu0 0.0
  %4118 = vmatpush1.msra.mxu0 0.0
  %4119 = vmatprep.subr.mxu0 0.0
  %4120 = vmatpush1.msra.mxu0 0.0
  %4121 = vmatprep.subr.mxu0 0.0
  %4122 = vmatpush1.msra.mxu0 0.0
  %4123 = vmatprep.subr.mxu0 0.0
  %4124 = vmatpush1.msra.mxu0 0.0
  %4125 = vmatprep.subr.mxu0 0.0
  %4126 = vmatpush1.msra.mxu0 0.0
  %4127 = vmatprep.subr.mxu0 0.0
  %4128 = vmatpush1.msra.mxu0 0.0
  %4129 = vmatprep.subr.mxu0 0.0
  %4130 = vmatpush1.msra.mxu0 0.0
  %4131 = vmatprep.subr.mxu0 0.0
  %4132 = vmatpush1.msra.mxu0 0.0
  %4133 = vmatprep.subr.mxu0 0.0
  %4134 = vmatpush1.msra.mxu0 0.0
  %4135 = vmatprep.subr.mxu0 0.0
  %4136 = vmatpush1.msra.mxu0 0.0
  %4137 = vmatprep.subr.mxu0 0.0
  %4138 = vmatpush1.msra.mxu0 0.0
  %4139 = vmatprep.subr.mxu0 0.0
  %4140 = vmatpush1.msra.mxu0 0.0
  %4141 = vmatprep.subr.mxu0 0.0
  %4142 = vmatpush1.msra.mxu0 0.0
  %4143 = vmatprep.subr.mxu0 0.0
  %4144 = vmatpush1.msra.mxu0 0.0
  %4145 = vmatprep.subr.mxu0 0.0
  %4146 = vmatpush1.msra.mxu0 0.0
  %4147 = vmatprep.subr.mxu0 0.0
  %4148 = vmatpush1.msra.mxu0 0.0
  %4149 = vmatprep.subr.mxu0 0.0
  %4150 = vmatpush1.msra.mxu0 0.0
  %4151 = vmatprep.subr.mxu0 0.0
  %4152 = vmatpush1.msra.mxu0 0.0
  %4153 = vmatprep.subr.mxu0 0.0
  %4154 = vmatpush1.msra.mxu0 0.0
  %4155 = vmatprep.subr.mxu0 0.0
  %4156 = vmatpush1.msra.mxu0 0.0
  %4157 = vmatprep.subr.mxu0 0.0
  %4158 = vmatpush1.msra.mxu0 0.0
  %4159 = vmatprep.subr.mxu0 0.0
  %4160 = vmatpush1.msra.mxu0 0.0
  %4161 = vmatprep.subr.mxu0 0.0
  %4162 = vmatpush1.msra.mxu0 0.0
  %4163 = vmatprep.subr.mxu0 0.0
  %4164 = vmatpush1.msra.mxu0 0.0
  %4165 = vmatprep.subr.mxu0 0.0
  %4166 = vmatpush1.msra.mxu0 0.0
  %4167 = vmatprep.mubr.f32.mxu0 0.0
  %4168 = vmatmul.mubr.f32.gmra.mrb[0].mxu0 %v3817
  %v4169 = vpop.f32.mrb[0].mxu0
  %v4170 = vadd.f32 0.0, %v4169
  %v4171 = vpop.f32.mrb[0].mxu0
  %v4172 = vadd.f32 0.0, %v4171
  %4173 = vdwg.mxu0
  %4174 = vmatprep.subr.mxu0 %v3622
  %4175 = vmatpush1.msra.mxu0 %v3621
  %4176 = vmatprep.subr.mxu0 %v3673
  %4177 = vmatpush1.msra.mxu0 %v3672
  %4178 = vmatprep.subr.mxu0 %v3724
  %4179 = vmatpush1.msra.mxu0 %v3723
  %4180 = vmatprep.subr.mxu0 %v3775
  %4181 = vmatpush1.msra.mxu0 %v3774
  %4182 = vmatprep.subr.mxu0 0.0
  %4183 = vmatpush1.msra.mxu0 0.0
  %4184 = vmatprep.subr.mxu0 0.0
  %4185 = vmatpush1.msra.mxu0 0.0
  %4186 = vmatprep.subr.mxu0 0.0
  %4187 = vmatpush1.msra.mxu0 0.0
  %4188 = vmatprep.subr.mxu0 0.0
  %4189 = vmatpush1.msra.mxu0 0.0
  %4190 = vmatprep.subr.mxu0 0.0
  %4191 = vmatpush1.msra.mxu0 0.0
  %4192 = vmatprep.subr.mxu0 0.0
  %4193 = vmatpush1.msra.mxu0 0.0
  %4194 = vmatprep.subr.mxu0 0.0
  %4195 = vmatpush1.msra.mxu0 0.0
  %4196 = vmatprep.subr.mxu0 0.0
  %4197 = vmatpush1.msra.mxu0 0.0
  %4198 = vmatprep.subr.mxu0 0.0
  %4199 = vmatpush1.msra.mxu0 0.0
  %4200 = vmatprep.subr.mxu0 0.0
  %4201 = vmatpush1.msra.mxu0 0.0
  %4202 = vmatprep.subr.mxu0 0.0
  %4203 = vmatpush1.msra.mxu0 0.0
  %4204 = vmatprep.subr.mxu0 0.0
  %4205 = vmatpush1.msra.mxu0 0.0
  %4206 = vmatprep.subr.mxu0 0.0
  %4207 = vmatpush1.msra.mxu0 0.0
  %4208 = vmatprep.subr.mxu0 0.0
  %4209 = vmatpush1.msra.mxu0 0.0
  %4210 = vmatprep.subr.mxu0 0.0
  %4211 = vmatpush1.msra.mxu0 0.0
  %4212 = vmatprep.subr.mxu0 0.0
  %4213 = vmatpush1.msra.mxu0 0.0
  %4214 = vmatprep.subr.mxu0 0.0
  %4215 = vmatpush1.msra.mxu0 0.0
  %4216 = vmatprep.subr.mxu0 0.0
  %4217 = vmatpush1.msra.mxu0 0.0
  %4218 = vmatprep.subr.mxu0 0.0
  %4219 = vmatpush1.msra.mxu0 0.0
  %4220 = vmatprep.subr.mxu0 0.0
  %4221 = vmatpush1.msra.mxu0 0.0
  %4222 = vmatprep.subr.mxu0 0.0
  %4223 = vmatpush1.msra.mxu0 0.0
  %4224 = vmatprep.subr.mxu0 0.0
  %4225 = vmatpush1.msra.mxu0 0.0
  %4226 = vmatprep.subr.mxu0 0.0
  %4227 = vmatpush1.msra.mxu0 0.0
  %4228 = vmatprep.subr.mxu0 0.0
  %4229 = vmatpush1.msra.mxu0 0.0
  %4230 = vmatprep.subr.mxu0 0.0
  %4231 = vmatpush1.msra.mxu0 0.0
  %4232 = vmatprep.subr.mxu0 0.0
  %4233 = vmatpush1.msra.mxu0 0.0
  %4234 = vmatprep.subr.mxu0 0.0
  %4235 = vmatpush1.msra.mxu0 0.0
  %4236 = vmatprep.subr.mxu0 0.0
  %4237 = vmatpush1.msra.mxu0 0.0
  %4238 = vmatprep.mubr.f32.mxu0 0.0
  %4239 = vmatmul.mubr.f32.gmra.mrb[0].mxu0 %v3817
  %v4240 = vpop.f32.mrb[0].mxu0
  %v4241 = vadd.f32 0.0, %v4240
  %v4242 = vpop.f32.mrb[0].mxu0
  %v4243 = vadd.f32 0.0, %v4242
  %4244 = vdwg.mxu0
  %4245 = vmatprep.subr.mxu0 %v3624
  %4246 = vmatpush1.msra.mxu0 %v3623
  %4247 = vmatprep.subr.mxu0 %v3675
  %4248 = vmatpush1.msra.mxu0 %v3674
  %4249 = vmatprep.subr.mxu0 %v3726
  %4250 = vmatpush1.msra.mxu0 %v3725
  %4251 = vmatprep.subr.mxu0 %v3777
  %4252 = vmatpush1.msra.mxu0 %v3776
  %4253 = vmatprep.subr.mxu0 0.0
  %4254 = vmatpush1.msra.mxu0 0.0
  %4255 = vmatprep.subr.mxu0 0.0
  %4256 = vmatpush1.msra.mxu0 0.0
  %4257 = vmatprep.subr.mxu0 0.0
  %4258 = vmatpush1.msra.mxu0 0.0
  %4259 = vmatprep.subr.mxu0 0.0
  %4260 = vmatpush1.msra.mxu0 0.0
  %4261 = vmatprep.subr.mxu0 0.0
  %4262 = vmatpush1.msra.mxu0 0.0
  %4263 = vmatprep.subr.mxu0 0.0
  %4264 = vmatpush1.msra.mxu0 0.0
  %4265 = vmatprep.subr.mxu0 0.0
  %4266 = vmatpush1.msra.mxu0 0.0
  %4267 = vmatprep.subr.mxu0 0.0
  %4268 = vmatpush1.msra.mxu0 0.0
  %4269 = vmatprep.subr.mxu0 0.0
  %4270 = vmatpush1.msra.mxu0 0.0
  %4271 = vmatprep.subr.mxu0 0.0
  %4272 = vmatpush1.msra.mxu0 0.0
  %4273 = vmatprep.subr.mxu0 0.0
  %4274 = vmatpush1.msra.mxu0 0.0
  %4275 = vmatprep.subr.mxu0 0.0
  %4276 = vmatpush1.msra.mxu0 0.0
  %4277 = vmatprep.subr.mxu0 0.0
  %4278 = vmatpush1.msra.mxu0 0.0
  %4279 = vmatprep.subr.mxu0 0.0
  %4280 = vmatpush1.msra.mxu0 0.0
  %4281 = vmatprep.subr.mxu0 0.0
  %4282 = vmatpush1.msra.mxu0 0.0
  %4283 = vmatprep.subr.mxu0 0.0
  %4284 = vmatpush1.msra.mxu0 0.0
  %4285 = vmatprep.subr.mxu0 0.0
  %4286 = vmatpush1.msra.mxu0 0.0
  %4287 = vmatprep.subr.mxu0 0.0
  %4288 = vmatpush1.msra.mxu0 0.0
  %4289 = vmatprep.subr.mxu0 0.0
  %4290 = vmatpush1.msra.mxu0 0.0
  %4291 = vmatprep.subr.mxu0 0.0
  %4292 = vmatpush1.msra.mxu0 0.0
  %4293 = vmatprep.subr.mxu0 0.0
  %4294 = vmatpush1.msra.mxu0 0.0
  %4295 = vmatprep.subr.mxu0 0.0
  %4296 = vmatpush1.msra.mxu0 0.0
  %4297 = vmatprep.subr.mxu0 0.0
  %4298 = vmatpush1.msra.mxu0 0.0
  %4299 = vmatprep.subr.mxu0 0.0
  %4300 = vmatpush1.msra.mxu0 0.0
  %4301 = vmatprep.subr.mxu0 0.0
  %4302 = vmatpush1.msra.mxu0 0.0
  %4303 = vmatprep.subr.mxu0 0.0
  %4304 = vmatpush1.msra.mxu0 0.0
  %4305 = vmatprep.subr.mxu0 0.0
  %4306 = vmatpush1.msra.mxu0 0.0
  %4307 = vmatprep.subr.mxu0 0.0
  %4308 = vmatpush1.msra.mxu0 0.0
  %4309 = vmatprep.mubr.f32.mxu0 0.0
  %4310 = vmatmul.mubr.f32.gmra.mrb[0].mxu0 %v3817
  %v4311 = vpop.f32.mrb[0].mxu0
  %v4312 = vadd.f32 0.0, %v4311
  %v4313 = vpop.f32.mrb[0].mxu0
  %v4314 = vadd.f32 0.0, %v4313
  %4315 = vdwg.mxu0
  %4316 = vmatprep.subr.mxu0 %v3626
  %4317 = vmatpush1.msra.mxu0 %v3625
  %4318 = vmatprep.subr.mxu0 %v3677
  %4319 = vmatpush1.msra.mxu0 %v3676
  %4320 = vmatprep.subr.mxu0 %v3728
  %4321 = vmatpush1.msra.mxu0 %v3727
  %4322 = vmatprep.subr.mxu0 %v3779
  %4323 = vmatpush1.msra.mxu0 %v3778
  %4324 = vmatprep.subr.mxu0 0.0
  %4325 = vmatpush1.msra.mxu0 0.0
  %4326 = vmatprep.subr.mxu0 0.0
  %4327 = vmatpush1.msra.mxu0 0.0
  %4328 = vmatprep.subr.mxu0 0.0
  %4329 = vmatpush1.msra.mxu0 0.0
  %4330 = vmatprep.subr.mxu0 0.0
  %4331 = vmatpush1.msra.mxu0 0.0
  %4332 = vmatprep.subr.mxu0 0.0
  %4333 = vmatpush1.msra.mxu0 0.0
  %4334 = vmatprep.subr.mxu0 0.0
  %4335 = vmatpush1.msra.mxu0 0.0
  %4336 = vmatprep.subr.mxu0 0.0
  %4337 = vmatpush1.msra.mxu0 0.0
  %4338 = vmatprep.subr.mxu0 0.0
  %4339 = vmatpush1.msra.mxu0 0.0
  %4340 = vmatprep.subr.mxu0 0.0
  %4341 = vmatpush1.msra.mxu0 0.0
  %4342 = vmatprep.subr.mxu0 0.0
  %4343 = vmatpush1.msra.mxu0 0.0
  %4344 = vmatprep.subr.mxu0 0.0
  %4345 = vmatpush1.msra.mxu0 0.0
  %4346 = vmatprep.subr.mxu0 0.0
  %4347 = vmatpush1.msra.mxu0 0.0
  %4348 = vmatprep.subr.mxu0 0.0
  %4349 = vmatpush1.msra.mxu0 0.0
  %4350 = vmatprep.subr.mxu0 0.0
  %4351 = vmatpush1.msra.mxu0 0.0
  %4352 = vmatprep.subr.mxu0 0.0
  %4353 = vmatpush1.msra.mxu0 0.0
  %4354 = vmatprep.subr.mxu0 0.0
  %4355 = vmatpush1.msra.mxu0 0.0
  %4356 = vmatprep.subr.mxu0 0.0
  %4357 = vmatpush1.msra.mxu0 0.0
  %4358 = vmatprep.subr.mxu0 0.0
  %4359 = vmatpush1.msra.mxu0 0.0
  %4360 = vmatprep.subr.mxu0 0.0
  %4361 = vmatpush1.msra.mxu0 0.0
  %4362 = vmatprep.subr.mxu0 0.0
  %4363 = vmatpush1.msra.mxu0 0.0
  %4364 = vmatprep.subr.mxu0 0.0
  %4365 = vmatpush1.msra.mxu0 0.0
  %4366 = vmatprep.subr.mxu0 0.0
  %4367 = vmatpush1.msra.mxu0 0.0
  %4368 = vmatprep.subr.mxu0 0.0
  %4369 = vmatpush1.msra.mxu0 0.0
  %4370 = vmatprep.subr.mxu0 0.0
  %4371 = vmatpush1.msra.mxu0 0.0
  %4372 = vmatprep.subr.mxu0 0.0
  %4373 = vmatpush1.msra.mxu0 0.0
  %4374 = vmatprep.subr.mxu0 0.0
  %4375 = vmatpush1.msra.mxu0 0.0
  %4376 = vmatprep.subr.mxu0 0.0
  %4377 = vmatpush1.msra.mxu0 0.0
  %4378 = vmatprep.subr.mxu0 0.0
  %4379 = vmatpush1.msra.mxu0 0.0
  %4380 = vmatprep.mubr.f32.mxu0 0.0
  %4381 = vmatmul.mubr.f32.gmra.mrb[0].mxu0 %v3817
  %v4382 = vpop.f32.mrb[0].mxu0
  %v4383 = vadd.f32 0.0, %v4382
  %v4384 = vpop.f32.mrb[0].mxu0
  %v4385 = vadd.f32 0.0, %v4384
  %4386 = vdwg.mxu0
  %4387 = vmatprep.subr.mxu0 %v3628
  %4388 = vmatpush1.msra.mxu0 %v3627
  %4389 = vmatprep.subr.mxu0 %v3679
  %4390 = vmatpush1.msra.mxu0 %v3678
  %4391 = vmatprep.subr.mxu0 %v3730
  %4392 = vmatpush1.msra.mxu0 %v3729
  %4393 = vmatprep.subr.mxu0 %v3781
  %4394 = vmatpush1.msra.mxu0 %v3780
  %4395 = vmatprep.subr.mxu0 0.0
  %4396 = vmatpush1.msra.mxu0 0.0
  %4397 = vmatprep.subr.mxu0 0.0
  %4398 = vmatpush1.msra.mxu0 0.0
  %4399 = vmatprep.subr.mxu0 0.0
  %4400 = vmatpush1.msra.mxu0 0.0
  %4401 = vmatprep.subr.mxu0 0.0
  %4402 = vmatpush1.msra.mxu0 0.0
  %4403 = vmatprep.subr.mxu0 0.0
  %4404 = vmatpush1.msra.mxu0 0.0
  %4405 = vmatprep.subr.mxu0 0.0
  %4406 = vmatpush1.msra.mxu0 0.0
  %4407 = vmatprep.subr.mxu0 0.0
  %4408 = vmatpush1.msra.mxu0 0.0
  %4409 = vmatprep.subr.mxu0 0.0
  %4410 = vmatpush1.msra.mxu0 0.0
  %4411 = vmatprep.subr.mxu0 0.0
  %4412 = vmatpush1.msra.mxu0 0.0
  %4413 = vmatprep.subr.mxu0 0.0
  %4414 = vmatpush1.msra.mxu0 0.0
  %4415 = vmatprep.subr.mxu0 0.0
  %4416 = vmatpush1.msra.mxu0 0.0
  %4417 = vmatprep.subr.mxu0 0.0
  %4418 = vmatpush1.msra.mxu0 0.0
  %4419 = vmatprep.subr.mxu0 0.0
  %4420 = vmatpush1.msra.mxu0 0.0
  %4421 = vmatprep.subr.mxu0 0.0
  %4422 = vmatpush1.msra.mxu0 0.0
  %4423 = vmatprep.subr.mxu0 0.0
  %4424 = vmatpush1.msra.mxu0 0.0
  %4425 = vmatprep.subr.mxu0 0.0
  %4426 = vmatpush1.msra.mxu0 0.0
  %4427 = vmatprep.subr.mxu0 0.0
  %4428 = vmatpush1.msra.mxu0 0.0
  %4429 = vmatprep.subr.mxu0 0.0
  %4430 = vmatpush1.msra.mxu0 0.0
  %4431 = vmatprep.subr.mxu0 0.0
  %4432 = vmatpush1.msra.mxu0 0.0
  %4433 = vmatprep.subr.mxu0 0.0
  %4434 = vmatpush1.msra.mxu0 0.0
  %4435 = vmatprep.subr.mxu0 0.0
  %4436 = vmatpush1.msra.mxu0 0.0
  %4437 = vmatprep.subr.mxu0 0.0
  %4438 = vmatpush1.msra.mxu0 0.0
  %4439 = vmatprep.subr.mxu0 0.0
  %4440 = vmatpush1.msra.mxu0 0.0
  %4441 = vmatprep.subr.mxu0 0.0
  %4442 = vmatpush1.msra.mxu0 0.0
  %4443 = vmatprep.subr.mxu0 0.0
  %4444 = vmatpush1.msra.mxu0 0.0
  %4445 = vmatprep.subr.mxu0 0.0
  %4446 = vmatpush1.msra.mxu0 0.0
  %4447 = vmatprep.subr.mxu0 0.0
  %4448 = vmatpush1.msra.mxu0 0.0
  %4449 = vmatprep.subr.mxu0 0.0
  %4450 = vmatpush1.msra.mxu0 0.0
  %4451 = vmatprep.mubr.f32.mxu0 0.0
  %4452 = vmatmul.mubr.f32.gmra.mrb[0].mxu0 %v3817
  %v4453 = vpop.f32.mrb[0].mxu0
  %v4454 = vadd.f32 0.0, %v4453
  %v4455 = vpop.f32.mrb[0].mxu0
  %v4456 = vadd.f32 0.0, %v4455
  %4457 = vdwg.mxu0
  %4458 = vmatprep.subr.mxu0 %v3630
  %4459 = vmatpush1.msra.mxu0 %v3629
  %4460 = vmatprep.subr.mxu0 %v3681
  %4461 = vmatpush1.msra.mxu0 %v3680
  %4462 = vmatprep.subr.mxu0 %v3732
  %4463 = vmatpush1.msra.mxu0 %v3731
  %4464 = vmatprep.subr.mxu0 %v3783
  %4465 = vmatpush1.msra.mxu0 %v3782
  %4466 = vmatprep.subr.mxu0 0.0
  %4467 = vmatpush1.msra.mxu0 0.0
  %4468 = vmatprep.subr.mxu0 0.0
  %4469 = vmatpush1.msra.mxu0 0.0
  %4470 = vmatprep.subr.mxu0 0.0
  %4471 = vmatpush1.msra.mxu0 0.0
  %4472 = vmatprep.subr.mxu0 0.0
  %4473 = vmatpush1.msra.mxu0 0.0
  %4474 = vmatprep.subr.mxu0 0.0
  %4475 = vmatpush1.msra.mxu0 0.0
  %4476 = vmatprep.subr.mxu0 0.0
  %4477 = vmatpush1.msra.mxu0 0.0
  %4478 = vmatprep.subr.mxu0 0.0
  %4479 = vmatpush1.msra.mxu0 0.0
  %4480 = vmatprep.subr.mxu0 0.0
  %4481 = vmatpush1.msra.mxu0 0.0
  %4482 = vmatprep.subr.mxu0 0.0
  %4483 = vmatpush1.msra.mxu0 0.0
  %4484 = vmatprep.subr.mxu0 0.0
  %4485 = vmatpush1.msra.mxu0 0.0
  %4486 = vmatprep.subr.mxu0 0.0
  %4487 = vmatpush1.msra.mxu0 0.0
  %4488 = vmatprep.subr.mxu0 0.0
  %4489 = vmatpush1.msra.mxu0 0.0
  %4490 = vmatprep.subr.mxu0 0.0
  %4491 = vmatpush1.msra.mxu0 0.0
  %4492 = vmatprep.subr.mxu0 0.0
  %4493 = vmatpush1.msra.mxu0 0.0
  %4494 = vmatprep.subr.mxu0 0.0
  %4495 = vmatpush1.msra.mxu0 0.0
  %4496 = vmatprep.subr.mxu0 0.0
  %4497 = vmatpush1.msra.mxu0 0.0
  %4498 = vmatprep.subr.mxu0 0.0
  %4499 = vmatpush1.msra.mxu0 0.0
  %4500 = vmatprep.subr.mxu0 0.0
  %4501 = vmatpush1.msra.mxu0 0.0
  %4502 = vmatprep.subr.mxu0 0.0
  %4503 = vmatpush1.msra.mxu0 0.0
  %4504 = vmatprep.subr.mxu0 0.0
  %4505 = vmatpush1.msra.mxu0 0.0
  %4506 = vmatprep.subr.mxu0 0.0
  %4507 = vmatpush1.msra.mxu0 0.0
  %4508 = vmatprep.subr.mxu0 0.0
  %4509 = vmatpush1.msra.mxu0 0.0
  %4510 = vmatprep.subr.mxu0 0.0
  %4511 = vmatpush1.msra.mxu0 0.0
  %4512 = vmatprep.subr.mxu0 0.0
  %4513 = vmatpush1.msra.mxu0 0.0
  %4514 = vmatprep.subr.mxu0 0.0
  %4515 = vmatpush1.msra.mxu0 0.0
  %4516 = vmatprep.subr.mxu0 0.0
  %4517 = vmatpush1.msra.mxu0 0.0
  %4518 = vmatprep.subr.mxu0 0.0
  %4519 = vmatpush1.msra.mxu0 0.0
  %4520 = vmatprep.subr.mxu0 0.0
  %4521 = vmatpush1.msra.mxu0 0.0
  %4522 = vmatprep.mubr.f32.mxu0 0.0
  %4523 = vmatmul.mubr.f32.gmra.mrb[0].mxu0 %v3817
  %v4524 = vpop.f32.mrb[0].mxu0
  %v4525 = vadd.f32 0.0, %v4524
  %v4526 = vpop.f32.mrb[0].mxu0
  %v4527 = vadd.f32 0.0, %v4526
  %4528 = vdwg.mxu0
  %4529 = vmatprep.subr.mxu0 %v3632
  %4530 = vmatpush1.msra.mxu0 %v3631
  %4531 = vmatprep.subr.mxu0 %v3683
  %4532 = vmatpush1.msra.mxu0 %v3682
  %4533 = vmatprep.subr.mxu0 %v3734
  %4534 = vmatpush1.msra.mxu0 %v3733
  %4535 = vmatprep.subr.mxu0 %v3785
  %4536 = vmatpush1.msra.mxu0 %v3784
  %4537 = vmatprep.subr.mxu0 0.0
  %4538 = vmatpush1.msra.mxu0 0.0
  %4539 = vmatprep.subr.mxu0 0.0
  %4540 = vmatpush1.msra.mxu0 0.0
  %4541 = vmatprep.subr.mxu0 0.0
  %4542 = vmatpush1.msra.mxu0 0.0
  %4543 = vmatprep.subr.mxu0 0.0
  %4544 = vmatpush1.msra.mxu0 0.0
  %4545 = vmatprep.subr.mxu0 0.0
  %4546 = vmatpush1.msra.mxu0 0.0
  %4547 = vmatprep.subr.mxu0 0.0
  %4548 = vmatpush1.msra.mxu0 0.0
  %4549 = vmatprep.subr.mxu0 0.0
  %4550 = vmatpush1.msra.mxu0 0.0
  %4551 = vmatprep.subr.mxu0 0.0
  %4552 = vmatpush1.msra.mxu0 0.0
  %4553 = vmatprep.subr.mxu0 0.0
  %4554 = vmatpush1.msra.mxu0 0.0
  %4555 = vmatprep.subr.mxu0 0.0
  %4556 = vmatpush1.msra.mxu0 0.0
  %4557 = vmatprep.subr.mxu0 0.0
  %4558 = vmatpush1.msra.mxu0 0.0
  %4559 = vmatprep.subr.mxu0 0.0
  %4560 = vmatpush1.msra.mxu0 0.0
  %4561 = vmatprep.subr.mxu0 0.0
  %4562 = vmatpush1.msra.mxu0 0.0
  %4563 = vmatprep.subr.mxu0 0.0
  %4564 = vmatpush1.msra.mxu0 0.0
  %4565 = vmatprep.subr.mxu0 0.0
  %4566 = vmatpush1.msra.mxu0 0.0
  %4567 = vmatprep.subr.mxu0 0.0
  %4568 = vmatpush1.msra.mxu0 0.0
  %4569 = vmatprep.subr.mxu0 0.0
  %4570 = vmatpush1.msra.mxu0 0.0
  %4571 = vmatprep.subr.mxu0 0.0
  %4572 = vmatpush1.msra.mxu0 0.0
  %4573 = vmatprep.subr.mxu0 0.0
  %4574 = vmatpush1.msra.mxu0 0.0
  %4575 = vmatprep.subr.mxu0 0.0
  %4576 = vmatpush1.msra.mxu0 0.0
  %4577 = vmatprep.subr.mxu0 0.0
  %4578 = vmatpush1.msra.mxu0 0.0
  %4579 = vmatprep.subr.mxu0 0.0
  %4580 = vmatpush1.msra.mxu0 0.0
  %4581 = vmatprep.subr.mxu0 0.0
  %4582 = vmatpush1.msra.mxu0 0.0
  %4583 = vmatprep.subr.mxu0 0.0
  %4584 = vmatpush1.msra.mxu0 0.0
  %4585 = vmatprep.subr.mxu0 0.0
  %4586 = vmatpush1.msra.mxu0 0.0
  %4587 = vmatprep.subr.mxu0 0.0
  %4588 = vmatpush1.msra.mxu0 0.0
  %4589 = vmatprep.subr.mxu0 0.0
  %4590 = vmatpush1.msra.mxu0 0.0
  %4591 = vmatprep.subr.mxu0 0.0
  %4592 = vmatpush1.msra.mxu0 0.0
  %4593 = vmatprep.mubr.f32.mxu0 0.0
  %4594 = vmatmul.mubr.f32.gmra.mrb[0].mxu0 %v3817
  %v4595 = vpop.f32.mrb[0].mxu0
  %v4596 = vadd.f32 0.0, %v4595
  %v4597 = vpop.f32.mrb[0].mxu0
  %v4598 = vadd.f32 0.0, %v4597
  %4599 = vdwg.mxu0
  %4600 = vmatprep.subr.mxu0 %v3634
  %4601 = vmatpush1.msra.mxu0 %v3633
  %4602 = vmatprep.subr.mxu0 %v3685
  %4603 = vmatpush1.msra.mxu0 %v3684
  %4604 = vmatprep.subr.mxu0 %v3736
  %4605 = vmatpush1.msra.mxu0 %v3735
  %4606 = vmatprep.subr.mxu0 %v3787
  %4607 = vmatpush1.msra.mxu0 %v3786
  %4608 = vmatprep.subr.mxu0 0.0
  %4609 = vmatpush1.msra.mxu0 0.0
  %4610 = vmatprep.subr.mxu0 0.0
  %4611 = vmatpush1.msra.mxu0 0.0
  %4612 = vmatprep.subr.mxu0 0.0
  %4613 = vmatpush1.msra.mxu0 0.0
  %4614 = vmatprep.subr.mxu0 0.0
  %4615 = vmatpush1.msra.mxu0 0.0
  %4616 = vmatprep.subr.mxu0 0.0
  %4617 = vmatpush1.msra.mxu0 0.0
  %4618 = vmatprep.subr.mxu0 0.0
  %4619 = vmatpush1.msra.mxu0 0.0
  %4620 = vmatprep.subr.mxu0 0.0
  %4621 = vmatpush1.msra.mxu0 0.0
  %4622 = vmatprep.subr.mxu0 0.0
  %4623 = vmatpush1.msra.mxu0 0.0
  %4624 = vmatprep.subr.mxu0 0.0
  %4625 = vmatpush1.msra.mxu0 0.0
  %4626 = vmatprep.subr.mxu0 0.0
  %4627 = vmatpush1.msra.mxu0 0.0
  %4628 = vmatprep.subr.mxu0 0.0
  %4629 = vmatpush1.msra.mxu0 0.0
  %4630 = vmatprep.subr.mxu0 0.0
  %4631 = vmatpush1.msra.mxu0 0.0
  %4632 = vmatprep.subr.mxu0 0.0
  %4633 = vmatpush1.msra.mxu0 0.0
  %4634 = vmatprep.subr.mxu0 0.0
  %4635 = vmatpush1.msra.mxu0 0.0
  %4636 = vmatprep.subr.mxu0 0.0
  %4637 = vmatpush1.msra.mxu0 0.0
  %4638 = vmatprep.subr.mxu0 0.0
  %4639 = vmatpush1.msra.mxu0 0.0
  %4640 = vmatprep.subr.mxu0 0.0
  %4641 = vmatpush1.msra.mxu0 0.0
  %4642 = vmatprep.subr.mxu0 0.0
  %4643 = vmatpush1.msra.mxu0 0.0
  %4644 = vmatprep.subr.mxu0 0.0
  %4645 = vmatpush1.msra.mxu0 0.0
  %4646 = vmatprep.subr.mxu0 0.0
  %4647 = vmatpush1.msra.mxu0 0.0
  %4648 = vmatprep.subr.mxu0 0.0
  %4649 = vmatpush1.msra.mxu0 0.0
  %4650 = vmatprep.subr.mxu0 0.0
  %4651 = vmatpush1.msra.mxu0 0.0
  %4652 = vmatprep.subr.mxu0 0.0
  %4653 = vmatpush1.msra.mxu0 0.0
  %4654 = vmatprep.subr.mxu0 0.0
  %4655 = vmatpush1.msra.mxu0 0.0
  %4656 = vmatprep.subr.mxu0 0.0
  %4657 = vmatpush1.msra.mxu0 0.0
  %4658 = vmatprep.subr.mxu0 0.0
  %4659 = vmatpush1.msra.mxu0 0.0
  %4660 = vmatprep.subr.mxu0 0.0
  %4661 = vmatpush1.msra.mxu0 0.0
  %4662 = vmatprep.subr.mxu0 0.0
  %4663 = vmatpush1.msra.mxu0 0.0
  %4664 = vmatprep.mubr.f32.mxu0 0.0
  %4665 = vmatmul.mubr.f32.gmra.mrb[0].mxu0 %v3817
  %v4666 = vpop.f32.mrb[0].mxu0
  %v4667 = vadd.f32 0.0, %v4666
  %v4668 = vpop.f32.mrb[0].mxu0
  %v4669 = vadd.f32 0.0, %v4668
  %4670 = vdwg.mxu0
  %4671 = vmatprep.subr.mxu0 %v3636
  %4672 = vmatpush1.msra.mxu0 %v3635
  %4673 = vmatprep.subr.mxu0 %v3687
  %4674 = vmatpush1.msra.mxu0 %v3686
  %4675 = vmatprep.subr.mxu0 %v3738
  %4676 = vmatpush1.msra.mxu0 %v3737
  %4677 = vmatprep.subr.mxu0 %v3789
  %4678 = vmatpush1.msra.mxu0 %v3788
  %4679 = vmatprep.subr.mxu0 0.0
  %4680 = vmatpush1.msra.mxu0 0.0
  %4681 = vmatprep.subr.mxu0 0.0
  %4682 = vmatpush1.msra.mxu0 0.0
  %4683 = vmatprep.subr.mxu0 0.0
  %4684 = vmatpush1.msra.mxu0 0.0
  %4685 = vmatprep.subr.mxu0 0.0
  %4686 = vmatpush1.msra.mxu0 0.0
  %4687 = vmatprep.subr.mxu0 0.0
  %4688 = vmatpush1.msra.mxu0 0.0
  %4689 = vmatprep.subr.mxu0 0.0
  %4690 = vmatpush1.msra.mxu0 0.0
  %4691 = vmatprep.subr.mxu0 0.0
  %4692 = vmatpush1.msra.mxu0 0.0
  %4693 = vmatprep.subr.mxu0 0.0
  %4694 = vmatpush1.msra.mxu0 0.0
  %4695 = vmatprep.subr.mxu0 0.0
  %4696 = vmatpush1.msra.mxu0 0.0
  %4697 = vmatprep.subr.mxu0 0.0
  %4698 = vmatpush1.msra.mxu0 0.0
  %4699 = vmatprep.subr.mxu0 0.0
  %4700 = vmatpush1.msra.mxu0 0.0
  %4701 = vmatprep.subr.mxu0 0.0
  %4702 = vmatpush1.msra.mxu0 0.0
  %4703 = vmatprep.subr.mxu0 0.0
  %4704 = vmatpush1.msra.mxu0 0.0
  %4705 = vmatprep.subr.mxu0 0.0
  %4706 = vmatpush1.msra.mxu0 0.0
  %4707 = vmatprep.subr.mxu0 0.0
  %4708 = vmatpush1.msra.mxu0 0.0
  %4709 = vmatprep.subr.mxu0 0.0
  %4710 = vmatpush1.msra.mxu0 0.0
  %4711 = vmatprep.subr.mxu0 0.0
  %4712 = vmatpush1.msra.mxu0 0.0
  %4713 = vmatprep.subr.mxu0 0.0
  %4714 = vmatpush1.msra.mxu0 0.0
  %4715 = vmatprep.subr.mxu0 0.0
  %4716 = vmatpush1.msra.mxu0 0.0
  %4717 = vmatprep.subr.mxu0 0.0
  %4718 = vmatpush1.msra.mxu0 0.0
  %4719 = vmatprep.subr.mxu0 0.0
  %4720 = vmatpush1.msra.mxu0 0.0
  %4721 = vmatprep.subr.mxu0 0.0
  %4722 = vmatpush1.msra.mxu0 0.0
  %4723 = vmatprep.subr.mxu0 0.0
  %4724 = vmatpush1.msra.mxu0 0.0
  %4725 = vmatprep.subr.mxu0 0.0
  %4726 = vmatpush1.msra.mxu0 0.0
  %4727 = vmatprep.subr.mxu0 0.0
  %4728 = vmatpush1.msra.mxu0 0.0
  %4729 = vmatprep.subr.mxu0 0.0
  %4730 = vmatpush1.msra.mxu0 0.0
  %4731 = vmatprep.subr.mxu0 0.0
  %4732 = vmatpush1.msra.mxu0 0.0
  %4733 = vmatprep.subr.mxu0 0.0
  %4734 = vmatpush1.msra.mxu0 0.0
  %4735 = vmatprep.mubr.f32.mxu0 0.0
  %4736 = vmatmul.mubr.f32.gmra.mrb[0].mxu0 %v3817
  %v4737 = vpop.f32.mrb[0].mxu0
  %v4738 = vadd.f32 0.0, %v4737
  %v4739 = vpop.f32.mrb[0].mxu0
  %v4740 = vadd.f32 0.0, %v4739
  %4741 = vdwg.mxu0
  %4742 = vmatprep.subr.mxu0 %v3638
  %4743 = vmatpush1.msra.mxu0 %v3637
  %4744 = vmatprep.subr.mxu0 %v3689
  %4745 = vmatpush1.msra.mxu0 %v3688
  %4746 = vmatprep.subr.mxu0 %v3740
  %4747 = vmatpush1.msra.mxu0 %v3739
  %4748 = vmatprep.subr.mxu0 %v3791
  %4749 = vmatpush1.msra.mxu0 %v3790
  %4750 = vmatprep.subr.mxu0 0.0
  %4751 = vmatpush1.msra.mxu0 0.0
  %4752 = vmatprep.subr.mxu0 0.0
  %4753 = vmatpush1.msra.mxu0 0.0
  %4754 = vmatprep.subr.mxu0 0.0
  %4755 = vmatpush1.msra.mxu0 0.0
  %4756 = vmatprep.subr.mxu0 0.0
  %4757 = vmatpush1.msra.mxu0 0.0
  %4758 = vmatprep.subr.mxu0 0.0
  %4759 = vmatpush1.msra.mxu0 0.0
  %4760 = vmatprep.subr.mxu0 0.0
  %4761 = vmatpush1.msra.mxu0 0.0
  %4762 = vmatprep.subr.mxu0 0.0
  %4763 = vmatpush1.msra.mxu0 0.0
  %4764 = vmatprep.subr.mxu0 0.0
  %4765 = vmatpush1.msra.mxu0 0.0
  %4766 = vmatprep.subr.mxu0 0.0
  %4767 = vmatpush1.msra.mxu0 0.0
  %4768 = vmatprep.subr.mxu0 0.0
  %4769 = vmatpush1.msra.mxu0 0.0
  %4770 = vmatprep.subr.mxu0 0.0
  %4771 = vmatpush1.msra.mxu0 0.0
  %4772 = vmatprep.subr.mxu0 0.0
  %4773 = vmatpush1.msra.mxu0 0.0
  %4774 = vmatprep.subr.mxu0 0.0
  %4775 = vmatpush1.msra.mxu0 0.0
  %4776 = vmatprep.subr.mxu0 0.0
  %4777 = vmatpush1.msra.mxu0 0.0
  %4778 = vmatprep.subr.mxu0 0.0
  %4779 = vmatpush1.msra.mxu0 0.0
  %4780 = vmatprep.subr.mxu0 0.0
  %4781 = vmatpush1.msra.mxu0 0.0
  %4782 = vmatprep.subr.mxu0 0.0
  %4783 = vmatpush1.msra.mxu0 0.0
  %4784 = vmatprep.subr.mxu0 0.0
  %4785 = vmatpush1.msra.mxu0 0.0
  %4786 = vmatprep.subr.mxu0 0.0
  %4787 = vmatpush1.msra.mxu0 0.0
  %4788 = vmatprep.subr.mxu0 0.0
  %4789 = vmatpush1.msra.mxu0 0.0
  %4790 = vmatprep.subr.mxu0 0.0
  %4791 = vmatpush1.msra.mxu0 0.0
  %4792 = vmatprep.subr.mxu0 0.0
  %4793 = vmatpush1.msra.mxu0 0.0
  %4794 = vmatprep.subr.mxu0 0.0
  %4795 = vmatpush1.msra.mxu0 0.0
  %4796 = vmatprep.subr.mxu0 0.0
  %4797 = vmatpush1.msra.mxu0 0.0
  %4798 = vmatprep.subr.mxu0 0.0
  %4799 = vmatpush1.msra.mxu0 0.0
  %4800 = vmatprep.subr.mxu0 0.0
  %4801 = vmatpush1.msra.mxu0 0.0
  %4802 = vmatprep.subr.mxu0 0.0
  %4803 = vmatpush1.msra.mxu0 0.0
  %4804 = vmatprep.subr.mxu0 0.0
  %4805 = vmatpush1.msra.mxu0 0.0
  %4806 = vmatprep.mubr.f32.mxu0 0.0
  %4807 = vmatmul.mubr.f32.gmra.mrb[0].mxu0 %v3817
  %v4808 = vpop.f32.mrb[0].mxu0
  %v4809 = vadd.f32 0.0, %v4808
  %v4810 = vpop.f32.mrb[0].mxu0
  %v4811 = vadd.f32 0.0, %v4810
  %4812 = vdwg.mxu0
  %4813 = vmatprep.subr.mxu0 %v3640
  %4814 = vmatpush1.msra.mxu0 %v3639
  %4815 = vmatprep.subr.mxu0 %v3691
  %4816 = vmatpush1.msra.mxu0 %v3690
  %4817 = vmatprep.subr.mxu0 %v3742
  %4818 = vmatpush1.msra.mxu0 %v3741
  %4819 = vmatprep.subr.mxu0 %v3793
  %4820 = vmatpush1.msra.mxu0 %v3792
  %4821 = vmatprep.subr.mxu0 0.0
  %4822 = vmatpush1.msra.mxu0 0.0
  %4823 = vmatprep.subr.mxu0 0.0
  %4824 = vmatpush1.msra.mxu0 0.0
  %4825 = vmatprep.subr.mxu0 0.0
  %4826 = vmatpush1.msra.mxu0 0.0
  %4827 = vmatprep.subr.mxu0 0.0
  %4828 = vmatpush1.msra.mxu0 0.0
  %4829 = vmatprep.subr.mxu0 0.0
  %4830 = vmatpush1.msra.mxu0 0.0
  %4831 = vmatprep.subr.mxu0 0.0
  %4832 = vmatpush1.msra.mxu0 0.0
  %4833 = vmatprep.subr.mxu0 0.0
  %4834 = vmatpush1.msra.mxu0 0.0
  %4835 = vmatprep.subr.mxu0 0.0
  %4836 = vmatpush1.msra.mxu0 0.0
  %4837 = vmatprep.subr.mxu0 0.0
  %4838 = vmatpush1.msra.mxu0 0.0
  %4839 = vmatprep.subr.mxu0 0.0
  %4840 = vmatpush1.msra.mxu0 0.0
  %4841 = vmatprep.subr.mxu0 0.0
  %4842 = vmatpush1.msra.mxu0 0.0
  %4843 = vmatprep.subr.mxu0 0.0
  %4844 = vmatpush1.msra.mxu0 0.0
  %4845 = vmatprep.subr.mxu0 0.0
  %4846 = vmatpush1.msra.mxu0 0.0
  %4847 = vmatprep.subr.mxu0 0.0
  %4848 = vmatpush1.msra.mxu0 0.0
  %4849 = vmatprep.subr.mxu0 0.0
  %4850 = vmatpush1.msra.mxu0 0.0
  %4851 = vmatprep.subr.mxu0 0.0
  %4852 = vmatpush1.msra.mxu0 0.0
  %4853 = vmatprep.subr.mxu0 0.0
  %4854 = vmatpush1.msra.mxu0 0.0
  %4855 = vmatprep.subr.mxu0 0.0
  %4856 = vmatpush1.msra.mxu0 0.0
  %4857 = vmatprep.subr.mxu0 0.0
  %4858 = vmatpush1.msra.mxu0 0.0
  %4859 = vmatprep.subr.mxu0 0.0
  %4860 = vmatpush1.msra.mxu0 0.0
  %4861 = vmatprep.subr.mxu0 0.0
  %4862 = vmatpush1.msra.mxu0 0.0
  %4863 = vmatprep.subr.mxu0 0.0
  %4864 = vmatpush1.msra.mxu0 0.0
  %4865 = vmatprep.subr.mxu0 0.0
  %4866 = vmatpush1.msra.mxu0 0.0
  %4867 = vmatprep.subr.mxu0 0.0
  %4868 = vmatpush1.msra.mxu0 0.0
  %4869 = vmatprep.subr.mxu0 0.0
  %4870 = vmatpush1.msra.mxu0 0.0
  %4871 = vmatprep.subr.mxu0 0.0
  %4872 = vmatpush1.msra.mxu0 0.0
  %4873 = vmatprep.subr.mxu0 0.0
  %4874 = vmatpush1.msra.mxu0 0.0
  %4875 = vmatprep.subr.mxu0 0.0
  %4876 = vmatpush1.msra.mxu0 0.0
  %4877 = vmatprep.mubr.f32.mxu0 0.0
  %4878 = vmatmul.mubr.f32.gmra.mrb[0].mxu0 %v3817
  %v4879 = vpop.f32.mrb[0].mxu0
  %v4880 = vadd.f32 0.0, %v4879
  %v4881 = vpop.f32.mrb[0].mxu0
  %v4882 = vadd.f32 0.0, %v4881
  %4883 = vdwg.mxu0
  %4884 = vmatprep.subr.mxu0 %v3642
  %4885 = vmatpush1.msra.mxu0 %v3641
  %4886 = vmatprep.subr.mxu0 %v3693
  %4887 = vmatpush1.msra.mxu0 %v3692
  %4888 = vmatprep.subr.mxu0 %v3744
  %4889 = vmatpush1.msra.mxu0 %v3743
  %4890 = vmatprep.subr.mxu0 %v3795
  %4891 = vmatpush1.msra.mxu0 %v3794
  %4892 = vmatprep.subr.mxu0 0.0
  %4893 = vmatpush1.msra.mxu0 0.0
  %4894 = vmatprep.subr.mxu0 0.0
  %4895 = vmatpush1.msra.mxu0 0.0
  %4896 = vmatprep.subr.mxu0 0.0
  %4897 = vmatpush1.msra.mxu0 0.0
  %4898 = vmatprep.subr.mxu0 0.0
  %4899 = vmatpush1.msra.mxu0 0.0
  %4900 = vmatprep.subr.mxu0 0.0
  %4901 = vmatpush1.msra.mxu0 0.0
  %4902 = vmatprep.subr.mxu0 0.0
  %4903 = vmatpush1.msra.mxu0 0.0
  %4904 = vmatprep.subr.mxu0 0.0
  %4905 = vmatpush1.msra.mxu0 0.0
  %4906 = vmatprep.subr.mxu0 0.0
  %4907 = vmatpush1.msra.mxu0 0.0
  %4908 = vmatprep.subr.mxu0 0.0
  %4909 = vmatpush1.msra.mxu0 0.0
  %4910 = vmatprep.subr.mxu0 0.0
  %4911 = vmatpush1.msra.mxu0 0.0
  %4912 = vmatprep.subr.mxu0 0.0
  %4913 = vmatpush1.msra.mxu0 0.0
  %4914 = vmatprep.subr.mxu0 0.0
  %4915 = vmatpush1.msra.mxu0 0.0
  %4916 = vmatprep.subr.mxu0 0.0
  %4917 = vmatpush1.msra.mxu0 0.0
  %4918 = vmatprep.subr.mxu0 0.0
  %4919 = vmatpush1.msra.mxu0 0.0
  %4920 = vmatprep.subr.mxu0 0.0
  %4921 = vmatpush1.msra.mxu0 0.0
  %4922 = vmatprep.subr.mxu0 0.0
  %4923 = vmatpush1.msra.mxu0 0.0
  %4924 = vmatprep.subr.mxu0 0.0
  %4925 = vmatpush1.msra.mxu0 0.0
  %4926 = vmatprep.subr.mxu0 0.0
  %4927 = vmatpush1.msra.mxu0 0.0
  %4928 = vmatprep.subr.mxu0 0.0
  %4929 = vmatpush1.msra.mxu0 0.0
  %4930 = vmatprep.subr.mxu0 0.0
  %4931 = vmatpush1.msra.mxu0 0.0
  %4932 = vmatprep.subr.mxu0 0.0
  %4933 = vmatpush1.msra.mxu0 0.0
  %4934 = vmatprep.subr.mxu0 0.0
  %4935 = vmatpush1.msra.mxu0 0.0
  %4936 = vmatprep.subr.mxu0 0.0
  %4937 = vmatpush1.msra.mxu0 0.0
  %4938 = vmatprep.subr.mxu0 0.0
  %4939 = vmatpush1.msra.mxu0 0.0
  %4940 = vmatprep.subr.mxu0 0.0
  %4941 = vmatpush1.msra.mxu0 0.0
  %4942 = vmatprep.subr.mxu0 0.0
  %4943 = vmatpush1.msra.mxu0 0.0
  %4944 = vmatprep.subr.mxu0 0.0
  %4945 = vmatpush1.msra.mxu0 0.0
  %4946 = vmatprep.subr.mxu0 0.0
  %4947 = vmatpush1.msra.mxu0 0.0
  %4948 = vmatprep.mubr.f32.mxu0 0.0
  %4949 = vmatmul.mubr.f32.gmra.mrb[0].mxu0 %v3817
  %v4950 = vpop.f32.mrb[0].mxu0
  %v4951 = vadd.f32 0.0, %v4950
  %v4952 = vpop.f32.mrb[0].mxu0
  %v4953 = vadd.f32 0.0, %v4952
  %4954 = vdwg.mxu0
  %4955 = vmatprep.subr.mxu0 %v3644
  %4956 = vmatpush1.msra.mxu0 %v3643
  %4957 = vmatprep.subr.mxu0 %v3695
  %4958 = vmatpush1.msra.mxu0 %v3694
  %4959 = vmatprep.subr.mxu0 %v3746
  %4960 = vmatpush1.msra.mxu0 %v3745
  %4961 = vmatprep.subr.mxu0 %v3797
  %4962 = vmatpush1.msra.mxu0 %v3796
  %4963 = vmatprep.subr.mxu0 0.0
  %4964 = vmatpush1.msra.mxu0 0.0
  %4965 = vmatprep.subr.mxu0 0.0
  %4966 = vmatpush1.msra.mxu0 0.0
  %4967 = vmatprep.subr.mxu0 0.0
  %4968 = vmatpush1.msra.mxu0 0.0
  %4969 = vmatprep.subr.mxu0 0.0
  %4970 = vmatpush1.msra.mxu0 0.0
  %4971 = vmatprep.subr.mxu0 0.0
  %4972 = vmatpush1.msra.mxu0 0.0
  %4973 = vmatprep.subr.mxu0 0.0
  %4974 = vmatpush1.msra.mxu0 0.0
  %4975 = vmatprep.subr.mxu0 0.0
  %4976 = vmatpush1.msra.mxu0 0.0
  %4977 = vmatprep.subr.mxu0 0.0
  %4978 = vmatpush1.msra.mxu0 0.0
  %4979 = vmatprep.subr.mxu0 0.0
  %4980 = vmatpush1.msra.mxu0 0.0
  %4981 = vmatprep.subr.mxu0 0.0
  %4982 = vmatpush1.msra.mxu0 0.0
  %4983 = vmatprep.subr.mxu0 0.0
  %4984 = vmatpush1.msra.mxu0 0.0
  %4985 = vmatprep.subr.mxu0 0.0
  %4986 = vmatpush1.msra.mxu0 0.0
  %4987 = vmatprep.subr.mxu0 0.0
  %4988 = vmatpush1.msra.mxu0 0.0
  %4989 = vmatprep.subr.mxu0 0.0
  %4990 = vmatpush1.msra.mxu0 0.0
  %4991 = vmatprep.subr.mxu0 0.0
  %4992 = vmatpush1.msra.mxu0 0.0
  %4993 = vmatprep.subr.mxu0 0.0
  %4994 = vmatpush1.msra.mxu0 0.0
  %4995 = vmatprep.subr.mxu0 0.0
  %4996 = vmatpush1.msra.mxu0 0.0
  %4997 = vmatprep.subr.mxu0 0.0
  %4998 = vmatpush1.msra.mxu0 0.0
  %4999 = vmatprep.subr.mxu0 0.0
  %5000 = vmatpush1.msra.mxu0 0.0
  %5001 = vmatprep.subr.mxu0 0.0
  %5002 = vmatpush1.msra.mxu0 0.0
  %5003 = vmatprep.subr.mxu0 0.0
  %5004 = vmatpush1.msra.mxu0 0.0
  %5005 = vmatprep.subr.mxu0 0.0
  %5006 = vmatpush1.msra.mxu0 0.0
  %5007 = vmatprep.subr.mxu0 0.0
  %5008 = vmatpush1.msra.mxu0 0.0
  %5009 = vmatprep.subr.mxu0 0.0
  %5010 = vmatpush1.msra.mxu0 0.0
  %5011 = vmatprep.subr.mxu0 0.0
  %5012 = vmatpush1.msra.mxu0 0.0
  %5013 = vmatprep.subr.mxu0 0.0
  %5014 = vmatpush1.msra.mxu0 0.0
  %5015 = vmatprep.subr.mxu0 0.0
  %5016 = vmatpush1.msra.mxu0 0.0
  %5017 = vmatprep.subr.mxu0 0.0
  %5018 = vmatpush1.msra.mxu0 0.0
  %5019 = vmatprep.mubr.f32.mxu0 0.0
  %5020 = vmatmul.mubr.f32.gmra.mrb[0].mxu0 %v3817
  %v5021 = vpop.f32.mrb[0].mxu0
  %v5022 = vadd.f32 0.0, %v5021
  %v5023 = vpop.f32.mrb[0].mxu0
  %v5024 = vadd.f32 0.0, %v5023
  %5025 = vdwg.mxu0
  %5026 = vmatprep.subr.mxu0 %v3646
  %5027 = vmatpush1.msra.mxu0 %v3645
  %5028 = vmatprep.subr.mxu0 %v3697
  %5029 = vmatpush1.msra.mxu0 %v3696
  %5030 = vmatprep.subr.mxu0 %v3748
  %5031 = vmatpush1.msra.mxu0 %v3747
  %5032 = vmatprep.subr.mxu0 %v3799
  %5033 = vmatpush1.msra.mxu0 %v3798
  %5034 = vmatprep.subr.mxu0 0.0
  %5035 = vmatpush1.msra.mxu0 0.0
  %5036 = vmatprep.subr.mxu0 0.0
  %5037 = vmatpush1.msra.mxu0 0.0
  %5038 = vmatprep.subr.mxu0 0.0
  %5039 = vmatpush1.msra.mxu0 0.0
  %5040 = vmatprep.subr.mxu0 0.0
  %5041 = vmatpush1.msra.mxu0 0.0
  %5042 = vmatprep.subr.mxu0 0.0
  %5043 = vmatpush1.msra.mxu0 0.0
  %5044 = vmatprep.subr.mxu0 0.0
  %5045 = vmatpush1.msra.mxu0 0.0
  %5046 = vmatprep.subr.mxu0 0.0
  %5047 = vmatpush1.msra.mxu0 0.0
  %5048 = vmatprep.subr.mxu0 0.0
  %5049 = vmatpush1.msra.mxu0 0.0
  %5050 = vmatprep.subr.mxu0 0.0
  %5051 = vmatpush1.msra.mxu0 0.0
  %5052 = vmatprep.subr.mxu0 0.0
  %5053 = vmatpush1.msra.mxu0 0.0
  %5054 = vmatprep.subr.mxu0 0.0
  %5055 = vmatpush1.msra.mxu0 0.0
  %5056 = vmatprep.subr.mxu0 0.0
  %5057 = vmatpush1.msra.mxu0 0.0
  %5058 = vmatprep.subr.mxu0 0.0
  %5059 = vmatpush1.msra.mxu0 0.0
  %5060 = vmatprep.subr.mxu0 0.0
  %5061 = vmatpush1.msra.mxu0 0.0
  %5062 = vmatprep.subr.mxu0 0.0
  %5063 = vmatpush1.msra.mxu0 0.0
  %5064 = vmatprep.subr.mxu0 0.0
  %5065 = vmatpush1.msra.mxu0 0.0
  %5066 = vmatprep.subr.mxu0 0.0
  %5067 = vmatpush1.msra.mxu0 0.0
  %5068 = vmatprep.subr.mxu0 0.0
  %5069 = vmatpush1.msra.mxu0 0.0
  %5070 = vmatprep.subr.mxu0 0.0
  %5071 = vmatpush1.msra.mxu0 0.0
  %5072 = vmatprep.subr.mxu0 0.0
  %5073 = vmatpush1.msra.mxu0 0.0
  %5074 = vmatprep.subr.mxu0 0.0
  %5075 = vmatpush1.msra.mxu0 0.0
  %5076 = vmatprep.subr.mxu0 0.0
  %5077 = vmatpush1.msra.mxu0 0.0
  %5078 = vmatprep.subr.mxu0 0.0
  %5079 = vmatpush1.msra.mxu0 0.0
  %5080 = vmatprep.subr.mxu0 0.0
  %5081 = vmatpush1.msra.mxu0 0.0
  %5082 = vmatprep.subr.mxu0 0.0
  %5083 = vmatpush1.msra.mxu0 0.0
  %5084 = vmatprep.subr.mxu0 0.0
  %5085 = vmatpush1.msra.mxu0 0.0
  %5086 = vmatprep.subr.mxu0 0.0
  %5087 = vmatpush1.msra.mxu0 0.0
  %5088 = vmatprep.subr.mxu0 0.0
  %5089 = vmatpush1.msra.mxu0 0.0
  %5090 = vmatprep.mubr.f32.mxu0 0.0
  %5091 = vmatmul.mubr.f32.gmra.mrb[0].mxu0 %v3817
  %v5092 = vpop.f32.mrb[0].mxu0
  %v5093 = vadd.f32 0.0, %v5092
  %v5094 = vpop.f32.mrb[0].mxu0
  %v5095 = vadd.f32 0.0, %v5094
  %5096 = vdwg.mxu0
  %5097 = vmatprep.subr.mxu0 %v3648
  %5098 = vmatpush1.msra.mxu0 %v3647
  %5099 = vmatprep.subr.mxu0 %v3699
  %5100 = vmatpush1.msra.mxu0 %v3698
  %5101 = vmatprep.subr.mxu0 %v3750
  %5102 = vmatpush1.msra.mxu0 %v3749
  %5103 = vmatprep.subr.mxu0 %v3801
  %5104 = vmatpush1.msra.mxu0 %v3800
  %5105 = vmatprep.subr.mxu0 0.0
  %5106 = vmatpush1.msra.mxu0 0.0
  %5107 = vmatprep.subr.mxu0 0.0
  %5108 = vmatpush1.msra.mxu0 0.0
  %5109 = vmatprep.subr.mxu0 0.0
  %5110 = vmatpush1.msra.mxu0 0.0
  %5111 = vmatprep.subr.mxu0 0.0
  %5112 = vmatpush1.msra.mxu0 0.0
  %5113 = vmatprep.subr.mxu0 0.0
  %5114 = vmatpush1.msra.mxu0 0.0
  %5115 = vmatprep.subr.mxu0 0.0
  %5116 = vmatpush1.msra.mxu0 0.0
  %5117 = vmatprep.subr.mxu0 0.0
  %5118 = vmatpush1.msra.mxu0 0.0
  %5119 = vmatprep.subr.mxu0 0.0
  %5120 = vmatpush1.msra.mxu0 0.0
  %5121 = vmatprep.subr.mxu0 0.0
  %5122 = vmatpush1.msra.mxu0 0.0
  %5123 = vmatprep.subr.mxu0 0.0
  %5124 = vmatpush1.msra.mxu0 0.0
  %5125 = vmatprep.subr.mxu0 0.0
  %5126 = vmatpush1.msra.mxu0 0.0
  %5127 = vmatprep.subr.mxu0 0.0
  %5128 = vmatpush1.msra.mxu0 0.0
  %5129 = vmatprep.subr.mxu0 0.0
  %5130 = vmatpush1.msra.mxu0 0.0
  %5131 = vmatprep.subr.mxu0 0.0
  %5132 = vmatpush1.msra.mxu0 0.0
  %5133 = vmatprep.subr.mxu0 0.0
  %5134 = vmatpush1.msra.mxu0 0.0
  %5135 = vmatprep.subr.mxu0 0.0
  %5136 = vmatpush1.msra.mxu0 0.0
  %5137 = vmatprep.subr.mxu0 0.0
  %5138 = vmatpush1.msra.mxu0 0.0
  %5139 = vmatprep.subr.mxu0 0.0
  %5140 = vmatpush1.msra.mxu0 0.0
  %5141 = vmatprep.subr.mxu0 0.0
  %5142 = vmatpush1.msra.mxu0 0.0
  %5143 = vmatprep.subr.mxu0 0.0
  %5144 = vmatpush1.msra.mxu0 0.0
  %5145 = vmatprep.subr.mxu0 0.0
  %5146 = vmatpush1.msra.mxu0 0.0
  %5147 = vmatprep.subr.mxu0 0.0
  %5148 = vmatpush1.msra.mxu0 0.0
  %5149 = vmatprep.subr.mxu0 0.0
  %5150 = vmatpush1.msra.mxu0 0.0
  %5151 = vmatprep.subr.mxu0 0.0
  %5152 = vmatpush1.msra.mxu0 0.0
  %5153 = vmatprep.subr.mxu0 0.0
  %5154 = vmatpush1.msra.mxu0 0.0
  %5155 = vmatprep.subr.mxu0 0.0
  %5156 = vmatpush1.msra.mxu0 0.0
  %5157 = vmatprep.subr.mxu0 0.0
  %5158 = vmatpush1.msra.mxu0 0.0
  %5159 = vmatprep.subr.mxu0 0.0
  %5160 = vmatpush1.msra.mxu0 0.0
  %5161 = vmatprep.mubr.f32.mxu0 0.0
  %5162 = vmatmul.mubr.f32.gmra.mrb[0].mxu0 %v3817
  %v5163 = vpop.f32.mrb[0].mxu0
  %v5164 = vadd.f32 0.0, %v5163
  %v5165 = vpop.f32.mrb[0].mxu0
  %v5166 = vadd.f32 0.0, %v5165
  %5167 = vdwg.mxu0
  %5168 = vmatprep.subr.mxu0 %v3650
  %5169 = vmatpush1.msra.mxu0 %v3649
  %5170 = vmatprep.subr.mxu0 %v3701
  %5171 = vmatpush1.msra.mxu0 %v3700
  %5172 = vmatprep.subr.mxu0 %v3752
  %5173 = vmatpush1.msra.mxu0 %v3751
  %5174 = vmatprep.subr.mxu0 %v3803
  %5175 = vmatpush1.msra.mxu0 %v3802
  %5176 = vmatprep.subr.mxu0 0.0
  %5177 = vmatpush1.msra.mxu0 0.0
  %5178 = vmatprep.subr.mxu0 0.0
  %5179 = vmatpush1.msra.mxu0 0.0
  %5180 = vmatprep.subr.mxu0 0.0
  %5181 = vmatpush1.msra.mxu0 0.0
  %5182 = vmatprep.subr.mxu0 0.0
  %5183 = vmatpush1.msra.mxu0 0.0
  %5184 = vmatprep.subr.mxu0 0.0
  %5185 = vmatpush1.msra.mxu0 0.0
  %5186 = vmatprep.subr.mxu0 0.0
  %5187 = vmatpush1.msra.mxu0 0.0
  %5188 = vmatprep.subr.mxu0 0.0
  %5189 = vmatpush1.msra.mxu0 0.0
  %5190 = vmatprep.subr.mxu0 0.0
  %5191 = vmatpush1.msra.mxu0 0.0
  %5192 = vmatprep.subr.mxu0 0.0
  %5193 = vmatpush1.msra.mxu0 0.0
  %5194 = vmatprep.subr.mxu0 0.0
  %5195 = vmatpush1.msra.mxu0 0.0
  %5196 = vmatprep.subr.mxu0 0.0
  %5197 = vmatpush1.msra.mxu0 0.0
  %5198 = vmatprep.subr.mxu0 0.0
  %5199 = vmatpush1.msra.mxu0 0.0
  %5200 = vmatprep.subr.mxu0 0.0
  %5201 = vmatpush1.msra.mxu0 0.0
  %5202 = vmatprep.subr.mxu0 0.0
  %5203 = vmatpush1.msra.mxu0 0.0
  %5204 = vmatprep.subr.mxu0 0.0
  %5205 = vmatpush1.msra.mxu0 0.0
  %5206 = vmatprep.subr.mxu0 0.0
  %5207 = vmatpush1.msra.mxu0 0.0
  %5208 = vmatprep.subr.mxu0 0.0
  %5209 = vmatpush1.msra.mxu0 0.0
  %5210 = vmatprep.subr.mxu0 0.0
  %5211 = vmatpush1.msra.mxu0 0.0
  %5212 = vmatprep.subr.mxu0 0.0
  %5213 = vmatpush1.msra.mxu0 0.0
  %5214 = vmatprep.subr.mxu0 0.0
  %5215 = vmatpush1.msra.mxu0 0.0
  %5216 = vmatprep.subr.mxu0 0.0
  %5217 = vmatpush1.msra.mxu0 0.0
  %5218 = vmatprep.subr.mxu0 0.0
  %5219 = vmatpush1.msra.mxu0 0.0
  %5220 = vmatprep.subr.mxu0 0.0
  %5221 = vmatpush1.msra.mxu0 0.0
  %5222 = vmatprep.subr.mxu0 0.0
  %5223 = vmatpush1.msra.mxu0 0.0
  %5224 = vmatprep.subr.mxu0 0.0
  %5225 = vmatpush1.msra.mxu0 0.0
  %5226 = vmatprep.subr.mxu0 0.0
  %5227 = vmatpush1.msra.mxu0 0.0
  %5228 = vmatprep.subr.mxu0 0.0
  %5229 = vmatpush1.msra.mxu0 0.0
  %5230 = vmatprep.subr.mxu0 0.0
  %5231 = vmatpush1.msra.mxu0 0.0
  %5232 = vmatprep.mubr.f32.mxu0 0.0
  %5233 = vmatmul.mubr.f32.gmra.mrb[0].mxu0 %v3817
  %v5234 = vpop.f32.mrb[0].mxu0
  %v5235 = vadd.f32 0.0, %v5234
  %v5236 = vpop.f32.mrb[0].mxu0
  %v5237 = vadd.f32 0.0, %v5236
  %5238 = vdwg.mxu0
  %5239 = vmatprep.subr.mxu0 %v3652
  %5240 = vmatpush1.msra.mxu0 %v3651
  %5241 = vmatprep.subr.mxu0 %v3703
  %5242 = vmatpush1.msra.mxu0 %v3702
  %5243 = vmatprep.subr.mxu0 %v3754
  %5244 = vmatpush1.msra.mxu0 %v3753
  %5245 = vmatprep.subr.mxu0 %v3805
  %5246 = vmatpush1.msra.mxu0 %v3804
  %5247 = vmatprep.subr.mxu0 0.0
  %5248 = vmatpush1.msra.mxu0 0.0
  %5249 = vmatprep.subr.mxu0 0.0
  %5250 = vmatpush1.msra.mxu0 0.0
  %5251 = vmatprep.subr.mxu0 0.0
  %5252 = vmatpush1.msra.mxu0 0.0
  %5253 = vmatprep.subr.mxu0 0.0
  %5254 = vmatpush1.msra.mxu0 0.0
  %5255 = vmatprep.subr.mxu0 0.0
  %5256 = vmatpush1.msra.mxu0 0.0
  %5257 = vmatprep.subr.mxu0 0.0
  %5258 = vmatpush1.msra.mxu0 0.0
  %5259 = vmatprep.subr.mxu0 0.0
  %5260 = vmatpush1.msra.mxu0 0.0
  %5261 = vmatprep.subr.mxu0 0.0
  %5262 = vmatpush1.msra.mxu0 0.0
  %5263 = vmatprep.subr.mxu0 0.0
  %5264 = vmatpush1.msra.mxu0 0.0
  %5265 = vmatprep.subr.mxu0 0.0
  %5266 = vmatpush1.msra.mxu0 0.0
  %5267 = vmatprep.subr.mxu0 0.0
  %5268 = vmatpush1.msra.mxu0 0.0
  %5269 = vmatprep.subr.mxu0 0.0
  %5270 = vmatpush1.msra.mxu0 0.0
  %5271 = vmatprep.subr.mxu0 0.0
  %5272 = vmatpush1.msra.mxu0 0.0
  %5273 = vmatprep.subr.mxu0 0.0
  %5274 = vmatpush1.msra.mxu0 0.0
  %5275 = vmatprep.subr.mxu0 0.0
  %5276 = vmatpush1.msra.mxu0 0.0
  %5277 = vmatprep.subr.mxu0 0.0
  %5278 = vmatpush1.msra.mxu0 0.0
  %5279 = vmatprep.subr.mxu0 0.0
  %5280 = vmatpush1.msra.mxu0 0.0
  %5281 = vmatprep.subr.mxu0 0.0
  %5282 = vmatpush1.msra.mxu0 0.0
  %5283 = vmatprep.subr.mxu0 0.0
  %5284 = vmatpush1.msra.mxu0 0.0
  %5285 = vmatprep.subr.mxu0 0.0
  %5286 = vmatpush1.msra.mxu0 0.0
  %5287 = vmatprep.subr.mxu0 0.0
  %5288 = vmatpush1.msra.mxu0 0.0
  %5289 = vmatprep.subr.mxu0 0.0
  %5290 = vmatpush1.msra.mxu0 0.0
  %5291 = vmatprep.subr.mxu0 0.0
  %5292 = vmatpush1.msra.mxu0 0.0
  %5293 = vmatprep.subr.mxu0 0.0
  %5294 = vmatpush1.msra.mxu0 0.0
  %5295 = vmatprep.subr.mxu0 0.0
  %5296 = vmatpush1.msra.mxu0 0.0
  %5297 = vmatprep.subr.mxu0 0.0
  %5298 = vmatpush1.msra.mxu0 0.0
  %5299 = vmatprep.subr.mxu0 0.0
  %5300 = vmatpush1.msra.mxu0 0.0
  %5301 = vmatprep.subr.mxu0 0.0
  %5302 = vmatpush1.msra.mxu0 0.0
  %5303 = vmatprep.mubr.f32.mxu0 0.0
  %5304 = vmatmul.mubr.f32.gmra.mrb[0].mxu0 %v3817
  %v5305 = vpop.f32.mrb[0].mxu0
  %v5306 = vadd.f32 0.0, %v5305
  %v5307 = vpop.f32.mrb[0].mxu0
  %v5308 = vadd.f32 0.0, %v5307
  %5309 = vdwg.mxu0
  %5310 = vmatprep.subr.mxu0 %v3654
  %5311 = vmatpush1.msra.mxu0 %v3653
  %5312 = vmatprep.subr.mxu0 %v3705
  %5313 = vmatpush1.msra.mxu0 %v3704
  %5314 = vmatprep.subr.mxu0 %v3756
  %5315 = vmatpush1.msra.mxu0 %v3755
  %5316 = vmatprep.subr.mxu0 %v3807
  %5317 = vmatpush1.msra.mxu0 %v3806
  %5318 = vmatprep.subr.mxu0 0.0
  %5319 = vmatpush1.msra.mxu0 0.0
  %5320 = vmatprep.subr.mxu0 0.0
  %5321 = vmatpush1.msra.mxu0 0.0
  %5322 = vmatprep.subr.mxu0 0.0
  %5323 = vmatpush1.msra.mxu0 0.0
  %5324 = vmatprep.subr.mxu0 0.0
  %5325 = vmatpush1.msra.mxu0 0.0
  %5326 = vmatprep.subr.mxu0 0.0
  %5327 = vmatpush1.msra.mxu0 0.0
  %5328 = vmatprep.subr.mxu0 0.0
  %5329 = vmatpush1.msra.mxu0 0.0
  %5330 = vmatprep.subr.mxu0 0.0
  %5331 = vmatpush1.msra.mxu0 0.0
  %5332 = vmatprep.subr.mxu0 0.0
  %5333 = vmatpush1.msra.mxu0 0.0
  %5334 = vmatprep.subr.mxu0 0.0
  %5335 = vmatpush1.msra.mxu0 0.0
  %5336 = vmatprep.subr.mxu0 0.0
  %5337 = vmatpush1.msra.mxu0 0.0
  %5338 = vmatprep.subr.mxu0 0.0
  %5339 = vmatpush1.msra.mxu0 0.0
  %5340 = vmatprep.subr.mxu0 0.0
  %5341 = vmatpush1.msra.mxu0 0.0
  %5342 = vmatprep.subr.mxu0 0.0
  %5343 = vmatpush1.msra.mxu0 0.0
  %5344 = vmatprep.subr.mxu0 0.0
  %5345 = vmatpush1.msra.mxu0 0.0
  %5346 = vmatprep.subr.mxu0 0.0
  %5347 = vmatpush1.msra.mxu0 0.0
  %5348 = vmatprep.subr.mxu0 0.0
  %5349 = vmatpush1.msra.mxu0 0.0
  %5350 = vmatprep.subr.mxu0 0.0
  %5351 = vmatpush1.msra.mxu0 0.0
  %5352 = vmatprep.subr.mxu0 0.0
  %5353 = vmatpush1.msra.mxu0 0.0
  %5354 = vmatprep.subr.mxu0 0.0
  %5355 = vmatpush1.msra.mxu0 0.0
  %5356 = vmatprep.subr.mxu0 0.0
  %5357 = vmatpush1.msra.mxu0 0.0
  %5358 = vmatprep.subr.mxu0 0.0
  %5359 = vmatpush1.msra.mxu0 0.0
  %5360 = vmatprep.subr.mxu0 0.0
  %5361 = vmatpush1.msra.mxu0 0.0
  %5362 = vmatprep.subr.mxu0 0.0
  %5363 = vmatpush1.msra.mxu0 0.0
  %5364 = vmatprep.subr.mxu0 0.0
  %5365 = vmatpush1.msra.mxu0 0.0
  %5366 = vmatprep.subr.mxu0 0.0
  %5367 = vmatpush1.msra.mxu0 0.0
  %5368 = vmatprep.subr.mxu0 0.0
  %5369 = vmatpush1.msra.mxu0 0.0
  %5370 = vmatprep.subr.mxu0 0.0
  %5371 = vmatpush1.msra.mxu0 0.0
  %5372 = vmatprep.subr.mxu0 0.0
  %5373 = vmatpush1.msra.mxu0 0.0
  %5374 = vmatprep.mubr.f32.mxu0 0.0
  %5375 = vmatmul.mubr.f32.gmra.mrb[0].mxu0 %v3817
  %v5376 = vpop.f32.mrb[0].mxu0
  %v5377 = vadd.f32 0.0, %v5376
  %v5378 = vpop.f32.mrb[0].mxu0
  %v5379 = vadd.f32 0.0, %v5378
  %5380 = vdwg.mxu0
  %5381 = vmatprep.subr.mxu0 %v3656
  %5382 = vmatpush1.msra.mxu0 %v3655
  %5383 = vmatprep.subr.mxu0 %v3707
  %5384 = vmatpush1.msra.mxu0 %v3706
  %5385 = vmatprep.subr.mxu0 %v3758
  %5386 = vmatpush1.msra.mxu0 %v3757
  %5387 = vmatprep.subr.mxu0 %v3809
  %5388 = vmatpush1.msra.mxu0 %v3808
  %5389 = vmatprep.subr.mxu0 0.0
  %5390 = vmatpush1.msra.mxu0 0.0
  %5391 = vmatprep.subr.mxu0 0.0
  %5392 = vmatpush1.msra.mxu0 0.0
  %5393 = vmatprep.subr.mxu0 0.0
  %5394 = vmatpush1.msra.mxu0 0.0
  %5395 = vmatprep.subr.mxu0 0.0
  %5396 = vmatpush1.msra.mxu0 0.0
  %5397 = vmatprep.subr.mxu0 0.0
  %5398 = vmatpush1.msra.mxu0 0.0
  %5399 = vmatprep.subr.mxu0 0.0
  %5400 = vmatpush1.msra.mxu0 0.0
  %5401 = vmatprep.subr.mxu0 0.0
  %5402 = vmatpush1.msra.mxu0 0.0
  %5403 = vmatprep.subr.mxu0 0.0
  %5404 = vmatpush1.msra.mxu0 0.0
  %5405 = vmatprep.subr.mxu0 0.0
  %5406 = vmatpush1.msra.mxu0 0.0
  %5407 = vmatprep.subr.mxu0 0.0
  %5408 = vmatpush1.msra.mxu0 0.0
  %5409 = vmatprep.subr.mxu0 0.0
  %5410 = vmatpush1.msra.mxu0 0.0
  %5411 = vmatprep.subr.mxu0 0.0
  %5412 = vmatpush1.msra.mxu0 0.0
  %5413 = vmatprep.subr.mxu0 0.0
  %5414 = vmatpush1.msra.mxu0 0.0
  %5415 = vmatprep.subr.mxu0 0.0
  %5416 = vmatpush1.msra.mxu0 0.0
  %5417 = vmatprep.subr.mxu0 0.0
  %5418 = vmatpush1.msra.mxu0 0.0
  %5419 = vmatprep.subr.mxu0 0.0
  %5420 = vmatpush1.msra.mxu0 0.0
  %5421 = vmatprep.subr.mxu0 0.0
  %5422 = vmatpush1.msra.mxu0 0.0
  %5423 = vmatprep.subr.mxu0 0.0
  %5424 = vmatpush1.msra.mxu0 0.0
  %5425 = vmatprep.subr.mxu0 0.0
  %5426 = vmatpush1.msra.mxu0 0.0
  %5427 = vmatprep.subr.mxu0 0.0
  %5428 = vmatpush1.msra.mxu0 0.0
  %5429 = vmatprep.subr.mxu0 0.0
  %5430 = vmatpush1.msra.mxu0 0.0
  %5431 = vmatprep.subr.mxu0 0.0
  %5432 = vmatpush1.msra.mxu0 0.0
  %5433 = vmatprep.subr.mxu0 0.0
  %5434 = vmatpush1.msra.mxu0 0.0
  %5435 = vmatprep.subr.mxu0 0.0
  %5436 = vmatpush1.msra.mxu0 0.0
  %5437 = vmatprep.subr.mxu0 0.0
  %5438 = vmatpush1.msra.mxu0 0.0
  %5439 = vmatprep.subr.mxu0 0.0
  %5440 = vmatpush1.msra.mxu0 0.0
  %5441 = vmatprep.subr.mxu0 0.0
  %5442 = vmatpush1.msra.mxu0 0.0
  %5443 = vmatprep.subr.mxu0 0.0
  %5444 = vmatpush1.msra.mxu0 0.0
  %5445 = vmatprep.mubr.f32.mxu0 0.0
  %5446 = vmatmul.mubr.f32.gmra.mrb[0].mxu0 %v3817
  %v5447 = vpop.f32.mrb[0].mxu0
  %v5448 = vadd.f32 0.0, %v5447
  %v5449 = vpop.f32.mrb[0].mxu0
  %v5450 = vadd.f32 0.0, %v5449
  %5451 = vdwg.mxu0
  %5452 = vmatprep.subr.mxu0 %v3658
  %5453 = vmatpush1.msra.mxu0 %v3657
  %5454 = vmatprep.subr.mxu0 %v3709
  %5455 = vmatpush1.msra.mxu0 %v3708
  %5456 = vmatprep.subr.mxu0 %v3760
  %5457 = vmatpush1.msra.mxu0 %v3759
  %5458 = vmatprep.subr.mxu0 %v3811
  %5459 = vmatpush1.msra.mxu0 %v3810
  %5460 = vmatprep.subr.mxu0 0.0
  %5461 = vmatpush1.msra.mxu0 0.0
  %5462 = vmatprep.subr.mxu0 0.0
  %5463 = vmatpush1.msra.mxu0 0.0
  %5464 = vmatprep.subr.mxu0 0.0
  %5465 = vmatpush1.msra.mxu0 0.0
  %5466 = vmatprep.subr.mxu0 0.0
  %5467 = vmatpush1.msra.mxu0 0.0
  %5468 = vmatprep.subr.mxu0 0.0
  %5469 = vmatpush1.msra.mxu0 0.0
  %5470 = vmatprep.subr.mxu0 0.0
  %5471 = vmatpush1.msra.mxu0 0.0
  %5472 = vmatprep.subr.mxu0 0.0
  %5473 = vmatpush1.msra.mxu0 0.0
  %5474 = vmatprep.subr.mxu0 0.0
  %5475 = vmatpush1.msra.mxu0 0.0
  %5476 = vmatprep.subr.mxu0 0.0
  %5477 = vmatpush1.msra.mxu0 0.0
  %5478 = vmatprep.subr.mxu0 0.0
  %5479 = vmatpush1.msra.mxu0 0.0
  %5480 = vmatprep.subr.mxu0 0.0
  %5481 = vmatpush1.msra.mxu0 0.0
  %5482 = vmatprep.subr.mxu0 0.0
  %5483 = vmatpush1.msra.mxu0 0.0
  %5484 = vmatprep.subr.mxu0 0.0
  %5485 = vmatpush1.msra.mxu0 0.0
  %5486 = vmatprep.subr.mxu0 0.0
  %5487 = vmatpush1.msra.mxu0 0.0
  %5488 = vmatprep.subr.mxu0 0.0
  %5489 = vmatpush1.msra.mxu0 0.0
  %5490 = vmatprep.subr.mxu0 0.0
  %5491 = vmatpush1.msra.mxu0 0.0
  %5492 = vmatprep.subr.mxu0 0.0
  %5493 = vmatpush1.msra.mxu0 0.0
  %5494 = vmatprep.subr.mxu0 0.0
  %5495 = vmatpush1.msra.mxu0 0.0
  %5496 = vmatprep.subr.mxu0 0.0
  %5497 = vmatpush1.msra.mxu0 0.0
  %5498 = vmatprep.subr.mxu0 0.0
  %5499 = vmatpush1.msra.mxu0 0.0
  %5500 = vmatprep.subr.mxu0 0.0
  %5501 = vmatpush1.msra.mxu0 0.0
  %5502 = vmatprep.subr.mxu0 0.0
  %5503 = vmatpush1.msra.mxu0 0.0
  %5504 = vmatprep.subr.mxu0 0.0
  %5505 = vmatpush1.msra.mxu0 0.0
  %5506 = vmatprep.subr.mxu0 0.0
  %5507 = vmatpush1.msra.mxu0 0.0
  %5508 = vmatprep.subr.mxu0 0.0
  %5509 = vmatpush1.msra.mxu0 0.0
  %5510 = vmatprep.subr.mxu0 0.0
  %5511 = vmatpush1.msra.mxu0 0.0
  %5512 = vmatprep.subr.mxu0 0.0
  %5513 = vmatpush1.msra.mxu0 0.0
  %5514 = vmatprep.subr.mxu0 0.0
  %5515 = vmatpush1.msra.mxu0 0.0
  %5516 = vmatprep.mubr.f32.mxu0 0.0
  %5517 = vmatmul.mubr.f32.gmra.mrb[0].mxu0 %v3817
  %v5518 = vpop.f32.mrb[0].mxu0
  %v5519 = vadd.f32 0.0, %v5518
  %v5520 = vpop.f32.mrb[0].mxu0
  %v5521 = vadd.f32 0.0, %v5520
  %5522 = vdwg.mxu0
  %5523 = vmatprep.subr.mxu0 %v3660
  %5524 = vmatpush1.msra.mxu0 %v3659
  %5525 = vmatprep.subr.mxu0 %v3711
  %5526 = vmatpush1.msra.mxu0 %v3710
  %5527 = vmatprep.subr.mxu0 %v3762
  %5528 = vmatpush1.msra.mxu0 %v3761
  %5529 = vmatprep.subr.mxu0 %v3813
  %5530 = vmatpush1.msra.mxu0 %v3812
  %5531 = vmatprep.subr.mxu0 0.0
  %5532 = vmatpush1.msra.mxu0 0.0
  %5533 = vmatprep.subr.mxu0 0.0
  %5534 = vmatpush1.msra.mxu0 0.0
  %5535 = vmatprep.subr.mxu0 0.0
  %5536 = vmatpush1.msra.mxu0 0.0
  %5537 = vmatprep.subr.mxu0 0.0
  %5538 = vmatpush1.msra.mxu0 0.0
  %5539 = vmatprep.subr.mxu0 0.0
  %5540 = vmatpush1.msra.mxu0 0.0
  %5541 = vmatprep.subr.mxu0 0.0
  %5542 = vmatpush1.msra.mxu0 0.0
  %5543 = vmatprep.subr.mxu0 0.0
  %5544 = vmatpush1.msra.mxu0 0.0
  %5545 = vmatprep.subr.mxu0 0.0
  %5546 = vmatpush1.msra.mxu0 0.0
  %5547 = vmatprep.subr.mxu0 0.0
  %5548 = vmatpush1.msra.mxu0 0.0
  %5549 = vmatprep.subr.mxu0 0.0
  %5550 = vmatpush1.msra.mxu0 0.0
  %5551 = vmatprep.subr.mxu0 0.0
  %5552 = vmatpush1.msra.mxu0 0.0
  %5553 = vmatprep.subr.mxu0 0.0
  %5554 = vmatpush1.msra.mxu0 0.0
  %5555 = vmatprep.subr.mxu0 0.0
  %5556 = vmatpush1.msra.mxu0 0.0
  %5557 = vmatprep.subr.mxu0 0.0
  %5558 = vmatpush1.msra.mxu0 0.0
  %5559 = vmatprep.subr.mxu0 0.0
  %5560 = vmatpush1.msra.mxu0 0.0
  %5561 = vmatprep.subr.mxu0 0.0
  %5562 = vmatpush1.msra.mxu0 0.0
  %5563 = vmatprep.subr.mxu0 0.0
  %5564 = vmatpush1.msra.mxu0 0.0
  %5565 = vmatprep.subr.mxu0 0.0
  %5566 = vmatpush1.msra.mxu0 0.0
  %5567 = vmatprep.subr.mxu0 0.0
  %5568 = vmatpush1.msra.mxu0 0.0
  %5569 = vmatprep.subr.mxu0 0.0
  %5570 = vmatpush1.msra.mxu0 0.0
  %5571 = vmatprep.subr.mxu0 0.0
  %5572 = vmatpush1.msra.mxu0 0.0
  %5573 = vmatprep.subr.mxu0 0.0
  %5574 = vmatpush1.msra.mxu0 0.0
  %5575 = vmatprep.subr.mxu0 0.0
  %5576 = vmatpush1.msra.mxu0 0.0
  %5577 = vmatprep.subr.mxu0 0.0
  %5578 = vmatpush1.msra.mxu0 0.0
  %5579 = vmatprep.subr.mxu0 0.0
  %5580 = vmatpush1.msra.mxu0 0.0
  %5581 = vmatprep.subr.mxu0 0.0
  %5582 = vmatpush1.msra.mxu0 0.0
  %5583 = vmatprep.subr.mxu0 0.0
  %5584 = vmatpush1.msra.mxu0 0.0
  %5585 = vmatprep.subr.mxu0 0.0
  %5586 = vmatpush1.msra.mxu0 0.0
  %5587 = vmatprep.mubr.f32.mxu0 0.0
  %5588 = vmatmul.mubr.f32.gmra.mrb[0].mxu0 %v3817
  %v5589 = vpop.f32.mrb[0].mxu0
  %v5590 = vadd.f32 0.0, %v5589
  %v5591 = vpop.f32.mrb[0].mxu0
  %v5592 = vadd.f32 0.0, %v5591
  %5593 = vdwg.mxu0
  %5594 = vmatprep.subr.mxu0 0.0
  %5595 = vmatpush1.msra.mxu0 %v3661
  %5596 = vmatprep.subr.mxu0 0.0
  %5597 = vmatpush1.msra.mxu0 %v3712
  %5598 = vmatprep.subr.mxu0 0.0
  %5599 = vmatpush1.msra.mxu0 %v3763
  %5600 = vmatprep.subr.mxu0 0.0
  %5601 = vmatpush1.msra.mxu0 %v3814
  %5602 = vmatprep.subr.mxu0 0.0
  %5603 = vmatpush1.msra.mxu0 0.0
  %5604 = vmatprep.subr.mxu0 0.0
  %5605 = vmatpush1.msra.mxu0 0.0
  %5606 = vmatprep.subr.mxu0 0.0
  %5607 = vmatpush1.msra.mxu0 0.0
  %5608 = vmatprep.subr.mxu0 0.0
  %5609 = vmatpush1.msra.mxu0 0.0
  %5610 = vmatprep.subr.mxu0 0.0
  %5611 = vmatpush1.msra.mxu0 0.0
  %5612 = vmatprep.subr.mxu0 0.0
  %5613 = vmatpush1.msra.mxu0 0.0
  %5614 = vmatprep.subr.mxu0 0.0
  %5615 = vmatpush1.msra.mxu0 0.0
  %5616 = vmatprep.subr.mxu0 0.0
  %5617 = vmatpush1.msra.mxu0 0.0
  %5618 = vmatprep.subr.mxu0 0.0
  %5619 = vmatpush1.msra.mxu0 0.0
  %5620 = vmatprep.subr.mxu0 0.0
  %5621 = vmatpush1.msra.mxu0 0.0
  %5622 = vmatprep.subr.mxu0 0.0
  %5623 = vmatpush1.msra.mxu0 0.0
  %5624 = vmatprep.subr.mxu0 0.0
  %5625 = vmatpush1.msra.mxu0 0.0
  %5626 = vmatprep.subr.mxu0 0.0
  %5627 = vmatpush1.msra.mxu0 0.0
  %5628 = vmatprep.subr.mxu0 0.0
  %5629 = vmatpush1.msra.mxu0 0.0
  %5630 = vmatprep.subr.mxu0 0.0
  %5631 = vmatpush1.msra.mxu0 0.0
  %5632 = vmatprep.subr.mxu0 0.0
  %5633 = vmatpush1.msra.mxu0 0.0
  %5634 = vmatprep.subr.mxu0 0.0
  %5635 = vmatpush1.msra.mxu0 0.0
  %5636 = vmatprep.subr.mxu0 0.0
  %5637 = vmatpush1.msra.mxu0 0.0
  %5638 = vmatprep.subr.mxu0 0.0
  %5639 = vmatpush1.msra.mxu0 0.0
  %5640 = vmatprep.subr.mxu0 0.0
  %5641 = vmatpush1.msra.mxu0 0.0
  %5642 = vmatprep.subr.mxu0 0.0
  %5643 = vmatpush1.msra.mxu0 0.0
  %5644 = vmatprep.subr.mxu0 0.0
  %5645 = vmatpush1.msra.mxu0 0.0
  %5646 = vmatprep.subr.mxu0 0.0
  %5647 = vmatpush1.msra.mxu0 0.0
  %5648 = vmatprep.subr.mxu0 0.0
  %5649 = vmatpush1.msra.mxu0 0.0
  %5650 = vmatprep.subr.mxu0 0.0
  %5651 = vmatpush1.msra.mxu0 0.0
  %5652 = vmatprep.subr.mxu0 0.0
  %5653 = vmatpush1.msra.mxu0 0.0
  %5654 = vmatprep.subr.mxu0 0.0
  %5655 = vmatpush1.msra.mxu0 0.0
  %5656 = vmatprep.subr.mxu0 0.0
  %5657 = vmatpush1.msra.mxu0 0.0
  %5658 = vmatprep.mubr.f32.mxu0 0.0
  %5659 = vmatmul.mubr.f32.gmra.mrb[0].mxu0 %v3817
  %v5660 = vpop.f32.mrb[0].mxu0
  %v5661 = vadd.f32 0.0, %v5660
  %v5662 = vpop.f32.mrb[0].mxu0
  %5663 = vdwg.mxu0
  %v5664 = vld [vmem:[#allocation3] sm:$0x1]
  %5666 = vset.pattern.permute.xlu0 0
  %5667 = vperm.xlu0 %5666, %v5664
  %v5668 = vpop.permute.xlu0 %5667
  %v5670 = vlaneseq
  %v5671 = vshrl.u32 %v5670, 7
  %v5672 = vsub.s32 0, %v5671
  %v5673 = vrot.slane %v5668, %v5672
  %v5674 = vadd.f32 %v3886, %v5673
  %v5675 = vadd.f32 %v3888, %v5673
  %v5676 = vadd.f32 %v3957, %v5673
  %v5677 = vadd.f32 %v3959, %v5673
  %v5678 = vadd.f32 %v4028, %v5673
  %v5679 = vadd.f32 %v4030, %v5673
  %v5680 = vadd.f32 %v4099, %v5673
  %v5681 = vadd.f32 %v4101, %v5673
  %v5682 = vadd.f32 %v4170, %v5673
  %v5683 = vadd.f32 %v4172, %v5673
  %v5684 = vadd.f32 %v4241, %v5673
  %v5685 = vadd.f32 %v4243, %v5673
  %v5686 = vadd.f32 %v4312, %v5673
  %v5687 = vadd.f32 %v4314, %v5673
  %v5688 = vadd.f32 %v4383, %v5673
  %v5689 = vadd.f32 %v4385, %v5673
  %v5690 = vadd.f32 %v4454, %v5673
  %v5691 = vadd.f32 %v4456, %v5673
  %v5692 = vadd.f32 %v4525, %v5673
  %v5693 = vadd.f32 %v4527, %v5673
  %v5694 = vadd.f32 %v4596, %v5673
  %v5695 = vadd.f32 %v4598, %v5673
  %v5696 = vadd.f32 %v4667, %v5673
  %v5697 = vadd.f32 %v4669, %v5673
  %v5698 = vadd.f32 %v4738, %v5673
  %v5699 = vadd.f32 %v4740, %v5673
  %v5700 = vadd.f32 %v4809, %v5673
  %v5701 = vadd.f32 %v4811, %v5673
  %v5702 = vadd.f32 %v4880, %v5673
  %v5703 = vadd.f32 %v4882, %v5673
  %v5704 = vadd.f32 %v4951, %v5673
  %v5705 = vadd.f32 %v4953, %v5673
  %v5706 = vadd.f32 %v5022, %v5673
  %v5707 = vadd.f32 %v5024, %v5673
  %v5708 = vadd.f32 %v5093, %v5673
  %v5709 = vadd.f32 %v5095, %v5673
  %v5710 = vadd.f32 %v5164, %v5673
  %v5711 = vadd.f32 %v5166, %v5673
  %v5712 = vadd.f32 %v5235, %v5673
  %v5713 = vadd.f32 %v5237, %v5673
  %v5714 = vadd.f32 %v5306, %v5673
  %v5715 = vadd.f32 %v5308, %v5673
  %v5716 = vadd.f32 %v5377, %v5673
  %v5717 = vadd.f32 %v5379, %v5673
  %v5718 = vadd.f32 %v5448, %v5673
  %v5719 = vadd.f32 %v5450, %v5673
  %v5720 = vadd.f32 %v5519, %v5673
  %v5721 = vadd.f32 %v5521, %v5673
  %v5722 = vadd.f32 %v5590, %v5673
  %v5723 = vadd.f32 %v5592, %v5673
  %v5724 = vadd.f32 %v5661, %v5673
  %vm5725 = vcmp.gt.f32.partialorder %v5674, 0.0
  %vm5726 = vcmp.gt.f32.partialorder %v5675, 0.0
  %vm5727 = vcmp.gt.f32.partialorder %v5676, 0.0
  %vm5728 = vcmp.gt.f32.partialorder %v5677, 0.0
  %vm5729 = vcmp.gt.f32.partialorder %v5678, 0.0
  %vm5730 = vcmp.gt.f32.partialorder %v5679, 0.0
  %vm5731 = vcmp.gt.f32.partialorder %v5680, 0.0
  %vm5732 = vcmp.gt.f32.partialorder %v5681, 0.0
  %vm5733 = vcmp.gt.f32.partialorder %v5682, 0.0
  %vm5734 = vcmp.gt.f32.partialorder %v5683, 0.0
  %vm5735 = vcmp.gt.f32.partialorder %v5684, 0.0
  %vm5736 = vcmp.gt.f32.partialorder %v5685, 0.0
  %vm5737 = vcmp.gt.f32.partialorder %v5686, 0.0
  %vm5738 = vcmp.gt.f32.partialorder %v5687, 0.0
  %vm5739 = vcmp.gt.f32.partialorder %v5688, 0.0
  %vm5740 = vcmp.gt.f32.partialorder %v5689, 0.0
  %vm5741 = vcmp.gt.f32.partialorder %v5690, 0.0
  %vm5742 = vcmp.gt.f32.partialorder %v5691, 0.0
  %vm5743 = vcmp.gt.f32.partialorder %v5692, 0.0
  %vm5744 = vcmp.gt.f32.partialorder %v5693, 0.0
  %vm5745 = vcmp.gt.f32.partialorder %v5694, 0.0
  %vm5746 = vcmp.gt.f32.partialorder %v5695, 0.0
  %vm5747 = vcmp.gt.f32.partialorder %v5696, 0.0
  %vm5748 = vcmp.gt.f32.partialorder %v5697, 0.0
  %vm5749 = vcmp.gt.f32.partialorder %v5698, 0.0
  %vm5750 = vcmp.gt.f32.partialorder %v5699, 0.0
  %vm5751 = vcmp.gt.f32.partialorder %v5700, 0.0
  %vm5752 = vcmp.gt.f32.partialorder %v5701, 0.0
  %vm5753 = vcmp.gt.f32.partialorder %v5702, 0.0
  %vm5754 = vcmp.gt.f32.partialorder %v5703, 0.0
  %vm5755 = vcmp.gt.f32.partialorder %v5704, 0.0
  %vm5756 = vcmp.gt.f32.partialorder %v5705, 0.0
  %vm5757 = vcmp.gt.f32.partialorder %v5706, 0.0
  %vm5758 = vcmp.gt.f32.partialorder %v5707, 0.0
  %vm5759 = vcmp.gt.f32.partialorder %v5708, 0.0
  %vm5760 = vcmp.gt.f32.partialorder %v5709, 0.0
  %vm5761 = vcmp.gt.f32.partialorder %v5710, 0.0
  %vm5762 = vcmp.gt.f32.partialorder %v5711, 0.0
  %vm5763 = vcmp.gt.f32.partialorder %v5712, 0.0
  %vm5764 = vcmp.gt.f32.partialorder %v5713, 0.0
  %vm5765 = vcmp.gt.f32.partialorder %v5714, 0.0
  %vm5766 = vcmp.gt.f32.partialorder %v5715, 0.0
  %vm5767 = vcmp.gt.f32.partialorder %v5716, 0.0
  %vm5768 = vcmp.gt.f32.partialorder %v5717, 0.0
  %vm5769 = vcmp.gt.f32.partialorder %v5718, 0.0
  %vm5770 = vcmp.gt.f32.partialorder %v5719, 0.0
  %vm5771 = vcmp.gt.f32.partialorder %v5720, 0.0
  %vm5772 = vcmp.gt.f32.partialorder %v5721, 0.0
  %vm5773 = vcmp.gt.f32.partialorder %v5722, 0.0
  %vm5774 = vcmp.gt.f32.partialorder %v5723, 0.0
  %vm5775 = vcmp.gt.f32.partialorder %v5724, 0.0
  %v5776 = vmin.f32 %v5674, 0.0
  %v5777 = vmin.f32 %v5675, 0.0
  %v5778 = vmin.f32 %v5676, 0.0
  %v5779 = vmin.f32 %v5677, 0.0
  %v5780 = vmin.f32 %v5678, 0.0
  %v5781 = vmin.f32 %v5679, 0.0
  %v5782 = vmin.f32 %v5680, 0.0
  %v5783 = vmin.f32 %v5681, 0.0
  %v5784 = vmin.f32 %v5682, 0.0
  %v5785 = vmin.f32 %v5683, 0.0
  %v5786 = vmin.f32 %v5684, 0.0
  %v5787 = vmin.f32 %v5685, 0.0
  %v5788 = vmin.f32 %v5686, 0.0
  %v5789 = vmin.f32 %v5687, 0.0
  %v5790 = vmin.f32 %v5688, 0.0
  %v5791 = vmin.f32 %v5689, 0.0
  %v5792 = vmin.f32 %v5690, 0.0
  %v5793 = vmin.f32 %v5691, 0.0
  %v5794 = vmin.f32 %v5692, 0.0
  %v5795 = vmin.f32 %v5693, 0.0
  %v5796 = vmin.f32 %v5694, 0.0
  %v5797 = vmin.f32 %v5695, 0.0
  %v5798 = vmin.f32 %v5696, 0.0
  %v5799 = vmin.f32 %v5697, 0.0
  %v5800 = vmin.f32 %v5698, 0.0
  %v5801 = vmin.f32 %v5699, 0.0
  %v5802 = vmin.f32 %v5700, 0.0
  %v5803 = vmin.f32 %v5701, 0.0
  %v5804 = vmin.f32 %v5702, 0.0
  %v5805 = vmin.f32 %v5703, 0.0
  %v5806 = vmin.f32 %v5704, 0.0
  %v5807 = vmin.f32 %v5705, 0.0
  %v5808 = vmin.f32 %v5706, 0.0
  %v5809 = vmin.f32 %v5707, 0.0
  %v5810 = vmin.f32 %v5708, 0.0
  %v5811 = vmin.f32 %v5709, 0.0
  %v5812 = vmin.f32 %v5710, 0.0
  %v5813 = vmin.f32 %v5711, 0.0
  %v5814 = vmin.f32 %v5712, 0.0
  %v5815 = vmin.f32 %v5713, 0.0
  %v5816 = vmin.f32 %v5714, 0.0
  %v5817 = vmin.f32 %v5715, 0.0
  %v5818 = vmin.f32 %v5716, 0.0
  %v5819 = vmin.f32 %v5717, 0.0
  %v5820 = vmin.f32 %v5718, 0.0
  %v5821 = vmin.f32 %v5719, 0.0
  %v5822 = vmin.f32 %v5720, 0.0
  %v5823 = vmin.f32 %v5721, 0.0
  %v5824 = vmin.f32 %v5722, 0.0
  %v5825 = vmin.f32 %v5723, 0.0
  %v5826 = vmin.f32 %v5724, 0.0
  %v5827 = vmul.f32 %v5776, 1.442695
  %v5828 = vpow.pop %v5827
  %v5829 = vmul.f32 %v5777, 1.442695
  %v5830 = vpow.pop %v5829
  %v5831 = vmul.f32 %v5778, 1.442695
  %v5832 = vpow.pop %v5831
  %v5833 = vmul.f32 %v5779, 1.442695
  %v5834 = vpow.pop %v5833
  %v5835 = vmul.f32 %v5780, 1.442695
  %v5836 = vpow.pop %v5835
  %v5837 = vmul.f32 %v5781, 1.442695
  %v5838 = vpow.pop %v5837
  %v5839 = vmul.f32 %v5782, 1.442695
  %v5840 = vpow.pop %v5839
  %v5841 = vmul.f32 %v5783, 1.442695
  %v5842 = vpow.pop %v5841
  %v5843 = vmul.f32 %v5784, 1.442695
  %v5844 = vpow.pop %v5843
  %v5845 = vmul.f32 %v5785, 1.442695
  %v5846 = vpow.pop %v5845
  %v5847 = vmul.f32 %v5786, 1.442695
  %v5848 = vpow.pop %v5847
  %v5849 = vmul.f32 %v5787, 1.442695
  %v5850 = vpow.pop %v5849
  %v5851 = vmul.f32 %v5788, 1.442695
  %v5852 = vpow.pop %v5851
  %v5853 = vmul.f32 %v5789, 1.442695
  %v5854 = vpow.pop %v5853
  %v5855 = vmul.f32 %v5790, 1.442695
  %v5856 = vpow.pop %v5855
  %v5857 = vmul.f32 %v5791, 1.442695
  %v5858 = vpow.pop %v5857
  %v5859 = vmul.f32 %v5792, 1.442695
  %v5860 = vpow.pop %v5859
  %v5861 = vmul.f32 %v5793, 1.442695
  %v5862 = vpow.pop %v5861
  %v5863 = vmul.f32 %v5794, 1.442695
  %v5864 = vpow.pop %v5863
  %v5865 = vmul.f32 %v5795, 1.442695
  %v5866 = vpow.pop %v5865
  %v5867 = vmul.f32 %v5796, 1.442695
  %v5868 = vpow.pop %v5867
  %v5869 = vmul.f32 %v5797, 1.442695
  %v5870 = vpow.pop %v5869
  %v5871 = vmul.f32 %v5798, 1.442695
  %v5872 = vpow.pop %v5871
  %v5873 = vmul.f32 %v5799, 1.442695
  %v5874 = vpow.pop %v5873
  %v5875 = vmul.f32 %v5800, 1.442695
  %v5876 = vpow.pop %v5875
  %v5877 = vmul.f32 %v5801, 1.442695
  %v5878 = vpow.pop %v5877
  %v5879 = vmul.f32 %v5802, 1.442695
  %v5880 = vpow.pop %v5879
  %v5881 = vmul.f32 %v5803, 1.442695
  %v5882 = vpow.pop %v5881
  %v5883 = vmul.f32 %v5804, 1.442695
  %v5884 = vpow.pop %v5883
  %v5885 = vmul.f32 %v5805, 1.442695
  %v5886 = vpow.pop %v5885
  %v5887 = vmul.f32 %v5806, 1.442695
  %v5888 = vpow.pop %v5887
  %v5889 = vmul.f32 %v5807, 1.442695
  %v5890 = vpow.pop %v5889
  %v5891 = vmul.f32 %v5808, 1.442695
  %v5892 = vpow.pop %v5891
  %v5893 = vmul.f32 %v5809, 1.442695
  %v5894 = vpow.pop %v5893
  %v5895 = vmul.f32 %v5810, 1.442695
  %v5896 = vpow.pop %v5895
  %v5897 = vmul.f32 %v5811, 1.442695
  %v5898 = vpow.pop %v5897
  %v5899 = vmul.f32 %v5812, 1.442695
  %v5900 = vpow.pop %v5899
  %v5901 = vmul.f32 %v5813, 1.442695
  %v5902 = vpow.pop %v5901
  %v5903 = vmul.f32 %v5814, 1.442695
  %v5904 = vpow.pop %v5903
  %v5905 = vmul.f32 %v5815, 1.442695
  %v5906 = vpow.pop %v5905
  %v5907 = vmul.f32 %v5816, 1.442695
  %v5908 = vpow.pop %v5907
  %v5909 = vmul.f32 %v5817, 1.442695
  %v5910 = vpow.pop %v5909
  %v5911 = vmul.f32 %v5818, 1.442695
  %v5912 = vpow.pop %v5911
  %v5913 = vmul.f32 %v5819, 1.442695
  %v5914 = vpow.pop %v5913
  %v5915 = vmul.f32 %v5820, 1.442695
  %v5916 = vpow.pop %v5915
  %v5917 = vmul.f32 %v5821, 1.442695
  %v5918 = vpow.pop %v5917
  %v5919 = vmul.f32 %v5822, 1.442695
  %v5920 = vpow.pop %v5919
  %v5921 = vmul.f32 %v5823, 1.442695
  %v5922 = vpow.pop %v5921
  %v5923 = vmul.f32 %v5824, 1.442695
  %v5924 = vpow.pop %v5923
  %v5925 = vmul.f32 %v5825, 1.442695
  %v5926 = vpow.pop %v5925
  %v5927 = vmul.f32 %v5826, 1.442695
  %v5928 = vpow.pop %v5927
  %v5929 = vsub.f32 %v5828, 1.0
  %v5930 = vsub.f32 %v5830, 1.0
  %v5931 = vsub.f32 %v5832, 1.0
  %v5932 = vsub.f32 %v5834, 1.0
  %v5933 = vsub.f32 %v5836, 1.0
  %v5934 = vsub.f32 %v5838, 1.0
  %v5935 = vsub.f32 %v5840, 1.0
  %v5936 = vsub.f32 %v5842, 1.0
  %v5937 = vsub.f32 %v5844, 1.0
  %v5938 = vsub.f32 %v5846, 1.0
  %v5939 = vsub.f32 %v5848, 1.0
  %v5940 = vsub.f32 %v5850, 1.0
  %v5941 = vsub.f32 %v5852, 1.0
  %v5942 = vsub.f32 %v5854, 1.0
  %v5943 = vsub.f32 %v5856, 1.0
  %v5944 = vsub.f32 %v5858, 1.0
  %v5945 = vsub.f32 %v5860, 1.0
  %v5946 = vsub.f32 %v5862, 1.0
  %v5947 = vsub.f32 %v5864, 1.0
  %v5948 = vsub.f32 %v5866, 1.0
  %v5949 = vsub.f32 %v5868, 1.0
  %v5950 = vsub.f32 %v5870, 1.0
  %v5951 = vsub.f32 %v5872, 1.0
  %v5952 = vsub.f32 %v5874, 1.0
  %v5953 = vsub.f32 %v5876, 1.0
  %v5954 = vsub.f32 %v5878, 1.0
  %v5955 = vsub.f32 %v5880, 1.0
  %v5956 = vsub.f32 %v5882, 1.0
  %v5957 = vsub.f32 %v5884, 1.0
  %v5958 = vsub.f32 %v5886, 1.0
  %v5959 = vsub.f32 %v5888, 1.0
  %v5960 = vsub.f32 %v5890, 1.0
  %v5961 = vsub.f32 %v5892, 1.0
  %v5962 = vsub.f32 %v5894, 1.0
  %v5963 = vsub.f32 %v5896, 1.0
  %v5964 = vsub.f32 %v5898, 1.0
  %v5965 = vsub.f32 %v5900, 1.0
  %v5966 = vsub.f32 %v5902, 1.0
  %v5967 = vsub.f32 %v5904, 1.0
  %v5968 = vsub.f32 %v5906, 1.0
  %v5969 = vsub.f32 %v5908, 1.0
  %v5970 = vsub.f32 %v5910, 1.0
  %v5971 = vsub.f32 %v5912, 1.0
  %v5972 = vsub.f32 %v5914, 1.0
  %v5973 = vsub.f32 %v5916, 1.0
  %v5974 = vsub.f32 %v5918, 1.0
  %v5975 = vsub.f32 %v5920, 1.0
  %v5976 = vsub.f32 %v5922, 1.0
  %v5977 = vsub.f32 %v5924, 1.0
  %v5978 = vsub.f32 %v5926, 1.0
  %v5979 = vsub.f32 %v5928, 1.0
  %v5980 = vsel %vm5725, %v5674, %v5929
  %v5981 = vsel %vm5726, %v5675, %v5930
  %v5982 = vsel %vm5727, %v5676, %v5931
  %v5983 = vsel %vm5728, %v5677, %v5932
  %v5984 = vsel %vm5729, %v5678, %v5933
  %v5985 = vsel %vm5730, %v5679, %v5934
  %v5986 = vsel %vm5731, %v5680, %v5935
  %v5987 = vsel %vm5732, %v5681, %v5936
  %v5988 = vsel %vm5733, %v5682, %v5937
  %v5989 = vsel %vm5734, %v5683, %v5938
  %v5990 = vsel %vm5735, %v5684, %v5939
  %v5991 = vsel %vm5736, %v5685, %v5940
  %v5992 = vsel %vm5737, %v5686, %v5941
  %v5993 = vsel %vm5738, %v5687, %v5942
  %v5994 = vsel %vm5739, %v5688, %v5943
  %v5995 = vsel %vm5740, %v5689, %v5944
  %v5996 = vsel %vm5741, %v5690, %v5945
  %v5997 = vsel %vm5742, %v5691, %v5946
  %v5998 = vsel %vm5743, %v5692, %v5947
  %v5999 = vsel %vm5744, %v5693, %v5948
  %v6000 = vsel %vm5745, %v5694, %v5949
  %v6001 = vsel %vm5746, %v5695, %v5950
  %v6002 = vsel %vm5747, %v5696, %v5951
  %v6003 = vsel %vm5748, %v5697, %v5952
  %v6004 = vsel %vm5749, %v5698, %v5953
  %v6005 = vsel %vm5750, %v5699, %v5954
  %v6006 = vsel %vm5751, %v5700, %v5955
  %v6007 = vsel %vm5752, %v5701, %v5956
  %v6008 = vsel %vm5753, %v5702, %v5957
  %v6009 = vsel %vm5754, %v5703, %v5958
  %v6010 = vsel %vm5755, %v5704, %v5959
  %v6011 = vsel %vm5756, %v5705, %v5960
  %v6012 = vsel %vm5757, %v5706, %v5961
  %v6013 = vsel %vm5758, %v5707, %v5962
  %v6014 = vsel %vm5759, %v5708, %v5963
  %v6015 = vsel %vm5760, %v5709, %v5964
  %v6016 = vsel %vm5761, %v5710, %v5965
  %v6017 = vsel %vm5762, %v5711, %v5966
  %v6018 = vsel %vm5763, %v5712, %v5967
  %v6019 = vsel %vm5764, %v5713, %v5968
  %v6020 = vsel %vm5765, %v5714, %v5969
  %v6021 = vsel %vm5766, %v5715, %v5970
  %v6022 = vsel %vm5767, %v5716, %v5971
  %v6023 = vsel %vm5768, %v5717, %v5972
  %v6024 = vsel %vm5769, %v5718, %v5973
  %v6025 = vsel %vm5770, %v5719, %v5974
  %v6026 = vsel %vm5771, %v5720, %v5975
  %v6027 = vsel %vm5772, %v5721, %v5976
  %v6028 = vsel %vm5773, %v5722, %v5977
  %v6029 = vsel %vm5774, %v5723, %v5978
  %v6030 = vsel %vm5775, %v5724, %v5979
  %v6031 = vadd.f32 %v5980, 1.0
  %v6032 = vadd.f32 %v5981, 1.0
  %v6033 = vadd.f32 %v5982, 1.0
  %v6034 = vadd.f32 %v5983, 1.0
  %v6035 = vadd.f32 %v5984, 1.0
  %v6036 = vadd.f32 %v5985, 1.0
  %v6037 = vadd.f32 %v5986, 1.0
  %v6038 = vadd.f32 %v5987, 1.0
  %v6039 = vadd.f32 %v5988, 1.0
  %v6040 = vadd.f32 %v5989, 1.0
  %v6041 = vadd.f32 %v5990, 1.0
  %v6042 = vadd.f32 %v5991, 1.0
  %v6043 = vadd.f32 %v5992, 1.0
  %v6044 = vadd.f32 %v5993, 1.0
  %v6045 = vadd.f32 %v5994, 1.0
  %v6046 = vadd.f32 %v5995, 1.0
  %v6047 = vadd.f32 %v5996, 1.0
  %v6048 = vadd.f32 %v5997, 1.0
  %v6049 = vadd.f32 %v5998, 1.0
  %v6050 = vadd.f32 %v5999, 1.0
  %v6051 = vadd.f32 %v6000, 1.0
  %v6052 = vadd.f32 %v6001, 1.0
  %v6053 = vadd.f32 %v6002, 1.0
  %v6054 = vadd.f32 %v6003, 1.0
  %v6055 = vadd.f32 %v6004, 1.0
  %v6056 = vadd.f32 %v6005, 1.0
  %v6057 = vadd.f32 %v6006, 1.0
  %v6058 = vadd.f32 %v6007, 1.0
  %v6059 = vadd.f32 %v6008, 1.0
  %v6060 = vadd.f32 %v6009, 1.0
  %v6061 = vadd.f32 %v6010, 1.0
  %v6062 = vadd.f32 %v6011, 1.0
  %v6063 = vadd.f32 %v6012, 1.0
  %v6064 = vadd.f32 %v6013, 1.0
  %v6065 = vadd.f32 %v6014, 1.0
  %v6066 = vadd.f32 %v6015, 1.0
  %v6067 = vadd.f32 %v6016, 1.0
  %v6068 = vadd.f32 %v6017, 1.0
  %v6069 = vadd.f32 %v6018, 1.0
  %v6070 = vadd.f32 %v6019, 1.0
  %v6071 = vadd.f32 %v6020, 1.0
  %v6072 = vadd.f32 %v6021, 1.0
  %v6073 = vadd.f32 %v6022, 1.0
  %v6074 = vadd.f32 %v6023, 1.0
  %v6075 = vadd.f32 %v6024, 1.0
  %v6076 = vadd.f32 %v6025, 1.0
  %v6077 = vadd.f32 %v6026, 1.0
  %v6078 = vadd.f32 %v6027, 1.0
  %v6079 = vadd.f32 %v6028, 1.0
  %v6080 = vadd.f32 %v6029, 1.0
  %v6081 = vadd.f32 %v6030, 1.0
  %v6082 = vmul.f32 %v6031, 0.00039215686
  %v6083 = vmul.f32 %v6032, 0.003867576
  %v6084 = vmul.f32 %v6033, 0.007891871
  %v6085 = vmul.f32 %v6034, 0.0117731765
  %v6086 = vmul.f32 %v6035, 0.015619337
  %v6087 = vadd.f32 %v6082, %v6086
  %v6088 = vmul.f32 %v6036, 0.019425694
  %v6089 = vadd.f32 %v6083, %v6088
  %v6090 = vmul.f32 %v6037, 0.023118526
  %v6091 = vadd.f32 %v6084, %v6090
  %v6092 = vmul.f32 %v6038, 0.026765052
  %v6093 = vadd.f32 %v6085, %v6092
  %v6094 = vmul.f32 %v6039, 0.030256184
  %v6095 = vadd.f32 %v6087, %v6094
  %v6096 = vmul.f32 %v6040, 0.033680797
  %v6097 = vadd.f32 %v6089, %v6096
  %v6098 = vmul.f32 %v6041, 0.036917467
  %v6099 = vadd.f32 %v6091, %v6098
  %v6100 = vmul.f32 %v6042, 0.040064972
  %v6101 = vadd.f32 %v6093, %v6100
  %v6102 = vmul.f32 %v6043, 0.042996716
  %v6103 = vadd.f32 %v6095, %v6102
  %v6104 = vmul.f32 %v6044, 0.045817256
  %v6105 = vadd.f32 %v6097, %v6104
  %v6106 = vmul.f32 %v6045, 0.048397843
  %v6107 = vadd.f32 %v6099, %v6106
  %v6108 = vmul.f32 %v6046, 0.05084707
  %v6109 = vadd.f32 %v6101, %v6108
  %v6110 = vmul.f32 %v6047, 0.053035576
  %v6111 = vadd.f32 %v6103, %v6110
  %v6112 = vmul.f32 %v6048, 0.055075146
  %v6113 = vadd.f32 %v6105, %v6112
  %v6114 = vmul.f32 %v6049, 0.056836735
  %v6115 = vadd.f32 %v6107, %v6114
  %v6116 = vmul.f32 %v6050, 0.058434848
  %v6117 = vadd.f32 %v6109, %v6116
  %v6118 = vmul.f32 %v6051, 0.059741344
  %v6119 = vadd.f32 %v6111, %v6118
  %v6120 = vmul.f32 %v6052, 0.0608732
  %v6121 = vadd.f32 %v6113, %v6120
  %v6122 = vmul.f32 %v6053, 0.061703585
  %v6123 = vadd.f32 %v6115, %v6122
  %v6124 = vmul.f32 %v6054, 0.062351763
  %v6125 = vadd.f32 %v6117, %v6124
  %v6126 = vmul.f32 %v6055, 0.0626925
  %v6127 = vadd.f32 %v6119, %v6126
  %v6128 = vmul.f32 %v6056, 0.06284722
  %v6129 = vadd.f32 %v6121, %v6128
  %v6130 = vmul.f32 %v6057, 0.0626925
  %v6131 = vadd.f32 %v6123, %v6130
  %v6132 = vmul.f32 %v6058, 0.062351763
  %v6133 = vadd.f32 %v6125, %v6132
  %v6134 = vmul.f32 %v6059, 0.061703585
  %v6135 = vadd.f32 %v6127, %v6134
  %v6136 = vmul.f32 %v6060, 0.0608732
  %v6137 = vadd.f32 %v6129, %v6136
  %v6138 = vmul.f32 %v6061, 0.059741344
  %v6139 = vadd.f32 %v6131, %v6138
  %v6140 = vmul.f32 %v6062, 0.058434848
  %v6141 = vadd.f32 %v6133, %v6140
  %v6142 = vmul.f32 %v6063, 0.056836735
  %v6143 = vadd.f32 %v6135, %v6142
  %v6144 = vmul.f32 %v6064, 0.055075146
  %v6145 = vadd.f32 %v6137, %v6144
  %v6146 = vmul.f32 %v6065, 0.053035576
  %v6147 = vadd.f32 %v6139, %v6146
  %v6148 = vmul.f32 %v6066, 0.05084707
  %v6149 = vadd.f32 %v6141, %v6148
  %v6150 = vmul.f32 %v6067, 0.048397843
  %v6151 = vadd.f32 %v6143, %v6150
  %v6152 = vmul.f32 %v6068, 0.045817256
  %v6153 = vadd.f32 %v6145, %v6152
  %v6154 = vmul.f32 %v6069, 0.042996716
  %v6155 = vadd.f32 %v6147, %v6154
  %v6156 = vmul.f32 %v6070, 0.040064972
  %v6157 = vadd.f32 %v6149, %v6156
  %v6158 = vmul.f32 %v6071, 0.036917467
  %v6159 = vadd.f32 %v6151, %v6158
  %v6160 = vmul.f32 %v6072, 0.033680797
  %v6161 = vadd.f32 %v6153, %v6160
  %v6162 = vmul.f32 %v6073, 0.030256184
  %v6163 = vadd.f32 %v6155, %v6162
  %v6164 = vmul.f32 %v6074, 0.026765052
  %v6165 = vadd.f32 %v6157, %v6164
  %v6166 = vmul.f32 %v6075, 0.023118526
  %v6167 = vadd.f32 %v6159, %v6166
  %v6168 = vmul.f32 %v6076, 0.019425694
  %v6169 = vadd.f32 %v6161, %v6168
  %v6170 = vmul.f32 %v6077, 0.015619337
  %v6171 = vadd.f32 %v6163, %v6170
  %v6172 = vmul.f32 %v6078, 0.0117731765
  %v6173 = vadd.f32 %v6165, %v6172
  %v6174 = vmul.f32 %v6079, 0.007891871
  %v6175 = vadd.f32 %v6167, %v6174
  %v6176 = vmul.f32 %v6080, 0.003867576
  %v6177 = vadd.f32 %v6169, %v6176
  %v6178 = vmul.f32 %v6081, 0.00039215686
  %v6179 = vadd.f32 %v6171, %v6178
  %v6180 = vadd.f32 %v6175, %v6177
  %v6181 = vadd.f32 %v6180, %v6179
  %v6182 = vadd.f32 %v6181, %v6173
  %v6183 = vmul.f32 %v6182, %v32
  %6184 = vst [vmem:[%s8] sm:$0x1] %v6183
  // Predicated region
  $region34: #{inner_umnn_forward.1} parent=0 // pred_check
    _
  $region35: #{inner_umnn_forward.1} parent=0 // pred_check_branch
    %6186 = sbr.rel (0) target = $region37
  $region36: #{inner_umnn_forward.1} parent=0 // pred_region
    _
  $region37: #{inner_umnn_forward.1} parent=0 // pred_fallthru
    _
  // Predicated region
  $region38: #{inner_umnn_forward.1} parent=0 // pred_check
    _
  $region39: #{inner_umnn_forward.1} parent=0 // pred_check_branch
    %6188 = sbr.rel (0) target = $region41
  $region40: #{inner_umnn_forward.1} parent=0 // pred_region
    _
  $region41: #{inner_umnn_forward.1} parent=0 // pred_fallthru
    _

</llo_original>
